<compile_context>
chip_gen: v7x
topology: tpu7x:2x2x1
jax: 0.10.0
libtpu: 0.0.40
codegen_flags: <defaults>
</compile_context>

<pallas_src>
import functools

import jax
import jax.numpy as jnp
import numpy as np
from jax.experimental import pallas as pl
from jax.experimental.pallas import tpu as pltpu


def _resblock_kernel(x_ref, w1_ref, s1_ref, b1_ref, w2_ref, s2_ref, b2_ref,
                     o_ref, xpad_ref, ypad_ref):
    """One batch *chunk* (nb images) per grid step.

    x_ref  : (nb, H, W, Cin)        raw input block (only input stream of x)
    w1_ref : (9*Cin,  Cout)         conv1 weights, HWIO flattened to (ky,kx,ci)
    w2_ref : (9*Cout, Cout)         conv2 weights, same flattening
    sX/bX  : (1, Cout)              folded BN scale / shift (conv bias included)
    o_ref  : (nb, H, W, Cout)
    xpad   : (nb, H+2, W+2, Cin)    VMEM scratch: zero-padded input
    ypad   : (nb, H+2, W+2, Cout)   VMEM scratch: zero-padded conv1 output
    """
    nb, H, W, cin = x_ref.shape
    cout = o_ref.shape[-1]
    hp, wp = H + 2, W + 2
    M = nb * H * W

    # ---- zero only the 1-pixel border of the padded scratches --------------
    # (interior is fully overwritten below; done every step so the kernel is
    #  correct under megacore "parallel" sharding of the batch axis)
    for ref, c in ((xpad_ref, cin), (ypad_ref, cout)):
        row0 = jnp.zeros((nb, 1, wp, c), jnp.float32)
        col0 = jnp.zeros((nb, hp, 1, c), jnp.float32)
        ref[:, 0:1, :, :] = row0
        ref[:, hp - 1:hp, :, :] = row0
        ref[:, :, 0:1, :] = col0
        ref[:, :, wp - 1:wp, :] = col0

    x = x_ref[...]                                    # single VMEM copy of x
    xpad_ref[:, 1:H + 1, 1:W + 1, :] = x

    def im2col(src_ref, c):
        cols = []
        for ky in range(3):
            for kx in range(3):
                cols.append(src_ref[:, ky:ky + H, kx:kx + W, :].reshape(M, c))
        return jnp.concatenate(cols, axis=1)          # (M, 9*c)

    # ---- conv1 (3x3, stride 1, pad 1): one im2col matmul + BN1 + ReLU ------
    p1 = im2col(xpad_ref, cin)
    y1 = jnp.dot(p1, w1_ref[...], preferred_element_type=jnp.float32)
    y1 = jnp.maximum(y1 * s1_ref[...] + b1_ref[...], 0.0)

    # stage conv1 output into the second zero-padded scratch for conv2
    ypad_ref[:, 1:H + 1, 1:W + 1, :] = y1.reshape(nb, H, W, cout)

    # ---- conv2 (3x3, stride 1, pad 1): one im2col matmul + BN2 -------------
    p2 = im2col(ypad_ref, cout)
    y2 = jnp.dot(p2, w2_ref[...], preferred_element_type=jnp.float32)
    y2 = y2 * s2_ref[...] + b2_ref[...]

    # ---- residual add (identity shortcut) + ReLU ---------------------------
    out = jnp.maximum(y2 + x.reshape(M, cin).astype(jnp.float32), 0.0)
    o_ref[...] = out.reshape(nb, H, W, cout).astype(o_ref.dtype)


@functools.partial(jax.jit, static_argnames=("max_batch_block",))
def residual_block_pallas(x_nchw, w1_hwio, s1, b1, w2_hwio, s2, b2,
                          *, max_batch_block=8):
    """x_nchw: (N, C, H, W) f32. wX_hwio: (3,3,Cin,Cout); sX/bX: (Cout,)."""
    N, C, H, W = x_nchw.shape
    cout = w1_hwio.shape[-1]
    assert C == cout, "identity shortcut requires Cin == Cout (no downsample)"

    # largest divisor of N that is <= max_batch_block (images per grid step)
    nb = 1
    for d in range(1, min(N, max_batch_block) + 1):
        if N % d == 0:
            nb = d

    x = jnp.transpose(x_nchw, (0, 2, 3, 1))           # NCHW -> NHWC
    w1f = w1_hwio.reshape(9 * C, cout)                # (ky,kx,ci) flattened
    w2f = w2_hwio.reshape(9 * cout, cout)
    s1_2d, b1_2d = s1.reshape(1, cout), b1.reshape(1, cout)
    s2_2d, b2_2d = s2.reshape(1, cout), b2.reshape(1, cout)

    out_nhwc = pl.pallas_call(
        _resblock_kernel,
        out_shape=jax.ShapeDtypeStruct((N, H, W, cout), jnp.float32),
        grid_spec=pltpu.PrefetchScalarGridSpec(
            num_scalar_prefetch=0,
            grid=(N // nb,),
            in_specs=[
                pl.BlockSpec((nb, H, W, C), lambda n: (n, 0, 0, 0)),
                pl.BlockSpec((9 * C, cout), lambda n: (0, 0)),
                pl.BlockSpec((1, cout), lambda n: (0, 0)),
                pl.BlockSpec((1, cout), lambda n: (0, 0)),
                pl.BlockSpec((9 * cout, cout), lambda n: (0, 0)),
                pl.BlockSpec((1, cout), lambda n: (0, 0)),
                pl.BlockSpec((1, cout), lambda n: (0, 0)),
            ],
            out_specs=pl.BlockSpec((nb, H, W, cout), lambda n: (n, 0, 0, 0)),
            scratch_shapes=[
                pltpu.VMEM((nb, H + 2, W + 2, C), jnp.float32),
                pltpu.VMEM((nb, H + 2, W + 2, cout), jnp.float32),
            ],
        ),
        compiler_params=pltpu.CompilerParams(
            dimension_semantics=("parallel",)),       # batch chunks independent
    )(x, w1f, s1_2d, b1_2d, w2f, s2_2d, b2_2d)

    return jnp.transpose(out_nhwc, (0, 3, 1, 2))      # NHWC -> NCHW


# ------------------------- pure-JAX reference --------------------------------
def _ref_residual_block(x, w1_oihw, cb1, g1, be1, m1, v1,
                        w2_oihw, cb2, g2, be2, m2, v2, eps=1e-5):
    def conv(inp, w, b):
        y = jax.lax.conv_general_dilated(
            inp, w, window_strides=(1, 1), padding=((1, 1), (1, 1)),
            dimension_numbers=("NCHW", "OIHW", "NCHW"))
        return y + b[None, :, None, None]

    def bn(inp, g, be, m, v):
        return (g[None, :, None, None] * (inp - m[None, :, None, None])
                / jnp.sqrt(v[None, :, None, None] + eps)
                + be[None, :, None, None])

    out = jax.nn.relu(bn(conv(x, w1_oihw, cb1), g1, be1, m1, v1))
    out = bn(conv(out, w2_oihw, cb2), g2, be2, m2, v2)
    return jax.nn.relu(out + x)


def _fold_bn(conv_bias, gamma, beta, mean, var, eps=1e-5):
    scale = gamma / jnp.sqrt(var + eps)
    shift = scale * (conv_bias - mean) + beta
    return scale, shift


if __name__ == "__main__":
    N, C, H, W = 2, 4, 16, 16   # in_channels == out_channels, stride=1, no downsample
    key = jax.random.PRNGKey(0)
    ks = jax.random.split(key, 16)

    x = jax.random.normal(ks[0], (N, C, H, W), jnp.float32)

    # conv1 / conv2 parameters (PyTorch weight layout OIHW) + BN parameters
    w1_oihw = 0.1 * jax.random.normal(ks[1], (C, C, 3, 3), jnp.float32)
    cb1 = 0.05 * jax.random.normal(ks[2], (C,), jnp.float32)
    g1 = 0.5 + jax.random.uniform(ks[3], (C,), jnp.float32)
    be1 = 0.1 * jax.random.normal(ks[4], (C,), jnp.float32)
    m1 = 0.1 * jax.random.normal(ks[5], (C,), jnp.float32)
    v1 = 0.5 + jax.random.uniform(ks[6], (C,), jnp.float32)

    w2_oihw = 0.1 * jax.random.normal(ks[7], (C, C, 3, 3), jnp.float32)
    cb2 = 0.05 * jax.random.normal(ks[8], (C,), jnp.float32)
    g2 = 0.5 + jax.random.uniform(ks[9], (C,), jnp.float32)
    be2 = 0.1 * jax.random.normal(ks[10], (C,), jnp.float32)
    m2 = 0.1 * jax.random.normal(ks[11], (C,), jnp.float32)
    v2 = 0.5 + jax.random.uniform(ks[12], (C,), jnp.float32)

    # kernel-side parameters: HWIO weights + folded BN scale/shift
    w1_hwio = jnp.transpose(w1_oihw, (2, 3, 1, 0))
    w2_hwio = jnp.transpose(w2_oihw, (2, 3, 1, 0))
    s1, b1 = _fold_bn(cb1, g1, be1, m1, v1)
    s2, b2 = _fold_bn(cb2, g2, be2, m2, v2)

    out = residual_block_pallas(x, w1_hwio, s1, b1, w2_hwio, s2, b2)
    out = jax.block_until_ready(out)

    ref = _ref_residual_block(x, w1_oihw, cb1, g1, be1, m1, v1,
                              w2_oihw, cb2, g2, be2, m2, v2)
    np.testing.assert_allclose(np.asarray(out), np.asarray(ref),
                               rtol=1e-4, atol=1e-4)
    print("KERNEL_OK")
</pallas_src>

<mosaic_0001>
module attributes {stable_mosaic.version = 11 : i64} {
  func.func @_resblock_kernel(%arg0: i32, %arg1: memref<2x16x16x4xf32, #tpu.memory_space<vmem>>, %arg2: memref<36x4xf32, #tpu.memory_space<vmem>>, %arg3: memref<1x4xf32, #tpu.memory_space<vmem>>, %arg4: memref<1x4xf32, #tpu.memory_space<vmem>>, %arg5: memref<36x4xf32, #tpu.memory_space<vmem>>, %arg6: memref<1x4xf32, #tpu.memory_space<vmem>>, %arg7: memref<1x4xf32, #tpu.memory_space<vmem>>, %arg8: memref<2x16x16x4xf32, #tpu.memory_space<vmem>>, %arg9: memref<2x18x18x4xf32, #tpu.memory_space<vmem>>, %arg10: memref<2x18x18x4xf32, #tpu.memory_space<vmem>>) attributes {dimension_semantics = [#tpu.dimension_semantics<parallel>], iteration_bounds = array<i64: 1>, scalar_prefetch = 0 : i64, scratch_operands = 2 : i64, tpu.core_type = #tpu.core_type<tc>, window_params = [{transform_indices = @transform_0, window_bounds = array<i64: 2, 16, 16, 4>}, {pipeline_mode = #tpu.pipeline_mode<synchronous>, transform_indices = @transform_1, window_bounds = array<i64: 36, 4>}, {pipeline_mode = #tpu.pipeline_mode<synchronous>, transform_indices = @transform_2, window_bounds = array<i64: 1, 4>}, {pipeline_mode = #tpu.pipeline_mode<synchronous>, transform_indices = @transform_3, window_bounds = array<i64: 1, 4>}, {pipeline_mode = #tpu.pipeline_mode<synchronous>, transform_indices = @transform_4, window_bounds = array<i64: 36, 4>}, {pipeline_mode = #tpu.pipeline_mode<synchronous>, transform_indices = @transform_5, window_bounds = array<i64: 1, 4>}, {pipeline_mode = #tpu.pipeline_mode<synchronous>, transform_indices = @transform_6, window_bounds = array<i64: 1, 4>}, {transform_indices = @transform_7, window_bounds = array<i64: 2, 16, 16, 4>}]} {
    %cst = arith.constant 0.000000e+00 : f32
    %0 = vector.broadcast %cst : f32 to vector<2x1x18x4xf32>
    %cst_0 = arith.constant 0.000000e+00 : f32
    %1 = vector.broadcast %cst_0 : f32 to vector<2x18x1x4xf32>
    %c0 = arith.constant 0 : index
    %c0_1 = arith.constant 0 : index
    %c0_2 = arith.constant 0 : index
    %c0_3 = arith.constant 0 : index
    %2 = vector.load %arg9[%c0, %c0_1, %c0_2, %c0_3] : memref<2x18x18x4xf32, #tpu.memory_space<vmem>>, vector<2x1x18x4xf32>
    tpu.vector_store %arg9[%c0, %c0_1, %c0_2, %c0_3], %0 {strides = array<i32>} : memref<2x18x18x4xf32, #tpu.memory_space<vmem>>, vector<2x1x18x4xf32>,
    %c0_4 = arith.constant 0 : index
    %c17 = arith.constant 17 : index
    %c0_5 = arith.constant 0 : index
    %c0_6 = arith.constant 0 : index
    %3 = vector.load %arg9[%c0_4, %c17, %c0_5, %c0_6] : memref<2x18x18x4xf32, #tpu.memory_space<vmem>>, vector<2x1x18x4xf32>
    tpu.vector_store %arg9[%c0_4, %c17, %c0_5, %c0_6], %0 {strides = array<i32>} : memref<2x18x18x4xf32, #tpu.memory_space<vmem>>, vector<2x1x18x4xf32>,
    %c0_7 = arith.constant 0 : index
    %c0_8 = arith.constant 0 : index
    %c0_9 = arith.constant 0 : index
    %c0_10 = arith.constant 0 : index
    %4 = vector.load %arg9[%c0_7, %c0_8, %c0_9, %c0_10] : memref<2x18x18x4xf32, #tpu.memory_space<vmem>>, vector<2x18x1x4xf32>
    tpu.vector_store %arg9[%c0_7, %c0_8, %c0_9, %c0_10], %1 {strides = array<i32>} : memref<2x18x18x4xf32, #tpu.memory_space<vmem>>, vector<2x18x1x4xf32>,
    %c0_11 = arith.constant 0 : index
    %c0_12 = arith.constant 0 : index
    %c17_13 = arith.constant 17 : index
    %c0_14 = arith.constant 0 : index
    %5 = vector.load %arg9[%c0_11, %c0_12, %c17_13, %c0_14] : memref<2x18x18x4xf32, #tpu.memory_space<vmem>>, vector<2x18x1x4xf32>
    tpu.vector_store %arg9[%c0_11, %c0_12, %c17_13, %c0_14], %1 {strides = array<i32>} : memref<2x18x18x4xf32, #tpu.memory_space<vmem>>, vector<2x18x1x4xf32>,
    %cst_15 = arith.constant 0.000000e+00 : f32
    %6 = vector.broadcast %cst_15 : f32 to vector<2x1x18x4xf32>
    %cst_16 = arith.constant 0.000000e+00 : f32
    %7 = vector.broadcast %cst_16 : f32 to vector<2x18x1x4xf32>
    %c0_17 = arith.constant 0 : index
    %c0_18 = arith.constant 0 : index
    %c0_19 = arith.constant 0 : index
    %c0_20 = arith.constant 0 : index
    %8 = vector.load %arg10[%c0_17, %c0_18, %c0_19, %c0_20] : memref<2x18x18x4xf32, #tpu.memory_space<vmem>>, vector<2x1x18x4xf32>
    tpu.vector_store %arg10[%c0_17, %c0_18, %c0_19, %c0_20], %6 {strides = array<i32>} : memref<2x18x18x4xf32, #tpu.memory_space<vmem>>, vector<2x1x18x4xf32>,
    %c0_21 = arith.constant 0 : index
    %c17_22 = arith.constant 17 : index
    %c0_23 = arith.constant 0 : index
    %c0_24 = arith.constant 0 : index
    %9 = vector.load %arg10[%c0_21, %c17_22, %c0_23, %c0_24] : memref<2x18x18x4xf32, #tpu.memory_space<vmem>>, vector<2x1x18x4xf32>
    tpu.vector_store %arg10[%c0_21, %c17_22, %c0_23, %c0_24], %6 {strides = array<i32>} : memref<2x18x18x4xf32, #tpu.memory_space<vmem>>, vector<2x1x18x4xf32>,
    %c0_25 = arith.constant 0 : index
    %c0_26 = arith.constant 0 : index
    %c0_27 = arith.constant 0 : index
    %c0_28 = arith.constant 0 : index
    %10 = vector.load %arg10[%c0_25, %c0_26, %c0_27, %c0_28] : memref<2x18x18x4xf32, #tpu.memory_space<vmem>>, vector<2x18x1x4xf32>
    tpu.vector_store %arg10[%c0_25, %c0_26, %c0_27, %c0_28], %7 {strides = array<i32>} : memref<2x18x18x4xf32, #tpu.memory_space<vmem>>, vector<2x18x1x4xf32>,
    %c0_29 = arith.constant 0 : index
    %c0_30 = arith.constant 0 : index
    %c17_31 = arith.constant 17 : index
    %c0_32 = arith.constant 0 : index
    %11 = vector.load %arg10[%c0_29, %c0_30, %c17_31, %c0_32] : memref<2x18x18x4xf32, #tpu.memory_space<vmem>>, vector<2x18x1x4xf32>
    tpu.vector_store %arg10[%c0_29, %c0_30, %c17_31, %c0_32], %7 {strides = array<i32>} : memref<2x18x18x4xf32, #tpu.memory_space<vmem>>, vector<2x18x1x4xf32>,
    %c0_33 = arith.constant 0 : index
    %c0_34 = arith.constant 0 : index
    %c0_35 = arith.constant 0 : index
    %c0_36 = arith.constant 0 : index
    %12 = vector.load %arg1[%c0_33, %c0_34, %c0_35, %c0_36] : memref<2x16x16x4xf32, #tpu.memory_space<vmem>>, vector<2x16x16x4xf32>
    %c0_37 = arith.constant 0 : index
    %c1 = arith.constant 1 : index
    %c1_38 = arith.constant 1 : index
    %c0_39 = arith.constant 0 : index
    %13 = vector.load %arg9[%c0_37, %c1, %c1_38, %c0_39] : memref<2x18x18x4xf32, #tpu.memory_space<vmem>>, vector<2x16x16x4xf32>
    tpu.vector_store %arg9[%c0_37, %c1, %c1_38, %c0_39], %12 {strides = array<i32>} : memref<2x18x18x4xf32, #tpu.memory_space<vmem>>, vector<2x16x16x4xf32>,
    %c0_40 = arith.constant 0 : index
    %c0_41 = arith.constant 0 : index
    %c0_42 = arith.constant 0 : index
    %c0_43 = arith.constant 0 : index
    %14 = vector.load %arg9[%c0_40, %c0_41, %c0_42, %c0_43] : memref<2x18x18x4xf32, #tpu.memory_space<vmem>>, vector<2x16x16x4xf32>
    %15 = vector.shape_cast %14 : vector<2x16x16x4xf32> to vector<512x4xf32>
    %c0_44 = arith.constant 0 : index
    %c0_45 = arith.constant 0 : index
    %c1_46 = arith.constant 1 : index
    %c0_47 = arith.constant 0 : index
    %16 = vector.load %arg9[%c0_44, %c0_45, %c1_46, %c0_47] : memref<2x18x18x4xf32, #tpu.memory_space<vmem>>, vector<2x16x16x4xf32>
    %17 = vector.shape_cast %16 : vector<2x16x16x4xf32> to vector<512x4xf32>
    %c0_48 = arith.constant 0 : index
    %c0_49 = arith.constant 0 : index
    %c2 = arith.constant 2 : index
    %c0_50 = arith.constant 0 : index
    %18 = vector.load %arg9[%c0_48, %c0_49, %c2, %c0_50] : memref<2x18x18x4xf32, #tpu.memory_space<vmem>>, vector<2x16x16x4xf32>
    %19 = vector.shape_cast %18 : vector<2x16x16x4xf32> to vector<512x4xf32>
    %c0_51 = arith.constant 0 : index
    %c1_52 = arith.constant 1 : index
    %c0_53 = arith.constant 0 : index
    %c0_54 = arith.constant 0 : index
    %20 = vector.load %arg9[%c0_51, %c1_52, %c0_53, %c0_54] : memref<2x18x18x4xf32, #tpu.memory_space<vmem>>, vector<2x16x16x4xf32>
    %21 = vector.shape_cast %20 : vector<2x16x16x4xf32> to vector<512x4xf32>
    %c0_55 = arith.constant 0 : index
    %c1_56 = arith.constant 1 : index
    %c1_57 = arith.constant 1 : index
    %c0_58 = arith.constant 0 : index
    %22 = vector.load %arg9[%c0_55, %c1_56, %c1_57, %c0_58] : memref<2x18x18x4xf32, #tpu.memory_space<vmem>>, vector<2x16x16x4xf32>
    %23 = vector.shape_cast %22 : vector<2x16x16x4xf32> to vector<512x4xf32>
    %c0_59 = arith.constant 0 : index
    %c1_60 = arith.constant 1 : index
    %c2_61 = arith.constant 2 : index
    %c0_62 = arith.constant 0 : index
    %24 = vector.load %arg9[%c0_59, %c1_60, %c2_61, %c0_62] : memref<2x18x18x4xf32, #tpu.memory_space<vmem>>, vector<2x16x16x4xf32>
    %25 = vector.shape_cast %24 : vector<2x16x16x4xf32> to vector<512x4xf32>
    %c0_63 = arith.constant 0 : index
    %c2_64 = arith.constant 2 : index
    %c0_65 = arith.constant 0 : index
    %c0_66 = arith.constant 0 : index
    %26 = vector.load %arg9[%c0_63, %c2_64, %c0_65, %c0_66] : memref<2x18x18x4xf32, #tpu.memory_space<vmem>>, vector<2x16x16x4xf32>
    %27 = vector.shape_cast %26 : vector<2x16x16x4xf32> to vector<512x4xf32>
    %c0_67 = arith.constant 0 : index
    %c2_68 = arith.constant 2 : index
    %c1_69 = arith.constant 1 : index
    %c0_70 = arith.constant 0 : index
    %28 = vector.load %arg9[%c0_67, %c2_68, %c1_69, %c0_70] : memref<2x18x18x4xf32, #tpu.memory_space<vmem>>, vector<2x16x16x4xf32>
    %29 = vector.shape_cast %28 : vector<2x16x16x4xf32> to vector<512x4xf32>
    %c0_71 = arith.constant 0 : index
    %c2_72 = arith.constant 2 : index
    %c2_73 = arith.constant 2 : index
    %c0_74 = arith.constant 0 : index
    %30 = vector.load %arg9[%c0_71, %c2_72, %c2_73, %c0_74] : memref<2x18x18x4xf32, #tpu.memory_space<vmem>>, vector<2x16x16x4xf32>
    %31 = vector.shape_cast %30 : vector<2x16x16x4xf32> to vector<512x4xf32>
    %32 = tpu.concatenate %15, %17, %19, %21, %23, %25, %27, %29, %31 in 1 : vector<512x4xf32>, vector<512x4xf32>, vector<512x4xf32>, vector<512x4xf32>, vector<512x4xf32>, vector<512x4xf32>, vector<512x4xf32>, vector<512x4xf32>, vector<512x4xf32> -> vector<512x36xf32>
    %c0_75 = arith.constant 0 : index
    %c0_76 = arith.constant 0 : index
    %33 = vector.load %arg2[%c0_75, %c0_76] : memref<36x4xf32, #tpu.memory_space<vmem>>, vector<36x4xf32>
    %cst_77 = arith.constant dense<0.000000e+00> : vector<512x4xf32>
    %34 = tpu.matmul %32, %33, %cst_77 {dimension_numbers = #tpu.dot_dimension_numbers<[1], [0], [0], [1], [0, 0, 1, 1], [], []>} : vector<512x36xf32>, vector<36x4xf32>, vector<512x4xf32> -> vector<512x4xf32>
    %c0_78 = arith.constant 0 : index
    %c0_79 = arith.constant 0 : index
    %35 = vector.load %arg3[%c0_78, %c0_79] : memref<1x4xf32, #tpu.memory_space<vmem>>, vector<1x4xf32>
    %36 = vector.broadcast %35 : vector<1x4xf32> to vector<512x4xf32>
    %37 = arith.mulf %34, %36 : vector<512x4xf32>
    %c0_80 = arith.constant 0 : index
    %c0_81 = arith.constant 0 : index
    %38 = vector.load %arg4[%c0_80, %c0_81] : memref<1x4xf32, #tpu.memory_space<vmem>>, vector<1x4xf32>
    %39 = vector.broadcast %38 : vector<1x4xf32> to vector<512x4xf32>
    %40 = arith.addf %37, %39 : vector<512x4xf32>
    %cst_82 = arith.constant 0.000000e+00 : f32
    %41 = vector.broadcast %cst_82 : f32 to vector<512x4xf32>
    %42 = arith.maximumf %40, %41 : vector<512x4xf32>
    %43 = vector.shape_cast %42 : vector<512x4xf32> to vector<2x16x16x4xf32>
    %c0_83 = arith.constant 0 : index
    %c1_84 = arith.constant 1 : index
    %c1_85 = arith.constant 1 : index
    %c0_86 = arith.constant 0 : index
    %44 = vector.load %arg10[%c0_83, %c1_84, %c1_85, %c0_86] : memref<2x18x18x4xf32, #tpu.memory_space<vmem>>, vector<2x16x16x4xf32>
    tpu.vector_store %arg10[%c0_83, %c1_84, %c1_85, %c0_86], %43 {strides = array<i32>} : memref<2x18x18x4xf32, #tpu.memory_space<vmem>>, vector<2x16x16x4xf32>,
    %c0_87 = arith.constant 0 : index
    %c0_88 = arith.constant 0 : index
    %c0_89 = arith.constant 0 : index
    %c0_90 = arith.constant 0 : index
    %45 = vector.load %arg10[%c0_87, %c0_88, %c0_89, %c0_90] : memref<2x18x18x4xf32, #tpu.memory_space<vmem>>, vector<2x16x16x4xf32>
    %46 = vector.shape_cast %45 : vector<2x16x16x4xf32> to vector<512x4xf32>
    %c0_91 = arith.constant 0 : index
    %c0_92 = arith.constant 0 : index
    %c1_93 = arith.constant 1 : index
    %c0_94 = arith.constant 0 : index
    %47 = vector.load %arg10[%c0_91, %c0_92, %c1_93, %c0_94] : memref<2x18x18x4xf32, #tpu.memory_space<vmem>>, vector<2x16x16x4xf32>
    %48 = vector.shape_cast %47 : vector<2x16x16x4xf32> to vector<512x4xf32>
    %c0_95 = arith.constant 0 : index
    %c0_96 = arith.constant 0 : index
    %c2_97 = arith.constant 2 : index
    %c0_98 = arith.constant 0 : index
    %49 = vector.load %arg10[%c0_95, %c0_96, %c2_97, %c0_98] : memref<2x18x18x4xf32, #tpu.memory_space<vmem>>, vector<2x16x16x4xf32>
    %50 = vector.shape_cast %49 : vector<2x16x16x4xf32> to vector<512x4xf32>
    %c0_99 = arith.constant 0 : index
    %c1_100 = arith.constant 1 : index
    %c0_101 = arith.constant 0 : index
    %c0_102 = arith.constant 0 : index
    %51 = vector.load %arg10[%c0_99, %c1_100, %c0_101, %c0_102] : memref<2x18x18x4xf32, #tpu.memory_space<vmem>>, vector<2x16x16x4xf32>
    %52 = vector.shape_cast %51 : vector<2x16x16x4xf32> to vector<512x4xf32>
    %c0_103 = arith.constant 0 : index
    %c1_104 = arith.constant 1 : index
    %c1_105 = arith.constant 1 : index
    %c0_106 = arith.constant 0 : index
    %53 = vector.load %arg10[%c0_103, %c1_104, %c1_105, %c0_106] : memref<2x18x18x4xf32, #tpu.memory_space<vmem>>, vector<2x16x16x4xf32>
    %54 = vector.shape_cast %53 : vector<2x16x16x4xf32> to vector<512x4xf32>
    %c0_107 = arith.constant 0 : index
    %c1_108 = arith.constant 1 : index
    %c2_109 = arith.constant 2 : index
    %c0_110 = arith.constant 0 : index
    %55 = vector.load %arg10[%c0_107, %c1_108, %c2_109, %c0_110] : memref<2x18x18x4xf32, #tpu.memory_space<vmem>>, vector<2x16x16x4xf32>
    %56 = vector.shape_cast %55 : vector<2x16x16x4xf32> to vector<512x4xf32>
    %c0_111 = arith.constant 0 : index
    %c2_112 = arith.constant 2 : index
    %c0_113 = arith.constant 0 : index
    %c0_114 = arith.constant 0 : index
    %57 = vector.load %arg10[%c0_111, %c2_112, %c0_113, %c0_114] : memref<2x18x18x4xf32, #tpu.memory_space<vmem>>, vector<2x16x16x4xf32>
    %58 = vector.shape_cast %57 : vector<2x16x16x4xf32> to vector<512x4xf32>
    %c0_115 = arith.constant 0 : index
    %c2_116 = arith.constant 2 : index
    %c1_117 = arith.constant 1 : index
    %c0_118 = arith.constant 0 : index
    %59 = vector.load %arg10[%c0_115, %c2_116, %c1_117, %c0_118] : memref<2x18x18x4xf32, #tpu.memory_space<vmem>>, vector<2x16x16x4xf32>
    %60 = vector.shape_cast %59 : vector<2x16x16x4xf32> to vector<512x4xf32>
    %c0_119 = arith.constant 0 : index
    %c2_120 = arith.constant 2 : index
    %c2_121 = arith.constant 2 : index
    %c0_122 = arith.constant 0 : index
    %61 = vector.load %arg10[%c0_119, %c2_120, %c2_121, %c0_122] : memref<2x18x18x4xf32, #tpu.memory_space<vmem>>, vector<2x16x16x4xf32>
    %62 = vector.shape_cast %61 : vector<2x16x16x4xf32> to vector<512x4xf32>
    %63 = tpu.concatenate %46, %48, %50, %52, %54, %56, %58, %60, %62 in 1 : vector<512x4xf32>, vector<512x4xf32>, vector<512x4xf32>, vector<512x4xf32>, vector<512x4xf32>, vector<512x4xf32>, vector<512x4xf32>, vector<512x4xf32>, vector<512x4xf32> -> vector<512x36xf32>
    %c0_123 = arith.constant 0 : index
    %c0_124 = arith.constant 0 : index
    %64 = vector.load %arg5[%c0_123, %c0_124] : memref<36x4xf32, #tpu.memory_space<vmem>>, vector<36x4xf32>
    %cst_125 = arith.constant dense<0.000000e+00> : vector<512x4xf32>
    %65 = tpu.matmul %63, %64, %cst_125 {dimension_numbers = #tpu.dot_dimension_numbers<[1], [0], [0], [1], [0, 0, 1, 1], [], []>} : vector<512x36xf32>, vector<36x4xf32>, vector<512x4xf32> -> vector<512x4xf32>
    %c0_126 = arith.constant 0 : index
    %c0_127 = arith.constant 0 : index
    %66 = vector.load %arg6[%c0_126, %c0_127] : memref<1x4xf32, #tpu.memory_space<vmem>>, vector<1x4xf32>
    %67 = vector.broadcast %66 : vector<1x4xf32> to vector<512x4xf32>
    %68 = arith.mulf %65, %67 : vector<512x4xf32>
    %c0_128 = arith.constant 0 : index
    %c0_129 = arith.constant 0 : index
    %69 = vector.load %arg7[%c0_128, %c0_129] : memref<1x4xf32, #tpu.memory_space<vmem>>, vector<1x4xf32>
    %70 = vector.broadcast %69 : vector<1x4xf32> to vector<512x4xf32>
    %71 = arith.addf %68, %70 : vector<512x4xf32>
    %72 = vector.shape_cast %12 : vector<2x16x16x4xf32> to vector<512x4xf32>
    %73 = arith.addf %71, %72 : vector<512x4xf32>
    %cst_130 = arith.constant 0.000000e+00 : f32
    %74 = vector.broadcast %cst_130 : f32 to vector<512x4xf32>
    %75 = arith.maximumf %73, %74 : vector<512x4xf32>
    %76 = vector.shape_cast %75 : vector<512x4xf32> to vector<2x16x16x4xf32>
    %c0_131 = arith.constant 0 : index
    %c0_132 = arith.constant 0 : index
    %c0_133 = arith.constant 0 : index
    %c0_134 = arith.constant 0 : index
    %77 = vector.load %arg8[%c0_131, %c0_132, %c0_133, %c0_134] : memref<2x16x16x4xf32, #tpu.memory_space<vmem>>, vector<2x16x16x4xf32>
    tpu.vector_store %arg8[%c0_131, %c0_132, %c0_133, %c0_134], %76 {strides = array<i32>} : memref<2x16x16x4xf32, #tpu.memory_space<vmem>>, vector<2x16x16x4xf32>,
    return
  }
  func.func @transform_0(%arg0: i32) -> (i32, i32, i32, i32) {
    %c0_i32 = arith.constant 0 : i32
    %c0_i32_0 = arith.constant 0 : i32
    %c0_i32_1 = arith.constant 0 : i32
    %c0_i32_2 = arith.constant 0 : i32
    return %arg0, %c0_i32, %c0_i32_0, %c0_i32_1 : i32, i32, i32, i32
  }
  func.func @transform_1(%arg0: i32) -> (i32, i32) {
    %c0_i32 = arith.constant 0 : i32
    %c0_i32_0 = arith.constant 0 : i32
    %c0_i32_1 = arith.constant 0 : i32
    return %c0_i32, %c0_i32_0 : i32, i32
  }
  func.func @transform_2(%arg0: i32) -> (i32, i32) {
    %c0_i32 = arith.constant 0 : i32
    %c0_i32_0 = arith.constant 0 : i32
    %c0_i32_1 = arith.constant 0 : i32
    return %c0_i32, %c0_i32_0 : i32, i32
  }
  func.func @transform_3(%arg0: i32) -> (i32, i32) {
    %c0_i32 = arith.constant 0 : i32
    %c0_i32_0 = arith.constant 0 : i32
    %c0_i32_1 = arith.constant 0 : i32
    return %c0_i32, %c0_i32_0 : i32, i32
  }
  func.func @transform_4(%arg0: i32) -> (i32, i32) {
    %c0_i32 = arith.constant 0 : i32
    %c0_i32_0 = arith.constant 0 : i32
    %c0_i32_1 = arith.constant 0 : i32
    return %c0_i32, %c0_i32_0 : i32, i32
  }
  func.func @transform_5(%arg0: i32) -> (i32, i32) {
    %c0_i32 = arith.constant 0 : i32
    %c0_i32_0 = arith.constant 0 : i32
    %c0_i32_1 = arith.constant 0 : i32
    return %c0_i32, %c0_i32_0 : i32, i32
  }
  func.func @transform_6(%arg0: i32) -> (i32, i32) {
    %c0_i32 = arith.constant 0 : i32
    %c0_i32_0 = arith.constant 0 : i32
    %c0_i32_1 = arith.constant 0 : i32
    return %c0_i32, %c0_i32_0 : i32, i32
  }
  func.func @transform_7(%arg0: i32) -> (i32, i32, i32, i32) {
    %c0_i32 = arith.constant 0 : i32
    %c0_i32_0 = arith.constant 0 : i32
    %c0_i32_1 = arith.constant 0 : i32
    %c0_i32_2 = arith.constant 0 : i32
    return %arg0, %c0_i32, %c0_i32_0, %c0_i32_1 : i32, i32, i32, i32
  }
}

</mosaic_0001>

<llo_original>
// kernel: residual_block_pallas.1
$region0: #{residual_block_pallas.1}
  #allocation0 [shape = 'u32[]', space=smem, size = 0x4, offset = 0x4, fixed_abs, tag = 'smem constant byte address 0x4 - core index']
  #allocation1 [shape = 'u32[144,128]{1,0:T(1,128)}', space=vmem, size = 0x12000, scoped, tag = 'internal scratch']
  #allocation2 [shape = 'f32[2,18,18,4]{3,2,1,0:T(8,128)}', space=vmem, size = 0x6c000, scoped, tag = 'scratch operand']
  #allocation3 [shape = 'f32[2,18,18,4]{3,2,1,0:T(8,128)}', space=vmem, size = 0x6c000, scoped, tag = 'scratch operand']
  %s0 = inlined_call_operand.vmem [shape: f32[2,16,16,4], index: 0, kind: input, shape index: {}]
  %s1 = inlined_call_operand.vmem [shape: f32[36,4], index: 1, kind: input, shape index: {}]
  %s2 = inlined_call_operand.vmem [shape: f32[1,4], index: 2, kind: input, shape index: {}]
  %s3 = inlined_call_operand.vmem [shape: f32[1,4], index: 3, kind: input, shape index: {}]
  %s4 = inlined_call_operand.vmem [shape: f32[36,4], index: 4, kind: input, shape index: {}]
  %s5 = inlined_call_operand.vmem [shape: f32[1,4], index: 5, kind: input, shape index: {}]
  %s6 = inlined_call_operand.vmem [shape: f32[1,4], index: 6, kind: input, shape index: {}]
  %s7 = inlined_call_operand.vmem [shape: f32[2,16,16,4], index: 7, kind: output, shape index: {}]
  %s8 = sld [smem:[#allocation0]]
  $region38: #{residual_block_pallas.1} parent=0
    _
  %s10 = ssub.s32 1, %s8
  %s11 = scalar_select 0, %s10, %s8
  // Predicated region
  $region2: #{residual_block_pallas.1} parent=0 // pred_check
    _
  $region3: #{residual_block_pallas.1} parent=0 // pred_check_branch
    %13 = sbr.rel (0) target = $region5
  $region4: #{residual_block_pallas.1} parent=0 // pred_region
    _
  $region5: #{residual_block_pallas.1} parent=0 // pred_fallthru
    _
  // Predicated region
  $region6: #{residual_block_pallas.1} parent=0 // pred_check
    _
  $region7: #{residual_block_pallas.1} parent=0 // pred_check_branch
    %15 = sbr.rel (0) target = $region9
  $region8: #{residual_block_pallas.1} parent=0 // pred_region
    _
  $region9: #{residual_block_pallas.1} parent=0 // pred_fallthru
    _
  // Predicated region
  $region10: #{residual_block_pallas.1} parent=0 // pred_check
    _
  $region11: #{residual_block_pallas.1} parent=0 // pred_check_branch
    %17 = sbr.rel (0) target = $region13
  $region12: #{residual_block_pallas.1} parent=0 // pred_region
    _
  $region13: #{residual_block_pallas.1} parent=0 // pred_fallthru
    _
  // Predicated region
  $region14: #{residual_block_pallas.1} parent=0 // pred_check
    _
  $region15: #{residual_block_pallas.1} parent=0 // pred_check_branch
    %19 = sbr.rel (0) target = $region17
  $region16: #{residual_block_pallas.1} parent=0 // pred_region
    _
  $region17: #{residual_block_pallas.1} parent=0 // pred_fallthru
    _
  // Predicated region
  $region18: #{residual_block_pallas.1} parent=0 // pred_check
    _
  $region19: #{residual_block_pallas.1} parent=0 // pred_check_branch
    %21 = sbr.rel (0) target = $region21
  $region20: #{residual_block_pallas.1} parent=0 // pred_region
    _
  $region21: #{residual_block_pallas.1} parent=0 // pred_fallthru
    _
  // Predicated region
  $region22: #{residual_block_pallas.1} parent=0 // pred_check
    _
  $region23: #{residual_block_pallas.1} parent=0 // pred_check_branch
    %23 = sbr.rel (0) target = $region25
  $region24: #{residual_block_pallas.1} parent=0 // pred_region
    _
  $region25: #{residual_block_pallas.1} parent=0 // pred_fallthru
    _
  // Predicated region
  $region26: #{residual_block_pallas.1} parent=0 // pred_check
    _
  $region27: #{residual_block_pallas.1} parent=0 // pred_check_branch
    %25 = sbr.rel (0) target = $region29
  $region28: #{residual_block_pallas.1} parent=0 // pred_region
    _
  $region29: #{residual_block_pallas.1} parent=0 // pred_fallthru
    _
  %vm26 = vcmask 31744
  %27 = vst.msk [vmem:[#allocation2] sm:$0xff] %vm26, 0.0
  %28 = vst.msk [vmem:[#allocation2 + $0x8] sm:$0xff] %vm26, 0.0
  %vm29 = vcmask 25600
  %30 = vst.msk [vmem:[#allocation2 + $0x10] sm:$0x3] %vm29, 0.0
  %31 = vst.msk [vmem:[#allocation2 + $0x1b0] sm:$0xff] %vm26, 0.0
  %32 = vst.msk [vmem:[#allocation2 + $0x1b8] sm:$0xff] %vm26, 0.0
  %33 = vst.msk [vmem:[#allocation2 + $0x1c0] sm:$0x3] %vm29, 0.0
  %s34 = scalar_lea.vmem [#allocation2], 408
  %35 = vst.msk [vmem:[%s34] sm:$0xff] %vm26, 0.0
  %36 = vst.msk [vmem:[%s34 + $0x8] sm:$0xff] %vm26, 0.0
  %37 = vst.msk [vmem:[%s34 + $0x10] sm:$0x3] %vm29, 0.0
  %38 = vst.msk [vmem:[%s34 + $0x1b0] sm:$0xff] %vm26, 0.0
  %39 = vst.msk [vmem:[%s34 + $0x1b8] sm:$0xff] %vm26, 0.0
  %40 = vst.msk [vmem:[%s34 + $0x1c0] sm:$0x3] %vm29, 0.0
  %vm41 = vcmask 24576
  %42 = vst.msk [vmem:[#allocation2] sm:$0x1] %vm41, 0.0
  %43 = vst.msk [vmem:[#allocation2 + $0x18] sm:$0x1] %vm41, 0.0
  %44 = vst.msk [vmem:[#allocation2 + $0x30] sm:$0x1] %vm41, 0.0
  %45 = vst.msk [vmem:[#allocation2 + $0x48] sm:$0x1] %vm41, 0.0
  %46 = vst.msk [vmem:[#allocation2 + $0x60] sm:$0x1] %vm41, 0.0
  %47 = vst.msk [vmem:[#allocation2 + $0x78] sm:$0x1] %vm41, 0.0
  %48 = vst.msk [vmem:[#allocation2 + $0x90] sm:$0x1] %vm41, 0.0
  %49 = vst.msk [vmem:[#allocation2 + $0xa8] sm:$0x1] %vm41, 0.0
  %50 = vst.msk [vmem:[#allocation2 + $0xc0] sm:$0x1] %vm41, 0.0
  %51 = vst.msk [vmem:[#allocation2 + $0xd8] sm:$0x1] %vm41, 0.0
  %52 = vst.msk [vmem:[#allocation2 + $0xf0] sm:$0x1] %vm41, 0.0
  %53 = vst.msk [vmem:[#allocation2 + $0x108] sm:$0x1] %vm41, 0.0
  %54 = vst.msk [vmem:[#allocation2 + $0x120] sm:$0x1] %vm41, 0.0
  %55 = vst.msk [vmem:[#allocation2 + $0x138] sm:$0x1] %vm41, 0.0
  %56 = vst.msk [vmem:[#allocation2 + $0x150] sm:$0x1] %vm41, 0.0
  %57 = vst.msk [vmem:[#allocation2 + $0x168] sm:$0x1] %vm41, 0.0
  %58 = vst.msk [vmem:[#allocation2 + $0x180] sm:$0x1] %vm41, 0.0
  %59 = vst.msk [vmem:[#allocation2 + $0x198] sm:$0x1] %vm41, 0.0
  %60 = vst.msk [vmem:[#allocation2 + $0x1b0] sm:$0x1] %vm41, 0.0
  %61 = vst.msk [vmem:[#allocation2 + $0x1c8] sm:$0x1] %vm41, 0.0
  %62 = vst.msk [vmem:[#allocation2 + $0x1e0] sm:$0x1] %vm41, 0.0
  %63 = vst.msk [vmem:[#allocation2 + $0x1f8] sm:$0x1] %vm41, 0.0
  %64 = vst.msk [vmem:[#allocation2 + $0x210] sm:$0x1] %vm41, 0.0
  %65 = vst.msk [vmem:[#allocation2 + $0x228] sm:$0x1] %vm41, 0.0
  %66 = vst.msk [vmem:[#allocation2 + $0x240] sm:$0x1] %vm41, 0.0
  %67 = vst.msk [vmem:[#allocation2 + $0x258] sm:$0x1] %vm41, 0.0
  %68 = vst.msk [vmem:[#allocation2 + $0x270] sm:$0x1] %vm41, 0.0
  %69 = vst.msk [vmem:[#allocation2 + $0x288] sm:$0x1] %vm41, 0.0
  %70 = vst.msk [vmem:[#allocation2 + $0x2a0] sm:$0x1] %vm41, 0.0
  %71 = vst.msk [vmem:[#allocation2 + $0x2b8] sm:$0x1] %vm41, 0.0
  %72 = vst.msk [vmem:[#allocation2 + $0x2d0] sm:$0x1] %vm41, 0.0
  %73 = vst.msk [vmem:[#allocation2 + $0x2e8] sm:$0x1] %vm41, 0.0
  %74 = vst.msk [vmem:[#allocation2 + $0x300] sm:$0x1] %vm41, 0.0
  %75 = vst.msk [vmem:[#allocation2 + $0x318] sm:$0x1] %vm41, 0.0
  %76 = vst.msk [vmem:[#allocation2 + $0x330] sm:$0x1] %vm41, 0.0
  %77 = vst.msk [vmem:[#allocation2 + $0x348] sm:$0x1] %vm41, 0.0
  %78 = vst.msk [vmem:[#allocation2 + $0x11] sm:$0x1] %vm41, 0.0
  %79 = vst.msk [vmem:[#allocation2 + $0x29] sm:$0x1] %vm41, 0.0
  %80 = vst.msk [vmem:[#allocation2 + $0x41] sm:$0x1] %vm41, 0.0
  %81 = vst.msk [vmem:[#allocation2 + $0x59] sm:$0x1] %vm41, 0.0
  %82 = vst.msk [vmem:[#allocation2 + $0x71] sm:$0x1] %vm41, 0.0
  %83 = vst.msk [vmem:[#allocation2 + $0x89] sm:$0x1] %vm41, 0.0
  %84 = vst.msk [vmem:[#allocation2 + $0xa1] sm:$0x1] %vm41, 0.0
  %85 = vst.msk [vmem:[#allocation2 + $0xb9] sm:$0x1] %vm41, 0.0
  %86 = vst.msk [vmem:[#allocation2 + $0xd1] sm:$0x1] %vm41, 0.0
  %87 = vst.msk [vmem:[#allocation2 + $0xe9] sm:$0x1] %vm41, 0.0
  %88 = vst.msk [vmem:[#allocation2 + $0x101] sm:$0x1] %vm41, 0.0
  %89 = vst.msk [vmem:[#allocation2 + $0x119] sm:$0x1] %vm41, 0.0
  %90 = vst.msk [vmem:[#allocation2 + $0x131] sm:$0x1] %vm41, 0.0
  %91 = vst.msk [vmem:[#allocation2 + $0x149] sm:$0x1] %vm41, 0.0
  %92 = vst.msk [vmem:[#allocation2 + $0x161] sm:$0x1] %vm41, 0.0
  %93 = vst.msk [vmem:[#allocation2 + $0x179] sm:$0x1] %vm41, 0.0
  %94 = vst.msk [vmem:[#allocation2 + $0x191] sm:$0x1] %vm41, 0.0
  %95 = vst.msk [vmem:[#allocation2 + $0x1a9] sm:$0x1] %vm41, 0.0
  %96 = vst.msk [vmem:[#allocation2 + $0x1c1] sm:$0x1] %vm41, 0.0
  %97 = vst.msk [vmem:[#allocation2 + $0x1d9] sm:$0x1] %vm41, 0.0
  %98 = vst.msk [vmem:[#allocation2 + $0x1f1] sm:$0x1] %vm41, 0.0
  %99 = vst.msk [vmem:[#allocation2 + $0x209] sm:$0x1] %vm41, 0.0
  %100 = vst.msk [vmem:[#allocation2 + $0x221] sm:$0x1] %vm41, 0.0
  %101 = vst.msk [vmem:[#allocation2 + $0x239] sm:$0x1] %vm41, 0.0
  %102 = vst.msk [vmem:[#allocation2 + $0x251] sm:$0x1] %vm41, 0.0
  %103 = vst.msk [vmem:[#allocation2 + $0x269] sm:$0x1] %vm41, 0.0
  %104 = vst.msk [vmem:[#allocation2 + $0x281] sm:$0x1] %vm41, 0.0
  %105 = vst.msk [vmem:[#allocation2 + $0x299] sm:$0x1] %vm41, 0.0
  %106 = vst.msk [vmem:[#allocation2 + $0x2b1] sm:$0x1] %vm41, 0.0
  %107 = vst.msk [vmem:[#allocation2 + $0x2c9] sm:$0x1] %vm41, 0.0
  %108 = vst.msk [vmem:[#allocation2 + $0x2e1] sm:$0x1] %vm41, 0.0
  %109 = vst.msk [vmem:[#allocation2 + $0x2f9] sm:$0x1] %vm41, 0.0
  %110 = vst.msk [vmem:[#allocation2 + $0x311] sm:$0x1] %vm41, 0.0
  %111 = vst.msk [vmem:[#allocation2 + $0x329] sm:$0x1] %vm41, 0.0
  %112 = vst.msk [vmem:[#allocation2 + $0x341] sm:$0x1] %vm41, 0.0
  %113 = vst.msk [vmem:[#allocation2 + $0x359] sm:$0x1] %vm41, 0.0
  %114 = vst.msk [vmem:[#allocation3] sm:$0xff] %vm26, 0.0
  %115 = vst.msk [vmem:[#allocation3 + $0x8] sm:$0xff] %vm26, 0.0
  %116 = vst.msk [vmem:[#allocation3 + $0x10] sm:$0x3] %vm29, 0.0
  %117 = vst.msk [vmem:[#allocation3 + $0x1b0] sm:$0xff] %vm26, 0.0
  %118 = vst.msk [vmem:[#allocation3 + $0x1b8] sm:$0xff] %vm26, 0.0
  %119 = vst.msk [vmem:[#allocation3 + $0x1c0] sm:$0x3] %vm29, 0.0
  %s120 = scalar_lea.vmem [#allocation3], 408
  %121 = vst.msk [vmem:[%s120] sm:$0xff] %vm26, 0.0
  %122 = vst.msk [vmem:[%s120 + $0x8] sm:$0xff] %vm26, 0.0
  %123 = vst.msk [vmem:[%s120 + $0x10] sm:$0x3] %vm29, 0.0
  %124 = vst.msk [vmem:[%s120 + $0x1b0] sm:$0xff] %vm26, 0.0
  %125 = vst.msk [vmem:[%s120 + $0x1b8] sm:$0xff] %vm26, 0.0
  %126 = vst.msk [vmem:[%s120 + $0x1c0] sm:$0x3] %vm29, 0.0
  %127 = vst.msk [vmem:[#allocation3] sm:$0x1] %vm41, 0.0
  %128 = vst.msk [vmem:[#allocation3 + $0x18] sm:$0x1] %vm41, 0.0
  %129 = vst.msk [vmem:[#allocation3 + $0x30] sm:$0x1] %vm41, 0.0
  %130 = vst.msk [vmem:[#allocation3 + $0x48] sm:$0x1] %vm41, 0.0
  %131 = vst.msk [vmem:[#allocation3 + $0x60] sm:$0x1] %vm41, 0.0
  %132 = vst.msk [vmem:[#allocation3 + $0x78] sm:$0x1] %vm41, 0.0
  %133 = vst.msk [vmem:[#allocation3 + $0x90] sm:$0x1] %vm41, 0.0
  %134 = vst.msk [vmem:[#allocation3 + $0xa8] sm:$0x1] %vm41, 0.0
  %135 = vst.msk [vmem:[#allocation3 + $0xc0] sm:$0x1] %vm41, 0.0
  %136 = vst.msk [vmem:[#allocation3 + $0xd8] sm:$0x1] %vm41, 0.0
  %137 = vst.msk [vmem:[#allocation3 + $0xf0] sm:$0x1] %vm41, 0.0
  %138 = vst.msk [vmem:[#allocation3 + $0x108] sm:$0x1] %vm41, 0.0
  %139 = vst.msk [vmem:[#allocation3 + $0x120] sm:$0x1] %vm41, 0.0
  %140 = vst.msk [vmem:[#allocation3 + $0x138] sm:$0x1] %vm41, 0.0
  %141 = vst.msk [vmem:[#allocation3 + $0x150] sm:$0x1] %vm41, 0.0
  %142 = vst.msk [vmem:[#allocation3 + $0x168] sm:$0x1] %vm41, 0.0
  %143 = vst.msk [vmem:[#allocation3 + $0x180] sm:$0x1] %vm41, 0.0
  %144 = vst.msk [vmem:[#allocation3 + $0x198] sm:$0x1] %vm41, 0.0
  %145 = vst.msk [vmem:[#allocation3 + $0x1b0] sm:$0x1] %vm41, 0.0
  %146 = vst.msk [vmem:[#allocation3 + $0x1c8] sm:$0x1] %vm41, 0.0
  %147 = vst.msk [vmem:[#allocation3 + $0x1e0] sm:$0x1] %vm41, 0.0
  %148 = vst.msk [vmem:[#allocation3 + $0x1f8] sm:$0x1] %vm41, 0.0
  %149 = vst.msk [vmem:[#allocation3 + $0x210] sm:$0x1] %vm41, 0.0
  %150 = vst.msk [vmem:[#allocation3 + $0x228] sm:$0x1] %vm41, 0.0
  %151 = vst.msk [vmem:[#allocation3 + $0x240] sm:$0x1] %vm41, 0.0
  %152 = vst.msk [vmem:[#allocation3 + $0x258] sm:$0x1] %vm41, 0.0
  %153 = vst.msk [vmem:[#allocation3 + $0x270] sm:$0x1] %vm41, 0.0
  %154 = vst.msk [vmem:[#allocation3 + $0x288] sm:$0x1] %vm41, 0.0
  %155 = vst.msk [vmem:[#allocation3 + $0x2a0] sm:$0x1] %vm41, 0.0
  %156 = vst.msk [vmem:[#allocation3 + $0x2b8] sm:$0x1] %vm41, 0.0
  %157 = vst.msk [vmem:[#allocation3 + $0x2d0] sm:$0x1] %vm41, 0.0
  %158 = vst.msk [vmem:[#allocation3 + $0x2e8] sm:$0x1] %vm41, 0.0
  %159 = vst.msk [vmem:[#allocation3 + $0x300] sm:$0x1] %vm41, 0.0
  %160 = vst.msk [vmem:[#allocation3 + $0x318] sm:$0x1] %vm41, 0.0
  %161 = vst.msk [vmem:[#allocation3 + $0x330] sm:$0x1] %vm41, 0.0
  %162 = vst.msk [vmem:[#allocation3 + $0x348] sm:$0x1] %vm41, 0.0
  %163 = vst.msk [vmem:[#allocation3 + $0x11] sm:$0x1] %vm41, 0.0
  %164 = vst.msk [vmem:[#allocation3 + $0x29] sm:$0x1] %vm41, 0.0
  %165 = vst.msk [vmem:[#allocation3 + $0x41] sm:$0x1] %vm41, 0.0
  %166 = vst.msk [vmem:[#allocation3 + $0x59] sm:$0x1] %vm41, 0.0
  %167 = vst.msk [vmem:[#allocation3 + $0x71] sm:$0x1] %vm41, 0.0
  %168 = vst.msk [vmem:[#allocation3 + $0x89] sm:$0x1] %vm41, 0.0
  %169 = vst.msk [vmem:[#allocation3 + $0xa1] sm:$0x1] %vm41, 0.0
  %170 = vst.msk [vmem:[#allocation3 + $0xb9] sm:$0x1] %vm41, 0.0
  %171 = vst.msk [vmem:[#allocation3 + $0xd1] sm:$0x1] %vm41, 0.0
  %172 = vst.msk [vmem:[#allocation3 + $0xe9] sm:$0x1] %vm41, 0.0
  %173 = vst.msk [vmem:[#allocation3 + $0x101] sm:$0x1] %vm41, 0.0
  %174 = vst.msk [vmem:[#allocation3 + $0x119] sm:$0x1] %vm41, 0.0
  %175 = vst.msk [vmem:[#allocation3 + $0x131] sm:$0x1] %vm41, 0.0
  %176 = vst.msk [vmem:[#allocation3 + $0x149] sm:$0x1] %vm41, 0.0
  %177 = vst.msk [vmem:[#allocation3 + $0x161] sm:$0x1] %vm41, 0.0
  %178 = vst.msk [vmem:[#allocation3 + $0x179] sm:$0x1] %vm41, 0.0
  %179 = vst.msk [vmem:[#allocation3 + $0x191] sm:$0x1] %vm41, 0.0
  %180 = vst.msk [vmem:[#allocation3 + $0x1a9] sm:$0x1] %vm41, 0.0
  %181 = vst.msk [vmem:[#allocation3 + $0x1c1] sm:$0x1] %vm41, 0.0
  %182 = vst.msk [vmem:[#allocation3 + $0x1d9] sm:$0x1] %vm41, 0.0
  %183 = vst.msk [vmem:[#allocation3 + $0x1f1] sm:$0x1] %vm41, 0.0
  %184 = vst.msk [vmem:[#allocation3 + $0x209] sm:$0x1] %vm41, 0.0
  %185 = vst.msk [vmem:[#allocation3 + $0x221] sm:$0x1] %vm41, 0.0
  %186 = vst.msk [vmem:[#allocation3 + $0x239] sm:$0x1] %vm41, 0.0
  %187 = vst.msk [vmem:[#allocation3 + $0x251] sm:$0x1] %vm41, 0.0
  %188 = vst.msk [vmem:[#allocation3 + $0x269] sm:$0x1] %vm41, 0.0
  %189 = vst.msk [vmem:[#allocation3 + $0x281] sm:$0x1] %vm41, 0.0
  %190 = vst.msk [vmem:[#allocation3 + $0x299] sm:$0x1] %vm41, 0.0
  %191 = vst.msk [vmem:[#allocation3 + $0x2b1] sm:$0x1] %vm41, 0.0
  %192 = vst.msk [vmem:[#allocation3 + $0x2c9] sm:$0x1] %vm41, 0.0
  %193 = vst.msk [vmem:[#allocation3 + $0x2e1] sm:$0x1] %vm41, 0.0
  %194 = vst.msk [vmem:[#allocation3 + $0x2f9] sm:$0x1] %vm41, 0.0
  %195 = vst.msk [vmem:[#allocation3 + $0x311] sm:$0x1] %vm41, 0.0
  %196 = vst.msk [vmem:[#allocation3 + $0x329] sm:$0x1] %vm41, 0.0
  %197 = vst.msk [vmem:[#allocation3 + $0x341] sm:$0x1] %vm41, 0.0
  %198 = vst.msk [vmem:[#allocation3 + $0x359] sm:$0x1] %vm41, 0.0
  %v199 = vld [vmem:[%s0] sm:$0xff]
  %v200 = vld [vmem:[%s0 + $0x8] sm:$0xff]
  %v201 = vld [vmem:[%s0 + $0x10] sm:$0xff]
  %v202 = vld [vmem:[%s0 + $0x18] sm:$0xff]
  %v203 = vld [vmem:[%s0 + $0x20] sm:$0xff]
  %v204 = vld [vmem:[%s0 + $0x28] sm:$0xff]
  %v205 = vld [vmem:[%s0 + $0x30] sm:$0xff]
  %v206 = vld [vmem:[%s0 + $0x38] sm:$0xff]
  %v207 = vld [vmem:[%s0 + $0x40] sm:$0xff]
  %v208 = vld [vmem:[%s0 + $0x48] sm:$0xff]
  %v209 = vld [vmem:[%s0 + $0x50] sm:$0xff]
  %v210 = vld [vmem:[%s0 + $0x58] sm:$0xff]
  %v211 = vld [vmem:[%s0 + $0x60] sm:$0xff]
  %v212 = vld [vmem:[%s0 + $0x68] sm:$0xff]
  %v213 = vld [vmem:[%s0 + $0x70] sm:$0xff]
  %v214 = vld [vmem:[%s0 + $0x78] sm:$0xff]
  %v215 = vld [vmem:[%s0 + $0x80] sm:$0xff]
  %v216 = vld [vmem:[%s0 + $0x88] sm:$0xff]
  %v217 = vld [vmem:[%s0 + $0x90] sm:$0xff]
  %v218 = vld [vmem:[%s0 + $0x98] sm:$0xff]
  %v219 = vld [vmem:[%s0 + $0xa0] sm:$0xff]
  %v220 = vld [vmem:[%s0 + $0xa8] sm:$0xff]
  %v221 = vld [vmem:[%s0 + $0xb0] sm:$0xff]
  %v222 = vld [vmem:[%s0 + $0xb8] sm:$0xff]
  %v223 = vld [vmem:[%s0 + $0xc0] sm:$0xff]
  %v224 = vld [vmem:[%s0 + $0xc8] sm:$0xff]
  %v225 = vld [vmem:[%s0 + $0xd0] sm:$0xff]
  %v226 = vld [vmem:[%s0 + $0xd8] sm:$0xff]
  %v227 = vld [vmem:[%s0 + $0xe0] sm:$0xff]
  %v228 = vld [vmem:[%s0 + $0xe8] sm:$0xff]
  %v229 = vld [vmem:[%s0 + $0xf0] sm:$0xff]
  %v230 = vld [vmem:[%s0 + $0xf8] sm:$0xff]
  %v231 = vld [vmem:[%s0 + $0x100] sm:$0xff]
  %v232 = vld [vmem:[%s0 + $0x108] sm:$0xff]
  %v233 = vld [vmem:[%s0 + $0x110] sm:$0xff]
  %v234 = vld [vmem:[%s0 + $0x118] sm:$0xff]
  %v235 = vld [vmem:[%s0 + $0x120] sm:$0xff]
  %v236 = vld [vmem:[%s0 + $0x128] sm:$0xff]
  %v237 = vld [vmem:[%s0 + $0x130] sm:$0xff]
  %v238 = vld [vmem:[%s0 + $0x138] sm:$0xff]
  %v239 = vld [vmem:[%s0 + $0x140] sm:$0xff]
  %v240 = vld [vmem:[%s0 + $0x148] sm:$0xff]
  %v241 = vld [vmem:[%s0 + $0x150] sm:$0xff]
  %v242 = vld [vmem:[%s0 + $0x158] sm:$0xff]
  %v243 = vld [vmem:[%s0 + $0x160] sm:$0xff]
  %v244 = vld [vmem:[%s0 + $0x168] sm:$0xff]
  %v245 = vld [vmem:[%s0 + $0x170] sm:$0xff]
  %v246 = vld [vmem:[%s0 + $0x178] sm:$0xff]
  %v247 = vld [vmem:[%s0 + $0x180] sm:$0xff]
  %v248 = vld [vmem:[%s0 + $0x188] sm:$0xff]
  %v249 = vld [vmem:[%s0 + $0x190] sm:$0xff]
  %v250 = vld [vmem:[%s0 + $0x198] sm:$0xff]
  %v251 = vld [vmem:[%s0 + $0x1a0] sm:$0xff]
  %v252 = vld [vmem:[%s0 + $0x1a8] sm:$0xff]
  %v253 = vld [vmem:[%s0 + $0x1b0] sm:$0xff]
  %v254 = vld [vmem:[%s0 + $0x1b8] sm:$0xff]
  %v255 = vld [vmem:[%s0 + $0x1c0] sm:$0xff]
  %v256 = vld [vmem:[%s0 + $0x1c8] sm:$0xff]
  %v257 = vld [vmem:[%s0 + $0x1d0] sm:$0xff]
  %v258 = vld [vmem:[%s0 + $0x1d8] sm:$0xff]
  %v259 = vld [vmem:[%s0 + $0x1e0] sm:$0xff]
  %v260 = vld [vmem:[%s0 + $0x1e8] sm:$0xff]
  %v261 = vld [vmem:[%s0 + $0x1f0] sm:$0xff]
  %v262 = vld [vmem:[%s0 + $0x1f8] sm:$0xff]
  %s263 = scalar_lea.vmem [#allocation2], 24
  %264 = vst.msk [vmem:[%s263 + $0x1] sm:$0xff] %vm26, %v199
  %265 = vst.msk [vmem:[%s263 + $0x9] sm:$0xff] %vm26, %v200
  %266 = vst.msk [vmem:[%s263 + $0x19] sm:$0xff] %vm26, %v201
  %267 = vst.msk [vmem:[%s263 + $0x21] sm:$0xff] %vm26, %v202
  %268 = vst.msk [vmem:[%s263 + $0x31] sm:$0xff] %vm26, %v203
  %269 = vst.msk [vmem:[%s263 + $0x39] sm:$0xff] %vm26, %v204
  %270 = vst.msk [vmem:[%s263 + $0x49] sm:$0xff] %vm26, %v205
  %271 = vst.msk [vmem:[%s263 + $0x51] sm:$0xff] %vm26, %v206
  %272 = vst.msk [vmem:[%s263 + $0x61] sm:$0xff] %vm26, %v207
  %273 = vst.msk [vmem:[%s263 + $0x69] sm:$0xff] %vm26, %v208
  %274 = vst.msk [vmem:[%s263 + $0x79] sm:$0xff] %vm26, %v209
  %275 = vst.msk [vmem:[%s263 + $0x81] sm:$0xff] %vm26, %v210
  %276 = vst.msk [vmem:[%s263 + $0x91] sm:$0xff] %vm26, %v211
  %277 = vst.msk [vmem:[%s263 + $0x99] sm:$0xff] %vm26, %v212
  %278 = vst.msk [vmem:[%s263 + $0xa9] sm:$0xff] %vm26, %v213
  %279 = vst.msk [vmem:[%s263 + $0xb1] sm:$0xff] %vm26, %v214
  %280 = vst.msk [vmem:[%s263 + $0xc1] sm:$0xff] %vm26, %v215
  %281 = vst.msk [vmem:[%s263 + $0xc9] sm:$0xff] %vm26, %v216
  %282 = vst.msk [vmem:[%s263 + $0xd9] sm:$0xff] %vm26, %v217
  %283 = vst.msk [vmem:[%s263 + $0xe1] sm:$0xff] %vm26, %v218
  %284 = vst.msk [vmem:[%s263 + $0xf1] sm:$0xff] %vm26, %v219
  %285 = vst.msk [vmem:[%s263 + $0xf9] sm:$0xff] %vm26, %v220
  %286 = vst.msk [vmem:[%s263 + $0x109] sm:$0xff] %vm26, %v221
  %287 = vst.msk [vmem:[%s263 + $0x111] sm:$0xff] %vm26, %v222
  %288 = vst.msk [vmem:[%s263 + $0x121] sm:$0xff] %vm26, %v223
  %289 = vst.msk [vmem:[%s263 + $0x129] sm:$0xff] %vm26, %v224
  %290 = vst.msk [vmem:[%s263 + $0x139] sm:$0xff] %vm26, %v225
  %291 = vst.msk [vmem:[%s263 + $0x141] sm:$0xff] %vm26, %v226
  %292 = vst.msk [vmem:[%s263 + $0x151] sm:$0xff] %vm26, %v227
  %293 = vst.msk [vmem:[%s263 + $0x159] sm:$0xff] %vm26, %v228
  %294 = vst.msk [vmem:[%s263 + $0x169] sm:$0xff] %vm26, %v229
  %295 = vst.msk [vmem:[%s263 + $0x171] sm:$0xff] %vm26, %v230
  %296 = vst.msk [vmem:[%s263 + $0x1b1] sm:$0xff] %vm26, %v231
  %297 = vst.msk [vmem:[%s263 + $0x1b9] sm:$0xff] %vm26, %v232
  %298 = vst.msk [vmem:[%s263 + $0x1c9] sm:$0xff] %vm26, %v233
  %299 = vst.msk [vmem:[%s263 + $0x1d1] sm:$0xff] %vm26, %v234
  %300 = vst.msk [vmem:[%s263 + $0x1e1] sm:$0xff] %vm26, %v235
  %301 = vst.msk [vmem:[%s263 + $0x1e9] sm:$0xff] %vm26, %v236
  %302 = vst.msk [vmem:[%s263 + $0x1f9] sm:$0xff] %vm26, %v237
  %303 = vst.msk [vmem:[%s263 + $0x201] sm:$0xff] %vm26, %v238
  %304 = vst.msk [vmem:[%s263 + $0x211] sm:$0xff] %vm26, %v239
  %305 = vst.msk [vmem:[%s263 + $0x219] sm:$0xff] %vm26, %v240
  %306 = vst.msk [vmem:[%s263 + $0x229] sm:$0xff] %vm26, %v241
  %307 = vst.msk [vmem:[%s263 + $0x231] sm:$0xff] %vm26, %v242
  %308 = vst.msk [vmem:[%s263 + $0x241] sm:$0xff] %vm26, %v243
  %309 = vst.msk [vmem:[%s263 + $0x249] sm:$0xff] %vm26, %v244
  %310 = vst.msk [vmem:[%s263 + $0x259] sm:$0xff] %vm26, %v245
  %311 = vst.msk [vmem:[%s263 + $0x261] sm:$0xff] %vm26, %v246
  %312 = vst.msk [vmem:[%s263 + $0x271] sm:$0xff] %vm26, %v247
  %313 = vst.msk [vmem:[%s263 + $0x279] sm:$0xff] %vm26, %v248
  %314 = vst.msk [vmem:[%s263 + $0x289] sm:$0xff] %vm26, %v249
  %315 = vst.msk [vmem:[%s263 + $0x291] sm:$0xff] %vm26, %v250
  %316 = vst.msk [vmem:[%s263 + $0x2a1] sm:$0xff] %vm26, %v251
  %317 = vst.msk [vmem:[%s263 + $0x2a9] sm:$0xff] %vm26, %v252
  %318 = vst.msk [vmem:[%s263 + $0x2b9] sm:$0xff] %vm26, %v253
  %319 = vst.msk [vmem:[%s263 + $0x2c1] sm:$0xff] %vm26, %v254
  %320 = vst.msk [vmem:[%s263 + $0x2d1] sm:$0xff] %vm26, %v255
  %321 = vst.msk [vmem:[%s263 + $0x2d9] sm:$0xff] %vm26, %v256
  %322 = vst.msk [vmem:[%s263 + $0x2e9] sm:$0xff] %vm26, %v257
  %323 = vst.msk [vmem:[%s263 + $0x2f1] sm:$0xff] %vm26, %v258
  %324 = vst.msk [vmem:[%s263 + $0x301] sm:$0xff] %vm26, %v259
  %325 = vst.msk [vmem:[%s263 + $0x309] sm:$0xff] %vm26, %v260
  %326 = vst.msk [vmem:[%s263 + $0x319] sm:$0xff] %vm26, %v261
  %327 = vst.msk [vmem:[%s263 + $0x321] sm:$0xff] %vm26, %v262
  %v328 = vld [vmem:[#allocation2] sm:$0xff]
  %v329 = vld [vmem:[#allocation2 + $0x8] sm:$0xff]
  %v330 = vld [vmem:[#allocation2 + $0x18] sm:$0xff]
  %v331 = vld [vmem:[#allocation2 + $0x20] sm:$0xff]
  %v332 = vld [vmem:[#allocation2 + $0x30] sm:$0xff]
  %v333 = vld [vmem:[#allocation2 + $0x38] sm:$0xff]
  %v334 = vld [vmem:[#allocation2 + $0x48] sm:$0xff]
  %v335 = vld [vmem:[#allocation2 + $0x50] sm:$0xff]
  %v336 = vld [vmem:[#allocation2 + $0x60] sm:$0xff]
  %v337 = vld [vmem:[#allocation2 + $0x68] sm:$0xff]
  %v338 = vld [vmem:[#allocation2 + $0x78] sm:$0xff]
  %v339 = vld [vmem:[#allocation2 + $0x80] sm:$0xff]
  %v340 = vld [vmem:[#allocation2 + $0x90] sm:$0xff]
  %v341 = vld [vmem:[#allocation2 + $0x98] sm:$0xff]
  %v342 = vld [vmem:[#allocation2 + $0xa8] sm:$0xff]
  %v343 = vld [vmem:[#allocation2 + $0xb0] sm:$0xff]
  %v344 = vld [vmem:[#allocation2 + $0xc0] sm:$0xff]
  %v345 = vld [vmem:[#allocation2 + $0xc8] sm:$0xff]
  %v346 = vld [vmem:[#allocation2 + $0xd8] sm:$0xff]
  %v347 = vld [vmem:[#allocation2 + $0xe0] sm:$0xff]
  %v348 = vld [vmem:[#allocation2 + $0xf0] sm:$0xff]
  %v349 = vld [vmem:[#allocation2 + $0xf8] sm:$0xff]
  %v350 = vld [vmem:[#allocation2 + $0x108] sm:$0xff]
  %v351 = vld [vmem:[#allocation2 + $0x110] sm:$0xff]
  %v352 = vld [vmem:[#allocation2 + $0x120] sm:$0xff]
  %v353 = vld [vmem:[#allocation2 + $0x128] sm:$0xff]
  %v354 = vld [vmem:[#allocation2 + $0x138] sm:$0xff]
  %v355 = vld [vmem:[#allocation2 + $0x140] sm:$0xff]
  %v356 = vld [vmem:[#allocation2 + $0x150] sm:$0xff]
  %v357 = vld [vmem:[#allocation2 + $0x158] sm:$0xff]
  %v358 = vld [vmem:[#allocation2 + $0x168] sm:$0xff]
  %v359 = vld [vmem:[#allocation2 + $0x170] sm:$0xff]
  %v360 = vld [vmem:[#allocation2 + $0x1b0] sm:$0xff]
  %v361 = vld [vmem:[#allocation2 + $0x1b8] sm:$0xff]
  %v362 = vld [vmem:[#allocation2 + $0x1c8] sm:$0xff]
  %v363 = vld [vmem:[#allocation2 + $0x1d0] sm:$0xff]
  %v364 = vld [vmem:[#allocation2 + $0x1e0] sm:$0xff]
  %v365 = vld [vmem:[#allocation2 + $0x1e8] sm:$0xff]
  %v366 = vld [vmem:[#allocation2 + $0x1f8] sm:$0xff]
  %v367 = vld [vmem:[#allocation2 + $0x200] sm:$0xff]
  %v368 = vld [vmem:[#allocation2 + $0x210] sm:$0xff]
  %v369 = vld [vmem:[#allocation2 + $0x218] sm:$0xff]
  %v370 = vld [vmem:[#allocation2 + $0x228] sm:$0xff]
  %v371 = vld [vmem:[#allocation2 + $0x230] sm:$0xff]
  %v372 = vld [vmem:[#allocation2 + $0x240] sm:$0xff]
  %v373 = vld [vmem:[#allocation2 + $0x248] sm:$0xff]
  %v374 = vld [vmem:[#allocation2 + $0x258] sm:$0xff]
  %v375 = vld [vmem:[#allocation2 + $0x260] sm:$0xff]
  %v376 = vld [vmem:[#allocation2 + $0x270] sm:$0xff]
  %v377 = vld [vmem:[#allocation2 + $0x278] sm:$0xff]
  %v378 = vld [vmem:[#allocation2 + $0x288] sm:$0xff]
  %v379 = vld [vmem:[#allocation2 + $0x290] sm:$0xff]
  %v380 = vld [vmem:[#allocation2 + $0x2a0] sm:$0xff]
  %v381 = vld [vmem:[#allocation2 + $0x2a8] sm:$0xff]
  %v382 = vld [vmem:[#allocation2 + $0x2b8] sm:$0xff]
  %v383 = vld [vmem:[#allocation2 + $0x2c0] sm:$0xff]
  %v384 = vld [vmem:[#allocation2 + $0x2d0] sm:$0xff]
  %v385 = vld [vmem:[#allocation2 + $0x2d8] sm:$0xff]
  %v386 = vld [vmem:[#allocation2 + $0x2e8] sm:$0xff]
  %v387 = vld [vmem:[#allocation2 + $0x2f0] sm:$0xff]
  %v388 = vld [vmem:[#allocation2 + $0x300] sm:$0xff]
  %v389 = vld [vmem:[#allocation2 + $0x308] sm:$0xff]
  %v390 = vld [vmem:[#allocation2 + $0x318] sm:$0xff]
  %v391 = vld [vmem:[#allocation2 + $0x320] sm:$0xff]
  %v392 = vld [vmem:[#allocation2 + $0x1] sm:$0xff]
  %v393 = vld [vmem:[#allocation2 + $0x9] sm:$0xff]
  %v394 = vld [vmem:[#allocation2 + $0x19] sm:$0xff]
  %v395 = vld [vmem:[#allocation2 + $0x21] sm:$0xff]
  %v396 = vld [vmem:[#allocation2 + $0x31] sm:$0xff]
  %v397 = vld [vmem:[#allocation2 + $0x39] sm:$0xff]
  %v398 = vld [vmem:[#allocation2 + $0x49] sm:$0xff]
  %v399 = vld [vmem:[#allocation2 + $0x51] sm:$0xff]
  %v400 = vld [vmem:[#allocation2 + $0x61] sm:$0xff]
  %v401 = vld [vmem:[#allocation2 + $0x69] sm:$0xff]
  %v402 = vld [vmem:[#allocation2 + $0x79] sm:$0xff]
  %v403 = vld [vmem:[#allocation2 + $0x81] sm:$0xff]
  %v404 = vld [vmem:[#allocation2 + $0x91] sm:$0xff]
  %v405 = vld [vmem:[#allocation2 + $0x99] sm:$0xff]
  %v406 = vld [vmem:[#allocation2 + $0xa9] sm:$0xff]
  %v407 = vld [vmem:[#allocation2 + $0xb1] sm:$0xff]
  %v408 = vld [vmem:[#allocation2 + $0xc1] sm:$0xff]
  %v409 = vld [vmem:[#allocation2 + $0xc9] sm:$0xff]
  %v410 = vld [vmem:[#allocation2 + $0xd9] sm:$0xff]
  %v411 = vld [vmem:[#allocation2 + $0xe1] sm:$0xff]
  %v412 = vld [vmem:[#allocation2 + $0xf1] sm:$0xff]
  %v413 = vld [vmem:[#allocation2 + $0xf9] sm:$0xff]
  %v414 = vld [vmem:[#allocation2 + $0x109] sm:$0xff]
  %v415 = vld [vmem:[#allocation2 + $0x111] sm:$0xff]
  %v416 = vld [vmem:[#allocation2 + $0x121] sm:$0xff]
  %v417 = vld [vmem:[#allocation2 + $0x129] sm:$0xff]
  %v418 = vld [vmem:[#allocation2 + $0x139] sm:$0xff]
  %v419 = vld [vmem:[#allocation2 + $0x141] sm:$0xff]
  %v420 = vld [vmem:[#allocation2 + $0x151] sm:$0xff]
  %v421 = vld [vmem:[#allocation2 + $0x159] sm:$0xff]
  %v422 = vld [vmem:[#allocation2 + $0x169] sm:$0xff]
  %v423 = vld [vmem:[#allocation2 + $0x171] sm:$0xff]
  %v424 = vld [vmem:[#allocation2 + $0x1b1] sm:$0xff]
  %v425 = vld [vmem:[#allocation2 + $0x1b9] sm:$0xff]
  %v426 = vld [vmem:[#allocation2 + $0x1c9] sm:$0xff]
  %v427 = vld [vmem:[#allocation2 + $0x1d1] sm:$0xff]
  %v428 = vld [vmem:[#allocation2 + $0x1e1] sm:$0xff]
  %v429 = vld [vmem:[#allocation2 + $0x1e9] sm:$0xff]
  %v430 = vld [vmem:[#allocation2 + $0x1f9] sm:$0xff]
  %v431 = vld [vmem:[#allocation2 + $0x201] sm:$0xff]
  %v432 = vld [vmem:[#allocation2 + $0x211] sm:$0xff]
  %v433 = vld [vmem:[#allocation2 + $0x219] sm:$0xff]
  %v434 = vld [vmem:[#allocation2 + $0x229] sm:$0xff]
  %v435 = vld [vmem:[#allocation2 + $0x231] sm:$0xff]
  %v436 = vld [vmem:[#allocation2 + $0x241] sm:$0xff]
  %v437 = vld [vmem:[#allocation2 + $0x249] sm:$0xff]
  %v438 = vld [vmem:[#allocation2 + $0x259] sm:$0xff]
  %v439 = vld [vmem:[#allocation2 + $0x261] sm:$0xff]
  %v440 = vld [vmem:[#allocation2 + $0x271] sm:$0xff]
  %v441 = vld [vmem:[#allocation2 + $0x279] sm:$0xff]
  %v442 = vld [vmem:[#allocation2 + $0x289] sm:$0xff]
  %v443 = vld [vmem:[#allocation2 + $0x291] sm:$0xff]
  %v444 = vld [vmem:[#allocation2 + $0x2a1] sm:$0xff]
  %v445 = vld [vmem:[#allocation2 + $0x2a9] sm:$0xff]
  %v446 = vld [vmem:[#allocation2 + $0x2b9] sm:$0xff]
  %v447 = vld [vmem:[#allocation2 + $0x2c1] sm:$0xff]
  %v448 = vld [vmem:[#allocation2 + $0x2d1] sm:$0xff]
  %v449 = vld [vmem:[#allocation2 + $0x2d9] sm:$0xff]
  %v450 = vld [vmem:[#allocation2 + $0x2e9] sm:$0xff]
  %v451 = vld [vmem:[#allocation2 + $0x2f1] sm:$0xff]
  %v452 = vld [vmem:[#allocation2 + $0x301] sm:$0xff]
  %v453 = vld [vmem:[#allocation2 + $0x309] sm:$0xff]
  %v454 = vld [vmem:[#allocation2 + $0x319] sm:$0xff]
  %v455 = vld [vmem:[#allocation2 + $0x321] sm:$0xff]
  %v456 = vld [vmem:[#allocation2 + $0x2] sm:$0xff]
  %v457 = vld [vmem:[#allocation2 + $0xa] sm:$0xff]
  %v458 = vld [vmem:[#allocation2 + $0x1a] sm:$0xff]
  %v459 = vld [vmem:[#allocation2 + $0x22] sm:$0xff]
  %v460 = vld [vmem:[#allocation2 + $0x32] sm:$0xff]
  %v461 = vld [vmem:[#allocation2 + $0x3a] sm:$0xff]
  %v462 = vld [vmem:[#allocation2 + $0x4a] sm:$0xff]
  %v463 = vld [vmem:[#allocation2 + $0x52] sm:$0xff]
  %v464 = vld [vmem:[#allocation2 + $0x62] sm:$0xff]
  %v465 = vld [vmem:[#allocation2 + $0x6a] sm:$0xff]
  %v466 = vld [vmem:[#allocation2 + $0x7a] sm:$0xff]
  %v467 = vld [vmem:[#allocation2 + $0x82] sm:$0xff]
  %v468 = vld [vmem:[#allocation2 + $0x92] sm:$0xff]
  %v469 = vld [vmem:[#allocation2 + $0x9a] sm:$0xff]
  %v470 = vld [vmem:[#allocation2 + $0xaa] sm:$0xff]
  %v471 = vld [vmem:[#allocation2 + $0xb2] sm:$0xff]
  %v472 = vld [vmem:[#allocation2 + $0xc2] sm:$0xff]
  %v473 = vld [vmem:[#allocation2 + $0xca] sm:$0xff]
  %v474 = vld [vmem:[#allocation2 + $0xda] sm:$0xff]
  %v475 = vld [vmem:[#allocation2 + $0xe2] sm:$0xff]
  %v476 = vld [vmem:[#allocation2 + $0xf2] sm:$0xff]
  %v477 = vld [vmem:[#allocation2 + $0xfa] sm:$0xff]
  %v478 = vld [vmem:[#allocation2 + $0x10a] sm:$0xff]
  %v479 = vld [vmem:[#allocation2 + $0x112] sm:$0xff]
  %v480 = vld [vmem:[#allocation2 + $0x122] sm:$0xff]
  %v481 = vld [vmem:[#allocation2 + $0x12a] sm:$0xff]
  %v482 = vld [vmem:[#allocation2 + $0x13a] sm:$0xff]
  %v483 = vld [vmem:[#allocation2 + $0x142] sm:$0xff]
  %v484 = vld [vmem:[#allocation2 + $0x152] sm:$0xff]
  %v485 = vld [vmem:[#allocation2 + $0x15a] sm:$0xff]
  %v486 = vld [vmem:[#allocation2 + $0x16a] sm:$0xff]
  %v487 = vld [vmem:[#allocation2 + $0x172] sm:$0xff]
  %v488 = vld [vmem:[#allocation2 + $0x1b2] sm:$0xff]
  %v489 = vld [vmem:[#allocation2 + $0x1ba] sm:$0xff]
  %v490 = vld [vmem:[#allocation2 + $0x1ca] sm:$0xff]
  %v491 = vld [vmem:[#allocation2 + $0x1d2] sm:$0xff]
  %v492 = vld [vmem:[#allocation2 + $0x1e2] sm:$0xff]
  %v493 = vld [vmem:[#allocation2 + $0x1ea] sm:$0xff]
  %v494 = vld [vmem:[#allocation2 + $0x1fa] sm:$0xff]
  %v495 = vld [vmem:[#allocation2 + $0x202] sm:$0xff]
  %v496 = vld [vmem:[#allocation2 + $0x212] sm:$0xff]
  %v497 = vld [vmem:[#allocation2 + $0x21a] sm:$0xff]
  %v498 = vld [vmem:[#allocation2 + $0x22a] sm:$0xff]
  %v499 = vld [vmem:[#allocation2 + $0x232] sm:$0xff]
  %v500 = vld [vmem:[#allocation2 + $0x242] sm:$0xff]
  %v501 = vld [vmem:[#allocation2 + $0x24a] sm:$0xff]
  %v502 = vld [vmem:[#allocation2 + $0x25a] sm:$0xff]
  %v503 = vld [vmem:[#allocation2 + $0x262] sm:$0xff]
  %v504 = vld [vmem:[#allocation2 + $0x272] sm:$0xff]
  %v505 = vld [vmem:[#allocation2 + $0x27a] sm:$0xff]
  %v506 = vld [vmem:[#allocation2 + $0x28a] sm:$0xff]
  %v507 = vld [vmem:[#allocation2 + $0x292] sm:$0xff]
  %v508 = vld [vmem:[#allocation2 + $0x2a2] sm:$0xff]
  %v509 = vld [vmem:[#allocation2 + $0x2aa] sm:$0xff]
  %v510 = vld [vmem:[#allocation2 + $0x2ba] sm:$0xff]
  %v511 = vld [vmem:[#allocation2 + $0x2c2] sm:$0xff]
  %v512 = vld [vmem:[#allocation2 + $0x2d2] sm:$0xff]
  %v513 = vld [vmem:[#allocation2 + $0x2da] sm:$0xff]
  %v514 = vld [vmem:[#allocation2 + $0x2ea] sm:$0xff]
  %v515 = vld [vmem:[#allocation2 + $0x2f2] sm:$0xff]
  %v516 = vld [vmem:[#allocation2 + $0x302] sm:$0xff]
  %v517 = vld [vmem:[#allocation2 + $0x30a] sm:$0xff]
  %v518 = vld [vmem:[#allocation2 + $0x31a] sm:$0xff]
  %v519 = vld [vmem:[#allocation2 + $0x322] sm:$0xff]
  %v520 = vld [vmem:[%s263] sm:$0xff]
  %v521 = vld [vmem:[%s263 + $0x8] sm:$0xff]
  %v522 = vld [vmem:[%s263 + $0x18] sm:$0xff]
  %v523 = vld [vmem:[%s263 + $0x20] sm:$0xff]
  %v524 = vld [vmem:[%s263 + $0x30] sm:$0xff]
  %v525 = vld [vmem:[%s263 + $0x38] sm:$0xff]
  %v526 = vld [vmem:[%s263 + $0x48] sm:$0xff]
  %v527 = vld [vmem:[%s263 + $0x50] sm:$0xff]
  %v528 = vld [vmem:[%s263 + $0x60] sm:$0xff]
  %v529 = vld [vmem:[%s263 + $0x68] sm:$0xff]
  %v530 = vld [vmem:[%s263 + $0x78] sm:$0xff]
  %v531 = vld [vmem:[%s263 + $0x80] sm:$0xff]
  %v532 = vld [vmem:[%s263 + $0x90] sm:$0xff]
  %v533 = vld [vmem:[%s263 + $0x98] sm:$0xff]
  %v534 = vld [vmem:[%s263 + $0xa8] sm:$0xff]
  %v535 = vld [vmem:[%s263 + $0xb0] sm:$0xff]
  %v536 = vld [vmem:[%s263 + $0xc0] sm:$0xff]
  %v537 = vld [vmem:[%s263 + $0xc8] sm:$0xff]
  %v538 = vld [vmem:[%s263 + $0xd8] sm:$0xff]
  %v539 = vld [vmem:[%s263 + $0xe0] sm:$0xff]
  %v540 = vld [vmem:[%s263 + $0xf0] sm:$0xff]
  %v541 = vld [vmem:[%s263 + $0xf8] sm:$0xff]
  %v542 = vld [vmem:[%s263 + $0x108] sm:$0xff]
  %v543 = vld [vmem:[%s263 + $0x110] sm:$0xff]
  %v544 = vld [vmem:[%s263 + $0x120] sm:$0xff]
  %v545 = vld [vmem:[%s263 + $0x128] sm:$0xff]
  %v546 = vld [vmem:[%s263 + $0x138] sm:$0xff]
  %v547 = vld [vmem:[%s263 + $0x140] sm:$0xff]
  %v548 = vld [vmem:[%s263 + $0x150] sm:$0xff]
  %v549 = vld [vmem:[%s263 + $0x158] sm:$0xff]
  %v550 = vld [vmem:[%s263 + $0x168] sm:$0xff]
  %v551 = vld [vmem:[%s263 + $0x170] sm:$0xff]
  %v552 = vld [vmem:[%s263 + $0x1b0] sm:$0xff]
  %v553 = vld [vmem:[%s263 + $0x1b8] sm:$0xff]
  %v554 = vld [vmem:[%s263 + $0x1c8] sm:$0xff]
  %v555 = vld [vmem:[%s263 + $0x1d0] sm:$0xff]
  %v556 = vld [vmem:[%s263 + $0x1e0] sm:$0xff]
  %v557 = vld [vmem:[%s263 + $0x1e8] sm:$0xff]
  %v558 = vld [vmem:[%s263 + $0x1f8] sm:$0xff]
  %v559 = vld [vmem:[%s263 + $0x200] sm:$0xff]
  %v560 = vld [vmem:[%s263 + $0x210] sm:$0xff]
  %v561 = vld [vmem:[%s263 + $0x218] sm:$0xff]
  %v562 = vld [vmem:[%s263 + $0x228] sm:$0xff]
  %v563 = vld [vmem:[%s263 + $0x230] sm:$0xff]
  %v564 = vld [vmem:[%s263 + $0x240] sm:$0xff]
  %v565 = vld [vmem:[%s263 + $0x248] sm:$0xff]
  %v566 = vld [vmem:[%s263 + $0x258] sm:$0xff]
  %v567 = vld [vmem:[%s263 + $0x260] sm:$0xff]
  %v568 = vld [vmem:[%s263 + $0x270] sm:$0xff]
  %v569 = vld [vmem:[%s263 + $0x278] sm:$0xff]
  %v570 = vld [vmem:[%s263 + $0x288] sm:$0xff]
  %v571 = vld [vmem:[%s263 + $0x290] sm:$0xff]
  %v572 = vld [vmem:[%s263 + $0x2a0] sm:$0xff]
  %v573 = vld [vmem:[%s263 + $0x2a8] sm:$0xff]
  %v574 = vld [vmem:[%s263 + $0x2b8] sm:$0xff]
  %v575 = vld [vmem:[%s263 + $0x2c0] sm:$0xff]
  %v576 = vld [vmem:[%s263 + $0x2d0] sm:$0xff]
  %v577 = vld [vmem:[%s263 + $0x2d8] sm:$0xff]
  %v578 = vld [vmem:[%s263 + $0x2e8] sm:$0xff]
  %v579 = vld [vmem:[%s263 + $0x2f0] sm:$0xff]
  %v580 = vld [vmem:[%s263 + $0x300] sm:$0xff]
  %v581 = vld [vmem:[%s263 + $0x308] sm:$0xff]
  %v582 = vld [vmem:[%s263 + $0x318] sm:$0xff]
  %v583 = vld [vmem:[%s263 + $0x320] sm:$0xff]
  %v584 = vld [vmem:[%s263 + $0x1] sm:$0xff]
  %v585 = vld [vmem:[%s263 + $0x9] sm:$0xff]
  %v586 = vld [vmem:[%s263 + $0x19] sm:$0xff]
  %v587 = vld [vmem:[%s263 + $0x21] sm:$0xff]
  %v588 = vld [vmem:[%s263 + $0x31] sm:$0xff]
  %v589 = vld [vmem:[%s263 + $0x39] sm:$0xff]
  %v590 = vld [vmem:[%s263 + $0x49] sm:$0xff]
  %v591 = vld [vmem:[%s263 + $0x51] sm:$0xff]
  %v592 = vld [vmem:[%s263 + $0x61] sm:$0xff]
  %v593 = vld [vmem:[%s263 + $0x69] sm:$0xff]
  %v594 = vld [vmem:[%s263 + $0x79] sm:$0xff]
  %v595 = vld [vmem:[%s263 + $0x81] sm:$0xff]
  %v596 = vld [vmem:[%s263 + $0x91] sm:$0xff]
  %v597 = vld [vmem:[%s263 + $0x99] sm:$0xff]
  %v598 = vld [vmem:[%s263 + $0xa9] sm:$0xff]
  %v599 = vld [vmem:[%s263 + $0xb1] sm:$0xff]
  %v600 = vld [vmem:[%s263 + $0xc1] sm:$0xff]
  %v601 = vld [vmem:[%s263 + $0xc9] sm:$0xff]
  %v602 = vld [vmem:[%s263 + $0xd9] sm:$0xff]
  %v603 = vld [vmem:[%s263 + $0xe1] sm:$0xff]
  %v604 = vld [vmem:[%s263 + $0xf1] sm:$0xff]
  %v605 = vld [vmem:[%s263 + $0xf9] sm:$0xff]
  %v606 = vld [vmem:[%s263 + $0x109] sm:$0xff]
  %v607 = vld [vmem:[%s263 + $0x111] sm:$0xff]
  %v608 = vld [vmem:[%s263 + $0x121] sm:$0xff]
  %v609 = vld [vmem:[%s263 + $0x129] sm:$0xff]
  %v610 = vld [vmem:[%s263 + $0x139] sm:$0xff]
  %v611 = vld [vmem:[%s263 + $0x141] sm:$0xff]
  %v612 = vld [vmem:[%s263 + $0x151] sm:$0xff]
  %v613 = vld [vmem:[%s263 + $0x159] sm:$0xff]
  %v614 = vld [vmem:[%s263 + $0x169] sm:$0xff]
  %v615 = vld [vmem:[%s263 + $0x171] sm:$0xff]
  %v616 = vld [vmem:[%s263 + $0x1b1] sm:$0xff]
  %v617 = vld [vmem:[%s263 + $0x1b9] sm:$0xff]
  %v618 = vld [vmem:[%s263 + $0x1c9] sm:$0xff]
  %v619 = vld [vmem:[%s263 + $0x1d1] sm:$0xff]
  %v620 = vld [vmem:[%s263 + $0x1e1] sm:$0xff]
  %v621 = vld [vmem:[%s263 + $0x1e9] sm:$0xff]
  %v622 = vld [vmem:[%s263 + $0x1f9] sm:$0xff]
  %v623 = vld [vmem:[%s263 + $0x201] sm:$0xff]
  %v624 = vld [vmem:[%s263 + $0x211] sm:$0xff]
  %v625 = vld [vmem:[%s263 + $0x219] sm:$0xff]
  %v626 = vld [vmem:[%s263 + $0x229] sm:$0xff]
  %v627 = vld [vmem:[%s263 + $0x231] sm:$0xff]
  %v628 = vld [vmem:[%s263 + $0x241] sm:$0xff]
  %v629 = vld [vmem:[%s263 + $0x249] sm:$0xff]
  %v630 = vld [vmem:[%s263 + $0x259] sm:$0xff]
  %v631 = vld [vmem:[%s263 + $0x261] sm:$0xff]
  %v632 = vld [vmem:[%s263 + $0x271] sm:$0xff]
  %v633 = vld [vmem:[%s263 + $0x279] sm:$0xff]
  %v634 = vld [vmem:[%s263 + $0x289] sm:$0xff]
  %v635 = vld [vmem:[%s263 + $0x291] sm:$0xff]
  %v636 = vld [vmem:[%s263 + $0x2a1] sm:$0xff]
  %v637 = vld [vmem:[%s263 + $0x2a9] sm:$0xff]
  %v638 = vld [vmem:[%s263 + $0x2b9] sm:$0xff]
  %v639 = vld [vmem:[%s263 + $0x2c1] sm:$0xff]
  %v640 = vld [vmem:[%s263 + $0x2d1] sm:$0xff]
  %v641 = vld [vmem:[%s263 + $0x2d9] sm:$0xff]
  %v642 = vld [vmem:[%s263 + $0x2e9] sm:$0xff]
  %v643 = vld [vmem:[%s263 + $0x2f1] sm:$0xff]
  %v644 = vld [vmem:[%s263 + $0x301] sm:$0xff]
  %v645 = vld [vmem:[%s263 + $0x309] sm:$0xff]
  %v646 = vld [vmem:[%s263 + $0x319] sm:$0xff]
  %v647 = vld [vmem:[%s263 + $0x321] sm:$0xff]
  %v648 = vld [vmem:[%s263 + $0x2] sm:$0xff]
  %v649 = vld [vmem:[%s263 + $0xa] sm:$0xff]
  %v650 = vld [vmem:[%s263 + $0x1a] sm:$0xff]
  %v651 = vld [vmem:[%s263 + $0x22] sm:$0xff]
  %v652 = vld [vmem:[%s263 + $0x32] sm:$0xff]
  %v653 = vld [vmem:[%s263 + $0x3a] sm:$0xff]
  %v654 = vld [vmem:[%s263 + $0x4a] sm:$0xff]
  %v655 = vld [vmem:[%s263 + $0x52] sm:$0xff]
  %v656 = vld [vmem:[%s263 + $0x62] sm:$0xff]
  %v657 = vld [vmem:[%s263 + $0x6a] sm:$0xff]
  %v658 = vld [vmem:[%s263 + $0x7a] sm:$0xff]
  %v659 = vld [vmem:[%s263 + $0x82] sm:$0xff]
  %v660 = vld [vmem:[%s263 + $0x92] sm:$0xff]
  %v661 = vld [vmem:[%s263 + $0x9a] sm:$0xff]
  %v662 = vld [vmem:[%s263 + $0xaa] sm:$0xff]
  %v663 = vld [vmem:[%s263 + $0xb2] sm:$0xff]
  %v664 = vld [vmem:[%s263 + $0xc2] sm:$0xff]
  %v665 = vld [vmem:[%s263 + $0xca] sm:$0xff]
  %v666 = vld [vmem:[%s263 + $0xda] sm:$0xff]
  %v667 = vld [vmem:[%s263 + $0xe2] sm:$0xff]
  %v668 = vld [vmem:[%s263 + $0xf2] sm:$0xff]
  %v669 = vld [vmem:[%s263 + $0xfa] sm:$0xff]
  %v670 = vld [vmem:[%s263 + $0x10a] sm:$0xff]
  %v671 = vld [vmem:[%s263 + $0x112] sm:$0xff]
  %v672 = vld [vmem:[%s263 + $0x122] sm:$0xff]
  %v673 = vld [vmem:[%s263 + $0x12a] sm:$0xff]
  %v674 = vld [vmem:[%s263 + $0x13a] sm:$0xff]
  %v675 = vld [vmem:[%s263 + $0x142] sm:$0xff]
  %v676 = vld [vmem:[%s263 + $0x152] sm:$0xff]
  %v677 = vld [vmem:[%s263 + $0x15a] sm:$0xff]
  %v678 = vld [vmem:[%s263 + $0x16a] sm:$0xff]
  %v679 = vld [vmem:[%s263 + $0x172] sm:$0xff]
  %v680 = vld [vmem:[%s263 + $0x1b2] sm:$0xff]
  %v681 = vld [vmem:[%s263 + $0x1ba] sm:$0xff]
  %v682 = vld [vmem:[%s263 + $0x1ca] sm:$0xff]
  %v683 = vld [vmem:[%s263 + $0x1d2] sm:$0xff]
  %v684 = vld [vmem:[%s263 + $0x1e2] sm:$0xff]
  %v685 = vld [vmem:[%s263 + $0x1ea] sm:$0xff]
  %v686 = vld [vmem:[%s263 + $0x1fa] sm:$0xff]
  %v687 = vld [vmem:[%s263 + $0x202] sm:$0xff]
  %v688 = vld [vmem:[%s263 + $0x212] sm:$0xff]
  %v689 = vld [vmem:[%s263 + $0x21a] sm:$0xff]
  %v690 = vld [vmem:[%s263 + $0x22a] sm:$0xff]
  %v691 = vld [vmem:[%s263 + $0x232] sm:$0xff]
  %v692 = vld [vmem:[%s263 + $0x242] sm:$0xff]
  %v693 = vld [vmem:[%s263 + $0x24a] sm:$0xff]
  %v694 = vld [vmem:[%s263 + $0x25a] sm:$0xff]
  %v695 = vld [vmem:[%s263 + $0x262] sm:$0xff]
  %v696 = vld [vmem:[%s263 + $0x272] sm:$0xff]
  %v697 = vld [vmem:[%s263 + $0x27a] sm:$0xff]
  %v698 = vld [vmem:[%s263 + $0x28a] sm:$0xff]
  %v699 = vld [vmem:[%s263 + $0x292] sm:$0xff]
  %v700 = vld [vmem:[%s263 + $0x2a2] sm:$0xff]
  %v701 = vld [vmem:[%s263 + $0x2aa] sm:$0xff]
  %v702 = vld [vmem:[%s263 + $0x2ba] sm:$0xff]
  %v703 = vld [vmem:[%s263 + $0x2c2] sm:$0xff]
  %v704 = vld [vmem:[%s263 + $0x2d2] sm:$0xff]
  %v705 = vld [vmem:[%s263 + $0x2da] sm:$0xff]
  %v706 = vld [vmem:[%s263 + $0x2ea] sm:$0xff]
  %v707 = vld [vmem:[%s263 + $0x2f2] sm:$0xff]
  %v708 = vld [vmem:[%s263 + $0x302] sm:$0xff]
  %v709 = vld [vmem:[%s263 + $0x30a] sm:$0xff]
  %v710 = vld [vmem:[%s263 + $0x31a] sm:$0xff]
  %v711 = vld [vmem:[%s263 + $0x322] sm:$0xff]
  %s712 = scalar_lea.vmem [#allocation2], 48
  %v713 = vld [vmem:[%s712] sm:$0xff]
  %v714 = vld [vmem:[%s712 + $0x8] sm:$0xff]
  %v715 = vld [vmem:[%s712 + $0x18] sm:$0xff]
  %v716 = vld [vmem:[%s712 + $0x20] sm:$0xff]
  %v717 = vld [vmem:[%s712 + $0x30] sm:$0xff]
  %v718 = vld [vmem:[%s712 + $0x38] sm:$0xff]
  %v719 = vld [vmem:[%s712 + $0x48] sm:$0xff]
  %v720 = vld [vmem:[%s712 + $0x50] sm:$0xff]
  %v721 = vld [vmem:[%s712 + $0x60] sm:$0xff]
  %v722 = vld [vmem:[%s712 + $0x68] sm:$0xff]
  %v723 = vld [vmem:[%s712 + $0x78] sm:$0xff]
  %v724 = vld [vmem:[%s712 + $0x80] sm:$0xff]
  %v725 = vld [vmem:[%s712 + $0x90] sm:$0xff]
  %v726 = vld [vmem:[%s712 + $0x98] sm:$0xff]
  %v727 = vld [vmem:[%s712 + $0xa8] sm:$0xff]
  %v728 = vld [vmem:[%s712 + $0xb0] sm:$0xff]
  %v729 = vld [vmem:[%s712 + $0xc0] sm:$0xff]
  %v730 = vld [vmem:[%s712 + $0xc8] sm:$0xff]
  %v731 = vld [vmem:[%s712 + $0xd8] sm:$0xff]
  %v732 = vld [vmem:[%s712 + $0xe0] sm:$0xff]
  %v733 = vld [vmem:[%s712 + $0xf0] sm:$0xff]
  %v734 = vld [vmem:[%s712 + $0xf8] sm:$0xff]
  %v735 = vld [vmem:[%s712 + $0x108] sm:$0xff]
  %v736 = vld [vmem:[%s712 + $0x110] sm:$0xff]
  %v737 = vld [vmem:[%s712 + $0x120] sm:$0xff]
  %v738 = vld [vmem:[%s712 + $0x128] sm:$0xff]
  %v739 = vld [vmem:[%s712 + $0x138] sm:$0xff]
  %v740 = vld [vmem:[%s712 + $0x140] sm:$0xff]
  %v741 = vld [vmem:[%s712 + $0x150] sm:$0xff]
  %v742 = vld [vmem:[%s712 + $0x158] sm:$0xff]
  %v743 = vld [vmem:[%s712 + $0x168] sm:$0xff]
  %v744 = vld [vmem:[%s712 + $0x170] sm:$0xff]
  %v745 = vld [vmem:[%s712 + $0x1b0] sm:$0xff]
  %v746 = vld [vmem:[%s712 + $0x1b8] sm:$0xff]
  %v747 = vld [vmem:[%s712 + $0x1c8] sm:$0xff]
  %v748 = vld [vmem:[%s712 + $0x1d0] sm:$0xff]
  %v749 = vld [vmem:[%s712 + $0x1e0] sm:$0xff]
  %v750 = vld [vmem:[%s712 + $0x1e8] sm:$0xff]
  %v751 = vld [vmem:[%s712 + $0x1f8] sm:$0xff]
  %v752 = vld [vmem:[%s712 + $0x200] sm:$0xff]
  %v753 = vld [vmem:[%s712 + $0x210] sm:$0xff]
  %v754 = vld [vmem:[%s712 + $0x218] sm:$0xff]
  %v755 = vld [vmem:[%s712 + $0x228] sm:$0xff]
  %v756 = vld [vmem:[%s712 + $0x230] sm:$0xff]
  %v757 = vld [vmem:[%s712 + $0x240] sm:$0xff]
  %v758 = vld [vmem:[%s712 + $0x248] sm:$0xff]
  %v759 = vld [vmem:[%s712 + $0x258] sm:$0xff]
  %v760 = vld [vmem:[%s712 + $0x260] sm:$0xff]
  %v761 = vld [vmem:[%s712 + $0x270] sm:$0xff]
  %v762 = vld [vmem:[%s712 + $0x278] sm:$0xff]
  %v763 = vld [vmem:[%s712 + $0x288] sm:$0xff]
  %v764 = vld [vmem:[%s712 + $0x290] sm:$0xff]
  %v765 = vld [vmem:[%s712 + $0x2a0] sm:$0xff]
  %v766 = vld [vmem:[%s712 + $0x2a8] sm:$0xff]
  %v767 = vld [vmem:[%s712 + $0x2b8] sm:$0xff]
  %v768 = vld [vmem:[%s712 + $0x2c0] sm:$0xff]
  %v769 = vld [vmem:[%s712 + $0x2d0] sm:$0xff]
  %v770 = vld [vmem:[%s712 + $0x2d8] sm:$0xff]
  %v771 = vld [vmem:[%s712 + $0x2e8] sm:$0xff]
  %v772 = vld [vmem:[%s712 + $0x2f0] sm:$0xff]
  %v773 = vld [vmem:[%s712 + $0x300] sm:$0xff]
  %v774 = vld [vmem:[%s712 + $0x308] sm:$0xff]
  %v775 = vld [vmem:[%s712 + $0x318] sm:$0xff]
  %v776 = vld [vmem:[%s712 + $0x320] sm:$0xff]
  %v777 = vld [vmem:[%s712 + $0x1] sm:$0xff]
  %v778 = vld [vmem:[%s712 + $0x9] sm:$0xff]
  %v779 = vld [vmem:[%s712 + $0x19] sm:$0xff]
  %v780 = vld [vmem:[%s712 + $0x21] sm:$0xff]
  %v781 = vld [vmem:[%s712 + $0x31] sm:$0xff]
  %v782 = vld [vmem:[%s712 + $0x39] sm:$0xff]
  %v783 = vld [vmem:[%s712 + $0x49] sm:$0xff]
  %v784 = vld [vmem:[%s712 + $0x51] sm:$0xff]
  %v785 = vld [vmem:[%s712 + $0x61] sm:$0xff]
  %v786 = vld [vmem:[%s712 + $0x69] sm:$0xff]
  %v787 = vld [vmem:[%s712 + $0x79] sm:$0xff]
  %v788 = vld [vmem:[%s712 + $0x81] sm:$0xff]
  %v789 = vld [vmem:[%s712 + $0x91] sm:$0xff]
  %v790 = vld [vmem:[%s712 + $0x99] sm:$0xff]
  %v791 = vld [vmem:[%s712 + $0xa9] sm:$0xff]
  %v792 = vld [vmem:[%s712 + $0xb1] sm:$0xff]
  %v793 = vld [vmem:[%s712 + $0xc1] sm:$0xff]
  %v794 = vld [vmem:[%s712 + $0xc9] sm:$0xff]
  %v795 = vld [vmem:[%s712 + $0xd9] sm:$0xff]
  %v796 = vld [vmem:[%s712 + $0xe1] sm:$0xff]
  %v797 = vld [vmem:[%s712 + $0xf1] sm:$0xff]
  %v798 = vld [vmem:[%s712 + $0xf9] sm:$0xff]
  %v799 = vld [vmem:[%s712 + $0x109] sm:$0xff]
  %v800 = vld [vmem:[%s712 + $0x111] sm:$0xff]
  %v801 = vld [vmem:[%s712 + $0x121] sm:$0xff]
  %v802 = vld [vmem:[%s712 + $0x129] sm:$0xff]
  %v803 = vld [vmem:[%s712 + $0x139] sm:$0xff]
  %v804 = vld [vmem:[%s712 + $0x141] sm:$0xff]
  %v805 = vld [vmem:[%s712 + $0x151] sm:$0xff]
  %v806 = vld [vmem:[%s712 + $0x159] sm:$0xff]
  %v807 = vld [vmem:[%s712 + $0x169] sm:$0xff]
  %v808 = vld [vmem:[%s712 + $0x171] sm:$0xff]
  %v809 = vld [vmem:[%s712 + $0x1b1] sm:$0xff]
  %v810 = vld [vmem:[%s712 + $0x1b9] sm:$0xff]
  %v811 = vld [vmem:[%s712 + $0x1c9] sm:$0xff]
  %v812 = vld [vmem:[%s712 + $0x1d1] sm:$0xff]
  %v813 = vld [vmem:[%s712 + $0x1e1] sm:$0xff]
  %v814 = vld [vmem:[%s712 + $0x1e9] sm:$0xff]
  %v815 = vld [vmem:[%s712 + $0x1f9] sm:$0xff]
  %v816 = vld [vmem:[%s712 + $0x201] sm:$0xff]
  %v817 = vld [vmem:[%s712 + $0x211] sm:$0xff]
  %v818 = vld [vmem:[%s712 + $0x219] sm:$0xff]
  %v819 = vld [vmem:[%s712 + $0x229] sm:$0xff]
  %v820 = vld [vmem:[%s712 + $0x231] sm:$0xff]
  %v821 = vld [vmem:[%s712 + $0x241] sm:$0xff]
  %v822 = vld [vmem:[%s712 + $0x249] sm:$0xff]
  %v823 = vld [vmem:[%s712 + $0x259] sm:$0xff]
  %v824 = vld [vmem:[%s712 + $0x261] sm:$0xff]
  %v825 = vld [vmem:[%s712 + $0x271] sm:$0xff]
  %v826 = vld [vmem:[%s712 + $0x279] sm:$0xff]
  %v827 = vld [vmem:[%s712 + $0x289] sm:$0xff]
  %v828 = vld [vmem:[%s712 + $0x291] sm:$0xff]
  %v829 = vld [vmem:[%s712 + $0x2a1] sm:$0xff]
  %v830 = vld [vmem:[%s712 + $0x2a9] sm:$0xff]
  %v831 = vld [vmem:[%s712 + $0x2b9] sm:$0xff]
  %v832 = vld [vmem:[%s712 + $0x2c1] sm:$0xff]
  %v833 = vld [vmem:[%s712 + $0x2d1] sm:$0xff]
  %v834 = vld [vmem:[%s712 + $0x2d9] sm:$0xff]
  %v835 = vld [vmem:[%s712 + $0x2e9] sm:$0xff]
  %v836 = vld [vmem:[%s712 + $0x2f1] sm:$0xff]
  %v837 = vld [vmem:[%s712 + $0x301] sm:$0xff]
  %v838 = vld [vmem:[%s712 + $0x309] sm:$0xff]
  %v839 = vld [vmem:[%s712 + $0x319] sm:$0xff]
  %v840 = vld [vmem:[%s712 + $0x321] sm:$0xff]
  %v841 = vld [vmem:[%s712 + $0x2] sm:$0xff]
  %v842 = vld [vmem:[%s712 + $0xa] sm:$0xff]
  %v843 = vld [vmem:[%s712 + $0x1a] sm:$0xff]
  %v844 = vld [vmem:[%s712 + $0x22] sm:$0xff]
  %v845 = vld [vmem:[%s712 + $0x32] sm:$0xff]
  %v846 = vld [vmem:[%s712 + $0x3a] sm:$0xff]
  %v847 = vld [vmem:[%s712 + $0x4a] sm:$0xff]
  %v848 = vld [vmem:[%s712 + $0x52] sm:$0xff]
  %v849 = vld [vmem:[%s712 + $0x62] sm:$0xff]
  %v850 = vld [vmem:[%s712 + $0x6a] sm:$0xff]
  %v851 = vld [vmem:[%s712 + $0x7a] sm:$0xff]
  %v852 = vld [vmem:[%s712 + $0x82] sm:$0xff]
  %v853 = vld [vmem:[%s712 + $0x92] sm:$0xff]
  %v854 = vld [vmem:[%s712 + $0x9a] sm:$0xff]
  %v855 = vld [vmem:[%s712 + $0xaa] sm:$0xff]
  %v856 = vld [vmem:[%s712 + $0xb2] sm:$0xff]
  %v857 = vld [vmem:[%s712 + $0xc2] sm:$0xff]
  %v858 = vld [vmem:[%s712 + $0xca] sm:$0xff]
  %v859 = vld [vmem:[%s712 + $0xda] sm:$0xff]
  %v860 = vld [vmem:[%s712 + $0xe2] sm:$0xff]
  %v861 = vld [vmem:[%s712 + $0xf2] sm:$0xff]
  %v862 = vld [vmem:[%s712 + $0xfa] sm:$0xff]
  %v863 = vld [vmem:[%s712 + $0x10a] sm:$0xff]
  %v864 = vld [vmem:[%s712 + $0x112] sm:$0xff]
  %v865 = vld [vmem:[%s712 + $0x122] sm:$0xff]
  %v866 = vld [vmem:[%s712 + $0x12a] sm:$0xff]
  %v867 = vld [vmem:[%s712 + $0x13a] sm:$0xff]
  %v868 = vld [vmem:[%s712 + $0x142] sm:$0xff]
  %v869 = vld [vmem:[%s712 + $0x152] sm:$0xff]
  %v870 = vld [vmem:[%s712 + $0x15a] sm:$0xff]
  %v871 = vld [vmem:[%s712 + $0x16a] sm:$0xff]
  %v872 = vld [vmem:[%s712 + $0x172] sm:$0xff]
  %v873 = vld [vmem:[%s712 + $0x1b2] sm:$0xff]
  %v874 = vld [vmem:[%s712 + $0x1ba] sm:$0xff]
  %v875 = vld [vmem:[%s712 + $0x1ca] sm:$0xff]
  %v876 = vld [vmem:[%s712 + $0x1d2] sm:$0xff]
  %v877 = vld [vmem:[%s712 + $0x1e2] sm:$0xff]
  %v878 = vld [vmem:[%s712 + $0x1ea] sm:$0xff]
  %v879 = vld [vmem:[%s712 + $0x1fa] sm:$0xff]
  %v880 = vld [vmem:[%s712 + $0x202] sm:$0xff]
  %v881 = vld [vmem:[%s712 + $0x212] sm:$0xff]
  %v882 = vld [vmem:[%s712 + $0x21a] sm:$0xff]
  %v883 = vld [vmem:[%s712 + $0x22a] sm:$0xff]
  %v884 = vld [vmem:[%s712 + $0x232] sm:$0xff]
  %v885 = vld [vmem:[%s712 + $0x242] sm:$0xff]
  %v886 = vld [vmem:[%s712 + $0x24a] sm:$0xff]
  %v887 = vld [vmem:[%s712 + $0x25a] sm:$0xff]
  %v888 = vld [vmem:[%s712 + $0x262] sm:$0xff]
  %v889 = vld [vmem:[%s712 + $0x272] sm:$0xff]
  %v890 = vld [vmem:[%s712 + $0x27a] sm:$0xff]
  %v891 = vld [vmem:[%s712 + $0x28a] sm:$0xff]
  %v892 = vld [vmem:[%s712 + $0x292] sm:$0xff]
  %v893 = vld [vmem:[%s712 + $0x2a2] sm:$0xff]
  %v894 = vld [vmem:[%s712 + $0x2aa] sm:$0xff]
  %v895 = vld [vmem:[%s712 + $0x2ba] sm:$0xff]
  %v896 = vld [vmem:[%s712 + $0x2c2] sm:$0xff]
  %v897 = vld [vmem:[%s712 + $0x2d2] sm:$0xff]
  %v898 = vld [vmem:[%s712 + $0x2da] sm:$0xff]
  %v899 = vld [vmem:[%s712 + $0x2ea] sm:$0xff]
  %v900 = vld [vmem:[%s712 + $0x2f2] sm:$0xff]
  %v901 = vld [vmem:[%s712 + $0x302] sm:$0xff]
  %v902 = vld [vmem:[%s712 + $0x30a] sm:$0xff]
  %v903 = vld [vmem:[%s712 + $0x31a] sm:$0xff]
  %v904 = vld [vmem:[%s712 + $0x322] sm:$0xff]
  %969 = vrot.lane.b32.xlu0 %v392, 4
  %v970 = vpop.permute.xlu0 %969
  %971 = vrot.lane.b32.xlu0 %v393, 4
  %v972 = vpop.permute.xlu0 %971
  %973 = vrot.lane.b32.xlu0 %v394, 4
  %v974 = vpop.permute.xlu0 %973
  %975 = vrot.lane.b32.xlu0 %v395, 4
  %v976 = vpop.permute.xlu0 %975
  %977 = vrot.lane.b32.xlu0 %v396, 4
  %v978 = vpop.permute.xlu0 %977
  %979 = vrot.lane.b32.xlu0 %v397, 4
  %v980 = vpop.permute.xlu0 %979
  %981 = vrot.lane.b32.xlu0 %v398, 4
  %v982 = vpop.permute.xlu0 %981
  %983 = vrot.lane.b32.xlu0 %v399, 4
  %v984 = vpop.permute.xlu0 %983
  %985 = vrot.lane.b32.xlu0 %v400, 4
  %v986 = vpop.permute.xlu0 %985
  %987 = vrot.lane.b32.xlu0 %v401, 4
  %v988 = vpop.permute.xlu0 %987
  %989 = vrot.lane.b32.xlu0 %v402, 4
  %v990 = vpop.permute.xlu0 %989
  %991 = vrot.lane.b32.xlu0 %v403, 4
  %v992 = vpop.permute.xlu0 %991
  %993 = vrot.lane.b32.xlu0 %v404, 4
  %v994 = vpop.permute.xlu0 %993
  %995 = vrot.lane.b32.xlu0 %v405, 4
  %v996 = vpop.permute.xlu0 %995
  %997 = vrot.lane.b32.xlu0 %v406, 4
  %v998 = vpop.permute.xlu0 %997
  %999 = vrot.lane.b32.xlu0 %v407, 4
  %v1000 = vpop.permute.xlu0 %999
  %1001 = vrot.lane.b32.xlu0 %v408, 4
  %v1002 = vpop.permute.xlu0 %1001
  %1003 = vrot.lane.b32.xlu0 %v409, 4
  %v1004 = vpop.permute.xlu0 %1003
  %1005 = vrot.lane.b32.xlu0 %v410, 4
  %v1006 = vpop.permute.xlu0 %1005
  %1007 = vrot.lane.b32.xlu0 %v411, 4
  %v1008 = vpop.permute.xlu0 %1007
  %1009 = vrot.lane.b32.xlu0 %v412, 4
  %v1010 = vpop.permute.xlu0 %1009
  %1011 = vrot.lane.b32.xlu0 %v413, 4
  %v1012 = vpop.permute.xlu0 %1011
  %1013 = vrot.lane.b32.xlu0 %v414, 4
  %v1014 = vpop.permute.xlu0 %1013
  %1015 = vrot.lane.b32.xlu0 %v415, 4
  %v1016 = vpop.permute.xlu0 %1015
  %1017 = vrot.lane.b32.xlu0 %v416, 4
  %v1018 = vpop.permute.xlu0 %1017
  %1019 = vrot.lane.b32.xlu0 %v417, 4
  %v1020 = vpop.permute.xlu0 %1019
  %1021 = vrot.lane.b32.xlu0 %v418, 4
  %v1022 = vpop.permute.xlu0 %1021
  %1023 = vrot.lane.b32.xlu0 %v419, 4
  %v1024 = vpop.permute.xlu0 %1023
  %1025 = vrot.lane.b32.xlu0 %v420, 4
  %v1026 = vpop.permute.xlu0 %1025
  %1027 = vrot.lane.b32.xlu0 %v421, 4
  %v1028 = vpop.permute.xlu0 %1027
  %1029 = vrot.lane.b32.xlu0 %v422, 4
  %v1030 = vpop.permute.xlu0 %1029
  %1031 = vrot.lane.b32.xlu0 %v423, 4
  %v1032 = vpop.permute.xlu0 %1031
  %1033 = vrot.lane.b32.xlu0 %v424, 4
  %v1034 = vpop.permute.xlu0 %1033
  %1035 = vrot.lane.b32.xlu0 %v425, 4
  %v1036 = vpop.permute.xlu0 %1035
  %1037 = vrot.lane.b32.xlu0 %v426, 4
  %v1038 = vpop.permute.xlu0 %1037
  %1039 = vrot.lane.b32.xlu0 %v427, 4
  %v1040 = vpop.permute.xlu0 %1039
  %1041 = vrot.lane.b32.xlu0 %v428, 4
  %v1042 = vpop.permute.xlu0 %1041
  %1043 = vrot.lane.b32.xlu0 %v429, 4
  %v1044 = vpop.permute.xlu0 %1043
  %1045 = vrot.lane.b32.xlu0 %v430, 4
  %v1046 = vpop.permute.xlu0 %1045
  %1047 = vrot.lane.b32.xlu0 %v431, 4
  %v1048 = vpop.permute.xlu0 %1047
  %1049 = vrot.lane.b32.xlu0 %v432, 4
  %v1050 = vpop.permute.xlu0 %1049
  %1051 = vrot.lane.b32.xlu0 %v433, 4
  %v1052 = vpop.permute.xlu0 %1051
  %1053 = vrot.lane.b32.xlu0 %v434, 4
  %v1054 = vpop.permute.xlu0 %1053
  %1055 = vrot.lane.b32.xlu0 %v435, 4
  %v1056 = vpop.permute.xlu0 %1055
  %1057 = vrot.lane.b32.xlu0 %v436, 4
  %v1058 = vpop.permute.xlu0 %1057
  %1059 = vrot.lane.b32.xlu0 %v437, 4
  %v1060 = vpop.permute.xlu0 %1059
  %1061 = vrot.lane.b32.xlu0 %v438, 4
  %v1062 = vpop.permute.xlu0 %1061
  %1063 = vrot.lane.b32.xlu0 %v439, 4
  %v1064 = vpop.permute.xlu0 %1063
  %1065 = vrot.lane.b32.xlu0 %v440, 4
  %v1066 = vpop.permute.xlu0 %1065
  %1067 = vrot.lane.b32.xlu0 %v441, 4
  %v1068 = vpop.permute.xlu0 %1067
  %1069 = vrot.lane.b32.xlu0 %v442, 4
  %v1070 = vpop.permute.xlu0 %1069
  %1071 = vrot.lane.b32.xlu0 %v443, 4
  %v1072 = vpop.permute.xlu0 %1071
  %1073 = vrot.lane.b32.xlu0 %v444, 4
  %v1074 = vpop.permute.xlu0 %1073
  %1075 = vrot.lane.b32.xlu0 %v445, 4
  %v1076 = vpop.permute.xlu0 %1075
  %1077 = vrot.lane.b32.xlu0 %v446, 4
  %v1078 = vpop.permute.xlu0 %1077
  %1079 = vrot.lane.b32.xlu0 %v447, 4
  %v1080 = vpop.permute.xlu0 %1079
  %1081 = vrot.lane.b32.xlu0 %v448, 4
  %v1082 = vpop.permute.xlu0 %1081
  %1083 = vrot.lane.b32.xlu0 %v449, 4
  %v1084 = vpop.permute.xlu0 %1083
  %1085 = vrot.lane.b32.xlu0 %v450, 4
  %v1086 = vpop.permute.xlu0 %1085
  %1087 = vrot.lane.b32.xlu0 %v451, 4
  %v1088 = vpop.permute.xlu0 %1087
  %1089 = vrot.lane.b32.xlu0 %v452, 4
  %v1090 = vpop.permute.xlu0 %1089
  %1091 = vrot.lane.b32.xlu0 %v453, 4
  %v1092 = vpop.permute.xlu0 %1091
  %1093 = vrot.lane.b32.xlu0 %v454, 4
  %v1094 = vpop.permute.xlu0 %1093
  %1095 = vrot.lane.b32.xlu0 %v455, 4
  %v1096 = vpop.permute.xlu0 %1095
  %1225 = vrot.lane.b32.xlu0 %v456, 8
  %v1226 = vpop.permute.xlu0 %1225
  %1227 = vrot.lane.b32.xlu0 %v457, 8
  %v1228 = vpop.permute.xlu0 %1227
  %1229 = vrot.lane.b32.xlu0 %v458, 8
  %v1230 = vpop.permute.xlu0 %1229
  %1231 = vrot.lane.b32.xlu0 %v459, 8
  %v1232 = vpop.permute.xlu0 %1231
  %1233 = vrot.lane.b32.xlu0 %v460, 8
  %v1234 = vpop.permute.xlu0 %1233
  %1235 = vrot.lane.b32.xlu0 %v461, 8
  %v1236 = vpop.permute.xlu0 %1235
  %1237 = vrot.lane.b32.xlu0 %v462, 8
  %v1238 = vpop.permute.xlu0 %1237
  %1239 = vrot.lane.b32.xlu0 %v463, 8
  %v1240 = vpop.permute.xlu0 %1239
  %1241 = vrot.lane.b32.xlu0 %v464, 8
  %v1242 = vpop.permute.xlu0 %1241
  %1243 = vrot.lane.b32.xlu0 %v465, 8
  %v1244 = vpop.permute.xlu0 %1243
  %1245 = vrot.lane.b32.xlu0 %v466, 8
  %v1246 = vpop.permute.xlu0 %1245
  %1247 = vrot.lane.b32.xlu0 %v467, 8
  %v1248 = vpop.permute.xlu0 %1247
  %1249 = vrot.lane.b32.xlu0 %v468, 8
  %v1250 = vpop.permute.xlu0 %1249
  %1251 = vrot.lane.b32.xlu0 %v469, 8
  %v1252 = vpop.permute.xlu0 %1251
  %1253 = vrot.lane.b32.xlu0 %v470, 8
  %v1254 = vpop.permute.xlu0 %1253
  %1255 = vrot.lane.b32.xlu0 %v471, 8
  %v1256 = vpop.permute.xlu0 %1255
  %1257 = vrot.lane.b32.xlu0 %v472, 8
  %v1258 = vpop.permute.xlu0 %1257
  %1259 = vrot.lane.b32.xlu0 %v473, 8
  %v1260 = vpop.permute.xlu0 %1259
  %1261 = vrot.lane.b32.xlu0 %v474, 8
  %v1262 = vpop.permute.xlu0 %1261
  %1263 = vrot.lane.b32.xlu0 %v475, 8
  %v1264 = vpop.permute.xlu0 %1263
  %1265 = vrot.lane.b32.xlu0 %v476, 8
  %v1266 = vpop.permute.xlu0 %1265
  %1267 = vrot.lane.b32.xlu0 %v477, 8
  %v1268 = vpop.permute.xlu0 %1267
  %1269 = vrot.lane.b32.xlu0 %v478, 8
  %v1270 = vpop.permute.xlu0 %1269
  %1271 = vrot.lane.b32.xlu0 %v479, 8
  %v1272 = vpop.permute.xlu0 %1271
  %1273 = vrot.lane.b32.xlu0 %v480, 8
  %v1274 = vpop.permute.xlu0 %1273
  %1275 = vrot.lane.b32.xlu0 %v481, 8
  %v1276 = vpop.permute.xlu0 %1275
  %1277 = vrot.lane.b32.xlu0 %v482, 8
  %v1278 = vpop.permute.xlu0 %1277
  %1279 = vrot.lane.b32.xlu0 %v483, 8
  %v1280 = vpop.permute.xlu0 %1279
  %1281 = vrot.lane.b32.xlu0 %v484, 8
  %v1282 = vpop.permute.xlu0 %1281
  %1283 = vrot.lane.b32.xlu0 %v485, 8
  %v1284 = vpop.permute.xlu0 %1283
  %1285 = vrot.lane.b32.xlu0 %v486, 8
  %v1286 = vpop.permute.xlu0 %1285
  %1287 = vrot.lane.b32.xlu0 %v487, 8
  %v1288 = vpop.permute.xlu0 %1287
  %1289 = vrot.lane.b32.xlu0 %v488, 8
  %v1290 = vpop.permute.xlu0 %1289
  %1291 = vrot.lane.b32.xlu0 %v489, 8
  %v1292 = vpop.permute.xlu0 %1291
  %1293 = vrot.lane.b32.xlu0 %v490, 8
  %v1294 = vpop.permute.xlu0 %1293
  %1295 = vrot.lane.b32.xlu0 %v491, 8
  %v1296 = vpop.permute.xlu0 %1295
  %1297 = vrot.lane.b32.xlu0 %v492, 8
  %v1298 = vpop.permute.xlu0 %1297
  %1299 = vrot.lane.b32.xlu0 %v493, 8
  %v1300 = vpop.permute.xlu0 %1299
  %1301 = vrot.lane.b32.xlu0 %v494, 8
  %v1302 = vpop.permute.xlu0 %1301
  %1303 = vrot.lane.b32.xlu0 %v495, 8
  %v1304 = vpop.permute.xlu0 %1303
  %1305 = vrot.lane.b32.xlu0 %v496, 8
  %v1306 = vpop.permute.xlu0 %1305
  %1307 = vrot.lane.b32.xlu0 %v497, 8
  %v1308 = vpop.permute.xlu0 %1307
  %1309 = vrot.lane.b32.xlu0 %v498, 8
  %v1310 = vpop.permute.xlu0 %1309
  %1311 = vrot.lane.b32.xlu0 %v499, 8
  %v1312 = vpop.permute.xlu0 %1311
  %1313 = vrot.lane.b32.xlu0 %v500, 8
  %v1314 = vpop.permute.xlu0 %1313
  %1315 = vrot.lane.b32.xlu0 %v501, 8
  %v1316 = vpop.permute.xlu0 %1315
  %1317 = vrot.lane.b32.xlu0 %v502, 8
  %v1318 = vpop.permute.xlu0 %1317
  %1319 = vrot.lane.b32.xlu0 %v503, 8
  %v1320 = vpop.permute.xlu0 %1319
  %1321 = vrot.lane.b32.xlu0 %v504, 8
  %v1322 = vpop.permute.xlu0 %1321
  %1323 = vrot.lane.b32.xlu0 %v505, 8
  %v1324 = vpop.permute.xlu0 %1323
  %1325 = vrot.lane.b32.xlu0 %v506, 8
  %v1326 = vpop.permute.xlu0 %1325
  %1327 = vrot.lane.b32.xlu0 %v507, 8
  %v1328 = vpop.permute.xlu0 %1327
  %1329 = vrot.lane.b32.xlu0 %v508, 8
  %v1330 = vpop.permute.xlu0 %1329
  %1331 = vrot.lane.b32.xlu0 %v509, 8
  %v1332 = vpop.permute.xlu0 %1331
  %1333 = vrot.lane.b32.xlu0 %v510, 8
  %v1334 = vpop.permute.xlu0 %1333
  %1335 = vrot.lane.b32.xlu0 %v511, 8
  %v1336 = vpop.permute.xlu0 %1335
  %1337 = vrot.lane.b32.xlu0 %v512, 8
  %v1338 = vpop.permute.xlu0 %1337
  %1339 = vrot.lane.b32.xlu0 %v513, 8
  %v1340 = vpop.permute.xlu0 %1339
  %1341 = vrot.lane.b32.xlu0 %v514, 8
  %v1342 = vpop.permute.xlu0 %1341
  %1343 = vrot.lane.b32.xlu0 %v515, 8
  %v1344 = vpop.permute.xlu0 %1343
  %1345 = vrot.lane.b32.xlu0 %v516, 8
  %v1346 = vpop.permute.xlu0 %1345
  %1347 = vrot.lane.b32.xlu0 %v517, 8
  %v1348 = vpop.permute.xlu0 %1347
  %1349 = vrot.lane.b32.xlu0 %v518, 8
  %v1350 = vpop.permute.xlu0 %1349
  %1351 = vrot.lane.b32.xlu0 %v519, 8
  %v1352 = vpop.permute.xlu0 %1351
  %1481 = vrot.lane.b32.xlu0 %v520, 12
  %v1482 = vpop.permute.xlu0 %1481
  %1483 = vrot.lane.b32.xlu0 %v521, 12
  %v1484 = vpop.permute.xlu0 %1483
  %1485 = vrot.lane.b32.xlu0 %v522, 12
  %v1486 = vpop.permute.xlu0 %1485
  %1487 = vrot.lane.b32.xlu0 %v523, 12
  %v1488 = vpop.permute.xlu0 %1487
  %1489 = vrot.lane.b32.xlu0 %v524, 12
  %v1490 = vpop.permute.xlu0 %1489
  %1491 = vrot.lane.b32.xlu0 %v525, 12
  %v1492 = vpop.permute.xlu0 %1491
  %1493 = vrot.lane.b32.xlu0 %v526, 12
  %v1494 = vpop.permute.xlu0 %1493
  %1495 = vrot.lane.b32.xlu0 %v527, 12
  %v1496 = vpop.permute.xlu0 %1495
  %1497 = vrot.lane.b32.xlu0 %v528, 12
  %v1498 = vpop.permute.xlu0 %1497
  %1499 = vrot.lane.b32.xlu0 %v529, 12
  %v1500 = vpop.permute.xlu0 %1499
  %1501 = vrot.lane.b32.xlu0 %v530, 12
  %v1502 = vpop.permute.xlu0 %1501
  %1503 = vrot.lane.b32.xlu0 %v531, 12
  %v1504 = vpop.permute.xlu0 %1503
  %1505 = vrot.lane.b32.xlu0 %v532, 12
  %v1506 = vpop.permute.xlu0 %1505
  %1507 = vrot.lane.b32.xlu0 %v533, 12
  %v1508 = vpop.permute.xlu0 %1507
  %1509 = vrot.lane.b32.xlu0 %v534, 12
  %v1510 = vpop.permute.xlu0 %1509
  %1511 = vrot.lane.b32.xlu0 %v535, 12
  %v1512 = vpop.permute.xlu0 %1511
  %1513 = vrot.lane.b32.xlu0 %v536, 12
  %v1514 = vpop.permute.xlu0 %1513
  %1515 = vrot.lane.b32.xlu0 %v537, 12
  %v1516 = vpop.permute.xlu0 %1515
  %1517 = vrot.lane.b32.xlu0 %v538, 12
  %v1518 = vpop.permute.xlu0 %1517
  %1519 = vrot.lane.b32.xlu0 %v539, 12
  %v1520 = vpop.permute.xlu0 %1519
  %1521 = vrot.lane.b32.xlu0 %v540, 12
  %v1522 = vpop.permute.xlu0 %1521
  %1523 = vrot.lane.b32.xlu0 %v541, 12
  %v1524 = vpop.permute.xlu0 %1523
  %1525 = vrot.lane.b32.xlu0 %v542, 12
  %v1526 = vpop.permute.xlu0 %1525
  %1527 = vrot.lane.b32.xlu0 %v543, 12
  %v1528 = vpop.permute.xlu0 %1527
  %1529 = vrot.lane.b32.xlu0 %v544, 12
  %v1530 = vpop.permute.xlu0 %1529
  %1531 = vrot.lane.b32.xlu0 %v545, 12
  %v1532 = vpop.permute.xlu0 %1531
  %1533 = vrot.lane.b32.xlu0 %v546, 12
  %v1534 = vpop.permute.xlu0 %1533
  %1535 = vrot.lane.b32.xlu0 %v547, 12
  %v1536 = vpop.permute.xlu0 %1535
  %1537 = vrot.lane.b32.xlu0 %v548, 12
  %v1538 = vpop.permute.xlu0 %1537
  %1539 = vrot.lane.b32.xlu0 %v549, 12
  %v1540 = vpop.permute.xlu0 %1539
  %1541 = vrot.lane.b32.xlu0 %v550, 12
  %v1542 = vpop.permute.xlu0 %1541
  %1543 = vrot.lane.b32.xlu0 %v551, 12
  %v1544 = vpop.permute.xlu0 %1543
  %1545 = vrot.lane.b32.xlu0 %v552, 12
  %v1546 = vpop.permute.xlu0 %1545
  %1547 = vrot.lane.b32.xlu0 %v553, 12
  %v1548 = vpop.permute.xlu0 %1547
  %1549 = vrot.lane.b32.xlu0 %v554, 12
  %v1550 = vpop.permute.xlu0 %1549
  %1551 = vrot.lane.b32.xlu0 %v555, 12
  %v1552 = vpop.permute.xlu0 %1551
  %1553 = vrot.lane.b32.xlu0 %v556, 12
  %v1554 = vpop.permute.xlu0 %1553
  %1555 = vrot.lane.b32.xlu0 %v557, 12
  %v1556 = vpop.permute.xlu0 %1555
  %1557 = vrot.lane.b32.xlu0 %v558, 12
  %v1558 = vpop.permute.xlu0 %1557
  %1559 = vrot.lane.b32.xlu0 %v559, 12
  %v1560 = vpop.permute.xlu0 %1559
  %1561 = vrot.lane.b32.xlu0 %v560, 12
  %v1562 = vpop.permute.xlu0 %1561
  %1563 = vrot.lane.b32.xlu0 %v561, 12
  %v1564 = vpop.permute.xlu0 %1563
  %1565 = vrot.lane.b32.xlu0 %v562, 12
  %v1566 = vpop.permute.xlu0 %1565
  %1567 = vrot.lane.b32.xlu0 %v563, 12
  %v1568 = vpop.permute.xlu0 %1567
  %1569 = vrot.lane.b32.xlu0 %v564, 12
  %v1570 = vpop.permute.xlu0 %1569
  %1571 = vrot.lane.b32.xlu0 %v565, 12
  %v1572 = vpop.permute.xlu0 %1571
  %1573 = vrot.lane.b32.xlu0 %v566, 12
  %v1574 = vpop.permute.xlu0 %1573
  %1575 = vrot.lane.b32.xlu0 %v567, 12
  %v1576 = vpop.permute.xlu0 %1575
  %1577 = vrot.lane.b32.xlu0 %v568, 12
  %v1578 = vpop.permute.xlu0 %1577
  %1579 = vrot.lane.b32.xlu0 %v569, 12
  %v1580 = vpop.permute.xlu0 %1579
  %1581 = vrot.lane.b32.xlu0 %v570, 12
  %v1582 = vpop.permute.xlu0 %1581
  %1583 = vrot.lane.b32.xlu0 %v571, 12
  %v1584 = vpop.permute.xlu0 %1583
  %1585 = vrot.lane.b32.xlu0 %v572, 12
  %v1586 = vpop.permute.xlu0 %1585
  %1587 = vrot.lane.b32.xlu0 %v573, 12
  %v1588 = vpop.permute.xlu0 %1587
  %1589 = vrot.lane.b32.xlu0 %v574, 12
  %v1590 = vpop.permute.xlu0 %1589
  %1591 = vrot.lane.b32.xlu0 %v575, 12
  %v1592 = vpop.permute.xlu0 %1591
  %1593 = vrot.lane.b32.xlu0 %v576, 12
  %v1594 = vpop.permute.xlu0 %1593
  %1595 = vrot.lane.b32.xlu0 %v577, 12
  %v1596 = vpop.permute.xlu0 %1595
  %1597 = vrot.lane.b32.xlu0 %v578, 12
  %v1598 = vpop.permute.xlu0 %1597
  %1599 = vrot.lane.b32.xlu0 %v579, 12
  %v1600 = vpop.permute.xlu0 %1599
  %1601 = vrot.lane.b32.xlu0 %v580, 12
  %v1602 = vpop.permute.xlu0 %1601
  %1603 = vrot.lane.b32.xlu0 %v581, 12
  %v1604 = vpop.permute.xlu0 %1603
  %1605 = vrot.lane.b32.xlu0 %v582, 12
  %v1606 = vpop.permute.xlu0 %1605
  %1607 = vrot.lane.b32.xlu0 %v583, 12
  %v1608 = vpop.permute.xlu0 %1607
  %1737 = vrot.lane.b32.xlu0 %v584, 16
  %v1738 = vpop.permute.xlu0 %1737
  %1739 = vrot.lane.b32.xlu0 %v585, 16
  %v1740 = vpop.permute.xlu0 %1739
  %1741 = vrot.lane.b32.xlu0 %v586, 16
  %v1742 = vpop.permute.xlu0 %1741
  %1743 = vrot.lane.b32.xlu0 %v587, 16
  %v1744 = vpop.permute.xlu0 %1743
  %1745 = vrot.lane.b32.xlu0 %v588, 16
  %v1746 = vpop.permute.xlu0 %1745
  %1747 = vrot.lane.b32.xlu0 %v589, 16
  %v1748 = vpop.permute.xlu0 %1747
  %1749 = vrot.lane.b32.xlu0 %v590, 16
  %v1750 = vpop.permute.xlu0 %1749
  %1751 = vrot.lane.b32.xlu0 %v591, 16
  %v1752 = vpop.permute.xlu0 %1751
  %1753 = vrot.lane.b32.xlu0 %v592, 16
  %v1754 = vpop.permute.xlu0 %1753
  %1755 = vrot.lane.b32.xlu0 %v593, 16
  %v1756 = vpop.permute.xlu0 %1755
  %1757 = vrot.lane.b32.xlu0 %v594, 16
  %v1758 = vpop.permute.xlu0 %1757
  %1759 = vrot.lane.b32.xlu0 %v595, 16
  %v1760 = vpop.permute.xlu0 %1759
  %1761 = vrot.lane.b32.xlu0 %v596, 16
  %v1762 = vpop.permute.xlu0 %1761
  %1763 = vrot.lane.b32.xlu0 %v597, 16
  %v1764 = vpop.permute.xlu0 %1763
  %1765 = vrot.lane.b32.xlu0 %v598, 16
  %v1766 = vpop.permute.xlu0 %1765
  %1767 = vrot.lane.b32.xlu0 %v599, 16
  %v1768 = vpop.permute.xlu0 %1767
  %1769 = vrot.lane.b32.xlu0 %v600, 16
  %v1770 = vpop.permute.xlu0 %1769
  %1771 = vrot.lane.b32.xlu0 %v601, 16
  %v1772 = vpop.permute.xlu0 %1771
  %1773 = vrot.lane.b32.xlu0 %v602, 16
  %v1774 = vpop.permute.xlu0 %1773
  %1775 = vrot.lane.b32.xlu0 %v603, 16
  %v1776 = vpop.permute.xlu0 %1775
  %1777 = vrot.lane.b32.xlu0 %v604, 16
  %v1778 = vpop.permute.xlu0 %1777
  %1779 = vrot.lane.b32.xlu0 %v605, 16
  %v1780 = vpop.permute.xlu0 %1779
  %1781 = vrot.lane.b32.xlu0 %v606, 16
  %v1782 = vpop.permute.xlu0 %1781
  %1783 = vrot.lane.b32.xlu0 %v607, 16
  %v1784 = vpop.permute.xlu0 %1783
  %1785 = vrot.lane.b32.xlu0 %v608, 16
  %v1786 = vpop.permute.xlu0 %1785
  %1787 = vrot.lane.b32.xlu0 %v609, 16
  %v1788 = vpop.permute.xlu0 %1787
  %1789 = vrot.lane.b32.xlu0 %v610, 16
  %v1790 = vpop.permute.xlu0 %1789
  %1791 = vrot.lane.b32.xlu0 %v611, 16
  %v1792 = vpop.permute.xlu0 %1791
  %1793 = vrot.lane.b32.xlu0 %v612, 16
  %v1794 = vpop.permute.xlu0 %1793
  %1795 = vrot.lane.b32.xlu0 %v613, 16
  %v1796 = vpop.permute.xlu0 %1795
  %1797 = vrot.lane.b32.xlu0 %v614, 16
  %v1798 = vpop.permute.xlu0 %1797
  %1799 = vrot.lane.b32.xlu0 %v615, 16
  %v1800 = vpop.permute.xlu0 %1799
  %1801 = vrot.lane.b32.xlu0 %v616, 16
  %v1802 = vpop.permute.xlu0 %1801
  %1803 = vrot.lane.b32.xlu0 %v617, 16
  %v1804 = vpop.permute.xlu0 %1803
  %1805 = vrot.lane.b32.xlu0 %v618, 16
  %v1806 = vpop.permute.xlu0 %1805
  %1807 = vrot.lane.b32.xlu0 %v619, 16
  %v1808 = vpop.permute.xlu0 %1807
  %1809 = vrot.lane.b32.xlu0 %v620, 16
  %v1810 = vpop.permute.xlu0 %1809
  %1811 = vrot.lane.b32.xlu0 %v621, 16
  %v1812 = vpop.permute.xlu0 %1811
  %1813 = vrot.lane.b32.xlu0 %v622, 16
  %v1814 = vpop.permute.xlu0 %1813
  %1815 = vrot.lane.b32.xlu0 %v623, 16
  %v1816 = vpop.permute.xlu0 %1815
  %1817 = vrot.lane.b32.xlu0 %v624, 16
  %v1818 = vpop.permute.xlu0 %1817
  %1819 = vrot.lane.b32.xlu0 %v625, 16
  %v1820 = vpop.permute.xlu0 %1819
  %1821 = vrot.lane.b32.xlu0 %v626, 16
  %v1822 = vpop.permute.xlu0 %1821
  %1823 = vrot.lane.b32.xlu0 %v627, 16
  %v1824 = vpop.permute.xlu0 %1823
  %1825 = vrot.lane.b32.xlu0 %v628, 16
  %v1826 = vpop.permute.xlu0 %1825
  %1827 = vrot.lane.b32.xlu0 %v629, 16
  %v1828 = vpop.permute.xlu0 %1827
  %1829 = vrot.lane.b32.xlu0 %v630, 16
  %v1830 = vpop.permute.xlu0 %1829
  %1831 = vrot.lane.b32.xlu0 %v631, 16
  %v1832 = vpop.permute.xlu0 %1831
  %1833 = vrot.lane.b32.xlu0 %v632, 16
  %v1834 = vpop.permute.xlu0 %1833
  %1835 = vrot.lane.b32.xlu0 %v633, 16
  %v1836 = vpop.permute.xlu0 %1835
  %1837 = vrot.lane.b32.xlu0 %v634, 16
  %v1838 = vpop.permute.xlu0 %1837
  %1839 = vrot.lane.b32.xlu0 %v635, 16
  %v1840 = vpop.permute.xlu0 %1839
  %1841 = vrot.lane.b32.xlu0 %v636, 16
  %v1842 = vpop.permute.xlu0 %1841
  %1843 = vrot.lane.b32.xlu0 %v637, 16
  %v1844 = vpop.permute.xlu0 %1843
  %1845 = vrot.lane.b32.xlu0 %v638, 16
  %v1846 = vpop.permute.xlu0 %1845
  %1847 = vrot.lane.b32.xlu0 %v639, 16
  %v1848 = vpop.permute.xlu0 %1847
  %1849 = vrot.lane.b32.xlu0 %v640, 16
  %v1850 = vpop.permute.xlu0 %1849
  %1851 = vrot.lane.b32.xlu0 %v641, 16
  %v1852 = vpop.permute.xlu0 %1851
  %1853 = vrot.lane.b32.xlu0 %v642, 16
  %v1854 = vpop.permute.xlu0 %1853
  %1855 = vrot.lane.b32.xlu0 %v643, 16
  %v1856 = vpop.permute.xlu0 %1855
  %1857 = vrot.lane.b32.xlu0 %v644, 16
  %v1858 = vpop.permute.xlu0 %1857
  %1859 = vrot.lane.b32.xlu0 %v645, 16
  %v1860 = vpop.permute.xlu0 %1859
  %1861 = vrot.lane.b32.xlu0 %v646, 16
  %v1862 = vpop.permute.xlu0 %1861
  %1863 = vrot.lane.b32.xlu0 %v647, 16
  %v1864 = vpop.permute.xlu0 %1863
  %1993 = vrot.lane.b32.xlu0 %v648, 20
  %v1994 = vpop.permute.xlu0 %1993
  %1995 = vrot.lane.b32.xlu0 %v649, 20
  %v1996 = vpop.permute.xlu0 %1995
  %1997 = vrot.lane.b32.xlu0 %v650, 20
  %v1998 = vpop.permute.xlu0 %1997
  %1999 = vrot.lane.b32.xlu0 %v651, 20
  %v2000 = vpop.permute.xlu0 %1999
  %2001 = vrot.lane.b32.xlu0 %v652, 20
  %v2002 = vpop.permute.xlu0 %2001
  %2003 = vrot.lane.b32.xlu0 %v653, 20
  %v2004 = vpop.permute.xlu0 %2003
  %2005 = vrot.lane.b32.xlu0 %v654, 20
  %v2006 = vpop.permute.xlu0 %2005
  %2007 = vrot.lane.b32.xlu0 %v655, 20
  %v2008 = vpop.permute.xlu0 %2007
  %2009 = vrot.lane.b32.xlu0 %v656, 20
  %v2010 = vpop.permute.xlu0 %2009
  %2011 = vrot.lane.b32.xlu0 %v657, 20
  %v2012 = vpop.permute.xlu0 %2011
  %2013 = vrot.lane.b32.xlu0 %v658, 20
  %v2014 = vpop.permute.xlu0 %2013
  %2015 = vrot.lane.b32.xlu0 %v659, 20
  %v2016 = vpop.permute.xlu0 %2015
  %2017 = vrot.lane.b32.xlu0 %v660, 20
  %v2018 = vpop.permute.xlu0 %2017
  %2019 = vrot.lane.b32.xlu0 %v661, 20
  %v2020 = vpop.permute.xlu0 %2019
  %2021 = vrot.lane.b32.xlu0 %v662, 20
  %v2022 = vpop.permute.xlu0 %2021
  %2023 = vrot.lane.b32.xlu0 %v663, 20
  %v2024 = vpop.permute.xlu0 %2023
  %2025 = vrot.lane.b32.xlu0 %v664, 20
  %v2026 = vpop.permute.xlu0 %2025
  %2027 = vrot.lane.b32.xlu0 %v665, 20
  %v2028 = vpop.permute.xlu0 %2027
  %2029 = vrot.lane.b32.xlu0 %v666, 20
  %v2030 = vpop.permute.xlu0 %2029
  %2031 = vrot.lane.b32.xlu0 %v667, 20
  %v2032 = vpop.permute.xlu0 %2031
  %2033 = vrot.lane.b32.xlu0 %v668, 20
  %v2034 = vpop.permute.xlu0 %2033
  %2035 = vrot.lane.b32.xlu0 %v669, 20
  %v2036 = vpop.permute.xlu0 %2035
  %2037 = vrot.lane.b32.xlu0 %v670, 20
  %v2038 = vpop.permute.xlu0 %2037
  %2039 = vrot.lane.b32.xlu0 %v671, 20
  %v2040 = vpop.permute.xlu0 %2039
  %2041 = vrot.lane.b32.xlu0 %v672, 20
  %v2042 = vpop.permute.xlu0 %2041
  %2043 = vrot.lane.b32.xlu0 %v673, 20
  %v2044 = vpop.permute.xlu0 %2043
  %2045 = vrot.lane.b32.xlu0 %v674, 20
  %v2046 = vpop.permute.xlu0 %2045
  %2047 = vrot.lane.b32.xlu0 %v675, 20
  %v2048 = vpop.permute.xlu0 %2047
  %2049 = vrot.lane.b32.xlu0 %v676, 20
  %v2050 = vpop.permute.xlu0 %2049
  %2051 = vrot.lane.b32.xlu0 %v677, 20
  %v2052 = vpop.permute.xlu0 %2051
  %2053 = vrot.lane.b32.xlu0 %v678, 20
  %v2054 = vpop.permute.xlu0 %2053
  %2055 = vrot.lane.b32.xlu0 %v679, 20
  %v2056 = vpop.permute.xlu0 %2055
  %2057 = vrot.lane.b32.xlu0 %v680, 20
  %v2058 = vpop.permute.xlu0 %2057
  %2059 = vrot.lane.b32.xlu0 %v681, 20
  %v2060 = vpop.permute.xlu0 %2059
  %2061 = vrot.lane.b32.xlu0 %v682, 20
  %v2062 = vpop.permute.xlu0 %2061
  %2063 = vrot.lane.b32.xlu0 %v683, 20
  %v2064 = vpop.permute.xlu0 %2063
  %2065 = vrot.lane.b32.xlu0 %v684, 20
  %v2066 = vpop.permute.xlu0 %2065
  %2067 = vrot.lane.b32.xlu0 %v685, 20
  %v2068 = vpop.permute.xlu0 %2067
  %2069 = vrot.lane.b32.xlu0 %v686, 20
  %v2070 = vpop.permute.xlu0 %2069
  %2071 = vrot.lane.b32.xlu0 %v687, 20
  %v2072 = vpop.permute.xlu0 %2071
  %2073 = vrot.lane.b32.xlu0 %v688, 20
  %v2074 = vpop.permute.xlu0 %2073
  %2075 = vrot.lane.b32.xlu0 %v689, 20
  %v2076 = vpop.permute.xlu0 %2075
  %2077 = vrot.lane.b32.xlu0 %v690, 20
  %v2078 = vpop.permute.xlu0 %2077
  %2079 = vrot.lane.b32.xlu0 %v691, 20
  %v2080 = vpop.permute.xlu0 %2079
  %2081 = vrot.lane.b32.xlu0 %v692, 20
  %v2082 = vpop.permute.xlu0 %2081
  %2083 = vrot.lane.b32.xlu0 %v693, 20
  %v2084 = vpop.permute.xlu0 %2083
  %2085 = vrot.lane.b32.xlu0 %v694, 20
  %v2086 = vpop.permute.xlu0 %2085
  %2087 = vrot.lane.b32.xlu0 %v695, 20
  %v2088 = vpop.permute.xlu0 %2087
  %2089 = vrot.lane.b32.xlu0 %v696, 20
  %v2090 = vpop.permute.xlu0 %2089
  %2091 = vrot.lane.b32.xlu0 %v697, 20
  %v2092 = vpop.permute.xlu0 %2091
  %2093 = vrot.lane.b32.xlu0 %v698, 20
  %v2094 = vpop.permute.xlu0 %2093
  %2095 = vrot.lane.b32.xlu0 %v699, 20
  %v2096 = vpop.permute.xlu0 %2095
  %2097 = vrot.lane.b32.xlu0 %v700, 20
  %v2098 = vpop.permute.xlu0 %2097
  %2099 = vrot.lane.b32.xlu0 %v701, 20
  %v2100 = vpop.permute.xlu0 %2099
  %2101 = vrot.lane.b32.xlu0 %v702, 20
  %v2102 = vpop.permute.xlu0 %2101
  %2103 = vrot.lane.b32.xlu0 %v703, 20
  %v2104 = vpop.permute.xlu0 %2103
  %2105 = vrot.lane.b32.xlu0 %v704, 20
  %v2106 = vpop.permute.xlu0 %2105
  %2107 = vrot.lane.b32.xlu0 %v705, 20
  %v2108 = vpop.permute.xlu0 %2107
  %2109 = vrot.lane.b32.xlu0 %v706, 20
  %v2110 = vpop.permute.xlu0 %2109
  %2111 = vrot.lane.b32.xlu0 %v707, 20
  %v2112 = vpop.permute.xlu0 %2111
  %2113 = vrot.lane.b32.xlu0 %v708, 20
  %v2114 = vpop.permute.xlu0 %2113
  %2115 = vrot.lane.b32.xlu0 %v709, 20
  %v2116 = vpop.permute.xlu0 %2115
  %2117 = vrot.lane.b32.xlu0 %v710, 20
  %v2118 = vpop.permute.xlu0 %2117
  %2119 = vrot.lane.b32.xlu0 %v711, 20
  %v2120 = vpop.permute.xlu0 %2119
  %2249 = vrot.lane.b32.xlu0 %v713, 24
  %v2250 = vpop.permute.xlu0 %2249
  %2251 = vrot.lane.b32.xlu0 %v714, 24
  %v2252 = vpop.permute.xlu0 %2251
  %2253 = vrot.lane.b32.xlu0 %v715, 24
  %v2254 = vpop.permute.xlu0 %2253
  %2255 = vrot.lane.b32.xlu0 %v716, 24
  %v2256 = vpop.permute.xlu0 %2255
  %2257 = vrot.lane.b32.xlu0 %v717, 24
  %v2258 = vpop.permute.xlu0 %2257
  %2259 = vrot.lane.b32.xlu0 %v718, 24
  %v2260 = vpop.permute.xlu0 %2259
  %2261 = vrot.lane.b32.xlu0 %v719, 24
  %v2262 = vpop.permute.xlu0 %2261
  %2263 = vrot.lane.b32.xlu0 %v720, 24
  %v2264 = vpop.permute.xlu0 %2263
  %2265 = vrot.lane.b32.xlu0 %v721, 24
  %v2266 = vpop.permute.xlu0 %2265
  %2267 = vrot.lane.b32.xlu0 %v722, 24
  %v2268 = vpop.permute.xlu0 %2267
  %2269 = vrot.lane.b32.xlu0 %v723, 24
  %v2270 = vpop.permute.xlu0 %2269
  %2271 = vrot.lane.b32.xlu0 %v724, 24
  %v2272 = vpop.permute.xlu0 %2271
  %2273 = vrot.lane.b32.xlu0 %v725, 24
  %v2274 = vpop.permute.xlu0 %2273
  %2275 = vrot.lane.b32.xlu0 %v726, 24
  %v2276 = vpop.permute.xlu0 %2275
  %2277 = vrot.lane.b32.xlu0 %v727, 24
  %v2278 = vpop.permute.xlu0 %2277
  %2279 = vrot.lane.b32.xlu0 %v728, 24
  %v2280 = vpop.permute.xlu0 %2279
  %2281 = vrot.lane.b32.xlu0 %v729, 24
  %v2282 = vpop.permute.xlu0 %2281
  %2283 = vrot.lane.b32.xlu0 %v730, 24
  %v2284 = vpop.permute.xlu0 %2283
  %2285 = vrot.lane.b32.xlu0 %v731, 24
  %v2286 = vpop.permute.xlu0 %2285
  %2287 = vrot.lane.b32.xlu0 %v732, 24
  %v2288 = vpop.permute.xlu0 %2287
  %2289 = vrot.lane.b32.xlu0 %v733, 24
  %v2290 = vpop.permute.xlu0 %2289
  %2291 = vrot.lane.b32.xlu0 %v734, 24
  %v2292 = vpop.permute.xlu0 %2291
  %2293 = vrot.lane.b32.xlu0 %v735, 24
  %v2294 = vpop.permute.xlu0 %2293
  %2295 = vrot.lane.b32.xlu0 %v736, 24
  %v2296 = vpop.permute.xlu0 %2295
  %2297 = vrot.lane.b32.xlu0 %v737, 24
  %v2298 = vpop.permute.xlu0 %2297
  %2299 = vrot.lane.b32.xlu0 %v738, 24
  %v2300 = vpop.permute.xlu0 %2299
  %2301 = vrot.lane.b32.xlu0 %v739, 24
  %v2302 = vpop.permute.xlu0 %2301
  %2303 = vrot.lane.b32.xlu0 %v740, 24
  %v2304 = vpop.permute.xlu0 %2303
  %2305 = vrot.lane.b32.xlu0 %v741, 24
  %v2306 = vpop.permute.xlu0 %2305
  %2307 = vrot.lane.b32.xlu0 %v742, 24
  %v2308 = vpop.permute.xlu0 %2307
  %2309 = vrot.lane.b32.xlu0 %v743, 24
  %v2310 = vpop.permute.xlu0 %2309
  %2311 = vrot.lane.b32.xlu0 %v744, 24
  %v2312 = vpop.permute.xlu0 %2311
  %2313 = vrot.lane.b32.xlu0 %v745, 24
  %v2314 = vpop.permute.xlu0 %2313
  %2315 = vrot.lane.b32.xlu0 %v746, 24
  %v2316 = vpop.permute.xlu0 %2315
  %2317 = vrot.lane.b32.xlu0 %v747, 24
  %v2318 = vpop.permute.xlu0 %2317
  %2319 = vrot.lane.b32.xlu0 %v748, 24
  %v2320 = vpop.permute.xlu0 %2319
  %2321 = vrot.lane.b32.xlu0 %v749, 24
  %v2322 = vpop.permute.xlu0 %2321
  %2323 = vrot.lane.b32.xlu0 %v750, 24
  %v2324 = vpop.permute.xlu0 %2323
  %2325 = vrot.lane.b32.xlu0 %v751, 24
  %v2326 = vpop.permute.xlu0 %2325
  %2327 = vrot.lane.b32.xlu0 %v752, 24
  %v2328 = vpop.permute.xlu0 %2327
  %2329 = vrot.lane.b32.xlu0 %v753, 24
  %v2330 = vpop.permute.xlu0 %2329
  %2331 = vrot.lane.b32.xlu0 %v754, 24
  %v2332 = vpop.permute.xlu0 %2331
  %2333 = vrot.lane.b32.xlu0 %v755, 24
  %v2334 = vpop.permute.xlu0 %2333
  %2335 = vrot.lane.b32.xlu0 %v756, 24
  %v2336 = vpop.permute.xlu0 %2335
  %2337 = vrot.lane.b32.xlu0 %v757, 24
  %v2338 = vpop.permute.xlu0 %2337
  %2339 = vrot.lane.b32.xlu0 %v758, 24
  %v2340 = vpop.permute.xlu0 %2339
  %2341 = vrot.lane.b32.xlu0 %v759, 24
  %v2342 = vpop.permute.xlu0 %2341
  %2343 = vrot.lane.b32.xlu0 %v760, 24
  %v2344 = vpop.permute.xlu0 %2343
  %2345 = vrot.lane.b32.xlu0 %v761, 24
  %v2346 = vpop.permute.xlu0 %2345
  %2347 = vrot.lane.b32.xlu0 %v762, 24
  %v2348 = vpop.permute.xlu0 %2347
  %2349 = vrot.lane.b32.xlu0 %v763, 24
  %v2350 = vpop.permute.xlu0 %2349
  %2351 = vrot.lane.b32.xlu0 %v764, 24
  %v2352 = vpop.permute.xlu0 %2351
  %2353 = vrot.lane.b32.xlu0 %v765, 24
  %v2354 = vpop.permute.xlu0 %2353
  %2355 = vrot.lane.b32.xlu0 %v766, 24
  %v2356 = vpop.permute.xlu0 %2355
  %2357 = vrot.lane.b32.xlu0 %v767, 24
  %v2358 = vpop.permute.xlu0 %2357
  %2359 = vrot.lane.b32.xlu0 %v768, 24
  %v2360 = vpop.permute.xlu0 %2359
  %2361 = vrot.lane.b32.xlu0 %v769, 24
  %v2362 = vpop.permute.xlu0 %2361
  %2363 = vrot.lane.b32.xlu0 %v770, 24
  %v2364 = vpop.permute.xlu0 %2363
  %2365 = vrot.lane.b32.xlu0 %v771, 24
  %v2366 = vpop.permute.xlu0 %2365
  %2367 = vrot.lane.b32.xlu0 %v772, 24
  %v2368 = vpop.permute.xlu0 %2367
  %2369 = vrot.lane.b32.xlu0 %v773, 24
  %v2370 = vpop.permute.xlu0 %2369
  %2371 = vrot.lane.b32.xlu0 %v774, 24
  %v2372 = vpop.permute.xlu0 %2371
  %2373 = vrot.lane.b32.xlu0 %v775, 24
  %v2374 = vpop.permute.xlu0 %2373
  %2375 = vrot.lane.b32.xlu0 %v776, 24
  %v2376 = vpop.permute.xlu0 %2375
  %2505 = vrot.lane.b32.xlu0 %v777, 28
  %v2506 = vpop.permute.xlu0 %2505
  %2507 = vrot.lane.b32.xlu0 %v778, 28
  %v2508 = vpop.permute.xlu0 %2507
  %2509 = vrot.lane.b32.xlu0 %v779, 28
  %v2510 = vpop.permute.xlu0 %2509
  %2511 = vrot.lane.b32.xlu0 %v780, 28
  %v2512 = vpop.permute.xlu0 %2511
  %2513 = vrot.lane.b32.xlu0 %v781, 28
  %v2514 = vpop.permute.xlu0 %2513
  %2515 = vrot.lane.b32.xlu0 %v782, 28
  %v2516 = vpop.permute.xlu0 %2515
  %2517 = vrot.lane.b32.xlu0 %v783, 28
  %v2518 = vpop.permute.xlu0 %2517
  %2519 = vrot.lane.b32.xlu0 %v784, 28
  %v2520 = vpop.permute.xlu0 %2519
  %2521 = vrot.lane.b32.xlu0 %v785, 28
  %v2522 = vpop.permute.xlu0 %2521
  %2523 = vrot.lane.b32.xlu0 %v786, 28
  %v2524 = vpop.permute.xlu0 %2523
  %2525 = vrot.lane.b32.xlu0 %v787, 28
  %v2526 = vpop.permute.xlu0 %2525
  %2527 = vrot.lane.b32.xlu0 %v788, 28
  %v2528 = vpop.permute.xlu0 %2527
  %2529 = vrot.lane.b32.xlu0 %v789, 28
  %v2530 = vpop.permute.xlu0 %2529
  %2531 = vrot.lane.b32.xlu0 %v790, 28
  %v2532 = vpop.permute.xlu0 %2531
  %2533 = vrot.lane.b32.xlu0 %v791, 28
  %v2534 = vpop.permute.xlu0 %2533
  %2535 = vrot.lane.b32.xlu0 %v792, 28
  %v2536 = vpop.permute.xlu0 %2535
  %2537 = vrot.lane.b32.xlu0 %v793, 28
  %v2538 = vpop.permute.xlu0 %2537
  %2539 = vrot.lane.b32.xlu0 %v794, 28
  %v2540 = vpop.permute.xlu0 %2539
  %2541 = vrot.lane.b32.xlu0 %v795, 28
  %v2542 = vpop.permute.xlu0 %2541
  %2543 = vrot.lane.b32.xlu0 %v796, 28
  %v2544 = vpop.permute.xlu0 %2543
  %2545 = vrot.lane.b32.xlu0 %v797, 28
  %v2546 = vpop.permute.xlu0 %2545
  %2547 = vrot.lane.b32.xlu0 %v798, 28
  %v2548 = vpop.permute.xlu0 %2547
  %2549 = vrot.lane.b32.xlu0 %v799, 28
  %v2550 = vpop.permute.xlu0 %2549
  %2551 = vrot.lane.b32.xlu0 %v800, 28
  %v2552 = vpop.permute.xlu0 %2551
  %2553 = vrot.lane.b32.xlu0 %v801, 28
  %v2554 = vpop.permute.xlu0 %2553
  %2555 = vrot.lane.b32.xlu0 %v802, 28
  %v2556 = vpop.permute.xlu0 %2555
  %2557 = vrot.lane.b32.xlu0 %v803, 28
  %v2558 = vpop.permute.xlu0 %2557
  %2559 = vrot.lane.b32.xlu0 %v804, 28
  %v2560 = vpop.permute.xlu0 %2559
  %2561 = vrot.lane.b32.xlu0 %v805, 28
  %v2562 = vpop.permute.xlu0 %2561
  %2563 = vrot.lane.b32.xlu0 %v806, 28
  %v2564 = vpop.permute.xlu0 %2563
  %2565 = vrot.lane.b32.xlu0 %v807, 28
  %v2566 = vpop.permute.xlu0 %2565
  %2567 = vrot.lane.b32.xlu0 %v808, 28
  %v2568 = vpop.permute.xlu0 %2567
  %2569 = vrot.lane.b32.xlu0 %v809, 28
  %v2570 = vpop.permute.xlu0 %2569
  %2571 = vrot.lane.b32.xlu0 %v810, 28
  %v2572 = vpop.permute.xlu0 %2571
  %2573 = vrot.lane.b32.xlu0 %v811, 28
  %v2574 = vpop.permute.xlu0 %2573
  %2575 = vrot.lane.b32.xlu0 %v812, 28
  %v2576 = vpop.permute.xlu0 %2575
  %2577 = vrot.lane.b32.xlu0 %v813, 28
  %v2578 = vpop.permute.xlu0 %2577
  %2579 = vrot.lane.b32.xlu0 %v814, 28
  %v2580 = vpop.permute.xlu0 %2579
  %2581 = vrot.lane.b32.xlu0 %v815, 28
  %v2582 = vpop.permute.xlu0 %2581
  %2583 = vrot.lane.b32.xlu0 %v816, 28
  %v2584 = vpop.permute.xlu0 %2583
  %2585 = vrot.lane.b32.xlu0 %v817, 28
  %v2586 = vpop.permute.xlu0 %2585
  %2587 = vrot.lane.b32.xlu0 %v818, 28
  %v2588 = vpop.permute.xlu0 %2587
  %2589 = vrot.lane.b32.xlu0 %v819, 28
  %v2590 = vpop.permute.xlu0 %2589
  %2591 = vrot.lane.b32.xlu0 %v820, 28
  %v2592 = vpop.permute.xlu0 %2591
  %2593 = vrot.lane.b32.xlu0 %v821, 28
  %v2594 = vpop.permute.xlu0 %2593
  %2595 = vrot.lane.b32.xlu0 %v822, 28
  %v2596 = vpop.permute.xlu0 %2595
  %2597 = vrot.lane.b32.xlu0 %v823, 28
  %v2598 = vpop.permute.xlu0 %2597
  %2599 = vrot.lane.b32.xlu0 %v824, 28
  %v2600 = vpop.permute.xlu0 %2599
  %2601 = vrot.lane.b32.xlu0 %v825, 28
  %v2602 = vpop.permute.xlu0 %2601
  %2603 = vrot.lane.b32.xlu0 %v826, 28
  %v2604 = vpop.permute.xlu0 %2603
  %2605 = vrot.lane.b32.xlu0 %v827, 28
  %v2606 = vpop.permute.xlu0 %2605
  %2607 = vrot.lane.b32.xlu0 %v828, 28
  %v2608 = vpop.permute.xlu0 %2607
  %2609 = vrot.lane.b32.xlu0 %v829, 28
  %v2610 = vpop.permute.xlu0 %2609
  %2611 = vrot.lane.b32.xlu0 %v830, 28
  %v2612 = vpop.permute.xlu0 %2611
  %2613 = vrot.lane.b32.xlu0 %v831, 28
  %v2614 = vpop.permute.xlu0 %2613
  %2615 = vrot.lane.b32.xlu0 %v832, 28
  %v2616 = vpop.permute.xlu0 %2615
  %2617 = vrot.lane.b32.xlu0 %v833, 28
  %v2618 = vpop.permute.xlu0 %2617
  %2619 = vrot.lane.b32.xlu0 %v834, 28
  %v2620 = vpop.permute.xlu0 %2619
  %2621 = vrot.lane.b32.xlu0 %v835, 28
  %v2622 = vpop.permute.xlu0 %2621
  %2623 = vrot.lane.b32.xlu0 %v836, 28
  %v2624 = vpop.permute.xlu0 %2623
  %2625 = vrot.lane.b32.xlu0 %v837, 28
  %v2626 = vpop.permute.xlu0 %2625
  %2627 = vrot.lane.b32.xlu0 %v838, 28
  %v2628 = vpop.permute.xlu0 %2627
  %2629 = vrot.lane.b32.xlu0 %v839, 28
  %v2630 = vpop.permute.xlu0 %2629
  %2631 = vrot.lane.b32.xlu0 %v840, 28
  %v2632 = vpop.permute.xlu0 %2631
  %2761 = vrot.lane.b32.xlu0 %v841, 32
  %v2762 = vpop.permute.xlu0 %2761
  %2763 = vrot.lane.b32.xlu0 %v842, 32
  %v2764 = vpop.permute.xlu0 %2763
  %2765 = vrot.lane.b32.xlu0 %v843, 32
  %v2766 = vpop.permute.xlu0 %2765
  %2767 = vrot.lane.b32.xlu0 %v844, 32
  %v2768 = vpop.permute.xlu0 %2767
  %2769 = vrot.lane.b32.xlu0 %v845, 32
  %v2770 = vpop.permute.xlu0 %2769
  %2771 = vrot.lane.b32.xlu0 %v846, 32
  %v2772 = vpop.permute.xlu0 %2771
  %2773 = vrot.lane.b32.xlu0 %v847, 32
  %v2774 = vpop.permute.xlu0 %2773
  %2775 = vrot.lane.b32.xlu0 %v848, 32
  %v2776 = vpop.permute.xlu0 %2775
  %2777 = vrot.lane.b32.xlu0 %v849, 32
  %v2778 = vpop.permute.xlu0 %2777
  %2779 = vrot.lane.b32.xlu0 %v850, 32
  %v2780 = vpop.permute.xlu0 %2779
  %2781 = vrot.lane.b32.xlu0 %v851, 32
  %v2782 = vpop.permute.xlu0 %2781
  %2783 = vrot.lane.b32.xlu0 %v852, 32
  %v2784 = vpop.permute.xlu0 %2783
  %2785 = vrot.lane.b32.xlu0 %v853, 32
  %v2786 = vpop.permute.xlu0 %2785
  %2787 = vrot.lane.b32.xlu0 %v854, 32
  %v2788 = vpop.permute.xlu0 %2787
  %2789 = vrot.lane.b32.xlu0 %v855, 32
  %v2790 = vpop.permute.xlu0 %2789
  %2791 = vrot.lane.b32.xlu0 %v856, 32
  %v2792 = vpop.permute.xlu0 %2791
  %2793 = vrot.lane.b32.xlu0 %v857, 32
  %v2794 = vpop.permute.xlu0 %2793
  %2795 = vrot.lane.b32.xlu0 %v858, 32
  %v2796 = vpop.permute.xlu0 %2795
  %2797 = vrot.lane.b32.xlu0 %v859, 32
  %v2798 = vpop.permute.xlu0 %2797
  %2799 = vrot.lane.b32.xlu0 %v860, 32
  %v2800 = vpop.permute.xlu0 %2799
  %2801 = vrot.lane.b32.xlu0 %v861, 32
  %v2802 = vpop.permute.xlu0 %2801
  %2803 = vrot.lane.b32.xlu0 %v862, 32
  %v2804 = vpop.permute.xlu0 %2803
  %2805 = vrot.lane.b32.xlu0 %v863, 32
  %v2806 = vpop.permute.xlu0 %2805
  %2807 = vrot.lane.b32.xlu0 %v864, 32
  %v2808 = vpop.permute.xlu0 %2807
  %2809 = vrot.lane.b32.xlu0 %v865, 32
  %v2810 = vpop.permute.xlu0 %2809
  %2811 = vrot.lane.b32.xlu0 %v866, 32
  %v2812 = vpop.permute.xlu0 %2811
  %2813 = vrot.lane.b32.xlu0 %v867, 32
  %v2814 = vpop.permute.xlu0 %2813
  %2815 = vrot.lane.b32.xlu0 %v868, 32
  %v2816 = vpop.permute.xlu0 %2815
  %2817 = vrot.lane.b32.xlu0 %v869, 32
  %v2818 = vpop.permute.xlu0 %2817
  %2819 = vrot.lane.b32.xlu0 %v870, 32
  %v2820 = vpop.permute.xlu0 %2819
  %2821 = vrot.lane.b32.xlu0 %v871, 32
  %v2822 = vpop.permute.xlu0 %2821
  %2823 = vrot.lane.b32.xlu0 %v872, 32
  %v2824 = vpop.permute.xlu0 %2823
  %2825 = vrot.lane.b32.xlu0 %v873, 32
  %v2826 = vpop.permute.xlu0 %2825
  %2827 = vrot.lane.b32.xlu0 %v874, 32
  %v2828 = vpop.permute.xlu0 %2827
  %2829 = vrot.lane.b32.xlu0 %v875, 32
  %v2830 = vpop.permute.xlu0 %2829
  %2831 = vrot.lane.b32.xlu0 %v876, 32
  %v2832 = vpop.permute.xlu0 %2831
  %2833 = vrot.lane.b32.xlu0 %v877, 32
  %v2834 = vpop.permute.xlu0 %2833
  %2835 = vrot.lane.b32.xlu0 %v878, 32
  %v2836 = vpop.permute.xlu0 %2835
  %2837 = vrot.lane.b32.xlu0 %v879, 32
  %v2838 = vpop.permute.xlu0 %2837
  %2839 = vrot.lane.b32.xlu0 %v880, 32
  %v2840 = vpop.permute.xlu0 %2839
  %2841 = vrot.lane.b32.xlu0 %v881, 32
  %v2842 = vpop.permute.xlu0 %2841
  %2843 = vrot.lane.b32.xlu0 %v882, 32
  %v2844 = vpop.permute.xlu0 %2843
  %2845 = vrot.lane.b32.xlu0 %v883, 32
  %v2846 = vpop.permute.xlu0 %2845
  %2847 = vrot.lane.b32.xlu0 %v884, 32
  %v2848 = vpop.permute.xlu0 %2847
  %2849 = vrot.lane.b32.xlu0 %v885, 32
  %v2850 = vpop.permute.xlu0 %2849
  %2851 = vrot.lane.b32.xlu0 %v886, 32
  %v2852 = vpop.permute.xlu0 %2851
  %2853 = vrot.lane.b32.xlu0 %v887, 32
  %v2854 = vpop.permute.xlu0 %2853
  %2855 = vrot.lane.b32.xlu0 %v888, 32
  %v2856 = vpop.permute.xlu0 %2855
  %2857 = vrot.lane.b32.xlu0 %v889, 32
  %v2858 = vpop.permute.xlu0 %2857
  %2859 = vrot.lane.b32.xlu0 %v890, 32
  %v2860 = vpop.permute.xlu0 %2859
  %2861 = vrot.lane.b32.xlu0 %v891, 32
  %v2862 = vpop.permute.xlu0 %2861
  %2863 = vrot.lane.b32.xlu0 %v892, 32
  %v2864 = vpop.permute.xlu0 %2863
  %2865 = vrot.lane.b32.xlu0 %v893, 32
  %v2866 = vpop.permute.xlu0 %2865
  %2867 = vrot.lane.b32.xlu0 %v894, 32
  %v2868 = vpop.permute.xlu0 %2867
  %2869 = vrot.lane.b32.xlu0 %v895, 32
  %v2870 = vpop.permute.xlu0 %2869
  %2871 = vrot.lane.b32.xlu0 %v896, 32
  %v2872 = vpop.permute.xlu0 %2871
  %2873 = vrot.lane.b32.xlu0 %v897, 32
  %v2874 = vpop.permute.xlu0 %2873
  %2875 = vrot.lane.b32.xlu0 %v898, 32
  %v2876 = vpop.permute.xlu0 %2875
  %2877 = vrot.lane.b32.xlu0 %v899, 32
  %v2878 = vpop.permute.xlu0 %2877
  %2879 = vrot.lane.b32.xlu0 %v900, 32
  %v2880 = vpop.permute.xlu0 %2879
  %2881 = vrot.lane.b32.xlu0 %v901, 32
  %v2882 = vpop.permute.xlu0 %2881
  %2883 = vrot.lane.b32.xlu0 %v902, 32
  %v2884 = vpop.permute.xlu0 %2883
  %2885 = vrot.lane.b32.xlu0 %v903, 32
  %v2886 = vpop.permute.xlu0 %2885
  %2887 = vrot.lane.b32.xlu0 %v904, 32
  %v2888 = vpop.permute.xlu0 %2887
  %v2953 = vsel %vm26, %v328, %v970
  %v2954 = vsel %vm26, %v329, %v972
  %v2955 = vsel %vm26, %v330, %v974
  %v2956 = vsel %vm26, %v331, %v976
  %v2957 = vsel %vm26, %v332, %v978
  %v2958 = vsel %vm26, %v333, %v980
  %v2959 = vsel %vm26, %v334, %v982
  %v2960 = vsel %vm26, %v335, %v984
  %v2961 = vsel %vm26, %v336, %v986
  %v2962 = vsel %vm26, %v337, %v988
  %v2963 = vsel %vm26, %v338, %v990
  %v2964 = vsel %vm26, %v339, %v992
  %v2965 = vsel %vm26, %v340, %v994
  %v2966 = vsel %vm26, %v341, %v996
  %v2967 = vsel %vm26, %v342, %v998
  %v2968 = vsel %vm26, %v343, %v1000
  %v2969 = vsel %vm26, %v344, %v1002
  %v2970 = vsel %vm26, %v345, %v1004
  %v2971 = vsel %vm26, %v346, %v1006
  %v2972 = vsel %vm26, %v347, %v1008
  %v2973 = vsel %vm26, %v348, %v1010
  %v2974 = vsel %vm26, %v349, %v1012
  %v2975 = vsel %vm26, %v350, %v1014
  %v2976 = vsel %vm26, %v351, %v1016
  %v2977 = vsel %vm26, %v352, %v1018
  %v2978 = vsel %vm26, %v353, %v1020
  %v2979 = vsel %vm26, %v354, %v1022
  %v2980 = vsel %vm26, %v355, %v1024
  %v2981 = vsel %vm26, %v356, %v1026
  %v2982 = vsel %vm26, %v357, %v1028
  %v2983 = vsel %vm26, %v358, %v1030
  %v2984 = vsel %vm26, %v359, %v1032
  %v2985 = vsel %vm26, %v360, %v1034
  %v2986 = vsel %vm26, %v361, %v1036
  %v2987 = vsel %vm26, %v362, %v1038
  %v2988 = vsel %vm26, %v363, %v1040
  %v2989 = vsel %vm26, %v364, %v1042
  %v2990 = vsel %vm26, %v365, %v1044
  %v2991 = vsel %vm26, %v366, %v1046
  %v2992 = vsel %vm26, %v367, %v1048
  %v2993 = vsel %vm26, %v368, %v1050
  %v2994 = vsel %vm26, %v369, %v1052
  %v2995 = vsel %vm26, %v370, %v1054
  %v2996 = vsel %vm26, %v371, %v1056
  %v2997 = vsel %vm26, %v372, %v1058
  %v2998 = vsel %vm26, %v373, %v1060
  %v2999 = vsel %vm26, %v374, %v1062
  %v3000 = vsel %vm26, %v375, %v1064
  %v3001 = vsel %vm26, %v376, %v1066
  %v3002 = vsel %vm26, %v377, %v1068
  %v3003 = vsel %vm26, %v378, %v1070
  %v3004 = vsel %vm26, %v379, %v1072
  %v3005 = vsel %vm26, %v380, %v1074
  %v3006 = vsel %vm26, %v381, %v1076
  %v3007 = vsel %vm26, %v382, %v1078
  %v3008 = vsel %vm26, %v383, %v1080
  %v3009 = vsel %vm26, %v384, %v1082
  %v3010 = vsel %vm26, %v385, %v1084
  %v3011 = vsel %vm26, %v386, %v1086
  %v3012 = vsel %vm26, %v387, %v1088
  %v3013 = vsel %vm26, %v388, %v1090
  %v3014 = vsel %vm26, %v389, %v1092
  %v3015 = vsel %vm26, %v390, %v1094
  %v3016 = vsel %vm26, %v391, %v1096
  %vm3017 = vcmask 64512
  %v3018 = vsel %vm3017, %v2953, %v1226
  %v3019 = vsel %vm3017, %v2954, %v1228
  %v3020 = vsel %vm3017, %v2955, %v1230
  %v3021 = vsel %vm3017, %v2956, %v1232
  %v3022 = vsel %vm3017, %v2957, %v1234
  %v3023 = vsel %vm3017, %v2958, %v1236
  %v3024 = vsel %vm3017, %v2959, %v1238
  %v3025 = vsel %vm3017, %v2960, %v1240
  %v3026 = vsel %vm3017, %v2961, %v1242
  %v3027 = vsel %vm3017, %v2962, %v1244
  %v3028 = vsel %vm3017, %v2963, %v1246
  %v3029 = vsel %vm3017, %v2964, %v1248
  %v3030 = vsel %vm3017, %v2965, %v1250
  %v3031 = vsel %vm3017, %v2966, %v1252
  %v3032 = vsel %vm3017, %v2967, %v1254
  %v3033 = vsel %vm3017, %v2968, %v1256
  %v3034 = vsel %vm3017, %v2969, %v1258
  %v3035 = vsel %vm3017, %v2970, %v1260
  %v3036 = vsel %vm3017, %v2971, %v1262
  %v3037 = vsel %vm3017, %v2972, %v1264
  %v3038 = vsel %vm3017, %v2973, %v1266
  %v3039 = vsel %vm3017, %v2974, %v1268
  %v3040 = vsel %vm3017, %v2975, %v1270
  %v3041 = vsel %vm3017, %v2976, %v1272
  %v3042 = vsel %vm3017, %v2977, %v1274
  %v3043 = vsel %vm3017, %v2978, %v1276
  %v3044 = vsel %vm3017, %v2979, %v1278
  %v3045 = vsel %vm3017, %v2980, %v1280
  %v3046 = vsel %vm3017, %v2981, %v1282
  %v3047 = vsel %vm3017, %v2982, %v1284
  %v3048 = vsel %vm3017, %v2983, %v1286
  %v3049 = vsel %vm3017, %v2984, %v1288
  %v3050 = vsel %vm3017, %v2985, %v1290
  %v3051 = vsel %vm3017, %v2986, %v1292
  %v3052 = vsel %vm3017, %v2987, %v1294
  %v3053 = vsel %vm3017, %v2988, %v1296
  %v3054 = vsel %vm3017, %v2989, %v1298
  %v3055 = vsel %vm3017, %v2990, %v1300
  %v3056 = vsel %vm3017, %v2991, %v1302
  %v3057 = vsel %vm3017, %v2992, %v1304
  %v3058 = vsel %vm3017, %v2993, %v1306
  %v3059 = vsel %vm3017, %v2994, %v1308
  %v3060 = vsel %vm3017, %v2995, %v1310
  %v3061 = vsel %vm3017, %v2996, %v1312
  %v3062 = vsel %vm3017, %v2997, %v1314
  %v3063 = vsel %vm3017, %v2998, %v1316
  %v3064 = vsel %vm3017, %v2999, %v1318
  %v3065 = vsel %vm3017, %v3000, %v1320
  %v3066 = vsel %vm3017, %v3001, %v1322
  %v3067 = vsel %vm3017, %v3002, %v1324
  %v3068 = vsel %vm3017, %v3003, %v1326
  %v3069 = vsel %vm3017, %v3004, %v1328
  %v3070 = vsel %vm3017, %v3005, %v1330
  %v3071 = vsel %vm3017, %v3006, %v1332
  %v3072 = vsel %vm3017, %v3007, %v1334
  %v3073 = vsel %vm3017, %v3008, %v1336
  %v3074 = vsel %vm3017, %v3009, %v1338
  %v3075 = vsel %vm3017, %v3010, %v1340
  %v3076 = vsel %vm3017, %v3011, %v1342
  %v3077 = vsel %vm3017, %v3012, %v1344
  %v3078 = vsel %vm3017, %v3013, %v1346
  %v3079 = vsel %vm3017, %v3014, %v1348
  %v3080 = vsel %vm3017, %v3015, %v1350
  %v3081 = vsel %vm3017, %v3016, %v1352
  %vm3082 = vcmask 97280
  %v3083 = vsel %vm3082, %v3018, %v1482
  %v3084 = vsel %vm3082, %v3019, %v1484
  %v3085 = vsel %vm3082, %v3020, %v1486
  %v3086 = vsel %vm3082, %v3021, %v1488
  %v3087 = vsel %vm3082, %v3022, %v1490
  %v3088 = vsel %vm3082, %v3023, %v1492
  %v3089 = vsel %vm3082, %v3024, %v1494
  %v3090 = vsel %vm3082, %v3025, %v1496
  %v3091 = vsel %vm3082, %v3026, %v1498
  %v3092 = vsel %vm3082, %v3027, %v1500
  %v3093 = vsel %vm3082, %v3028, %v1502
  %v3094 = vsel %vm3082, %v3029, %v1504
  %v3095 = vsel %vm3082, %v3030, %v1506
  %v3096 = vsel %vm3082, %v3031, %v1508
  %v3097 = vsel %vm3082, %v3032, %v1510
  %v3098 = vsel %vm3082, %v3033, %v1512
  %v3099 = vsel %vm3082, %v3034, %v1514
  %v3100 = vsel %vm3082, %v3035, %v1516
  %v3101 = vsel %vm3082, %v3036, %v1518
  %v3102 = vsel %vm3082, %v3037, %v1520
  %v3103 = vsel %vm3082, %v3038, %v1522
  %v3104 = vsel %vm3082, %v3039, %v1524
  %v3105 = vsel %vm3082, %v3040, %v1526
  %v3106 = vsel %vm3082, %v3041, %v1528
  %v3107 = vsel %vm3082, %v3042, %v1530
  %v3108 = vsel %vm3082, %v3043, %v1532
  %v3109 = vsel %vm3082, %v3044, %v1534
  %v3110 = vsel %vm3082, %v3045, %v1536
  %v3111 = vsel %vm3082, %v3046, %v1538
  %v3112 = vsel %vm3082, %v3047, %v1540
  %v3113 = vsel %vm3082, %v3048, %v1542
  %v3114 = vsel %vm3082, %v3049, %v1544
  %v3115 = vsel %vm3082, %v3050, %v1546
  %v3116 = vsel %vm3082, %v3051, %v1548
  %v3117 = vsel %vm3082, %v3052, %v1550
  %v3118 = vsel %vm3082, %v3053, %v1552
  %v3119 = vsel %vm3082, %v3054, %v1554
  %v3120 = vsel %vm3082, %v3055, %v1556
  %v3121 = vsel %vm3082, %v3056, %v1558
  %v3122 = vsel %vm3082, %v3057, %v1560
  %v3123 = vsel %vm3082, %v3058, %v1562
  %v3124 = vsel %vm3082, %v3059, %v1564
  %v3125 = vsel %vm3082, %v3060, %v1566
  %v3126 = vsel %vm3082, %v3061, %v1568
  %v3127 = vsel %vm3082, %v3062, %v1570
  %v3128 = vsel %vm3082, %v3063, %v1572
  %v3129 = vsel %vm3082, %v3064, %v1574
  %v3130 = vsel %vm3082, %v3065, %v1576
  %v3131 = vsel %vm3082, %v3066, %v1578
  %v3132 = vsel %vm3082, %v3067, %v1580
  %v3133 = vsel %vm3082, %v3068, %v1582
  %v3134 = vsel %vm3082, %v3069, %v1584
  %v3135 = vsel %vm3082, %v3070, %v1586
  %v3136 = vsel %vm3082, %v3071, %v1588
  %v3137 = vsel %vm3082, %v3072, %v1590
  %v3138 = vsel %vm3082, %v3073, %v1592
  %v3139 = vsel %vm3082, %v3074, %v1594
  %v3140 = vsel %vm3082, %v3075, %v1596
  %v3141 = vsel %vm3082, %v3076, %v1598
  %v3142 = vsel %vm3082, %v3077, %v1600
  %v3143 = vsel %vm3082, %v3078, %v1602
  %v3144 = vsel %vm3082, %v3079, %v1604
  %v3145 = vsel %vm3082, %v3080, %v1606
  %v3146 = vsel %vm3082, %v3081, %v1608
  %vm3147 = vcmask 130048
  %v3148 = vsel %vm3147, %v3083, %v1738
  %v3149 = vsel %vm3147, %v3084, %v1740
  %v3150 = vsel %vm3147, %v3085, %v1742
  %v3151 = vsel %vm3147, %v3086, %v1744
  %v3152 = vsel %vm3147, %v3087, %v1746
  %v3153 = vsel %vm3147, %v3088, %v1748
  %v3154 = vsel %vm3147, %v3089, %v1750
  %v3155 = vsel %vm3147, %v3090, %v1752
  %v3156 = vsel %vm3147, %v3091, %v1754
  %v3157 = vsel %vm3147, %v3092, %v1756
  %v3158 = vsel %vm3147, %v3093, %v1758
  %v3159 = vsel %vm3147, %v3094, %v1760
  %v3160 = vsel %vm3147, %v3095, %v1762
  %v3161 = vsel %vm3147, %v3096, %v1764
  %v3162 = vsel %vm3147, %v3097, %v1766
  %v3163 = vsel %vm3147, %v3098, %v1768
  %v3164 = vsel %vm3147, %v3099, %v1770
  %v3165 = vsel %vm3147, %v3100, %v1772
  %v3166 = vsel %vm3147, %v3101, %v1774
  %v3167 = vsel %vm3147, %v3102, %v1776
  %v3168 = vsel %vm3147, %v3103, %v1778
  %v3169 = vsel %vm3147, %v3104, %v1780
  %v3170 = vsel %vm3147, %v3105, %v1782
  %v3171 = vsel %vm3147, %v3106, %v1784
  %v3172 = vsel %vm3147, %v3107, %v1786
  %v3173 = vsel %vm3147, %v3108, %v1788
  %v3174 = vsel %vm3147, %v3109, %v1790
  %v3175 = vsel %vm3147, %v3110, %v1792
  %v3176 = vsel %vm3147, %v3111, %v1794
  %v3177 = vsel %vm3147, %v3112, %v1796
  %v3178 = vsel %vm3147, %v3113, %v1798
  %v3179 = vsel %vm3147, %v3114, %v1800
  %v3180 = vsel %vm3147, %v3115, %v1802
  %v3181 = vsel %vm3147, %v3116, %v1804
  %v3182 = vsel %vm3147, %v3117, %v1806
  %v3183 = vsel %vm3147, %v3118, %v1808
  %v3184 = vsel %vm3147, %v3119, %v1810
  %v3185 = vsel %vm3147, %v3120, %v1812
  %v3186 = vsel %vm3147, %v3121, %v1814
  %v3187 = vsel %vm3147, %v3122, %v1816
  %v3188 = vsel %vm3147, %v3123, %v1818
  %v3189 = vsel %vm3147, %v3124, %v1820
  %v3190 = vsel %vm3147, %v3125, %v1822
  %v3191 = vsel %vm3147, %v3126, %v1824
  %v3192 = vsel %vm3147, %v3127, %v1826
  %v3193 = vsel %vm3147, %v3128, %v1828
  %v3194 = vsel %vm3147, %v3129, %v1830
  %v3195 = vsel %vm3147, %v3130, %v1832
  %v3196 = vsel %vm3147, %v3131, %v1834
  %v3197 = vsel %vm3147, %v3132, %v1836
  %v3198 = vsel %vm3147, %v3133, %v1838
  %v3199 = vsel %vm3147, %v3134, %v1840
  %v3200 = vsel %vm3147, %v3135, %v1842
  %v3201 = vsel %vm3147, %v3136, %v1844
  %v3202 = vsel %vm3147, %v3137, %v1846
  %v3203 = vsel %vm3147, %v3138, %v1848
  %v3204 = vsel %vm3147, %v3139, %v1850
  %v3205 = vsel %vm3147, %v3140, %v1852
  %v3206 = vsel %vm3147, %v3141, %v1854
  %v3207 = vsel %vm3147, %v3142, %v1856
  %v3208 = vsel %vm3147, %v3143, %v1858
  %v3209 = vsel %vm3147, %v3144, %v1860
  %v3210 = vsel %vm3147, %v3145, %v1862
  %v3211 = vsel %vm3147, %v3146, %v1864
  %vm3212 = vcmask 162816
  %v3213 = vsel %vm3212, %v3148, %v1994
  %v3214 = vsel %vm3212, %v3149, %v1996
  %v3215 = vsel %vm3212, %v3150, %v1998
  %v3216 = vsel %vm3212, %v3151, %v2000
  %v3217 = vsel %vm3212, %v3152, %v2002
  %v3218 = vsel %vm3212, %v3153, %v2004
  %v3219 = vsel %vm3212, %v3154, %v2006
  %v3220 = vsel %vm3212, %v3155, %v2008
  %v3221 = vsel %vm3212, %v3156, %v2010
  %v3222 = vsel %vm3212, %v3157, %v2012
  %v3223 = vsel %vm3212, %v3158, %v2014
  %v3224 = vsel %vm3212, %v3159, %v2016
  %v3225 = vsel %vm3212, %v3160, %v2018
  %v3226 = vsel %vm3212, %v3161, %v2020
  %v3227 = vsel %vm3212, %v3162, %v2022
  %v3228 = vsel %vm3212, %v3163, %v2024
  %v3229 = vsel %vm3212, %v3164, %v2026
  %v3230 = vsel %vm3212, %v3165, %v2028
  %v3231 = vsel %vm3212, %v3166, %v2030
  %v3232 = vsel %vm3212, %v3167, %v2032
  %v3233 = vsel %vm3212, %v3168, %v2034
  %v3234 = vsel %vm3212, %v3169, %v2036
  %v3235 = vsel %vm3212, %v3170, %v2038
  %v3236 = vsel %vm3212, %v3171, %v2040
  %v3237 = vsel %vm3212, %v3172, %v2042
  %v3238 = vsel %vm3212, %v3173, %v2044
  %v3239 = vsel %vm3212, %v3174, %v2046
  %v3240 = vsel %vm3212, %v3175, %v2048
  %v3241 = vsel %vm3212, %v3176, %v2050
  %v3242 = vsel %vm3212, %v3177, %v2052
  %v3243 = vsel %vm3212, %v3178, %v2054
  %v3244 = vsel %vm3212, %v3179, %v2056
  %v3245 = vsel %vm3212, %v3180, %v2058
  %v3246 = vsel %vm3212, %v3181, %v2060
  %v3247 = vsel %vm3212, %v3182, %v2062
  %v3248 = vsel %vm3212, %v3183, %v2064
  %v3249 = vsel %vm3212, %v3184, %v2066
  %v3250 = vsel %vm3212, %v3185, %v2068
  %v3251 = vsel %vm3212, %v3186, %v2070
  %v3252 = vsel %vm3212, %v3187, %v2072
  %v3253 = vsel %vm3212, %v3188, %v2074
  %v3254 = vsel %vm3212, %v3189, %v2076
  %v3255 = vsel %vm3212, %v3190, %v2078
  %v3256 = vsel %vm3212, %v3191, %v2080
  %v3257 = vsel %vm3212, %v3192, %v2082
  %v3258 = vsel %vm3212, %v3193, %v2084
  %v3259 = vsel %vm3212, %v3194, %v2086
  %v3260 = vsel %vm3212, %v3195, %v2088
  %v3261 = vsel %vm3212, %v3196, %v2090
  %v3262 = vsel %vm3212, %v3197, %v2092
  %v3263 = vsel %vm3212, %v3198, %v2094
  %v3264 = vsel %vm3212, %v3199, %v2096
  %v3265 = vsel %vm3212, %v3200, %v2098
  %v3266 = vsel %vm3212, %v3201, %v2100
  %v3267 = vsel %vm3212, %v3202, %v2102
  %v3268 = vsel %vm3212, %v3203, %v2104
  %v3269 = vsel %vm3212, %v3204, %v2106
  %v3270 = vsel %vm3212, %v3205, %v2108
  %v3271 = vsel %vm3212, %v3206, %v2110
  %v3272 = vsel %vm3212, %v3207, %v2112
  %v3273 = vsel %vm3212, %v3208, %v2114
  %v3274 = vsel %vm3212, %v3209, %v2116
  %v3275 = vsel %vm3212, %v3210, %v2118
  %v3276 = vsel %vm3212, %v3211, %v2120
  %vm3277 = vcmask 195584
  %v3278 = vsel %vm3277, %v3213, %v2250
  %v3279 = vsel %vm3277, %v3214, %v2252
  %v3280 = vsel %vm3277, %v3215, %v2254
  %v3281 = vsel %vm3277, %v3216, %v2256
  %v3282 = vsel %vm3277, %v3217, %v2258
  %v3283 = vsel %vm3277, %v3218, %v2260
  %v3284 = vsel %vm3277, %v3219, %v2262
  %v3285 = vsel %vm3277, %v3220, %v2264
  %v3286 = vsel %vm3277, %v3221, %v2266
  %v3287 = vsel %vm3277, %v3222, %v2268
  %v3288 = vsel %vm3277, %v3223, %v2270
  %v3289 = vsel %vm3277, %v3224, %v2272
  %v3290 = vsel %vm3277, %v3225, %v2274
  %v3291 = vsel %vm3277, %v3226, %v2276
  %v3292 = vsel %vm3277, %v3227, %v2278
  %v3293 = vsel %vm3277, %v3228, %v2280
  %v3294 = vsel %vm3277, %v3229, %v2282
  %v3295 = vsel %vm3277, %v3230, %v2284
  %v3296 = vsel %vm3277, %v3231, %v2286
  %v3297 = vsel %vm3277, %v3232, %v2288
  %v3298 = vsel %vm3277, %v3233, %v2290
  %v3299 = vsel %vm3277, %v3234, %v2292
  %v3300 = vsel %vm3277, %v3235, %v2294
  %v3301 = vsel %vm3277, %v3236, %v2296
  %v3302 = vsel %vm3277, %v3237, %v2298
  %v3303 = vsel %vm3277, %v3238, %v2300
  %v3304 = vsel %vm3277, %v3239, %v2302
  %v3305 = vsel %vm3277, %v3240, %v2304
  %v3306 = vsel %vm3277, %v3241, %v2306
  %v3307 = vsel %vm3277, %v3242, %v2308
  %v3308 = vsel %vm3277, %v3243, %v2310
  %v3309 = vsel %vm3277, %v3244, %v2312
  %v3310 = vsel %vm3277, %v3245, %v2314
  %v3311 = vsel %vm3277, %v3246, %v2316
  %v3312 = vsel %vm3277, %v3247, %v2318
  %v3313 = vsel %vm3277, %v3248, %v2320
  %v3314 = vsel %vm3277, %v3249, %v2322
  %v3315 = vsel %vm3277, %v3250, %v2324
  %v3316 = vsel %vm3277, %v3251, %v2326
  %v3317 = vsel %vm3277, %v3252, %v2328
  %v3318 = vsel %vm3277, %v3253, %v2330
  %v3319 = vsel %vm3277, %v3254, %v2332
  %v3320 = vsel %vm3277, %v3255, %v2334
  %v3321 = vsel %vm3277, %v3256, %v2336
  %v3322 = vsel %vm3277, %v3257, %v2338
  %v3323 = vsel %vm3277, %v3258, %v2340
  %v3324 = vsel %vm3277, %v3259, %v2342
  %v3325 = vsel %vm3277, %v3260, %v2344
  %v3326 = vsel %vm3277, %v3261, %v2346
  %v3327 = vsel %vm3277, %v3262, %v2348
  %v3328 = vsel %vm3277, %v3263, %v2350
  %v3329 = vsel %vm3277, %v3264, %v2352
  %v3330 = vsel %vm3277, %v3265, %v2354
  %v3331 = vsel %vm3277, %v3266, %v2356
  %v3332 = vsel %vm3277, %v3267, %v2358
  %v3333 = vsel %vm3277, %v3268, %v2360
  %v3334 = vsel %vm3277, %v3269, %v2362
  %v3335 = vsel %vm3277, %v3270, %v2364
  %v3336 = vsel %vm3277, %v3271, %v2366
  %v3337 = vsel %vm3277, %v3272, %v2368
  %v3338 = vsel %vm3277, %v3273, %v2370
  %v3339 = vsel %vm3277, %v3274, %v2372
  %v3340 = vsel %vm3277, %v3275, %v2374
  %v3341 = vsel %vm3277, %v3276, %v2376
  %vm3342 = vcmask 228352
  %v3343 = vsel %vm3342, %v3278, %v2506
  %v3344 = vsel %vm3342, %v3279, %v2508
  %v3345 = vsel %vm3342, %v3280, %v2510
  %v3346 = vsel %vm3342, %v3281, %v2512
  %v3347 = vsel %vm3342, %v3282, %v2514
  %v3348 = vsel %vm3342, %v3283, %v2516
  %v3349 = vsel %vm3342, %v3284, %v2518
  %v3350 = vsel %vm3342, %v3285, %v2520
  %v3351 = vsel %vm3342, %v3286, %v2522
  %v3352 = vsel %vm3342, %v3287, %v2524
  %v3353 = vsel %vm3342, %v3288, %v2526
  %v3354 = vsel %vm3342, %v3289, %v2528
  %v3355 = vsel %vm3342, %v3290, %v2530
  %v3356 = vsel %vm3342, %v3291, %v2532
  %v3357 = vsel %vm3342, %v3292, %v2534
  %v3358 = vsel %vm3342, %v3293, %v2536
  %v3359 = vsel %vm3342, %v3294, %v2538
  %v3360 = vsel %vm3342, %v3295, %v2540
  %v3361 = vsel %vm3342, %v3296, %v2542
  %v3362 = vsel %vm3342, %v3297, %v2544
  %v3363 = vsel %vm3342, %v3298, %v2546
  %v3364 = vsel %vm3342, %v3299, %v2548
  %v3365 = vsel %vm3342, %v3300, %v2550
  %v3366 = vsel %vm3342, %v3301, %v2552
  %v3367 = vsel %vm3342, %v3302, %v2554
  %v3368 = vsel %vm3342, %v3303, %v2556
  %v3369 = vsel %vm3342, %v3304, %v2558
  %v3370 = vsel %vm3342, %v3305, %v2560
  %v3371 = vsel %vm3342, %v3306, %v2562
  %v3372 = vsel %vm3342, %v3307, %v2564
  %v3373 = vsel %vm3342, %v3308, %v2566
  %v3374 = vsel %vm3342, %v3309, %v2568
  %v3375 = vsel %vm3342, %v3310, %v2570
  %v3376 = vsel %vm3342, %v3311, %v2572
  %v3377 = vsel %vm3342, %v3312, %v2574
  %v3378 = vsel %vm3342, %v3313, %v2576
  %v3379 = vsel %vm3342, %v3314, %v2578
  %v3380 = vsel %vm3342, %v3315, %v2580
  %v3381 = vsel %vm3342, %v3316, %v2582
  %v3382 = vsel %vm3342, %v3317, %v2584
  %v3383 = vsel %vm3342, %v3318, %v2586
  %v3384 = vsel %vm3342, %v3319, %v2588
  %v3385 = vsel %vm3342, %v3320, %v2590
  %v3386 = vsel %vm3342, %v3321, %v2592
  %v3387 = vsel %vm3342, %v3322, %v2594
  %v3388 = vsel %vm3342, %v3323, %v2596
  %v3389 = vsel %vm3342, %v3324, %v2598
  %v3390 = vsel %vm3342, %v3325, %v2600
  %v3391 = vsel %vm3342, %v3326, %v2602
  %v3392 = vsel %vm3342, %v3327, %v2604
  %v3393 = vsel %vm3342, %v3328, %v2606
  %v3394 = vsel %vm3342, %v3329, %v2608
  %v3395 = vsel %vm3342, %v3330, %v2610
  %v3396 = vsel %vm3342, %v3331, %v2612
  %v3397 = vsel %vm3342, %v3332, %v2614
  %v3398 = vsel %vm3342, %v3333, %v2616
  %v3399 = vsel %vm3342, %v3334, %v2618
  %v3400 = vsel %vm3342, %v3335, %v2620
  %v3401 = vsel %vm3342, %v3336, %v2622
  %v3402 = vsel %vm3342, %v3337, %v2624
  %v3403 = vsel %vm3342, %v3338, %v2626
  %v3404 = vsel %vm3342, %v3339, %v2628
  %v3405 = vsel %vm3342, %v3340, %v2630
  %v3406 = vsel %vm3342, %v3341, %v2632
  %vm3407 = vcmask 261120
  %v3408 = vsel %vm3407, %v3343, %v2762
  %v3409 = vsel %vm3407, %v3344, %v2764
  %v3410 = vsel %vm3407, %v3345, %v2766
  %v3411 = vsel %vm3407, %v3346, %v2768
  %v3412 = vsel %vm3407, %v3347, %v2770
  %v3413 = vsel %vm3407, %v3348, %v2772
  %v3414 = vsel %vm3407, %v3349, %v2774
  %v3415 = vsel %vm3407, %v3350, %v2776
  %v3416 = vsel %vm3407, %v3351, %v2778
  %v3417 = vsel %vm3407, %v3352, %v2780
  %v3418 = vsel %vm3407, %v3353, %v2782
  %v3419 = vsel %vm3407, %v3354, %v2784
  %v3420 = vsel %vm3407, %v3355, %v2786
  %v3421 = vsel %vm3407, %v3356, %v2788
  %v3422 = vsel %vm3407, %v3357, %v2790
  %v3423 = vsel %vm3407, %v3358, %v2792
  %v3424 = vsel %vm3407, %v3359, %v2794
  %v3425 = vsel %vm3407, %v3360, %v2796
  %v3426 = vsel %vm3407, %v3361, %v2798
  %v3427 = vsel %vm3407, %v3362, %v2800
  %v3428 = vsel %vm3407, %v3363, %v2802
  %v3429 = vsel %vm3407, %v3364, %v2804
  %v3430 = vsel %vm3407, %v3365, %v2806
  %v3431 = vsel %vm3407, %v3366, %v2808
  %v3432 = vsel %vm3407, %v3367, %v2810
  %v3433 = vsel %vm3407, %v3368, %v2812
  %v3434 = vsel %vm3407, %v3369, %v2814
  %v3435 = vsel %vm3407, %v3370, %v2816
  %v3436 = vsel %vm3407, %v3371, %v2818
  %v3437 = vsel %vm3407, %v3372, %v2820
  %v3438 = vsel %vm3407, %v3373, %v2822
  %v3439 = vsel %vm3407, %v3374, %v2824
  %v3440 = vsel %vm3407, %v3375, %v2826
  %v3441 = vsel %vm3407, %v3376, %v2828
  %v3442 = vsel %vm3407, %v3377, %v2830
  %v3443 = vsel %vm3407, %v3378, %v2832
  %v3444 = vsel %vm3407, %v3379, %v2834
  %v3445 = vsel %vm3407, %v3380, %v2836
  %v3446 = vsel %vm3407, %v3381, %v2838
  %v3447 = vsel %vm3407, %v3382, %v2840
  %v3448 = vsel %vm3407, %v3383, %v2842
  %v3449 = vsel %vm3407, %v3384, %v2844
  %v3450 = vsel %vm3407, %v3385, %v2846
  %v3451 = vsel %vm3407, %v3386, %v2848
  %v3452 = vsel %vm3407, %v3387, %v2850
  %v3453 = vsel %vm3407, %v3388, %v2852
  %v3454 = vsel %vm3407, %v3389, %v2854
  %v3455 = vsel %vm3407, %v3390, %v2856
  %v3456 = vsel %vm3407, %v3391, %v2858
  %v3457 = vsel %vm3407, %v3392, %v2860
  %v3458 = vsel %vm3407, %v3393, %v2862
  %v3459 = vsel %vm3407, %v3394, %v2864
  %v3460 = vsel %vm3407, %v3395, %v2866
  %v3461 = vsel %vm3407, %v3396, %v2868
  %v3462 = vsel %vm3407, %v3397, %v2870
  %v3463 = vsel %vm3407, %v3398, %v2872
  %v3464 = vsel %vm3407, %v3399, %v2874
  %v3465 = vsel %vm3407, %v3400, %v2876
  %v3466 = vsel %vm3407, %v3401, %v2878
  %v3467 = vsel %vm3407, %v3402, %v2880
  %v3468 = vsel %vm3407, %v3403, %v2882
  %v3469 = vsel %vm3407, %v3404, %v2884
  %v3470 = vsel %vm3407, %v3405, %v2886
  %v3471 = vsel %vm3407, %v3406, %v2888
  %v3472 = vld [vmem:[%s1] sm:$0xff]
  %v3473 = vld [vmem:[%s1 + $0x8] sm:$0xff]
  %v3474 = vld [vmem:[%s1 + $0x10] sm:$0xff]
  %v3475 = vld [vmem:[%s1 + $0x18] sm:$0xff]
  %v3476 = vld [vmem:[%s1 + $0x20] sm:$0xf]
  %vm3477 = vcmask 293888
  %v3479 = vsel %vm3477, %v3408, 0
  %v3482 = vsel %vm3477, %v3409, 0
  %v3485 = vsel %vm3477, %v3410, 0
  %v3488 = vsel %vm3477, %v3411, 0
  %v3491 = vsel %vm3477, %v3412, 0
  %v3494 = vsel %vm3477, %v3413, 0
  %v3497 = vsel %vm3477, %v3414, 0
  %v3500 = vsel %vm3477, %v3415, 0
  %v3503 = vsel %vm3477, %v3416, 0
  %v3506 = vsel %vm3477, %v3417, 0
  %v3509 = vsel %vm3477, %v3418, 0
  %v3512 = vsel %vm3477, %v3419, 0
  %v3515 = vsel %vm3477, %v3420, 0
  %v3518 = vsel %vm3477, %v3421, 0
  %v3521 = vsel %vm3477, %v3422, 0
  %v3524 = vsel %vm3477, %v3423, 0
  %v3527 = vsel %vm3477, %v3424, 0
  %v3530 = vsel %vm3477, %v3425, 0
  %v3533 = vsel %vm3477, %v3426, 0
  %v3536 = vsel %vm3477, %v3427, 0
  %v3539 = vsel %vm3477, %v3428, 0
  %v3542 = vsel %vm3477, %v3429, 0
  %v3545 = vsel %vm3477, %v3430, 0
  %v3548 = vsel %vm3477, %v3431, 0
  %v3551 = vsel %vm3477, %v3432, 0
  %v3554 = vsel %vm3477, %v3433, 0
  %v3557 = vsel %vm3477, %v3434, 0
  %v3560 = vsel %vm3477, %v3435, 0
  %v3563 = vsel %vm3477, %v3436, 0
  %v3566 = vsel %vm3477, %v3437, 0
  %v3569 = vsel %vm3477, %v3438, 0
  %v3572 = vsel %vm3477, %v3439, 0
  %v3575 = vsel %vm3477, %v3440, 0
  %v3578 = vsel %vm3477, %v3441, 0
  %v3581 = vsel %vm3477, %v3442, 0
  %v3584 = vsel %vm3477, %v3443, 0
  %v3587 = vsel %vm3477, %v3444, 0
  %v3590 = vsel %vm3477, %v3445, 0
  %v3593 = vsel %vm3477, %v3446, 0
  %v3596 = vsel %vm3477, %v3447, 0
  %v3599 = vsel %vm3477, %v3448, 0
  %v3602 = vsel %vm3477, %v3449, 0
  %v3605 = vsel %vm3477, %v3450, 0
  %v3608 = vsel %vm3477, %v3451, 0
  %v3611 = vsel %vm3477, %v3452, 0
  %v3614 = vsel %vm3477, %v3453, 0
  %v3617 = vsel %vm3477, %v3454, 0
  %v3620 = vsel %vm3477, %v3455, 0
  %v3623 = vsel %vm3477, %v3456, 0
  %v3626 = vsel %vm3477, %v3457, 0
  %v3629 = vsel %vm3477, %v3458, 0
  %v3632 = vsel %vm3477, %v3459, 0
  %v3635 = vsel %vm3477, %v3460, 0
  %v3638 = vsel %vm3477, %v3461, 0
  %v3641 = vsel %vm3477, %v3462, 0
  %v3644 = vsel %vm3477, %v3463, 0
  %v3647 = vsel %vm3477, %v3464, 0
  %v3650 = vsel %vm3477, %v3465, 0
  %v3653 = vsel %vm3477, %v3466, 0
  %v3656 = vsel %vm3477, %v3467, 0
  %v3659 = vsel %vm3477, %v3468, 0
  %v3662 = vsel %vm3477, %v3469, 0
  %v3665 = vsel %vm3477, %v3470, 0
  %v3668 = vsel %vm3477, %v3471, 0
  %vm3670 = vcmask 1043456
  %v3672 = vsel %vm3670, %v3476, 0
  %3674 = vmatprep.subr.mxu0 0.0
  %3675 = vmatpush1.msra.mxu0 %v3472
  %3676 = vmatprep.subr.mxu0 0.0
  %3677 = vmatpush1.msra.mxu0 %v3473
  %3678 = vmatprep.subr.mxu0 0.0
  %3679 = vmatpush1.msra.mxu0 %v3474
  %3680 = vmatprep.subr.mxu0 0.0
  %3681 = vmatpush1.msra.mxu0 %v3475
  %3682 = vmatprep.subr.mxu0 0.0
  %3683 = vmatpush1.msra.mxu0 %v3672
  %3684 = vmatprep.subr.mxu0 0.0
  %3685 = vmatpush1.msra.mxu0 0.0
  %3686 = vmatprep.subr.mxu0 0.0
  %3687 = vmatpush1.msra.mxu0 0.0
  %3688 = vmatprep.subr.mxu0 0.0
  %3689 = vmatpush1.msra.mxu0 0.0
  %3690 = vmatprep.subr.mxu0 0.0
  %3691 = vmatpush1.msra.mxu0 0.0
  %3692 = vmatprep.subr.mxu0 0.0
  %3693 = vmatpush1.msra.mxu0 0.0
  %3694 = vmatprep.subr.mxu0 0.0
  %3695 = vmatpush1.msra.mxu0 0.0
  %3696 = vmatprep.subr.mxu0 0.0
  %3697 = vmatpush1.msra.mxu0 0.0
  %3698 = vmatprep.subr.mxu0 0.0
  %3699 = vmatpush1.msra.mxu0 0.0
  %3700 = vmatprep.subr.mxu0 0.0
  %3701 = vmatpush1.msra.mxu0 0.0
  %3702 = vmatprep.subr.mxu0 0.0
  %3703 = vmatpush1.msra.mxu0 0.0
  %3704 = vmatprep.subr.mxu0 0.0
  %3705 = vmatpush1.msra.mxu0 0.0
  %3706 = vmatprep.subr.mxu0 0.0
  %3707 = vmatpush1.msra.mxu0 0.0
  %3708 = vmatprep.subr.mxu0 0.0
  %3709 = vmatpush1.msra.mxu0 0.0
  %3710 = vmatprep.subr.mxu0 0.0
  %3711 = vmatpush1.msra.mxu0 0.0
  %3712 = vmatprep.subr.mxu0 0.0
  %3713 = vmatpush1.msra.mxu0 0.0
  %3714 = vmatprep.subr.mxu0 0.0
  %3715 = vmatpush1.msra.mxu0 0.0
  %3716 = vmatprep.subr.mxu0 0.0
  %3717 = vmatpush1.msra.mxu0 0.0
  %3718 = vmatprep.subr.mxu0 0.0
  %3719 = vmatpush1.msra.mxu0 0.0
  %3720 = vmatprep.subr.mxu0 0.0
  %3721 = vmatpush1.msra.mxu0 0.0
  %3722 = vmatprep.subr.mxu0 0.0
  %3723 = vmatpush1.msra.mxu0 0.0
  %3724 = vmatprep.subr.mxu0 0.0
  %3725 = vmatpush1.msra.mxu0 0.0
  %3726 = vmatprep.subr.mxu0 0.0
  %3727 = vmatpush1.msra.mxu0 0.0
  %3728 = vmatprep.subr.mxu0 0.0
  %3729 = vmatpush1.msra.mxu0 0.0
  %3730 = vmatprep.subr.mxu0 0.0
  %3731 = vmatpush1.msra.mxu0 0.0
  %3732 = vmatprep.subr.mxu0 0.0
  %3733 = vmatpush1.msra.mxu0 0.0
  %3734 = vmatprep.subr.mxu0 0.0
  %3735 = vmatpush1.msra.mxu0 0.0
  %3736 = vmatprep.subr.mxu0 0.0
  %3737 = vmatpush1.msra.mxu0 0.0
  %3738 = vmatprep.mubr.f32.mxu0 0.0
  %3739 = vmatmul.mubr.f32.gmra.mrb[0].mxu0 %v3479
  %v3740 = vpop.f32.mrb[0].mxu0
  %v3741 = vadd.f32 0.0, %v3740
  %v3742 = vpop.f32.mrb[0].mxu0
  %3743 = vmatprep.mubr.f32.mxu0 0.0
  %3744 = vmatmul.mubr.f32.gmra.mrb[0].mxu0 %v3482
  %v3745 = vpop.f32.mrb[0].mxu0
  %v3746 = vadd.f32 0.0, %v3745
  %v3747 = vpop.f32.mrb[0].mxu0
  %3748 = vmatprep.mubr.f32.mxu0 0.0
  %3749 = vmatmul.mubr.f32.gmra.mrb[0].mxu0 %v3485
  %v3750 = vpop.f32.mrb[0].mxu0
  %v3751 = vadd.f32 0.0, %v3750
  %v3752 = vpop.f32.mrb[0].mxu0
  %3753 = vmatprep.mubr.f32.mxu0 0.0
  %3754 = vmatmul.mubr.f32.gmra.mrb[0].mxu0 %v3488
  %v3755 = vpop.f32.mrb[0].mxu0
  %v3756 = vadd.f32 0.0, %v3755
  %v3757 = vpop.f32.mrb[0].mxu0
  %3758 = vmatprep.mubr.f32.mxu0 0.0
  %3759 = vmatmul.mubr.f32.gmra.mrb[0].mxu0 %v3491
  %v3760 = vpop.f32.mrb[0].mxu0
  %v3761 = vadd.f32 0.0, %v3760
  %v3762 = vpop.f32.mrb[0].mxu0
  %3763 = vmatprep.mubr.f32.mxu0 0.0
  %3764 = vmatmul.mubr.f32.gmra.mrb[0].mxu0 %v3494
  %v3765 = vpop.f32.mrb[0].mxu0
  %v3766 = vadd.f32 0.0, %v3765
  %v3767 = vpop.f32.mrb[0].mxu0
  %3768 = vmatprep.mubr.f32.mxu0 0.0
  %3769 = vmatmul.mubr.f32.gmra.mrb[0].mxu0 %v3497
  %v3770 = vpop.f32.mrb[0].mxu0
  %v3771 = vadd.f32 0.0, %v3770
  %v3772 = vpop.f32.mrb[0].mxu0
  %3773 = vmatprep.mubr.f32.mxu0 0.0
  %3774 = vmatmul.mubr.f32.gmra.mrb[0].mxu0 %v3500
  %v3775 = vpop.f32.mrb[0].mxu0
  %v3776 = vadd.f32 0.0, %v3775
  %v3777 = vpop.f32.mrb[0].mxu0
  %3778 = vmatprep.mubr.f32.mxu0 0.0
  %3779 = vmatmul.mubr.f32.gmra.mrb[0].mxu0 %v3503
  %v3780 = vpop.f32.mrb[0].mxu0
  %v3781 = vadd.f32 0.0, %v3780
  %v3782 = vpop.f32.mrb[0].mxu0
  %3783 = vmatprep.mubr.f32.mxu0 0.0
  %3784 = vmatmul.mubr.f32.gmra.mrb[0].mxu0 %v3506
  %v3785 = vpop.f32.mrb[0].mxu0
  %v3786 = vadd.f32 0.0, %v3785
  %v3787 = vpop.f32.mrb[0].mxu0
  %3788 = vmatprep.mubr.f32.mxu0 0.0
  %3789 = vmatmul.mubr.f32.gmra.mrb[0].mxu0 %v3509
  %v3790 = vpop.f32.mrb[0].mxu0
  %v3791 = vadd.f32 0.0, %v3790
  %v3792 = vpop.f32.mrb[0].mxu0
  %3793 = vmatprep.mubr.f32.mxu0 0.0
  %3794 = vmatmul.mubr.f32.gmra.mrb[0].mxu0 %v3512
  %v3795 = vpop.f32.mrb[0].mxu0
  %v3796 = vadd.f32 0.0, %v3795
  %v3797 = vpop.f32.mrb[0].mxu0
  %3798 = vmatprep.mubr.f32.mxu0 0.0
  %3799 = vmatmul.mubr.f32.gmra.mrb[0].mxu0 %v3515
  %v3800 = vpop.f32.mrb[0].mxu0
  %v3801 = vadd.f32 0.0, %v3800
  %v3802 = vpop.f32.mrb[0].mxu0
  %3803 = vmatprep.mubr.f32.mxu0 0.0
  %3804 = vmatmul.mubr.f32.gmra.mrb[0].mxu0 %v3518
  %v3805 = vpop.f32.mrb[0].mxu0
  %v3806 = vadd.f32 0.0, %v3805
  %v3807 = vpop.f32.mrb[0].mxu0
  %3808 = vmatprep.mubr.f32.mxu0 0.0
  %3809 = vmatmul.mubr.f32.gmra.mrb[0].mxu0 %v3521
  %v3810 = vpop.f32.mrb[0].mxu0
  %v3811 = vadd.f32 0.0, %v3810
  %v3812 = vpop.f32.mrb[0].mxu0
  %3813 = vmatprep.mubr.f32.mxu0 0.0
  %3814 = vmatmul.mubr.f32.gmra.mrb[0].mxu0 %v3524
  %v3815 = vpop.f32.mrb[0].mxu0
  %v3816 = vadd.f32 0.0, %v3815
  %v3817 = vpop.f32.mrb[0].mxu0
  %3818 = vmatprep.mubr.f32.mxu0 0.0
  %3819 = vmatmul.mubr.f32.gmra.mrb[0].mxu0 %v3527
  %v3820 = vpop.f32.mrb[0].mxu0
  %v3821 = vadd.f32 0.0, %v3820
  %v3822 = vpop.f32.mrb[0].mxu0
  %3823 = vmatprep.mubr.f32.mxu0 0.0
  %3824 = vmatmul.mubr.f32.gmra.mrb[0].mxu0 %v3530
  %v3825 = vpop.f32.mrb[0].mxu0
  %v3826 = vadd.f32 0.0, %v3825
  %v3827 = vpop.f32.mrb[0].mxu0
  %3828 = vmatprep.mubr.f32.mxu0 0.0
  %3829 = vmatmul.mubr.f32.gmra.mrb[0].mxu0 %v3533
  %v3830 = vpop.f32.mrb[0].mxu0
  %v3831 = vadd.f32 0.0, %v3830
  %v3832 = vpop.f32.mrb[0].mxu0
  %3833 = vmatprep.mubr.f32.mxu0 0.0
  %3834 = vmatmul.mubr.f32.gmra.mrb[0].mxu0 %v3536
  %v3835 = vpop.f32.mrb[0].mxu0
  %v3836 = vadd.f32 0.0, %v3835
  %v3837 = vpop.f32.mrb[0].mxu0
  %3838 = vmatprep.mubr.f32.mxu0 0.0
  %3839 = vmatmul.mubr.f32.gmra.mrb[0].mxu0 %v3539
  %v3840 = vpop.f32.mrb[0].mxu0
  %v3841 = vadd.f32 0.0, %v3840
  %v3842 = vpop.f32.mrb[0].mxu0
  %3843 = vmatprep.mubr.f32.mxu0 0.0
  %3844 = vmatmul.mubr.f32.gmra.mrb[0].mxu0 %v3542
  %v3845 = vpop.f32.mrb[0].mxu0
  %v3846 = vadd.f32 0.0, %v3845
  %v3847 = vpop.f32.mrb[0].mxu0
  %3848 = vmatprep.mubr.f32.mxu0 0.0
  %3849 = vmatmul.mubr.f32.gmra.mrb[0].mxu0 %v3545
  %v3850 = vpop.f32.mrb[0].mxu0
  %v3851 = vadd.f32 0.0, %v3850
  %v3852 = vpop.f32.mrb[0].mxu0
  %3853 = vmatprep.mubr.f32.mxu0 0.0
  %3854 = vmatmul.mubr.f32.gmra.mrb[0].mxu0 %v3548
  %v3855 = vpop.f32.mrb[0].mxu0
  %v3856 = vadd.f32 0.0, %v3855
  %v3857 = vpop.f32.mrb[0].mxu0
  %3858 = vmatprep.mubr.f32.mxu0 0.0
  %3859 = vmatmul.mubr.f32.gmra.mrb[0].mxu0 %v3551
  %v3860 = vpop.f32.mrb[0].mxu0
  %v3861 = vadd.f32 0.0, %v3860
  %v3862 = vpop.f32.mrb[0].mxu0
  %3863 = vmatprep.mubr.f32.mxu0 0.0
  %3864 = vmatmul.mubr.f32.gmra.mrb[0].mxu0 %v3554
  %v3865 = vpop.f32.mrb[0].mxu0
  %v3866 = vadd.f32 0.0, %v3865
  %v3867 = vpop.f32.mrb[0].mxu0
  %3868 = vmatprep.mubr.f32.mxu0 0.0
  %3869 = vmatmul.mubr.f32.gmra.mrb[0].mxu0 %v3557
  %v3870 = vpop.f32.mrb[0].mxu0
  %v3871 = vadd.f32 0.0, %v3870
  %v3872 = vpop.f32.mrb[0].mxu0
  %3873 = vmatprep.mubr.f32.mxu0 0.0
  %3874 = vmatmul.mubr.f32.gmra.mrb[0].mxu0 %v3560
  %v3875 = vpop.f32.mrb[0].mxu0
  %v3876 = vadd.f32 0.0, %v3875
  %v3877 = vpop.f32.mrb[0].mxu0
  %3878 = vmatprep.mubr.f32.mxu0 0.0
  %3879 = vmatmul.mubr.f32.gmra.mrb[0].mxu0 %v3563
  %v3880 = vpop.f32.mrb[0].mxu0
  %v3881 = vadd.f32 0.0, %v3880
  %v3882 = vpop.f32.mrb[0].mxu0
  %3883 = vmatprep.mubr.f32.mxu0 0.0
  %3884 = vmatmul.mubr.f32.gmra.mrb[0].mxu0 %v3566
  %v3885 = vpop.f32.mrb[0].mxu0
  %v3886 = vadd.f32 0.0, %v3885
  %v3887 = vpop.f32.mrb[0].mxu0
  %3888 = vmatprep.mubr.f32.mxu0 0.0
  %3889 = vmatmul.mubr.f32.gmra.mrb[0].mxu0 %v3569
  %v3890 = vpop.f32.mrb[0].mxu0
  %v3891 = vadd.f32 0.0, %v3890
  %v3892 = vpop.f32.mrb[0].mxu0
  %3893 = vmatprep.mubr.f32.mxu0 0.0
  %3894 = vmatmul.mubr.f32.gmra.mrb[0].mxu0 %v3572
  %v3895 = vpop.f32.mrb[0].mxu0
  %v3896 = vadd.f32 0.0, %v3895
  %v3897 = vpop.f32.mrb[0].mxu0
  %3898 = vmatprep.mubr.f32.mxu0 0.0
  %3899 = vmatmul.mubr.f32.gmra.mrb[0].mxu0 %v3575
  %v3900 = vpop.f32.mrb[0].mxu0
  %v3901 = vadd.f32 0.0, %v3900
  %v3902 = vpop.f32.mrb[0].mxu0
  %3903 = vmatprep.mubr.f32.mxu0 0.0
  %3904 = vmatmul.mubr.f32.gmra.mrb[0].mxu0 %v3578
  %v3905 = vpop.f32.mrb[0].mxu0
  %v3906 = vadd.f32 0.0, %v3905
  %v3907 = vpop.f32.mrb[0].mxu0
  %3908 = vmatprep.mubr.f32.mxu0 0.0
  %3909 = vmatmul.mubr.f32.gmra.mrb[0].mxu0 %v3581
  %v3910 = vpop.f32.mrb[0].mxu0
  %v3911 = vadd.f32 0.0, %v3910
  %v3912 = vpop.f32.mrb[0].mxu0
  %3913 = vmatprep.mubr.f32.mxu0 0.0
  %3914 = vmatmul.mubr.f32.gmra.mrb[0].mxu0 %v3584
  %v3915 = vpop.f32.mrb[0].mxu0
  %v3916 = vadd.f32 0.0, %v3915
  %v3917 = vpop.f32.mrb[0].mxu0
  %3918 = vmatprep.mubr.f32.mxu0 0.0
  %3919 = vmatmul.mubr.f32.gmra.mrb[0].mxu0 %v3587
  %v3920 = vpop.f32.mrb[0].mxu0
  %v3921 = vadd.f32 0.0, %v3920
  %v3922 = vpop.f32.mrb[0].mxu0
  %3923 = vmatprep.mubr.f32.mxu0 0.0
  %3924 = vmatmul.mubr.f32.gmra.mrb[0].mxu0 %v3590
  %v3925 = vpop.f32.mrb[0].mxu0
  %v3926 = vadd.f32 0.0, %v3925
  %v3927 = vpop.f32.mrb[0].mxu0
  %3928 = vmatprep.mubr.f32.mxu0 0.0
  %3929 = vmatmul.mubr.f32.gmra.mrb[0].mxu0 %v3593
  %v3930 = vpop.f32.mrb[0].mxu0
  %v3931 = vadd.f32 0.0, %v3930
  %v3932 = vpop.f32.mrb[0].mxu0
  %3933 = vmatprep.mubr.f32.mxu0 0.0
  %3934 = vmatmul.mubr.f32.gmra.mrb[0].mxu0 %v3596
  %v3935 = vpop.f32.mrb[0].mxu0
  %v3936 = vadd.f32 0.0, %v3935
  %v3937 = vpop.f32.mrb[0].mxu0
  %3938 = vmatprep.mubr.f32.mxu0 0.0
  %3939 = vmatmul.mubr.f32.gmra.mrb[0].mxu0 %v3599
  %v3940 = vpop.f32.mrb[0].mxu0
  %v3941 = vadd.f32 0.0, %v3940
  %v3942 = vpop.f32.mrb[0].mxu0
  %3943 = vmatprep.mubr.f32.mxu0 0.0
  %3944 = vmatmul.mubr.f32.gmra.mrb[0].mxu0 %v3602
  %v3945 = vpop.f32.mrb[0].mxu0
  %v3946 = vadd.f32 0.0, %v3945
  %v3947 = vpop.f32.mrb[0].mxu0
  %3948 = vmatprep.mubr.f32.mxu0 0.0
  %3949 = vmatmul.mubr.f32.gmra.mrb[0].mxu0 %v3605
  %v3950 = vpop.f32.mrb[0].mxu0
  %v3951 = vadd.f32 0.0, %v3950
  %v3952 = vpop.f32.mrb[0].mxu0
  %3953 = vmatprep.mubr.f32.mxu0 0.0
  %3954 = vmatmul.mubr.f32.gmra.mrb[0].mxu0 %v3608
  %v3955 = vpop.f32.mrb[0].mxu0
  %v3956 = vadd.f32 0.0, %v3955
  %v3957 = vpop.f32.mrb[0].mxu0
  %3958 = vmatprep.mubr.f32.mxu0 0.0
  %3959 = vmatmul.mubr.f32.gmra.mrb[0].mxu0 %v3611
  %v3960 = vpop.f32.mrb[0].mxu0
  %v3961 = vadd.f32 0.0, %v3960
  %v3962 = vpop.f32.mrb[0].mxu0
  %3963 = vmatprep.mubr.f32.mxu0 0.0
  %3964 = vmatmul.mubr.f32.gmra.mrb[0].mxu0 %v3614
  %v3965 = vpop.f32.mrb[0].mxu0
  %v3966 = vadd.f32 0.0, %v3965
  %v3967 = vpop.f32.mrb[0].mxu0
  %3968 = vmatprep.mubr.f32.mxu0 0.0
  %3969 = vmatmul.mubr.f32.gmra.mrb[0].mxu0 %v3617
  %v3970 = vpop.f32.mrb[0].mxu0
  %v3971 = vadd.f32 0.0, %v3970
  %v3972 = vpop.f32.mrb[0].mxu0
  %3973 = vmatprep.mubr.f32.mxu0 0.0
  %3974 = vmatmul.mubr.f32.gmra.mrb[0].mxu0 %v3620
  %v3975 = vpop.f32.mrb[0].mxu0
  %v3976 = vadd.f32 0.0, %v3975
  %v3977 = vpop.f32.mrb[0].mxu0
  %3978 = vmatprep.mubr.f32.mxu0 0.0
  %3979 = vmatmul.mubr.f32.gmra.mrb[0].mxu0 %v3623
  %v3980 = vpop.f32.mrb[0].mxu0
  %v3981 = vadd.f32 0.0, %v3980
  %v3982 = vpop.f32.mrb[0].mxu0
  %3983 = vmatprep.mubr.f32.mxu0 0.0
  %3984 = vmatmul.mubr.f32.gmra.mrb[0].mxu0 %v3626
  %v3985 = vpop.f32.mrb[0].mxu0
  %v3986 = vadd.f32 0.0, %v3985
  %v3987 = vpop.f32.mrb[0].mxu0
  %3988 = vmatprep.mubr.f32.mxu0 0.0
  %3989 = vmatmul.mubr.f32.gmra.mrb[0].mxu0 %v3629
  %v3990 = vpop.f32.mrb[0].mxu0
  %v3991 = vadd.f32 0.0, %v3990
  %v3992 = vpop.f32.mrb[0].mxu0
  %3993 = vmatprep.mubr.f32.mxu0 0.0
  %3994 = vmatmul.mubr.f32.gmra.mrb[0].mxu0 %v3632
  %v3995 = vpop.f32.mrb[0].mxu0
  %v3996 = vadd.f32 0.0, %v3995
  %v3997 = vpop.f32.mrb[0].mxu0
  %3998 = vmatprep.mubr.f32.mxu0 0.0
  %3999 = vmatmul.mubr.f32.gmra.mrb[0].mxu0 %v3635
  %v4000 = vpop.f32.mrb[0].mxu0
  %v4001 = vadd.f32 0.0, %v4000
  %v4002 = vpop.f32.mrb[0].mxu0
  %4003 = vmatprep.mubr.f32.mxu0 0.0
  %4004 = vmatmul.mubr.f32.gmra.mrb[0].mxu0 %v3638
  %v4005 = vpop.f32.mrb[0].mxu0
  %v4006 = vadd.f32 0.0, %v4005
  %v4007 = vpop.f32.mrb[0].mxu0
  %4008 = vmatprep.mubr.f32.mxu0 0.0
  %4009 = vmatmul.mubr.f32.gmra.mrb[0].mxu0 %v3641
  %v4010 = vpop.f32.mrb[0].mxu0
  %v4011 = vadd.f32 0.0, %v4010
  %v4012 = vpop.f32.mrb[0].mxu0
  %4013 = vmatprep.mubr.f32.mxu0 0.0
  %4014 = vmatmul.mubr.f32.gmra.mrb[0].mxu0 %v3644
  %v4015 = vpop.f32.mrb[0].mxu0
  %v4016 = vadd.f32 0.0, %v4015
  %v4017 = vpop.f32.mrb[0].mxu0
  %4018 = vmatprep.mubr.f32.mxu0 0.0
  %4019 = vmatmul.mubr.f32.gmra.mrb[0].mxu0 %v3647
  %v4020 = vpop.f32.mrb[0].mxu0
  %v4021 = vadd.f32 0.0, %v4020
  %v4022 = vpop.f32.mrb[0].mxu0
  %4023 = vmatprep.mubr.f32.mxu0 0.0
  %4024 = vmatmul.mubr.f32.gmra.mrb[0].mxu0 %v3650
  %v4025 = vpop.f32.mrb[0].mxu0
  %v4026 = vadd.f32 0.0, %v4025
  %v4027 = vpop.f32.mrb[0].mxu0
  %4028 = vmatprep.mubr.f32.mxu0 0.0
  %4029 = vmatmul.mubr.f32.gmra.mrb[0].mxu0 %v3653
  %v4030 = vpop.f32.mrb[0].mxu0
  %v4031 = vadd.f32 0.0, %v4030
  %v4032 = vpop.f32.mrb[0].mxu0
  %4033 = vmatprep.mubr.f32.mxu0 0.0
  %4034 = vmatmul.mubr.f32.gmra.mrb[0].mxu0 %v3656
  %v4035 = vpop.f32.mrb[0].mxu0
  %v4036 = vadd.f32 0.0, %v4035
  %v4037 = vpop.f32.mrb[0].mxu0
  %4038 = vmatprep.mubr.f32.mxu0 0.0
  %4039 = vmatmul.mubr.f32.gmra.mrb[0].mxu0 %v3659
  %v4040 = vpop.f32.mrb[0].mxu0
  %v4041 = vadd.f32 0.0, %v4040
  %v4042 = vpop.f32.mrb[0].mxu0
  %4043 = vmatprep.mubr.f32.mxu0 0.0
  %4044 = vmatmul.mubr.f32.gmra.mrb[0].mxu0 %v3662
  %v4045 = vpop.f32.mrb[0].mxu0
  %v4046 = vadd.f32 0.0, %v4045
  %v4047 = vpop.f32.mrb[0].mxu0
  %4048 = vmatprep.mubr.f32.mxu0 0.0
  %4049 = vmatmul.mubr.f32.gmra.mrb[0].mxu0 %v3665
  %v4050 = vpop.f32.mrb[0].mxu0
  %v4051 = vadd.f32 0.0, %v4050
  %v4052 = vpop.f32.mrb[0].mxu0
  %4053 = vmatprep.mubr.f32.mxu0 0.0
  %4054 = vmatmul.mubr.f32.gmra.mrb[0].mxu0 %v3668
  %v4055 = vpop.f32.mrb[0].mxu0
  %v4056 = vadd.f32 0.0, %v4055
  %v4057 = vpop.f32.mrb[0].mxu0
  %4058 = vdwg.mxu0
  %v4059 = vld [vmem:[%s2] sm:$0x1]
  %v4061 = vlaneseq
  %v4062 = vshrl.u32 %v4061, 7
  %v4063 = vsub.s32 0, %v4062
  %v4064 = vrot.slane %v4059, %v4063
  %v4066 = vmul.f32 %v3741, %v4064
  %v4067 = vmul.f32 %v3746, %v4064
  %v4068 = vmul.f32 %v3751, %v4064
  %v4069 = vmul.f32 %v3756, %v4064
  %v4070 = vmul.f32 %v3761, %v4064
  %v4071 = vmul.f32 %v3766, %v4064
  %v4072 = vmul.f32 %v3771, %v4064
  %v4073 = vmul.f32 %v3776, %v4064
  %v4074 = vmul.f32 %v3781, %v4064
  %v4075 = vmul.f32 %v3786, %v4064
  %v4076 = vmul.f32 %v3791, %v4064
  %v4077 = vmul.f32 %v3796, %v4064
  %v4078 = vmul.f32 %v3801, %v4064
  %v4079 = vmul.f32 %v3806, %v4064
  %v4080 = vmul.f32 %v3811, %v4064
  %v4081 = vmul.f32 %v3816, %v4064
  %v4082 = vmul.f32 %v3821, %v4064
  %v4083 = vmul.f32 %v3826, %v4064
  %v4084 = vmul.f32 %v3831, %v4064
  %v4085 = vmul.f32 %v3836, %v4064
  %v4086 = vmul.f32 %v3841, %v4064
  %v4087 = vmul.f32 %v3846, %v4064
  %v4088 = vmul.f32 %v3851, %v4064
  %v4089 = vmul.f32 %v3856, %v4064
  %v4090 = vmul.f32 %v3861, %v4064
  %v4091 = vmul.f32 %v3866, %v4064
  %v4092 = vmul.f32 %v3871, %v4064
  %v4093 = vmul.f32 %v3876, %v4064
  %v4094 = vmul.f32 %v3881, %v4064
  %v4095 = vmul.f32 %v3886, %v4064
  %v4096 = vmul.f32 %v3891, %v4064
  %v4097 = vmul.f32 %v3896, %v4064
  %v4098 = vmul.f32 %v3901, %v4064
  %v4099 = vmul.f32 %v3906, %v4064
  %v4100 = vmul.f32 %v3911, %v4064
  %v4101 = vmul.f32 %v3916, %v4064
  %v4102 = vmul.f32 %v3921, %v4064
  %v4103 = vmul.f32 %v3926, %v4064
  %v4104 = vmul.f32 %v3931, %v4064
  %v4105 = vmul.f32 %v3936, %v4064
  %v4106 = vmul.f32 %v3941, %v4064
  %v4107 = vmul.f32 %v3946, %v4064
  %v4108 = vmul.f32 %v3951, %v4064
  %v4109 = vmul.f32 %v3956, %v4064
  %v4110 = vmul.f32 %v3961, %v4064
  %v4111 = vmul.f32 %v3966, %v4064
  %v4112 = vmul.f32 %v3971, %v4064
  %v4113 = vmul.f32 %v3976, %v4064
  %v4114 = vmul.f32 %v3981, %v4064
  %v4115 = vmul.f32 %v3986, %v4064
  %v4116 = vmul.f32 %v3991, %v4064
  %v4117 = vmul.f32 %v3996, %v4064
  %v4118 = vmul.f32 %v4001, %v4064
  %v4119 = vmul.f32 %v4006, %v4064
  %v4120 = vmul.f32 %v4011, %v4064
  %v4121 = vmul.f32 %v4016, %v4064
  %v4122 = vmul.f32 %v4021, %v4064
  %v4123 = vmul.f32 %v4026, %v4064
  %v4124 = vmul.f32 %v4031, %v4064
  %v4125 = vmul.f32 %v4036, %v4064
  %v4126 = vmul.f32 %v4041, %v4064
  %v4127 = vmul.f32 %v4046, %v4064
  %v4128 = vmul.f32 %v4051, %v4064
  %v4129 = vmul.f32 %v4056, %v4064
  %v4130 = vld [vmem:[%s3] sm:$0x1]
  %v4132 = vlaneseq
  %v4133 = vshrl.u32 %v4132, 7
  %v4134 = vsub.s32 0, %v4133
  %v4135 = vrot.slane %v4130, %v4134
  %v4137 = vadd.f32 %v4066, %v4135
  %v4138 = vadd.f32 %v4067, %v4135
  %v4139 = vadd.f32 %v4068, %v4135
  %v4140 = vadd.f32 %v4069, %v4135
  %v4141 = vadd.f32 %v4070, %v4135
  %v4142 = vadd.f32 %v4071, %v4135
  %v4143 = vadd.f32 %v4072, %v4135
  %v4144 = vadd.f32 %v4073, %v4135
  %v4145 = vadd.f32 %v4074, %v4135
  %v4146 = vadd.f32 %v4075, %v4135
  %v4147 = vadd.f32 %v4076, %v4135
  %v4148 = vadd.f32 %v4077, %v4135
  %v4149 = vadd.f32 %v4078, %v4135
  %v4150 = vadd.f32 %v4079, %v4135
  %v4151 = vadd.f32 %v4080, %v4135
  %v4152 = vadd.f32 %v4081, %v4135
  %v4153 = vadd.f32 %v4082, %v4135
  %v4154 = vadd.f32 %v4083, %v4135
  %v4155 = vadd.f32 %v4084, %v4135
  %v4156 = vadd.f32 %v4085, %v4135
  %v4157 = vadd.f32 %v4086, %v4135
  %v4158 = vadd.f32 %v4087, %v4135
  %v4159 = vadd.f32 %v4088, %v4135
  %v4160 = vadd.f32 %v4089, %v4135
  %v4161 = vadd.f32 %v4090, %v4135
  %v4162 = vadd.f32 %v4091, %v4135
  %v4163 = vadd.f32 %v4092, %v4135
  %v4164 = vadd.f32 %v4093, %v4135
  %v4165 = vadd.f32 %v4094, %v4135
  %v4166 = vadd.f32 %v4095, %v4135
  %v4167 = vadd.f32 %v4096, %v4135
  %v4168 = vadd.f32 %v4097, %v4135
  %v4169 = vadd.f32 %v4098, %v4135
  %v4170 = vadd.f32 %v4099, %v4135
  %v4171 = vadd.f32 %v4100, %v4135
  %v4172 = vadd.f32 %v4101, %v4135
  %v4173 = vadd.f32 %v4102, %v4135
  %v4174 = vadd.f32 %v4103, %v4135
  %v4175 = vadd.f32 %v4104, %v4135
  %v4176 = vadd.f32 %v4105, %v4135
  %v4177 = vadd.f32 %v4106, %v4135
  %v4178 = vadd.f32 %v4107, %v4135
  %v4179 = vadd.f32 %v4108, %v4135
  %v4180 = vadd.f32 %v4109, %v4135
  %v4181 = vadd.f32 %v4110, %v4135
  %v4182 = vadd.f32 %v4111, %v4135
  %v4183 = vadd.f32 %v4112, %v4135
  %v4184 = vadd.f32 %v4113, %v4135
  %v4185 = vadd.f32 %v4114, %v4135
  %v4186 = vadd.f32 %v4115, %v4135
  %v4187 = vadd.f32 %v4116, %v4135
  %v4188 = vadd.f32 %v4117, %v4135
  %v4189 = vadd.f32 %v4118, %v4135
  %v4190 = vadd.f32 %v4119, %v4135
  %v4191 = vadd.f32 %v4120, %v4135
  %v4192 = vadd.f32 %v4121, %v4135
  %v4193 = vadd.f32 %v4122, %v4135
  %v4194 = vadd.f32 %v4123, %v4135
  %v4195 = vadd.f32 %v4124, %v4135
  %v4196 = vadd.f32 %v4125, %v4135
  %v4197 = vadd.f32 %v4126, %v4135
  %v4198 = vadd.f32 %v4127, %v4135
  %v4199 = vadd.f32 %v4128, %v4135
  %v4200 = vadd.f32 %v4129, %v4135
  %v4201 = vmax.f32 %v4137, 0.0
  %v4202 = vmax.f32 %v4138, 0.0
  %v4203 = vmax.f32 %v4139, 0.0
  %v4204 = vmax.f32 %v4140, 0.0
  %v4205 = vmax.f32 %v4141, 0.0
  %v4206 = vmax.f32 %v4142, 0.0
  %v4207 = vmax.f32 %v4143, 0.0
  %v4208 = vmax.f32 %v4144, 0.0
  %v4209 = vmax.f32 %v4145, 0.0
  %v4210 = vmax.f32 %v4146, 0.0
  %v4211 = vmax.f32 %v4147, 0.0
  %v4212 = vmax.f32 %v4148, 0.0
  %v4213 = vmax.f32 %v4149, 0.0
  %v4214 = vmax.f32 %v4150, 0.0
  %v4215 = vmax.f32 %v4151, 0.0
  %v4216 = vmax.f32 %v4152, 0.0
  %v4217 = vmax.f32 %v4153, 0.0
  %v4218 = vmax.f32 %v4154, 0.0
  %v4219 = vmax.f32 %v4155, 0.0
  %v4220 = vmax.f32 %v4156, 0.0
  %v4221 = vmax.f32 %v4157, 0.0
  %v4222 = vmax.f32 %v4158, 0.0
  %v4223 = vmax.f32 %v4159, 0.0
  %v4224 = vmax.f32 %v4160, 0.0
  %v4225 = vmax.f32 %v4161, 0.0
  %v4226 = vmax.f32 %v4162, 0.0
  %v4227 = vmax.f32 %v4163, 0.0
  %v4228 = vmax.f32 %v4164, 0.0
  %v4229 = vmax.f32 %v4165, 0.0
  %v4230 = vmax.f32 %v4166, 0.0
  %v4231 = vmax.f32 %v4167, 0.0
  %v4232 = vmax.f32 %v4168, 0.0
  %v4233 = vmax.f32 %v4169, 0.0
  %v4234 = vmax.f32 %v4170, 0.0
  %v4235 = vmax.f32 %v4171, 0.0
  %v4236 = vmax.f32 %v4172, 0.0
  %v4237 = vmax.f32 %v4173, 0.0
  %v4238 = vmax.f32 %v4174, 0.0
  %v4239 = vmax.f32 %v4175, 0.0
  %v4240 = vmax.f32 %v4176, 0.0
  %v4241 = vmax.f32 %v4177, 0.0
  %v4242 = vmax.f32 %v4178, 0.0
  %v4243 = vmax.f32 %v4179, 0.0
  %v4244 = vmax.f32 %v4180, 0.0
  %v4245 = vmax.f32 %v4181, 0.0
  %v4246 = vmax.f32 %v4182, 0.0
  %v4247 = vmax.f32 %v4183, 0.0
  %v4248 = vmax.f32 %v4184, 0.0
  %v4249 = vmax.f32 %v4185, 0.0
  %v4250 = vmax.f32 %v4186, 0.0
  %v4251 = vmax.f32 %v4187, 0.0
  %v4252 = vmax.f32 %v4188, 0.0
  %v4253 = vmax.f32 %v4189, 0.0
  %v4254 = vmax.f32 %v4190, 0.0
  %v4255 = vmax.f32 %v4191, 0.0
  %v4256 = vmax.f32 %v4192, 0.0
  %v4257 = vmax.f32 %v4193, 0.0
  %v4258 = vmax.f32 %v4194, 0.0
  %v4259 = vmax.f32 %v4195, 0.0
  %v4260 = vmax.f32 %v4196, 0.0
  %v4261 = vmax.f32 %v4197, 0.0
  %v4262 = vmax.f32 %v4198, 0.0
  %v4263 = vmax.f32 %v4199, 0.0
  %v4264 = vmax.f32 %v4200, 0.0
  %s4265 = scalar_lea.vmem [#allocation3], 24
  %4266 = vst.msk [vmem:[%s4265 + $0x1] sm:$0xff] %vm26, %v4201
  %4267 = vst.msk [vmem:[%s4265 + $0x9] sm:$0xff] %vm26, %v4202
  %4268 = vst.msk [vmem:[%s4265 + $0x19] sm:$0xff] %vm26, %v4203
  %4269 = vst.msk [vmem:[%s4265 + $0x21] sm:$0xff] %vm26, %v4204
  %4270 = vst.msk [vmem:[%s4265 + $0x31] sm:$0xff] %vm26, %v4205
  %4271 = vst.msk [vmem:[%s4265 + $0x39] sm:$0xff] %vm26, %v4206
  %4272 = vst.msk [vmem:[%s4265 + $0x49] sm:$0xff] %vm26, %v4207
  %4273 = vst.msk [vmem:[%s4265 + $0x51] sm:$0xff] %vm26, %v4208
  %4274 = vst.msk [vmem:[%s4265 + $0x61] sm:$0xff] %vm26, %v4209
  %4275 = vst.msk [vmem:[%s4265 + $0x69] sm:$0xff] %vm26, %v4210
  %4276 = vst.msk [vmem:[%s4265 + $0x79] sm:$0xff] %vm26, %v4211
  %4277 = vst.msk [vmem:[%s4265 + $0x81] sm:$0xff] %vm26, %v4212
  %4278 = vst.msk [vmem:[%s4265 + $0x91] sm:$0xff] %vm26, %v4213
  %4279 = vst.msk [vmem:[%s4265 + $0x99] sm:$0xff] %vm26, %v4214
  %4280 = vst.msk [vmem:[%s4265 + $0xa9] sm:$0xff] %vm26, %v4215
  %4281 = vst.msk [vmem:[%s4265 + $0xb1] sm:$0xff] %vm26, %v4216
  %4282 = vst.msk [vmem:[%s4265 + $0xc1] sm:$0xff] %vm26, %v4217
  %4283 = vst.msk [vmem:[%s4265 + $0xc9] sm:$0xff] %vm26, %v4218
  %4284 = vst.msk [vmem:[%s4265 + $0xd9] sm:$0xff] %vm26, %v4219
  %4285 = vst.msk [vmem:[%s4265 + $0xe1] sm:$0xff] %vm26, %v4220
  %4286 = vst.msk [vmem:[%s4265 + $0xf1] sm:$0xff] %vm26, %v4221
  %4287 = vst.msk [vmem:[%s4265 + $0xf9] sm:$0xff] %vm26, %v4222
  %4288 = vst.msk [vmem:[%s4265 + $0x109] sm:$0xff] %vm26, %v4223
  %4289 = vst.msk [vmem:[%s4265 + $0x111] sm:$0xff] %vm26, %v4224
  %4290 = vst.msk [vmem:[%s4265 + $0x121] sm:$0xff] %vm26, %v4225
  %4291 = vst.msk [vmem:[%s4265 + $0x129] sm:$0xff] %vm26, %v4226
  %4292 = vst.msk [vmem:[%s4265 + $0x139] sm:$0xff] %vm26, %v4227
  %4293 = vst.msk [vmem:[%s4265 + $0x141] sm:$0xff] %vm26, %v4228
  %4294 = vst.msk [vmem:[%s4265 + $0x151] sm:$0xff] %vm26, %v4229
  %4295 = vst.msk [vmem:[%s4265 + $0x159] sm:$0xff] %vm26, %v4230
  %4296 = vst.msk [vmem:[%s4265 + $0x169] sm:$0xff] %vm26, %v4231
  %4297 = vst.msk [vmem:[%s4265 + $0x171] sm:$0xff] %vm26, %v4232
  %4298 = vst.msk [vmem:[%s4265 + $0x1b1] sm:$0xff] %vm26, %v4233
  %4299 = vst.msk [vmem:[%s4265 + $0x1b9] sm:$0xff] %vm26, %v4234
  %4300 = vst.msk [vmem:[%s4265 + $0x1c9] sm:$0xff] %vm26, %v4235
  %4301 = vst.msk [vmem:[%s4265 + $0x1d1] sm:$0xff] %vm26, %v4236
  %4302 = vst.msk [vmem:[%s4265 + $0x1e1] sm:$0xff] %vm26, %v4237
  %4303 = vst.msk [vmem:[%s4265 + $0x1e9] sm:$0xff] %vm26, %v4238
  %4304 = vst.msk [vmem:[%s4265 + $0x1f9] sm:$0xff] %vm26, %v4239
  %4305 = vst.msk [vmem:[%s4265 + $0x201] sm:$0xff] %vm26, %v4240
  %4306 = vst.msk [vmem:[%s4265 + $0x211] sm:$0xff] %vm26, %v4241
  %4307 = vst.msk [vmem:[%s4265 + $0x219] sm:$0xff] %vm26, %v4242
  %4308 = vst.msk [vmem:[%s4265 + $0x229] sm:$0xff] %vm26, %v4243
  %4309 = vst.msk [vmem:[%s4265 + $0x231] sm:$0xff] %vm26, %v4244
  %4310 = vst.msk [vmem:[%s4265 + $0x241] sm:$0xff] %vm26, %v4245
  %4311 = vst.msk [vmem:[%s4265 + $0x249] sm:$0xff] %vm26, %v4246
  %4312 = vst.msk [vmem:[%s4265 + $0x259] sm:$0xff] %vm26, %v4247
  %4313 = vst.msk [vmem:[%s4265 + $0x261] sm:$0xff] %vm26, %v4248
  %4314 = vst.msk [vmem:[%s4265 + $0x271] sm:$0xff] %vm26, %v4249
  %4315 = vst.msk [vmem:[%s4265 + $0x279] sm:$0xff] %vm26, %v4250
  %4316 = vst.msk [vmem:[%s4265 + $0x289] sm:$0xff] %vm26, %v4251
  %4317 = vst.msk [vmem:[%s4265 + $0x291] sm:$0xff] %vm26, %v4252
  %4318 = vst.msk [vmem:[%s4265 + $0x2a1] sm:$0xff] %vm26, %v4253
  %4319 = vst.msk [vmem:[%s4265 + $0x2a9] sm:$0xff] %vm26, %v4254
  %4320 = vst.msk [vmem:[%s4265 + $0x2b9] sm:$0xff] %vm26, %v4255
  %4321 = vst.msk [vmem:[%s4265 + $0x2c1] sm:$0xff] %vm26, %v4256
  %4322 = vst.msk [vmem:[%s4265 + $0x2d1] sm:$0xff] %vm26, %v4257
  %4323 = vst.msk [vmem:[%s4265 + $0x2d9] sm:$0xff] %vm26, %v4258
  %4324 = vst.msk [vmem:[%s4265 + $0x2e9] sm:$0xff] %vm26, %v4259
  %4325 = vst.msk [vmem:[%s4265 + $0x2f1] sm:$0xff] %vm26, %v4260
  %4326 = vst.msk [vmem:[%s4265 + $0x301] sm:$0xff] %vm26, %v4261
  %4327 = vst.msk [vmem:[%s4265 + $0x309] sm:$0xff] %vm26, %v4262
  %4328 = vst.msk [vmem:[%s4265 + $0x319] sm:$0xff] %vm26, %v4263
  %4329 = vst.msk [vmem:[%s4265 + $0x321] sm:$0xff] %vm26, %v4264
  %v4330 = vld [vmem:[#allocation3] sm:$0xff]
  %v4331 = vld [vmem:[#allocation3 + $0x8] sm:$0xff]
  %v4332 = vld [vmem:[#allocation3 + $0x18] sm:$0xff]
  %v4333 = vld [vmem:[#allocation3 + $0x20] sm:$0xff]
  %v4334 = vld [vmem:[#allocation3 + $0x30] sm:$0xff]
  %v4335 = vld [vmem:[#allocation3 + $0x38] sm:$0xff]
  %v4336 = vld [vmem:[#allocation3 + $0x48] sm:$0xff]
  %v4337 = vld [vmem:[#allocation3 + $0x50] sm:$0xff]
  %v4338 = vld [vmem:[#allocation3 + $0x60] sm:$0xff]
  %v4339 = vld [vmem:[#allocation3 + $0x68] sm:$0xff]
  %v4340 = vld [vmem:[#allocation3 + $0x78] sm:$0xff]
  %v4341 = vld [vmem:[#allocation3 + $0x80] sm:$0xff]
  %v4342 = vld [vmem:[#allocation3 + $0x90] sm:$0xff]
  %v4343 = vld [vmem:[#allocation3 + $0x98] sm:$0xff]
  %v4344 = vld [vmem:[#allocation3 + $0xa8] sm:$0xff]
  %v4345 = vld [vmem:[#allocation3 + $0xb0] sm:$0xff]
  %v4346 = vld [vmem:[#allocation3 + $0xc0] sm:$0xff]
  %v4347 = vld [vmem:[#allocation3 + $0xc8] sm:$0xff]
  %v4348 = vld [vmem:[#allocation3 + $0xd8] sm:$0xff]
  %v4349 = vld [vmem:[#allocation3 + $0xe0] sm:$0xff]
  %v4350 = vld [vmem:[#allocation3 + $0xf0] sm:$0xff]
  %v4351 = vld [vmem:[#allocation3 + $0xf8] sm:$0xff]
  %v4352 = vld [vmem:[#allocation3 + $0x108] sm:$0xff]
  %v4353 = vld [vmem:[#allocation3 + $0x110] sm:$0xff]
  %v4354 = vld [vmem:[#allocation3 + $0x120] sm:$0xff]
  %v4355 = vld [vmem:[#allocation3 + $0x128] sm:$0xff]
  %v4356 = vld [vmem:[#allocation3 + $0x138] sm:$0xff]
  %v4357 = vld [vmem:[#allocation3 + $0x140] sm:$0xff]
  %v4358 = vld [vmem:[#allocation3 + $0x150] sm:$0xff]
  %v4359 = vld [vmem:[#allocation3 + $0x158] sm:$0xff]
  %v4360 = vld [vmem:[#allocation3 + $0x168] sm:$0xff]
  %v4361 = vld [vmem:[#allocation3 + $0x170] sm:$0xff]
  %v4362 = vld [vmem:[#allocation3 + $0x1b0] sm:$0xff]
  %v4363 = vld [vmem:[#allocation3 + $0x1b8] sm:$0xff]
  %v4364 = vld [vmem:[#allocation3 + $0x1c8] sm:$0xff]
  %v4365 = vld [vmem:[#allocation3 + $0x1d0] sm:$0xff]
  %v4366 = vld [vmem:[#allocation3 + $0x1e0] sm:$0xff]
  %v4367 = vld [vmem:[#allocation3 + $0x1e8] sm:$0xff]
  %v4368 = vld [vmem:[#allocation3 + $0x1f8] sm:$0xff]
  %v4369 = vld [vmem:[#allocation3 + $0x200] sm:$0xff]
  %v4370 = vld [vmem:[#allocation3 + $0x210] sm:$0xff]
  %v4371 = vld [vmem:[#allocation3 + $0x218] sm:$0xff]
  %v4372 = vld [vmem:[#allocation3 + $0x228] sm:$0xff]
  %v4373 = vld [vmem:[#allocation3 + $0x230] sm:$0xff]
  %v4374 = vld [vmem:[#allocation3 + $0x240] sm:$0xff]
  %v4375 = vld [vmem:[#allocation3 + $0x248] sm:$0xff]
  %v4376 = vld [vmem:[#allocation3 + $0x258] sm:$0xff]
  %v4377 = vld [vmem:[#allocation3 + $0x260] sm:$0xff]
  %v4378 = vld [vmem:[#allocation3 + $0x270] sm:$0xff]
  %v4379 = vld [vmem:[#allocation3 + $0x278] sm:$0xff]
  %v4380 = vld [vmem:[#allocation3 + $0x288] sm:$0xff]
  %v4381 = vld [vmem:[#allocation3 + $0x290] sm:$0xff]
  %v4382 = vld [vmem:[#allocation3 + $0x2a0] sm:$0xff]
  %v4383 = vld [vmem:[#allocation3 + $0x2a8] sm:$0xff]
  %v4384 = vld [vmem:[#allocation3 + $0x2b8] sm:$0xff]
  %v4385 = vld [vmem:[#allocation3 + $0x2c0] sm:$0xff]
  %v4386 = vld [vmem:[#allocation3 + $0x2d0] sm:$0xff]
  %v4387 = vld [vmem:[#allocation3 + $0x2d8] sm:$0xff]
  %v4388 = vld [vmem:[#allocation3 + $0x2e8] sm:$0xff]
  %v4389 = vld [vmem:[#allocation3 + $0x2f0] sm:$0xff]
  %v4390 = vld [vmem:[#allocation3 + $0x300] sm:$0xff]
  %v4391 = vld [vmem:[#allocation3 + $0x308] sm:$0xff]
  %v4392 = vld [vmem:[#allocation3 + $0x318] sm:$0xff]
  %v4393 = vld [vmem:[#allocation3 + $0x320] sm:$0xff]
  %v4394 = vld [vmem:[#allocation3 + $0x1] sm:$0xff]
  %v4395 = vld [vmem:[#allocation3 + $0x9] sm:$0xff]
  %v4396 = vld [vmem:[#allocation3 + $0x19] sm:$0xff]
  %v4397 = vld [vmem:[#allocation3 + $0x21] sm:$0xff]
  %v4398 = vld [vmem:[#allocation3 + $0x31] sm:$0xff]
  %v4399 = vld [vmem:[#allocation3 + $0x39] sm:$0xff]
  %v4400 = vld [vmem:[#allocation3 + $0x49] sm:$0xff]
  %v4401 = vld [vmem:[#allocation3 + $0x51] sm:$0xff]
  %v4402 = vld [vmem:[#allocation3 + $0x61] sm:$0xff]
  %v4403 = vld [vmem:[#allocation3 + $0x69] sm:$0xff]
  %v4404 = vld [vmem:[#allocation3 + $0x79] sm:$0xff]
  %v4405 = vld [vmem:[#allocation3 + $0x81] sm:$0xff]
  %v4406 = vld [vmem:[#allocation3 + $0x91] sm:$0xff]
  %v4407 = vld [vmem:[#allocation3 + $0x99] sm:$0xff]
  %v4408 = vld [vmem:[#allocation3 + $0xa9] sm:$0xff]
  %v4409 = vld [vmem:[#allocation3 + $0xb1] sm:$0xff]
  %v4410 = vld [vmem:[#allocation3 + $0xc1] sm:$0xff]
  %v4411 = vld [vmem:[#allocation3 + $0xc9] sm:$0xff]
  %v4412 = vld [vmem:[#allocation3 + $0xd9] sm:$0xff]
  %v4413 = vld [vmem:[#allocation3 + $0xe1] sm:$0xff]
  %v4414 = vld [vmem:[#allocation3 + $0xf1] sm:$0xff]
  %v4415 = vld [vmem:[#allocation3 + $0xf9] sm:$0xff]
  %v4416 = vld [vmem:[#allocation3 + $0x109] sm:$0xff]
  %v4417 = vld [vmem:[#allocation3 + $0x111] sm:$0xff]
  %v4418 = vld [vmem:[#allocation3 + $0x121] sm:$0xff]
  %v4419 = vld [vmem:[#allocation3 + $0x129] sm:$0xff]
  %v4420 = vld [vmem:[#allocation3 + $0x139] sm:$0xff]
  %v4421 = vld [vmem:[#allocation3 + $0x141] sm:$0xff]
  %v4422 = vld [vmem:[#allocation3 + $0x151] sm:$0xff]
  %v4423 = vld [vmem:[#allocation3 + $0x159] sm:$0xff]
  %v4424 = vld [vmem:[#allocation3 + $0x169] sm:$0xff]
  %v4425 = vld [vmem:[#allocation3 + $0x171] sm:$0xff]
  %v4426 = vld [vmem:[#allocation3 + $0x1b1] sm:$0xff]
  %v4427 = vld [vmem:[#allocation3 + $0x1b9] sm:$0xff]
  %v4428 = vld [vmem:[#allocation3 + $0x1c9] sm:$0xff]
  %v4429 = vld [vmem:[#allocation3 + $0x1d1] sm:$0xff]
  %v4430 = vld [vmem:[#allocation3 + $0x1e1] sm:$0xff]
  %v4431 = vld [vmem:[#allocation3 + $0x1e9] sm:$0xff]
  %v4432 = vld [vmem:[#allocation3 + $0x1f9] sm:$0xff]
  %v4433 = vld [vmem:[#allocation3 + $0x201] sm:$0xff]
  %v4434 = vld [vmem:[#allocation3 + $0x211] sm:$0xff]
  %v4435 = vld [vmem:[#allocation3 + $0x219] sm:$0xff]
  %v4436 = vld [vmem:[#allocation3 + $0x229] sm:$0xff]
  %v4437 = vld [vmem:[#allocation3 + $0x231] sm:$0xff]
  %v4438 = vld [vmem:[#allocation3 + $0x241] sm:$0xff]
  %v4439 = vld [vmem:[#allocation3 + $0x249] sm:$0xff]
  %v4440 = vld [vmem:[#allocation3 + $0x259] sm:$0xff]
  %v4441 = vld [vmem:[#allocation3 + $0x261] sm:$0xff]
  %v4442 = vld [vmem:[#allocation3 + $0x271] sm:$0xff]
  %v4443 = vld [vmem:[#allocation3 + $0x279] sm:$0xff]
  %v4444 = vld [vmem:[#allocation3 + $0x289] sm:$0xff]
  %v4445 = vld [vmem:[#allocation3 + $0x291] sm:$0xff]
  %v4446 = vld [vmem:[#allocation3 + $0x2a1] sm:$0xff]
  %v4447 = vld [vmem:[#allocation3 + $0x2a9] sm:$0xff]
  %v4448 = vld [vmem:[#allocation3 + $0x2b9] sm:$0xff]
  %v4449 = vld [vmem:[#allocation3 + $0x2c1] sm:$0xff]
  %v4450 = vld [vmem:[#allocation3 + $0x2d1] sm:$0xff]
  %v4451 = vld [vmem:[#allocation3 + $0x2d9] sm:$0xff]
  %v4452 = vld [vmem:[#allocation3 + $0x2e9] sm:$0xff]
  %v4453 = vld [vmem:[#allocation3 + $0x2f1] sm:$0xff]
  %v4454 = vld [vmem:[#allocation3 + $0x301] sm:$0xff]
  %v4455 = vld [vmem:[#allocation3 + $0x309] sm:$0xff]
  %v4456 = vld [vmem:[#allocation3 + $0x319] sm:$0xff]
  %v4457 = vld [vmem:[#allocation3 + $0x321] sm:$0xff]
  %v4458 = vld [vmem:[#allocation3 + $0x2] sm:$0xff]
  %v4459 = vld [vmem:[#allocation3 + $0xa] sm:$0xff]
  %v4460 = vld [vmem:[#allocation3 + $0x1a] sm:$0xff]
  %v4461 = vld [vmem:[#allocation3 + $0x22] sm:$0xff]
  %v4462 = vld [vmem:[#allocation3 + $0x32] sm:$0xff]
  %v4463 = vld [vmem:[#allocation3 + $0x3a] sm:$0xff]
  %v4464 = vld [vmem:[#allocation3 + $0x4a] sm:$0xff]
  %v4465 = vld [vmem:[#allocation3 + $0x52] sm:$0xff]
  %v4466 = vld [vmem:[#allocation3 + $0x62] sm:$0xff]
  %v4467 = vld [vmem:[#allocation3 + $0x6a] sm:$0xff]
  %v4468 = vld [vmem:[#allocation3 + $0x7a] sm:$0xff]
  %v4469 = vld [vmem:[#allocation3 + $0x82] sm:$0xff]
  %v4470 = vld [vmem:[#allocation3 + $0x92] sm:$0xff]
  %v4471 = vld [vmem:[#allocation3 + $0x9a] sm:$0xff]
  %v4472 = vld [vmem:[#allocation3 + $0xaa] sm:$0xff]
  %v4473 = vld [vmem:[#allocation3 + $0xb2] sm:$0xff]
  %v4474 = vld [vmem:[#allocation3 + $0xc2] sm:$0xff]
  %v4475 = vld [vmem:[#allocation3 + $0xca] sm:$0xff]
  %v4476 = vld [vmem:[#allocation3 + $0xda] sm:$0xff]
  %v4477 = vld [vmem:[#allocation3 + $0xe2] sm:$0xff]
  %v4478 = vld [vmem:[#allocation3 + $0xf2] sm:$0xff]
  %v4479 = vld [vmem:[#allocation3 + $0xfa] sm:$0xff]
  %v4480 = vld [vmem:[#allocation3 + $0x10a] sm:$0xff]
  %v4481 = vld [vmem:[#allocation3 + $0x112] sm:$0xff]
  %v4482 = vld [vmem:[#allocation3 + $0x122] sm:$0xff]
  %v4483 = vld [vmem:[#allocation3 + $0x12a] sm:$0xff]
  %v4484 = vld [vmem:[#allocation3 + $0x13a] sm:$0xff]
  %v4485 = vld [vmem:[#allocation3 + $0x142] sm:$0xff]
  %v4486 = vld [vmem:[#allocation3 + $0x152] sm:$0xff]
  %v4487 = vld [vmem:[#allocation3 + $0x15a] sm:$0xff]
  %v4488 = vld [vmem:[#allocation3 + $0x16a] sm:$0xff]
  %v4489 = vld [vmem:[#allocation3 + $0x172] sm:$0xff]
  %v4490 = vld [vmem:[#allocation3 + $0x1b2] sm:$0xff]
  %v4491 = vld [vmem:[#allocation3 + $0x1ba] sm:$0xff]
  %v4492 = vld [vmem:[#allocation3 + $0x1ca] sm:$0xff]
  %v4493 = vld [vmem:[#allocation3 + $0x1d2] sm:$0xff]
  %v4494 = vld [vmem:[#allocation3 + $0x1e2] sm:$0xff]
  %v4495 = vld [vmem:[#allocation3 + $0x1ea] sm:$0xff]
  %v4496 = vld [vmem:[#allocation3 + $0x1fa] sm:$0xff]
  %v4497 = vld [vmem:[#allocation3 + $0x202] sm:$0xff]
  %v4498 = vld [vmem:[#allocation3 + $0x212] sm:$0xff]
  %v4499 = vld [vmem:[#allocation3 + $0x21a] sm:$0xff]
  %v4500 = vld [vmem:[#allocation3 + $0x22a] sm:$0xff]
  %v4501 = vld [vmem:[#allocation3 + $0x232] sm:$0xff]
  %v4502 = vld [vmem:[#allocation3 + $0x242] sm:$0xff]
  %v4503 = vld [vmem:[#allocation3 + $0x24a] sm:$0xff]
  %v4504 = vld [vmem:[#allocation3 + $0x25a] sm:$0xff]
  %v4505 = vld [vmem:[#allocation3 + $0x262] sm:$0xff]
  %v4506 = vld [vmem:[#allocation3 + $0x272] sm:$0xff]
  %v4507 = vld [vmem:[#allocation3 + $0x27a] sm:$0xff]
  %v4508 = vld [vmem:[#allocation3 + $0x28a] sm:$0xff]
  %v4509 = vld [vmem:[#allocation3 + $0x292] sm:$0xff]
  %v4510 = vld [vmem:[#allocation3 + $0x2a2] sm:$0xff]
  %v4511 = vld [vmem:[#allocation3 + $0x2aa] sm:$0xff]
  %v4512 = vld [vmem:[#allocation3 + $0x2ba] sm:$0xff]
  %v4513 = vld [vmem:[#allocation3 + $0x2c2] sm:$0xff]
  %v4514 = vld [vmem:[#allocation3 + $0x2d2] sm:$0xff]
  %v4515 = vld [vmem:[#allocation3 + $0x2da] sm:$0xff]
  %v4516 = vld [vmem:[#allocation3 + $0x2ea] sm:$0xff]
  %v4517 = vld [vmem:[#allocation3 + $0x2f2] sm:$0xff]
  %v4518 = vld [vmem:[#allocation3 + $0x302] sm:$0xff]
  %v4519 = vld [vmem:[#allocation3 + $0x30a] sm:$0xff]
  %v4520 = vld [vmem:[#allocation3 + $0x31a] sm:$0xff]
  %v4521 = vld [vmem:[#allocation3 + $0x322] sm:$0xff]
  %v4522 = vld [vmem:[%s4265] sm:$0xff]
  %v4523 = vld [vmem:[%s4265 + $0x8] sm:$0xff]
  %v4524 = vld [vmem:[%s4265 + $0x18] sm:$0xff]
  %v4525 = vld [vmem:[%s4265 + $0x20] sm:$0xff]
  %v4526 = vld [vmem:[%s4265 + $0x30] sm:$0xff]
  %v4527 = vld [vmem:[%s4265 + $0x38] sm:$0xff]
  %v4528 = vld [vmem:[%s4265 + $0x48] sm:$0xff]
  %v4529 = vld [vmem:[%s4265 + $0x50] sm:$0xff]
  %v4530 = vld [vmem:[%s4265 + $0x60] sm:$0xff]
  %v4531 = vld [vmem:[%s4265 + $0x68] sm:$0xff]
  %v4532 = vld [vmem:[%s4265 + $0x78] sm:$0xff]
  %v4533 = vld [vmem:[%s4265 + $0x80] sm:$0xff]
  %v4534 = vld [vmem:[%s4265 + $0x90] sm:$0xff]
  %v4535 = vld [vmem:[%s4265 + $0x98] sm:$0xff]
  %v4536 = vld [vmem:[%s4265 + $0xa8] sm:$0xff]
  %v4537 = vld [vmem:[%s4265 + $0xb0] sm:$0xff]
  %v4538 = vld [vmem:[%s4265 + $0xc0] sm:$0xff]
  %v4539 = vld [vmem:[%s4265 + $0xc8] sm:$0xff]
  %v4540 = vld [vmem:[%s4265 + $0xd8] sm:$0xff]
  %v4541 = vld [vmem:[%s4265 + $0xe0] sm:$0xff]
  %v4542 = vld [vmem:[%s4265 + $0xf0] sm:$0xff]
  %v4543 = vld [vmem:[%s4265 + $0xf8] sm:$0xff]
  %v4544 = vld [vmem:[%s4265 + $0x108] sm:$0xff]
  %v4545 = vld [vmem:[%s4265 + $0x110] sm:$0xff]
  %v4546 = vld [vmem:[%s4265 + $0x120] sm:$0xff]
  %v4547 = vld [vmem:[%s4265 + $0x128] sm:$0xff]
  %v4548 = vld [vmem:[%s4265 + $0x138] sm:$0xff]
  %v4549 = vld [vmem:[%s4265 + $0x140] sm:$0xff]
  %v4550 = vld [vmem:[%s4265 + $0x150] sm:$0xff]
  %v4551 = vld [vmem:[%s4265 + $0x158] sm:$0xff]
  %v4552 = vld [vmem:[%s4265 + $0x168] sm:$0xff]
  %v4553 = vld [vmem:[%s4265 + $0x170] sm:$0xff]
  %v4554 = vld [vmem:[%s4265 + $0x1b0] sm:$0xff]
  %v4555 = vld [vmem:[%s4265 + $0x1b8] sm:$0xff]
  %v4556 = vld [vmem:[%s4265 + $0x1c8] sm:$0xff]
  %v4557 = vld [vmem:[%s4265 + $0x1d0] sm:$0xff]
  %v4558 = vld [vmem:[%s4265 + $0x1e0] sm:$0xff]
  %v4559 = vld [vmem:[%s4265 + $0x1e8] sm:$0xff]
  %v4560 = vld [vmem:[%s4265 + $0x1f8] sm:$0xff]
  %v4561 = vld [vmem:[%s4265 + $0x200] sm:$0xff]
  %v4562 = vld [vmem:[%s4265 + $0x210] sm:$0xff]
  %v4563 = vld [vmem:[%s4265 + $0x218] sm:$0xff]
  %v4564 = vld [vmem:[%s4265 + $0x228] sm:$0xff]
  %v4565 = vld [vmem:[%s4265 + $0x230] sm:$0xff]
  %v4566 = vld [vmem:[%s4265 + $0x240] sm:$0xff]
  %v4567 = vld [vmem:[%s4265 + $0x248] sm:$0xff]
  %v4568 = vld [vmem:[%s4265 + $0x258] sm:$0xff]
  %v4569 = vld [vmem:[%s4265 + $0x260] sm:$0xff]
  %v4570 = vld [vmem:[%s4265 + $0x270] sm:$0xff]
  %v4571 = vld [vmem:[%s4265 + $0x278] sm:$0xff]
  %v4572 = vld [vmem:[%s4265 + $0x288] sm:$0xff]
  %v4573 = vld [vmem:[%s4265 + $0x290] sm:$0xff]
  %v4574 = vld [vmem:[%s4265 + $0x2a0] sm:$0xff]
  %v4575 = vld [vmem:[%s4265 + $0x2a8] sm:$0xff]
  %v4576 = vld [vmem:[%s4265 + $0x2b8] sm:$0xff]
  %v4577 = vld [vmem:[%s4265 + $0x2c0] sm:$0xff]
  %v4578 = vld [vmem:[%s4265 + $0x2d0] sm:$0xff]
  %v4579 = vld [vmem:[%s4265 + $0x2d8] sm:$0xff]
  %v4580 = vld [vmem:[%s4265 + $0x2e8] sm:$0xff]
  %v4581 = vld [vmem:[%s4265 + $0x2f0] sm:$0xff]
  %v4582 = vld [vmem:[%s4265 + $0x300] sm:$0xff]
  %v4583 = vld [vmem:[%s4265 + $0x308] sm:$0xff]
  %v4584 = vld [vmem:[%s4265 + $0x318] sm:$0xff]
  %v4585 = vld [vmem:[%s4265 + $0x320] sm:$0xff]
  %v4586 = vld [vmem:[%s4265 + $0x1] sm:$0xff]
  %v4587 = vld [vmem:[%s4265 + $0x9] sm:$0xff]
  %v4588 = vld [vmem:[%s4265 + $0x19] sm:$0xff]
  %v4589 = vld [vmem:[%s4265 + $0x21] sm:$0xff]
  %v4590 = vld [vmem:[%s4265 + $0x31] sm:$0xff]
  %v4591 = vld [vmem:[%s4265 + $0x39] sm:$0xff]
  %v4592 = vld [vmem:[%s4265 + $0x49] sm:$0xff]
  %v4593 = vld [vmem:[%s4265 + $0x51] sm:$0xff]
  %v4594 = vld [vmem:[%s4265 + $0x61] sm:$0xff]
  %v4595 = vld [vmem:[%s4265 + $0x69] sm:$0xff]
  %v4596 = vld [vmem:[%s4265 + $0x79] sm:$0xff]
  %v4597 = vld [vmem:[%s4265 + $0x81] sm:$0xff]
  %v4598 = vld [vmem:[%s4265 + $0x91] sm:$0xff]
  %v4599 = vld [vmem:[%s4265 + $0x99] sm:$0xff]
  %v4600 = vld [vmem:[%s4265 + $0xa9] sm:$0xff]
  %v4601 = vld [vmem:[%s4265 + $0xb1] sm:$0xff]
  %v4602 = vld [vmem:[%s4265 + $0xc1] sm:$0xff]
  %v4603 = vld [vmem:[%s4265 + $0xc9] sm:$0xff]
  %v4604 = vld [vmem:[%s4265 + $0xd9] sm:$0xff]
  %v4605 = vld [vmem:[%s4265 + $0xe1] sm:$0xff]
  %v4606 = vld [vmem:[%s4265 + $0xf1] sm:$0xff]
  %v4607 = vld [vmem:[%s4265 + $0xf9] sm:$0xff]
  %v4608 = vld [vmem:[%s4265 + $0x109] sm:$0xff]
  %v4609 = vld [vmem:[%s4265 + $0x111] sm:$0xff]
  %v4610 = vld [vmem:[%s4265 + $0x121] sm:$0xff]
  %v4611 = vld [vmem:[%s4265 + $0x129] sm:$0xff]
  %v4612 = vld [vmem:[%s4265 + $0x139] sm:$0xff]
  %v4613 = vld [vmem:[%s4265 + $0x141] sm:$0xff]
  %v4614 = vld [vmem:[%s4265 + $0x151] sm:$0xff]
  %v4615 = vld [vmem:[%s4265 + $0x159] sm:$0xff]
  %v4616 = vld [vmem:[%s4265 + $0x169] sm:$0xff]
  %v4617 = vld [vmem:[%s4265 + $0x171] sm:$0xff]
  %v4618 = vld [vmem:[%s4265 + $0x1b1] sm:$0xff]
  %v4619 = vld [vmem:[%s4265 + $0x1b9] sm:$0xff]
  %v4620 = vld [vmem:[%s4265 + $0x1c9] sm:$0xff]
  %v4621 = vld [vmem:[%s4265 + $0x1d1] sm:$0xff]
  %v4622 = vld [vmem:[%s4265 + $0x1e1] sm:$0xff]
  %v4623 = vld [vmem:[%s4265 + $0x1e9] sm:$0xff]
  %v4624 = vld [vmem:[%s4265 + $0x1f9] sm:$0xff]
  %v4625 = vld [vmem:[%s4265 + $0x201] sm:$0xff]
  %v4626 = vld [vmem:[%s4265 + $0x211] sm:$0xff]
  %v4627 = vld [vmem:[%s4265 + $0x219] sm:$0xff]
  %v4628 = vld [vmem:[%s4265 + $0x229] sm:$0xff]
  %v4629 = vld [vmem:[%s4265 + $0x231] sm:$0xff]
  %v4630 = vld [vmem:[%s4265 + $0x241] sm:$0xff]
  %v4631 = vld [vmem:[%s4265 + $0x249] sm:$0xff]
  %v4632 = vld [vmem:[%s4265 + $0x259] sm:$0xff]
  %v4633 = vld [vmem:[%s4265 + $0x261] sm:$0xff]
  %v4634 = vld [vmem:[%s4265 + $0x271] sm:$0xff]
  %v4635 = vld [vmem:[%s4265 + $0x279] sm:$0xff]
  %v4636 = vld [vmem:[%s4265 + $0x289] sm:$0xff]
  %v4637 = vld [vmem:[%s4265 + $0x291] sm:$0xff]
  %v4638 = vld [vmem:[%s4265 + $0x2a1] sm:$0xff]
  %v4639 = vld [vmem:[%s4265 + $0x2a9] sm:$0xff]
  %v4640 = vld [vmem:[%s4265 + $0x2b9] sm:$0xff]
  %v4641 = vld [vmem:[%s4265 + $0x2c1] sm:$0xff]
  %v4642 = vld [vmem:[%s4265 + $0x2d1] sm:$0xff]
  %v4643 = vld [vmem:[%s4265 + $0x2d9] sm:$0xff]
  %v4644 = vld [vmem:[%s4265 + $0x2e9] sm:$0xff]
  %v4645 = vld [vmem:[%s4265 + $0x2f1] sm:$0xff]
  %v4646 = vld [vmem:[%s4265 + $0x301] sm:$0xff]
  %v4647 = vld [vmem:[%s4265 + $0x309] sm:$0xff]
  %v4648 = vld [vmem:[%s4265 + $0x319] sm:$0xff]
  %v4649 = vld [vmem:[%s4265 + $0x321] sm:$0xff]
  %v4650 = vld [vmem:[%s4265 + $0x2] sm:$0xff]
  %v4651 = vld [vmem:[%s4265 + $0xa] sm:$0xff]
  %v4652 = vld [vmem:[%s4265 + $0x1a] sm:$0xff]
  %v4653 = vld [vmem:[%s4265 + $0x22] sm:$0xff]
  %v4654 = vld [vmem:[%s4265 + $0x32] sm:$0xff]
  %v4655 = vld [vmem:[%s4265 + $0x3a] sm:$0xff]
  %v4656 = vld [vmem:[%s4265 + $0x4a] sm:$0xff]
  %v4657 = vld [vmem:[%s4265 + $0x52] sm:$0xff]
  %v4658 = vld [vmem:[%s4265 + $0x62] sm:$0xff]
  %v4659 = vld [vmem:[%s4265 + $0x6a] sm:$0xff]
  %v4660 = vld [vmem:[%s4265 + $0x7a] sm:$0xff]
  %v4661 = vld [vmem:[%s4265 + $0x82] sm:$0xff]
  %v4662 = vld [vmem:[%s4265 + $0x92] sm:$0xff]
  %v4663 = vld [vmem:[%s4265 + $0x9a] sm:$0xff]
  %v4664 = vld [vmem:[%s4265 + $0xaa] sm:$0xff]
  %v4665 = vld [vmem:[%s4265 + $0xb2] sm:$0xff]
  %v4666 = vld [vmem:[%s4265 + $0xc2] sm:$0xff]
  %v4667 = vld [vmem:[%s4265 + $0xca] sm:$0xff]
  %v4668 = vld [vmem:[%s4265 + $0xda] sm:$0xff]
  %v4669 = vld [vmem:[%s4265 + $0xe2] sm:$0xff]
  %v4670 = vld [vmem:[%s4265 + $0xf2] sm:$0xff]
  %v4671 = vld [vmem:[%s4265 + $0xfa] sm:$0xff]
  %v4672 = vld [vmem:[%s4265 + $0x10a] sm:$0xff]
  %v4673 = vld [vmem:[%s4265 + $0x112] sm:$0xff]
  %v4674 = vld [vmem:[%s4265 + $0x122] sm:$0xff]
  %v4675 = vld [vmem:[%s4265 + $0x12a] sm:$0xff]
  %v4676 = vld [vmem:[%s4265 + $0x13a] sm:$0xff]
  %v4677 = vld [vmem:[%s4265 + $0x142] sm:$0xff]
  %v4678 = vld [vmem:[%s4265 + $0x152] sm:$0xff]
  %v4679 = vld [vmem:[%s4265 + $0x15a] sm:$0xff]
  %v4680 = vld [vmem:[%s4265 + $0x16a] sm:$0xff]
  %v4681 = vld [vmem:[%s4265 + $0x172] sm:$0xff]
  %v4682 = vld [vmem:[%s4265 + $0x1b2] sm:$0xff]
  %v4683 = vld [vmem:[%s4265 + $0x1ba] sm:$0xff]
  %v4684 = vld [vmem:[%s4265 + $0x1ca] sm:$0xff]
  %v4685 = vld [vmem:[%s4265 + $0x1d2] sm:$0xff]
  %v4686 = vld [vmem:[%s4265 + $0x1e2] sm:$0xff]
  %v4687 = vld [vmem:[%s4265 + $0x1ea] sm:$0xff]
  %v4688 = vld [vmem:[%s4265 + $0x1fa] sm:$0xff]
  %v4689 = vld [vmem:[%s4265 + $0x202] sm:$0xff]
  %v4690 = vld [vmem:[%s4265 + $0x212] sm:$0xff]
  %v4691 = vld [vmem:[%s4265 + $0x21a] sm:$0xff]
  %v4692 = vld [vmem:[%s4265 + $0x22a] sm:$0xff]
  %v4693 = vld [vmem:[%s4265 + $0x232] sm:$0xff]
  %v4694 = vld [vmem:[%s4265 + $0x242] sm:$0xff]
  %v4695 = vld [vmem:[%s4265 + $0x24a] sm:$0xff]
  %v4696 = vld [vmem:[%s4265 + $0x25a] sm:$0xff]
  %v4697 = vld [vmem:[%s4265 + $0x262] sm:$0xff]
  %v4698 = vld [vmem:[%s4265 + $0x272] sm:$0xff]
  %v4699 = vld [vmem:[%s4265 + $0x27a] sm:$0xff]
  %v4700 = vld [vmem:[%s4265 + $0x28a] sm:$0xff]
  %v4701 = vld [vmem:[%s4265 + $0x292] sm:$0xff]
  %v4702 = vld [vmem:[%s4265 + $0x2a2] sm:$0xff]
  %v4703 = vld [vmem:[%s4265 + $0x2aa] sm:$0xff]
  %v4704 = vld [vmem:[%s4265 + $0x2ba] sm:$0xff]
  %v4705 = vld [vmem:[%s4265 + $0x2c2] sm:$0xff]
  %v4706 = vld [vmem:[%s4265 + $0x2d2] sm:$0xff]
  %v4707 = vld [vmem:[%s4265 + $0x2da] sm:$0xff]
  %v4708 = vld [vmem:[%s4265 + $0x2ea] sm:$0xff]
  %v4709 = vld [vmem:[%s4265 + $0x2f2] sm:$0xff]
  %v4710 = vld [vmem:[%s4265 + $0x302] sm:$0xff]
  %v4711 = vld [vmem:[%s4265 + $0x30a] sm:$0xff]
  %v4712 = vld [vmem:[%s4265 + $0x31a] sm:$0xff]
  %v4713 = vld [vmem:[%s4265 + $0x322] sm:$0xff]
  %s4714 = scalar_lea.vmem [#allocation3], 48
  %v4715 = vld [vmem:[%s4714] sm:$0xff]
  %v4716 = vld [vmem:[%s4714 + $0x8] sm:$0xff]
  %v4717 = vld [vmem:[%s4714 + $0x18] sm:$0xff]
  %v4718 = vld [vmem:[%s4714 + $0x20] sm:$0xff]
  %v4719 = vld [vmem:[%s4714 + $0x30] sm:$0xff]
  %v4720 = vld [vmem:[%s4714 + $0x38] sm:$0xff]
  %v4721 = vld [vmem:[%s4714 + $0x48] sm:$0xff]
  %v4722 = vld [vmem:[%s4714 + $0x50] sm:$0xff]
  %v4723 = vld [vmem:[%s4714 + $0x60] sm:$0xff]
  %v4724 = vld [vmem:[%s4714 + $0x68] sm:$0xff]
  %v4725 = vld [vmem:[%s4714 + $0x78] sm:$0xff]
  %v4726 = vld [vmem:[%s4714 + $0x80] sm:$0xff]
  %v4727 = vld [vmem:[%s4714 + $0x90] sm:$0xff]
  %v4728 = vld [vmem:[%s4714 + $0x98] sm:$0xff]
  %v4729 = vld [vmem:[%s4714 + $0xa8] sm:$0xff]
  %v4730 = vld [vmem:[%s4714 + $0xb0] sm:$0xff]
  %v4731 = vld [vmem:[%s4714 + $0xc0] sm:$0xff]
  %v4732 = vld [vmem:[%s4714 + $0xc8] sm:$0xff]
  %v4733 = vld [vmem:[%s4714 + $0xd8] sm:$0xff]
  %v4734 = vld [vmem:[%s4714 + $0xe0] sm:$0xff]
  %v4735 = vld [vmem:[%s4714 + $0xf0] sm:$0xff]
  %v4736 = vld [vmem:[%s4714 + $0xf8] sm:$0xff]
  %v4737 = vld [vmem:[%s4714 + $0x108] sm:$0xff]
  %v4738 = vld [vmem:[%s4714 + $0x110] sm:$0xff]
  %v4739 = vld [vmem:[%s4714 + $0x120] sm:$0xff]
  %v4740 = vld [vmem:[%s4714 + $0x128] sm:$0xff]
  %v4741 = vld [vmem:[%s4714 + $0x138] sm:$0xff]
  %v4742 = vld [vmem:[%s4714 + $0x140] sm:$0xff]
  %v4743 = vld [vmem:[%s4714 + $0x150] sm:$0xff]
  %v4744 = vld [vmem:[%s4714 + $0x158] sm:$0xff]
  %v4745 = vld [vmem:[%s4714 + $0x168] sm:$0xff]
  %v4746 = vld [vmem:[%s4714 + $0x170] sm:$0xff]
  %v4747 = vld [vmem:[%s4714 + $0x1b0] sm:$0xff]
  %v4748 = vld [vmem:[%s4714 + $0x1b8] sm:$0xff]
  %v4749 = vld [vmem:[%s4714 + $0x1c8] sm:$0xff]
  %v4750 = vld [vmem:[%s4714 + $0x1d0] sm:$0xff]
  %v4751 = vld [vmem:[%s4714 + $0x1e0] sm:$0xff]
  %v4752 = vld [vmem:[%s4714 + $0x1e8] sm:$0xff]
  %v4753 = vld [vmem:[%s4714 + $0x1f8] sm:$0xff]
  %v4754 = vld [vmem:[%s4714 + $0x200] sm:$0xff]
  %v4755 = vld [vmem:[%s4714 + $0x210] sm:$0xff]
  %v4756 = vld [vmem:[%s4714 + $0x218] sm:$0xff]
  %v4757 = vld [vmem:[%s4714 + $0x228] sm:$0xff]
  %v4758 = vld [vmem:[%s4714 + $0x230] sm:$0xff]
  %v4759 = vld [vmem:[%s4714 + $0x240] sm:$0xff]
  %v4760 = vld [vmem:[%s4714 + $0x248] sm:$0xff]
  %v4761 = vld [vmem:[%s4714 + $0x258] sm:$0xff]
  %v4762 = vld [vmem:[%s4714 + $0x260] sm:$0xff]
  %v4763 = vld [vmem:[%s4714 + $0x270] sm:$0xff]
  %v4764 = vld [vmem:[%s4714 + $0x278] sm:$0xff]
  %v4765 = vld [vmem:[%s4714 + $0x288] sm:$0xff]
  %v4766 = vld [vmem:[%s4714 + $0x290] sm:$0xff]
  %v4767 = vld [vmem:[%s4714 + $0x2a0] sm:$0xff]
  %v4768 = vld [vmem:[%s4714 + $0x2a8] sm:$0xff]
  %v4769 = vld [vmem:[%s4714 + $0x2b8] sm:$0xff]
  %v4770 = vld [vmem:[%s4714 + $0x2c0] sm:$0xff]
  %v4771 = vld [vmem:[%s4714 + $0x2d0] sm:$0xff]
  %v4772 = vld [vmem:[%s4714 + $0x2d8] sm:$0xff]
  %v4773 = vld [vmem:[%s4714 + $0x2e8] sm:$0xff]
  %v4774 = vld [vmem:[%s4714 + $0x2f0] sm:$0xff]
  %v4775 = vld [vmem:[%s4714 + $0x300] sm:$0xff]
  %v4776 = vld [vmem:[%s4714 + $0x308] sm:$0xff]
  %v4777 = vld [vmem:[%s4714 + $0x318] sm:$0xff]
  %v4778 = vld [vmem:[%s4714 + $0x320] sm:$0xff]
  %v4779 = vld [vmem:[%s4714 + $0x1] sm:$0xff]
  %v4780 = vld [vmem:[%s4714 + $0x9] sm:$0xff]
  %v4781 = vld [vmem:[%s4714 + $0x19] sm:$0xff]
  %v4782 = vld [vmem:[%s4714 + $0x21] sm:$0xff]
  %v4783 = vld [vmem:[%s4714 + $0x31] sm:$0xff]
  %v4784 = vld [vmem:[%s4714 + $0x39] sm:$0xff]
  %v4785 = vld [vmem:[%s4714 + $0x49] sm:$0xff]
  %v4786 = vld [vmem:[%s4714 + $0x51] sm:$0xff]
  %v4787 = vld [vmem:[%s4714 + $0x61] sm:$0xff]
  %v4788 = vld [vmem:[%s4714 + $0x69] sm:$0xff]
  %v4789 = vld [vmem:[%s4714 + $0x79] sm:$0xff]
  %v4790 = vld [vmem:[%s4714 + $0x81] sm:$0xff]
  %v4791 = vld [vmem:[%s4714 + $0x91] sm:$0xff]
  %v4792 = vld [vmem:[%s4714 + $0x99] sm:$0xff]
  %v4793 = vld [vmem:[%s4714 + $0xa9] sm:$0xff]
  %v4794 = vld [vmem:[%s4714 + $0xb1] sm:$0xff]
  %v4795 = vld [vmem:[%s4714 + $0xc1] sm:$0xff]
  %v4796 = vld [vmem:[%s4714 + $0xc9] sm:$0xff]
  %v4797 = vld [vmem:[%s4714 + $0xd9] sm:$0xff]
  %v4798 = vld [vmem:[%s4714 + $0xe1] sm:$0xff]
  %v4799 = vld [vmem:[%s4714 + $0xf1] sm:$0xff]
  %v4800 = vld [vmem:[%s4714 + $0xf9] sm:$0xff]
  %v4801 = vld [vmem:[%s4714 + $0x109] sm:$0xff]
  %v4802 = vld [vmem:[%s4714 + $0x111] sm:$0xff]
  %v4803 = vld [vmem:[%s4714 + $0x121] sm:$0xff]
  %v4804 = vld [vmem:[%s4714 + $0x129] sm:$0xff]
  %v4805 = vld [vmem:[%s4714 + $0x139] sm:$0xff]
  %v4806 = vld [vmem:[%s4714 + $0x141] sm:$0xff]
  %v4807 = vld [vmem:[%s4714 + $0x151] sm:$0xff]
  %v4808 = vld [vmem:[%s4714 + $0x159] sm:$0xff]
  %v4809 = vld [vmem:[%s4714 + $0x169] sm:$0xff]
  %v4810 = vld [vmem:[%s4714 + $0x171] sm:$0xff]
  %v4811 = vld [vmem:[%s4714 + $0x1b1] sm:$0xff]
  %v4812 = vld [vmem:[%s4714 + $0x1b9] sm:$0xff]
  %v4813 = vld [vmem:[%s4714 + $0x1c9] sm:$0xff]
  %v4814 = vld [vmem:[%s4714 + $0x1d1] sm:$0xff]
  %v4815 = vld [vmem:[%s4714 + $0x1e1] sm:$0xff]
  %v4816 = vld [vmem:[%s4714 + $0x1e9] sm:$0xff]
  %v4817 = vld [vmem:[%s4714 + $0x1f9] sm:$0xff]
  %v4818 = vld [vmem:[%s4714 + $0x201] sm:$0xff]
  %v4819 = vld [vmem:[%s4714 + $0x211] sm:$0xff]
  %v4820 = vld [vmem:[%s4714 + $0x219] sm:$0xff]
  %v4821 = vld [vmem:[%s4714 + $0x229] sm:$0xff]
  %v4822 = vld [vmem:[%s4714 + $0x231] sm:$0xff]
  %v4823 = vld [vmem:[%s4714 + $0x241] sm:$0xff]
  %v4824 = vld [vmem:[%s4714 + $0x249] sm:$0xff]
  %v4825 = vld [vmem:[%s4714 + $0x259] sm:$0xff]
  %v4826 = vld [vmem:[%s4714 + $0x261] sm:$0xff]
  %v4827 = vld [vmem:[%s4714 + $0x271] sm:$0xff]
  %v4828 = vld [vmem:[%s4714 + $0x279] sm:$0xff]
  %v4829 = vld [vmem:[%s4714 + $0x289] sm:$0xff]
  %v4830 = vld [vmem:[%s4714 + $0x291] sm:$0xff]
  %v4831 = vld [vmem:[%s4714 + $0x2a1] sm:$0xff]
  %v4832 = vld [vmem:[%s4714 + $0x2a9] sm:$0xff]
  %v4833 = vld [vmem:[%s4714 + $0x2b9] sm:$0xff]
  %v4834 = vld [vmem:[%s4714 + $0x2c1] sm:$0xff]
  %v4835 = vld [vmem:[%s4714 + $0x2d1] sm:$0xff]
  %v4836 = vld [vmem:[%s4714 + $0x2d9] sm:$0xff]
  %v4837 = vld [vmem:[%s4714 + $0x2e9] sm:$0xff]
  %v4838 = vld [vmem:[%s4714 + $0x2f1] sm:$0xff]
  %v4839 = vld [vmem:[%s4714 + $0x301] sm:$0xff]
  %v4840 = vld [vmem:[%s4714 + $0x309] sm:$0xff]
  %v4841 = vld [vmem:[%s4714 + $0x319] sm:$0xff]
  %v4842 = vld [vmem:[%s4714 + $0x321] sm:$0xff]
  %v4843 = vld [vmem:[%s4714 + $0x2] sm:$0xff]
  %v4844 = vld [vmem:[%s4714 + $0xa] sm:$0xff]
  %v4845 = vld [vmem:[%s4714 + $0x1a] sm:$0xff]
  %v4846 = vld [vmem:[%s4714 + $0x22] sm:$0xff]
  %v4847 = vld [vmem:[%s4714 + $0x32] sm:$0xff]
  %v4848 = vld [vmem:[%s4714 + $0x3a] sm:$0xff]
  %v4849 = vld [vmem:[%s4714 + $0x4a] sm:$0xff]
  %v4850 = vld [vmem:[%s4714 + $0x52] sm:$0xff]
  %v4851 = vld [vmem:[%s4714 + $0x62] sm:$0xff]
  %v4852 = vld [vmem:[%s4714 + $0x6a] sm:$0xff]
  %v4853 = vld [vmem:[%s4714 + $0x7a] sm:$0xff]
  %v4854 = vld [vmem:[%s4714 + $0x82] sm:$0xff]
  %v4855 = vld [vmem:[%s4714 + $0x92] sm:$0xff]
  %v4856 = vld [vmem:[%s4714 + $0x9a] sm:$0xff]
  %v4857 = vld [vmem:[%s4714 + $0xaa] sm:$0xff]
  %v4858 = vld [vmem:[%s4714 + $0xb2] sm:$0xff]
  %v4859 = vld [vmem:[%s4714 + $0xc2] sm:$0xff]
  %v4860 = vld [vmem:[%s4714 + $0xca] sm:$0xff]
  %v4861 = vld [vmem:[%s4714 + $0xda] sm:$0xff]
  %v4862 = vld [vmem:[%s4714 + $0xe2] sm:$0xff]
  %v4863 = vld [vmem:[%s4714 + $0xf2] sm:$0xff]
  %v4864 = vld [vmem:[%s4714 + $0xfa] sm:$0xff]
  %v4865 = vld [vmem:[%s4714 + $0x10a] sm:$0xff]
  %v4866 = vld [vmem:[%s4714 + $0x112] sm:$0xff]
  %v4867 = vld [vmem:[%s4714 + $0x122] sm:$0xff]
  %v4868 = vld [vmem:[%s4714 + $0x12a] sm:$0xff]
  %v4869 = vld [vmem:[%s4714 + $0x13a] sm:$0xff]
  %v4870 = vld [vmem:[%s4714 + $0x142] sm:$0xff]
  %v4871 = vld [vmem:[%s4714 + $0x152] sm:$0xff]
  %v4872 = vld [vmem:[%s4714 + $0x15a] sm:$0xff]
  %v4873 = vld [vmem:[%s4714 + $0x16a] sm:$0xff]
  %v4874 = vld [vmem:[%s4714 + $0x172] sm:$0xff]
  %v4875 = vld [vmem:[%s4714 + $0x1b2] sm:$0xff]
  %v4876 = vld [vmem:[%s4714 + $0x1ba] sm:$0xff]
  %v4877 = vld [vmem:[%s4714 + $0x1ca] sm:$0xff]
  %v4878 = vld [vmem:[%s4714 + $0x1d2] sm:$0xff]
  %v4879 = vld [vmem:[%s4714 + $0x1e2] sm:$0xff]
  %v4880 = vld [vmem:[%s4714 + $0x1ea] sm:$0xff]
  %v4881 = vld [vmem:[%s4714 + $0x1fa] sm:$0xff]
  %v4882 = vld [vmem:[%s4714 + $0x202] sm:$0xff]
  %v4883 = vld [vmem:[%s4714 + $0x212] sm:$0xff]
  %v4884 = vld [vmem:[%s4714 + $0x21a] sm:$0xff]
  %v4885 = vld [vmem:[%s4714 + $0x22a] sm:$0xff]
  %v4886 = vld [vmem:[%s4714 + $0x232] sm:$0xff]
  %v4887 = vld [vmem:[%s4714 + $0x242] sm:$0xff]
  %v4888 = vld [vmem:[%s4714 + $0x24a] sm:$0xff]
  %v4889 = vld [vmem:[%s4714 + $0x25a] sm:$0xff]
  %v4890 = vld [vmem:[%s4714 + $0x262] sm:$0xff]
  %v4891 = vld [vmem:[%s4714 + $0x272] sm:$0xff]
  %v4892 = vld [vmem:[%s4714 + $0x27a] sm:$0xff]
  %v4893 = vld [vmem:[%s4714 + $0x28a] sm:$0xff]
  %v4894 = vld [vmem:[%s4714 + $0x292] sm:$0xff]
  %v4895 = vld [vmem:[%s4714 + $0x2a2] sm:$0xff]
  %v4896 = vld [vmem:[%s4714 + $0x2aa] sm:$0xff]
  %v4897 = vld [vmem:[%s4714 + $0x2ba] sm:$0xff]
  %v4898 = vld [vmem:[%s4714 + $0x2c2] sm:$0xff]
  %v4899 = vld [vmem:[%s4714 + $0x2d2] sm:$0xff]
  %v4900 = vld [vmem:[%s4714 + $0x2da] sm:$0xff]
  %v4901 = vld [vmem:[%s4714 + $0x2ea] sm:$0xff]
  %v4902 = vld [vmem:[%s4714 + $0x2f2] sm:$0xff]
  %v4903 = vld [vmem:[%s4714 + $0x302] sm:$0xff]
  %v4904 = vld [vmem:[%s4714 + $0x30a] sm:$0xff]
  %v4905 = vld [vmem:[%s4714 + $0x31a] sm:$0xff]
  %v4906 = vld [vmem:[%s4714 + $0x322] sm:$0xff]
  %4971 = vrot.lane.b32.xlu0 %v4394, 4
  %v4972 = vpop.permute.xlu0 %4971
  %4973 = vrot.lane.b32.xlu0 %v4395, 4
  %v4974 = vpop.permute.xlu0 %4973
  %4975 = vrot.lane.b32.xlu0 %v4396, 4
  %v4976 = vpop.permute.xlu0 %4975
  %4977 = vrot.lane.b32.xlu0 %v4397, 4
  %v4978 = vpop.permute.xlu0 %4977
  %4979 = vrot.lane.b32.xlu0 %v4398, 4
  %v4980 = vpop.permute.xlu0 %4979
  %4981 = vrot.lane.b32.xlu0 %v4399, 4
  %v4982 = vpop.permute.xlu0 %4981
  %4983 = vrot.lane.b32.xlu0 %v4400, 4
  %v4984 = vpop.permute.xlu0 %4983
  %4985 = vrot.lane.b32.xlu0 %v4401, 4
  %v4986 = vpop.permute.xlu0 %4985
  %4987 = vrot.lane.b32.xlu0 %v4402, 4
  %v4988 = vpop.permute.xlu0 %4987
  %4989 = vrot.lane.b32.xlu0 %v4403, 4
  %v4990 = vpop.permute.xlu0 %4989
  %4991 = vrot.lane.b32.xlu0 %v4404, 4
  %v4992 = vpop.permute.xlu0 %4991
  %4993 = vrot.lane.b32.xlu0 %v4405, 4
  %v4994 = vpop.permute.xlu0 %4993
  %4995 = vrot.lane.b32.xlu0 %v4406, 4
  %v4996 = vpop.permute.xlu0 %4995
  %4997 = vrot.lane.b32.xlu0 %v4407, 4
  %v4998 = vpop.permute.xlu0 %4997
  %4999 = vrot.lane.b32.xlu0 %v4408, 4
  %v5000 = vpop.permute.xlu0 %4999
  %5001 = vrot.lane.b32.xlu0 %v4409, 4
  %v5002 = vpop.permute.xlu0 %5001
  %5003 = vrot.lane.b32.xlu0 %v4410, 4
  %v5004 = vpop.permute.xlu0 %5003
  %5005 = vrot.lane.b32.xlu0 %v4411, 4
  %v5006 = vpop.permute.xlu0 %5005
  %5007 = vrot.lane.b32.xlu0 %v4412, 4
  %v5008 = vpop.permute.xlu0 %5007
  %5009 = vrot.lane.b32.xlu0 %v4413, 4
  %v5010 = vpop.permute.xlu0 %5009
  %5011 = vrot.lane.b32.xlu0 %v4414, 4
  %v5012 = vpop.permute.xlu0 %5011
  %5013 = vrot.lane.b32.xlu0 %v4415, 4
  %v5014 = vpop.permute.xlu0 %5013
  %5015 = vrot.lane.b32.xlu0 %v4416, 4
  %v5016 = vpop.permute.xlu0 %5015
  %5017 = vrot.lane.b32.xlu0 %v4417, 4
  %v5018 = vpop.permute.xlu0 %5017
  %5019 = vrot.lane.b32.xlu0 %v4418, 4
  %v5020 = vpop.permute.xlu0 %5019
  %5021 = vrot.lane.b32.xlu0 %v4419, 4
  %v5022 = vpop.permute.xlu0 %5021
  %5023 = vrot.lane.b32.xlu0 %v4420, 4
  %v5024 = vpop.permute.xlu0 %5023
  %5025 = vrot.lane.b32.xlu0 %v4421, 4
  %v5026 = vpop.permute.xlu0 %5025
  %5027 = vrot.lane.b32.xlu0 %v4422, 4
  %v5028 = vpop.permute.xlu0 %5027
  %5029 = vrot.lane.b32.xlu0 %v4423, 4
  %v5030 = vpop.permute.xlu0 %5029
  %5031 = vrot.lane.b32.xlu0 %v4424, 4
  %v5032 = vpop.permute.xlu0 %5031
  %5033 = vrot.lane.b32.xlu0 %v4425, 4
  %v5034 = vpop.permute.xlu0 %5033
  %5035 = vrot.lane.b32.xlu0 %v4426, 4
  %v5036 = vpop.permute.xlu0 %5035
  %5037 = vrot.lane.b32.xlu0 %v4427, 4
  %v5038 = vpop.permute.xlu0 %5037
  %5039 = vrot.lane.b32.xlu0 %v4428, 4
  %v5040 = vpop.permute.xlu0 %5039
  %5041 = vrot.lane.b32.xlu0 %v4429, 4
  %v5042 = vpop.permute.xlu0 %5041
  %5043 = vrot.lane.b32.xlu0 %v4430, 4
  %v5044 = vpop.permute.xlu0 %5043
  %5045 = vrot.lane.b32.xlu0 %v4431, 4
  %v5046 = vpop.permute.xlu0 %5045
  %5047 = vrot.lane.b32.xlu0 %v4432, 4
  %v5048 = vpop.permute.xlu0 %5047
  %5049 = vrot.lane.b32.xlu0 %v4433, 4
  %v5050 = vpop.permute.xlu0 %5049
  %5051 = vrot.lane.b32.xlu0 %v4434, 4
  %v5052 = vpop.permute.xlu0 %5051
  %5053 = vrot.lane.b32.xlu0 %v4435, 4
  %v5054 = vpop.permute.xlu0 %5053
  %5055 = vrot.lane.b32.xlu0 %v4436, 4
  %v5056 = vpop.permute.xlu0 %5055
  %5057 = vrot.lane.b32.xlu0 %v4437, 4
  %v5058 = vpop.permute.xlu0 %5057
  %5059 = vrot.lane.b32.xlu0 %v4438, 4
  %v5060 = vpop.permute.xlu0 %5059
  %5061 = vrot.lane.b32.xlu0 %v4439, 4
  %v5062 = vpop.permute.xlu0 %5061
  %5063 = vrot.lane.b32.xlu0 %v4440, 4
  %v5064 = vpop.permute.xlu0 %5063
  %5065 = vrot.lane.b32.xlu0 %v4441, 4
  %v5066 = vpop.permute.xlu0 %5065
  %5067 = vrot.lane.b32.xlu0 %v4442, 4
  %v5068 = vpop.permute.xlu0 %5067
  %5069 = vrot.lane.b32.xlu0 %v4443, 4
  %v5070 = vpop.permute.xlu0 %5069
  %5071 = vrot.lane.b32.xlu0 %v4444, 4
  %v5072 = vpop.permute.xlu0 %5071
  %5073 = vrot.lane.b32.xlu0 %v4445, 4
  %v5074 = vpop.permute.xlu0 %5073
  %5075 = vrot.lane.b32.xlu0 %v4446, 4
  %v5076 = vpop.permute.xlu0 %5075
  %5077 = vrot.lane.b32.xlu0 %v4447, 4
  %v5078 = vpop.permute.xlu0 %5077
  %5079 = vrot.lane.b32.xlu0 %v4448, 4
  %v5080 = vpop.permute.xlu0 %5079
  %5081 = vrot.lane.b32.xlu0 %v4449, 4
  %v5082 = vpop.permute.xlu0 %5081
  %5083 = vrot.lane.b32.xlu0 %v4450, 4
  %v5084 = vpop.permute.xlu0 %5083
  %5085 = vrot.lane.b32.xlu0 %v4451, 4
  %v5086 = vpop.permute.xlu0 %5085
  %5087 = vrot.lane.b32.xlu0 %v4452, 4
  %v5088 = vpop.permute.xlu0 %5087
  %5089 = vrot.lane.b32.xlu0 %v4453, 4
  %v5090 = vpop.permute.xlu0 %5089
  %5091 = vrot.lane.b32.xlu0 %v4454, 4
  %v5092 = vpop.permute.xlu0 %5091
  %5093 = vrot.lane.b32.xlu0 %v4455, 4
  %v5094 = vpop.permute.xlu0 %5093
  %5095 = vrot.lane.b32.xlu0 %v4456, 4
  %v5096 = vpop.permute.xlu0 %5095
  %5097 = vrot.lane.b32.xlu0 %v4457, 4
  %v5098 = vpop.permute.xlu0 %5097
  %5227 = vrot.lane.b32.xlu0 %v4458, 8
  %v5228 = vpop.permute.xlu0 %5227
  %5229 = vrot.lane.b32.xlu0 %v4459, 8
  %v5230 = vpop.permute.xlu0 %5229
  %5231 = vrot.lane.b32.xlu0 %v4460, 8
  %v5232 = vpop.permute.xlu0 %5231
  %5233 = vrot.lane.b32.xlu0 %v4461, 8
  %v5234 = vpop.permute.xlu0 %5233
  %5235 = vrot.lane.b32.xlu0 %v4462, 8
  %v5236 = vpop.permute.xlu0 %5235
  %5237 = vrot.lane.b32.xlu0 %v4463, 8
  %v5238 = vpop.permute.xlu0 %5237
  %5239 = vrot.lane.b32.xlu0 %v4464, 8
  %v5240 = vpop.permute.xlu0 %5239
  %5241 = vrot.lane.b32.xlu0 %v4465, 8
  %v5242 = vpop.permute.xlu0 %5241
  %5243 = vrot.lane.b32.xlu0 %v4466, 8
  %v5244 = vpop.permute.xlu0 %5243
  %5245 = vrot.lane.b32.xlu0 %v4467, 8
  %v5246 = vpop.permute.xlu0 %5245
  %5247 = vrot.lane.b32.xlu0 %v4468, 8
  %v5248 = vpop.permute.xlu0 %5247
  %5249 = vrot.lane.b32.xlu0 %v4469, 8
  %v5250 = vpop.permute.xlu0 %5249
  %5251 = vrot.lane.b32.xlu0 %v4470, 8
  %v5252 = vpop.permute.xlu0 %5251
  %5253 = vrot.lane.b32.xlu0 %v4471, 8
  %v5254 = vpop.permute.xlu0 %5253
  %5255 = vrot.lane.b32.xlu0 %v4472, 8
  %v5256 = vpop.permute.xlu0 %5255
  %5257 = vrot.lane.b32.xlu0 %v4473, 8
  %v5258 = vpop.permute.xlu0 %5257
  %5259 = vrot.lane.b32.xlu0 %v4474, 8
  %v5260 = vpop.permute.xlu0 %5259
  %5261 = vrot.lane.b32.xlu0 %v4475, 8
  %v5262 = vpop.permute.xlu0 %5261
  %5263 = vrot.lane.b32.xlu0 %v4476, 8
  %v5264 = vpop.permute.xlu0 %5263
  %5265 = vrot.lane.b32.xlu0 %v4477, 8
  %v5266 = vpop.permute.xlu0 %5265
  %5267 = vrot.lane.b32.xlu0 %v4478, 8
  %v5268 = vpop.permute.xlu0 %5267
  %5269 = vrot.lane.b32.xlu0 %v4479, 8
  %v5270 = vpop.permute.xlu0 %5269
  %5271 = vrot.lane.b32.xlu0 %v4480, 8
  %v5272 = vpop.permute.xlu0 %5271
  %5273 = vrot.lane.b32.xlu0 %v4481, 8
  %v5274 = vpop.permute.xlu0 %5273
  %5275 = vrot.lane.b32.xlu0 %v4482, 8
  %v5276 = vpop.permute.xlu0 %5275
  %5277 = vrot.lane.b32.xlu0 %v4483, 8
  %v5278 = vpop.permute.xlu0 %5277
  %5279 = vrot.lane.b32.xlu0 %v4484, 8
  %v5280 = vpop.permute.xlu0 %5279
  %5281 = vrot.lane.b32.xlu0 %v4485, 8
  %v5282 = vpop.permute.xlu0 %5281
  %5283 = vrot.lane.b32.xlu0 %v4486, 8
  %v5284 = vpop.permute.xlu0 %5283
  %5285 = vrot.lane.b32.xlu0 %v4487, 8
  %v5286 = vpop.permute.xlu0 %5285
  %5287 = vrot.lane.b32.xlu0 %v4488, 8
  %v5288 = vpop.permute.xlu0 %5287
  %5289 = vrot.lane.b32.xlu0 %v4489, 8
  %v5290 = vpop.permute.xlu0 %5289
  %5291 = vrot.lane.b32.xlu0 %v4490, 8
  %v5292 = vpop.permute.xlu0 %5291
  %5293 = vrot.lane.b32.xlu0 %v4491, 8
  %v5294 = vpop.permute.xlu0 %5293
  %5295 = vrot.lane.b32.xlu0 %v4492, 8
  %v5296 = vpop.permute.xlu0 %5295
  %5297 = vrot.lane.b32.xlu0 %v4493, 8
  %v5298 = vpop.permute.xlu0 %5297
  %5299 = vrot.lane.b32.xlu0 %v4494, 8
  %v5300 = vpop.permute.xlu0 %5299
  %5301 = vrot.lane.b32.xlu0 %v4495, 8
  %v5302 = vpop.permute.xlu0 %5301
  %5303 = vrot.lane.b32.xlu0 %v4496, 8
  %v5304 = vpop.permute.xlu0 %5303
  %5305 = vrot.lane.b32.xlu0 %v4497, 8
  %v5306 = vpop.permute.xlu0 %5305
  %5307 = vrot.lane.b32.xlu0 %v4498, 8
  %v5308 = vpop.permute.xlu0 %5307
  %5309 = vrot.lane.b32.xlu0 %v4499, 8
  %v5310 = vpop.permute.xlu0 %5309
  %5311 = vrot.lane.b32.xlu0 %v4500, 8
  %v5312 = vpop.permute.xlu0 %5311
  %5313 = vrot.lane.b32.xlu0 %v4501, 8
  %v5314 = vpop.permute.xlu0 %5313
  %5315 = vrot.lane.b32.xlu0 %v4502, 8
  %v5316 = vpop.permute.xlu0 %5315
  %5317 = vrot.lane.b32.xlu0 %v4503, 8
  %v5318 = vpop.permute.xlu0 %5317
  %5319 = vrot.lane.b32.xlu0 %v4504, 8
  %v5320 = vpop.permute.xlu0 %5319
  %5321 = vrot.lane.b32.xlu0 %v4505, 8
  %v5322 = vpop.permute.xlu0 %5321
  %5323 = vrot.lane.b32.xlu0 %v4506, 8
  %v5324 = vpop.permute.xlu0 %5323
  %5325 = vrot.lane.b32.xlu0 %v4507, 8
  %v5326 = vpop.permute.xlu0 %5325
  %5327 = vrot.lane.b32.xlu0 %v4508, 8
  %v5328 = vpop.permute.xlu0 %5327
  %5329 = vrot.lane.b32.xlu0 %v4509, 8
  %v5330 = vpop.permute.xlu0 %5329
  %5331 = vrot.lane.b32.xlu0 %v4510, 8
  %v5332 = vpop.permute.xlu0 %5331
  %5333 = vrot.lane.b32.xlu0 %v4511, 8
  %v5334 = vpop.permute.xlu0 %5333
  %5335 = vrot.lane.b32.xlu0 %v4512, 8
  %v5336 = vpop.permute.xlu0 %5335
  %5337 = vrot.lane.b32.xlu0 %v4513, 8
  %v5338 = vpop.permute.xlu0 %5337
  %5339 = vrot.lane.b32.xlu0 %v4514, 8
  %v5340 = vpop.permute.xlu0 %5339
  %5341 = vrot.lane.b32.xlu0 %v4515, 8
  %v5342 = vpop.permute.xlu0 %5341
  %5343 = vrot.lane.b32.xlu0 %v4516, 8
  %v5344 = vpop.permute.xlu0 %5343
  %5345 = vrot.lane.b32.xlu0 %v4517, 8
  %v5346 = vpop.permute.xlu0 %5345
  %5347 = vrot.lane.b32.xlu0 %v4518, 8
  %v5348 = vpop.permute.xlu0 %5347
  %5349 = vrot.lane.b32.xlu0 %v4519, 8
  %v5350 = vpop.permute.xlu0 %5349
  %5351 = vrot.lane.b32.xlu0 %v4520, 8
  %v5352 = vpop.permute.xlu0 %5351
  %5353 = vrot.lane.b32.xlu0 %v4521, 8
  %v5354 = vpop.permute.xlu0 %5353
  %5483 = vrot.lane.b32.xlu0 %v4522, 12
  %v5484 = vpop.permute.xlu0 %5483
  %5485 = vrot.lane.b32.xlu0 %v4523, 12
  %v5486 = vpop.permute.xlu0 %5485
  %5487 = vrot.lane.b32.xlu0 %v4524, 12
  %v5488 = vpop.permute.xlu0 %5487
  %5489 = vrot.lane.b32.xlu0 %v4525, 12
  %v5490 = vpop.permute.xlu0 %5489
  %5491 = vrot.lane.b32.xlu0 %v4526, 12
  %v5492 = vpop.permute.xlu0 %5491
  %5493 = vrot.lane.b32.xlu0 %v4527, 12
  %v5494 = vpop.permute.xlu0 %5493
  %5495 = vrot.lane.b32.xlu0 %v4528, 12
  %v5496 = vpop.permute.xlu0 %5495
  %5497 = vrot.lane.b32.xlu0 %v4529, 12
  %v5498 = vpop.permute.xlu0 %5497
  %5499 = vrot.lane.b32.xlu0 %v4530, 12
  %v5500 = vpop.permute.xlu0 %5499
  %5501 = vrot.lane.b32.xlu0 %v4531, 12
  %v5502 = vpop.permute.xlu0 %5501
  %5503 = vrot.lane.b32.xlu0 %v4532, 12
  %v5504 = vpop.permute.xlu0 %5503
  %5505 = vrot.lane.b32.xlu0 %v4533, 12
  %v5506 = vpop.permute.xlu0 %5505
  %5507 = vrot.lane.b32.xlu0 %v4534, 12
  %v5508 = vpop.permute.xlu0 %5507
  %5509 = vrot.lane.b32.xlu0 %v4535, 12
  %v5510 = vpop.permute.xlu0 %5509
  %5511 = vrot.lane.b32.xlu0 %v4536, 12
  %v5512 = vpop.permute.xlu0 %5511
  %5513 = vrot.lane.b32.xlu0 %v4537, 12
  %v5514 = vpop.permute.xlu0 %5513
  %5515 = vrot.lane.b32.xlu0 %v4538, 12
  %v5516 = vpop.permute.xlu0 %5515
  %5517 = vrot.lane.b32.xlu0 %v4539, 12
  %v5518 = vpop.permute.xlu0 %5517
  %5519 = vrot.lane.b32.xlu0 %v4540, 12
  %v5520 = vpop.permute.xlu0 %5519
  %5521 = vrot.lane.b32.xlu0 %v4541, 12
  %v5522 = vpop.permute.xlu0 %5521
  %5523 = vrot.lane.b32.xlu0 %v4542, 12
  %v5524 = vpop.permute.xlu0 %5523
  %5525 = vrot.lane.b32.xlu0 %v4543, 12
  %v5526 = vpop.permute.xlu0 %5525
  %5527 = vrot.lane.b32.xlu0 %v4544, 12
  %v5528 = vpop.permute.xlu0 %5527
  %5529 = vrot.lane.b32.xlu0 %v4545, 12
  %v5530 = vpop.permute.xlu0 %5529
  %5531 = vrot.lane.b32.xlu0 %v4546, 12
  %v5532 = vpop.permute.xlu0 %5531
  %5533 = vrot.lane.b32.xlu0 %v4547, 12
  %v5534 = vpop.permute.xlu0 %5533
  %5535 = vrot.lane.b32.xlu0 %v4548, 12
  %v5536 = vpop.permute.xlu0 %5535
  %5537 = vrot.lane.b32.xlu0 %v4549, 12
  %v5538 = vpop.permute.xlu0 %5537
  %5539 = vrot.lane.b32.xlu0 %v4550, 12
  %v5540 = vpop.permute.xlu0 %5539
  %5541 = vrot.lane.b32.xlu0 %v4551, 12
  %v5542 = vpop.permute.xlu0 %5541
  %5543 = vrot.lane.b32.xlu0 %v4552, 12
  %v5544 = vpop.permute.xlu0 %5543
  %5545 = vrot.lane.b32.xlu0 %v4553, 12
  %v5546 = vpop.permute.xlu0 %5545
  %5547 = vrot.lane.b32.xlu0 %v4554, 12
  %v5548 = vpop.permute.xlu0 %5547
  %5549 = vrot.lane.b32.xlu0 %v4555, 12
  %v5550 = vpop.permute.xlu0 %5549
  %5551 = vrot.lane.b32.xlu0 %v4556, 12
  %v5552 = vpop.permute.xlu0 %5551
  %5553 = vrot.lane.b32.xlu0 %v4557, 12
  %v5554 = vpop.permute.xlu0 %5553
  %5555 = vrot.lane.b32.xlu0 %v4558, 12
  %v5556 = vpop.permute.xlu0 %5555
  %5557 = vrot.lane.b32.xlu0 %v4559, 12
  %v5558 = vpop.permute.xlu0 %5557
  %5559 = vrot.lane.b32.xlu0 %v4560, 12
  %v5560 = vpop.permute.xlu0 %5559
  %5561 = vrot.lane.b32.xlu0 %v4561, 12
  %v5562 = vpop.permute.xlu0 %5561
  %5563 = vrot.lane.b32.xlu0 %v4562, 12
  %v5564 = vpop.permute.xlu0 %5563
  %5565 = vrot.lane.b32.xlu0 %v4563, 12
  %v5566 = vpop.permute.xlu0 %5565
  %5567 = vrot.lane.b32.xlu0 %v4564, 12
  %v5568 = vpop.permute.xlu0 %5567
  %5569 = vrot.lane.b32.xlu0 %v4565, 12
  %v5570 = vpop.permute.xlu0 %5569
  %5571 = vrot.lane.b32.xlu0 %v4566, 12
  %v5572 = vpop.permute.xlu0 %5571
  %5573 = vrot.lane.b32.xlu0 %v4567, 12
  %v5574 = vpop.permute.xlu0 %5573
  %5575 = vrot.lane.b32.xlu0 %v4568, 12
  %v5576 = vpop.permute.xlu0 %5575
  %5577 = vrot.lane.b32.xlu0 %v4569, 12
  %v5578 = vpop.permute.xlu0 %5577
  %5579 = vrot.lane.b32.xlu0 %v4570, 12
  %v5580 = vpop.permute.xlu0 %5579
  %5581 = vrot.lane.b32.xlu0 %v4571, 12
  %v5582 = vpop.permute.xlu0 %5581
  %5583 = vrot.lane.b32.xlu0 %v4572, 12
  %v5584 = vpop.permute.xlu0 %5583
  %5585 = vrot.lane.b32.xlu0 %v4573, 12
  %v5586 = vpop.permute.xlu0 %5585
  %5587 = vrot.lane.b32.xlu0 %v4574, 12
  %v5588 = vpop.permute.xlu0 %5587
  %5589 = vrot.lane.b32.xlu0 %v4575, 12
  %v5590 = vpop.permute.xlu0 %5589
  %5591 = vrot.lane.b32.xlu0 %v4576, 12
  %v5592 = vpop.permute.xlu0 %5591
  %5593 = vrot.lane.b32.xlu0 %v4577, 12
  %v5594 = vpop.permute.xlu0 %5593
  %5595 = vrot.lane.b32.xlu0 %v4578, 12
  %v5596 = vpop.permute.xlu0 %5595
  %5597 = vrot.lane.b32.xlu0 %v4579, 12
  %v5598 = vpop.permute.xlu0 %5597
  %5599 = vrot.lane.b32.xlu0 %v4580, 12
  %v5600 = vpop.permute.xlu0 %5599
  %5601 = vrot.lane.b32.xlu0 %v4581, 12
  %v5602 = vpop.permute.xlu0 %5601
  %5603 = vrot.lane.b32.xlu0 %v4582, 12
  %v5604 = vpop.permute.xlu0 %5603
  %5605 = vrot.lane.b32.xlu0 %v4583, 12
  %v5606 = vpop.permute.xlu0 %5605
  %5607 = vrot.lane.b32.xlu0 %v4584, 12
  %v5608 = vpop.permute.xlu0 %5607
  %5609 = vrot.lane.b32.xlu0 %v4585, 12
  %v5610 = vpop.permute.xlu0 %5609
  %5739 = vrot.lane.b32.xlu0 %v4586, 16
  %v5740 = vpop.permute.xlu0 %5739
  %5741 = vrot.lane.b32.xlu0 %v4587, 16
  %v5742 = vpop.permute.xlu0 %5741
  %5743 = vrot.lane.b32.xlu0 %v4588, 16
  %v5744 = vpop.permute.xlu0 %5743
  %5745 = vrot.lane.b32.xlu0 %v4589, 16
  %v5746 = vpop.permute.xlu0 %5745
  %5747 = vrot.lane.b32.xlu0 %v4590, 16
  %v5748 = vpop.permute.xlu0 %5747
  %5749 = vrot.lane.b32.xlu0 %v4591, 16
  %v5750 = vpop.permute.xlu0 %5749
  %5751 = vrot.lane.b32.xlu0 %v4592, 16
  %v5752 = vpop.permute.xlu0 %5751
  %5753 = vrot.lane.b32.xlu0 %v4593, 16
  %v5754 = vpop.permute.xlu0 %5753
  %5755 = vrot.lane.b32.xlu0 %v4594, 16
  %v5756 = vpop.permute.xlu0 %5755
  %5757 = vrot.lane.b32.xlu0 %v4595, 16
  %v5758 = vpop.permute.xlu0 %5757
  %5759 = vrot.lane.b32.xlu0 %v4596, 16
  %v5760 = vpop.permute.xlu0 %5759
  %5761 = vrot.lane.b32.xlu0 %v4597, 16
  %v5762 = vpop.permute.xlu0 %5761
  %5763 = vrot.lane.b32.xlu0 %v4598, 16
  %v5764 = vpop.permute.xlu0 %5763
  %5765 = vrot.lane.b32.xlu0 %v4599, 16
  %v5766 = vpop.permute.xlu0 %5765
  %5767 = vrot.lane.b32.xlu0 %v4600, 16
  %v5768 = vpop.permute.xlu0 %5767
  %5769 = vrot.lane.b32.xlu0 %v4601, 16
  %v5770 = vpop.permute.xlu0 %5769
  %5771 = vrot.lane.b32.xlu0 %v4602, 16
  %v5772 = vpop.permute.xlu0 %5771
  %5773 = vrot.lane.b32.xlu0 %v4603, 16
  %v5774 = vpop.permute.xlu0 %5773
  %5775 = vrot.lane.b32.xlu0 %v4604, 16
  %v5776 = vpop.permute.xlu0 %5775
  %5777 = vrot.lane.b32.xlu0 %v4605, 16
  %v5778 = vpop.permute.xlu0 %5777
  %5779 = vrot.lane.b32.xlu0 %v4606, 16
  %v5780 = vpop.permute.xlu0 %5779
  %5781 = vrot.lane.b32.xlu0 %v4607, 16
  %v5782 = vpop.permute.xlu0 %5781
  %5783 = vrot.lane.b32.xlu0 %v4608, 16
  %v5784 = vpop.permute.xlu0 %5783
  %5785 = vrot.lane.b32.xlu0 %v4609, 16
  %v5786 = vpop.permute.xlu0 %5785
  %5787 = vrot.lane.b32.xlu0 %v4610, 16
  %v5788 = vpop.permute.xlu0 %5787
  %5789 = vrot.lane.b32.xlu0 %v4611, 16
  %v5790 = vpop.permute.xlu0 %5789
  %5791 = vrot.lane.b32.xlu0 %v4612, 16
  %v5792 = vpop.permute.xlu0 %5791
  %5793 = vrot.lane.b32.xlu0 %v4613, 16
  %v5794 = vpop.permute.xlu0 %5793
  %5795 = vrot.lane.b32.xlu0 %v4614, 16
  %v5796 = vpop.permute.xlu0 %5795
  %5797 = vrot.lane.b32.xlu0 %v4615, 16
  %v5798 = vpop.permute.xlu0 %5797
  %5799 = vrot.lane.b32.xlu0 %v4616, 16
  %v5800 = vpop.permute.xlu0 %5799
  %5801 = vrot.lane.b32.xlu0 %v4617, 16
  %v5802 = vpop.permute.xlu0 %5801
  %5803 = vrot.lane.b32.xlu0 %v4618, 16
  %v5804 = vpop.permute.xlu0 %5803
  %5805 = vrot.lane.b32.xlu0 %v4619, 16
  %v5806 = vpop.permute.xlu0 %5805
  %5807 = vrot.lane.b32.xlu0 %v4620, 16
  %v5808 = vpop.permute.xlu0 %5807
  %5809 = vrot.lane.b32.xlu0 %v4621, 16
  %v5810 = vpop.permute.xlu0 %5809
  %5811 = vrot.lane.b32.xlu0 %v4622, 16
  %v5812 = vpop.permute.xlu0 %5811
  %5813 = vrot.lane.b32.xlu0 %v4623, 16
  %v5814 = vpop.permute.xlu0 %5813
  %5815 = vrot.lane.b32.xlu0 %v4624, 16
  %v5816 = vpop.permute.xlu0 %5815
  %5817 = vrot.lane.b32.xlu0 %v4625, 16
  %v5818 = vpop.permute.xlu0 %5817
  %5819 = vrot.lane.b32.xlu0 %v4626, 16
  %v5820 = vpop.permute.xlu0 %5819
  %5821 = vrot.lane.b32.xlu0 %v4627, 16
  %v5822 = vpop.permute.xlu0 %5821
  %5823 = vrot.lane.b32.xlu0 %v4628, 16
  %v5824 = vpop.permute.xlu0 %5823
  %5825 = vrot.lane.b32.xlu0 %v4629, 16
  %v5826 = vpop.permute.xlu0 %5825
  %5827 = vrot.lane.b32.xlu0 %v4630, 16
  %v5828 = vpop.permute.xlu0 %5827
  %5829 = vrot.lane.b32.xlu0 %v4631, 16
  %v5830 = vpop.permute.xlu0 %5829
  %5831 = vrot.lane.b32.xlu0 %v4632, 16
  %v5832 = vpop.permute.xlu0 %5831
  %5833 = vrot.lane.b32.xlu0 %v4633, 16
  %v5834 = vpop.permute.xlu0 %5833
  %5835 = vrot.lane.b32.xlu0 %v4634, 16
  %v5836 = vpop.permute.xlu0 %5835
  %5837 = vrot.lane.b32.xlu0 %v4635, 16
  %v5838 = vpop.permute.xlu0 %5837
  %5839 = vrot.lane.b32.xlu0 %v4636, 16
  %v5840 = vpop.permute.xlu0 %5839
  %5841 = vrot.lane.b32.xlu0 %v4637, 16
  %v5842 = vpop.permute.xlu0 %5841
  %5843 = vrot.lane.b32.xlu0 %v4638, 16
  %v5844 = vpop.permute.xlu0 %5843
  %5845 = vrot.lane.b32.xlu0 %v4639, 16
  %v5846 = vpop.permute.xlu0 %5845
  %5847 = vrot.lane.b32.xlu0 %v4640, 16
  %v5848 = vpop.permute.xlu0 %5847
  %5849 = vrot.lane.b32.xlu0 %v4641, 16
  %v5850 = vpop.permute.xlu0 %5849
  %5851 = vrot.lane.b32.xlu0 %v4642, 16
  %v5852 = vpop.permute.xlu0 %5851
  %5853 = vrot.lane.b32.xlu0 %v4643, 16
  %v5854 = vpop.permute.xlu0 %5853
  %5855 = vrot.lane.b32.xlu0 %v4644, 16
  %v5856 = vpop.permute.xlu0 %5855
  %5857 = vrot.lane.b32.xlu0 %v4645, 16
  %v5858 = vpop.permute.xlu0 %5857
  %5859 = vrot.lane.b32.xlu0 %v4646, 16
  %v5860 = vpop.permute.xlu0 %5859
  %5861 = vrot.lane.b32.xlu0 %v4647, 16
  %v5862 = vpop.permute.xlu0 %5861
  %5863 = vrot.lane.b32.xlu0 %v4648, 16
  %v5864 = vpop.permute.xlu0 %5863
  %5865 = vrot.lane.b32.xlu0 %v4649, 16
  %v5866 = vpop.permute.xlu0 %5865
  %5995 = vrot.lane.b32.xlu0 %v4650, 20
  %v5996 = vpop.permute.xlu0 %5995
  %5997 = vrot.lane.b32.xlu0 %v4651, 20
  %v5998 = vpop.permute.xlu0 %5997
  %5999 = vrot.lane.b32.xlu0 %v4652, 20
  %v6000 = vpop.permute.xlu0 %5999
  %6001 = vrot.lane.b32.xlu0 %v4653, 20
  %v6002 = vpop.permute.xlu0 %6001
  %6003 = vrot.lane.b32.xlu0 %v4654, 20
  %v6004 = vpop.permute.xlu0 %6003
  %6005 = vrot.lane.b32.xlu0 %v4655, 20
  %v6006 = vpop.permute.xlu0 %6005
  %6007 = vrot.lane.b32.xlu0 %v4656, 20
  %v6008 = vpop.permute.xlu0 %6007
  %6009 = vrot.lane.b32.xlu0 %v4657, 20
  %v6010 = vpop.permute.xlu0 %6009
  %6011 = vrot.lane.b32.xlu0 %v4658, 20
  %v6012 = vpop.permute.xlu0 %6011
  %6013 = vrot.lane.b32.xlu0 %v4659, 20
  %v6014 = vpop.permute.xlu0 %6013
  %6015 = vrot.lane.b32.xlu0 %v4660, 20
  %v6016 = vpop.permute.xlu0 %6015
  %6017 = vrot.lane.b32.xlu0 %v4661, 20
  %v6018 = vpop.permute.xlu0 %6017
  %6019 = vrot.lane.b32.xlu0 %v4662, 20
  %v6020 = vpop.permute.xlu0 %6019
  %6021 = vrot.lane.b32.xlu0 %v4663, 20
  %v6022 = vpop.permute.xlu0 %6021
  %6023 = vrot.lane.b32.xlu0 %v4664, 20
  %v6024 = vpop.permute.xlu0 %6023
  %6025 = vrot.lane.b32.xlu0 %v4665, 20
  %v6026 = vpop.permute.xlu0 %6025
  %6027 = vrot.lane.b32.xlu0 %v4666, 20
  %v6028 = vpop.permute.xlu0 %6027
  %6029 = vrot.lane.b32.xlu0 %v4667, 20
  %v6030 = vpop.permute.xlu0 %6029
  %6031 = vrot.lane.b32.xlu0 %v4668, 20
  %v6032 = vpop.permute.xlu0 %6031
  %6033 = vrot.lane.b32.xlu0 %v4669, 20
  %v6034 = vpop.permute.xlu0 %6033
  %6035 = vrot.lane.b32.xlu0 %v4670, 20
  %v6036 = vpop.permute.xlu0 %6035
  %6037 = vrot.lane.b32.xlu0 %v4671, 20
  %v6038 = vpop.permute.xlu0 %6037
  %6039 = vrot.lane.b32.xlu0 %v4672, 20
  %v6040 = vpop.permute.xlu0 %6039
  %6041 = vrot.lane.b32.xlu0 %v4673, 20
  %v6042 = vpop.permute.xlu0 %6041
  %6043 = vrot.lane.b32.xlu0 %v4674, 20
  %v6044 = vpop.permute.xlu0 %6043
  %6045 = vrot.lane.b32.xlu0 %v4675, 20
  %v6046 = vpop.permute.xlu0 %6045
  %6047 = vrot.lane.b32.xlu0 %v4676, 20
  %v6048 = vpop.permute.xlu0 %6047
  %6049 = vrot.lane.b32.xlu0 %v4677, 20
  %v6050 = vpop.permute.xlu0 %6049
  %6051 = vrot.lane.b32.xlu0 %v4678, 20
  %v6052 = vpop.permute.xlu0 %6051
  %6053 = vrot.lane.b32.xlu0 %v4679, 20
  %v6054 = vpop.permute.xlu0 %6053
  %6055 = vrot.lane.b32.xlu0 %v4680, 20
  %v6056 = vpop.permute.xlu0 %6055
  %6057 = vrot.lane.b32.xlu0 %v4681, 20
  %v6058 = vpop.permute.xlu0 %6057
  %6059 = vrot.lane.b32.xlu0 %v4682, 20
  %v6060 = vpop.permute.xlu0 %6059
  %6061 = vrot.lane.b32.xlu0 %v4683, 20
  %v6062 = vpop.permute.xlu0 %6061
  %6063 = vrot.lane.b32.xlu0 %v4684, 20
  %v6064 = vpop.permute.xlu0 %6063
  %6065 = vrot.lane.b32.xlu0 %v4685, 20
  %v6066 = vpop.permute.xlu0 %6065
  %6067 = vrot.lane.b32.xlu0 %v4686, 20
  %v6068 = vpop.permute.xlu0 %6067
  %6069 = vrot.lane.b32.xlu0 %v4687, 20
  %v6070 = vpop.permute.xlu0 %6069
  %6071 = vrot.lane.b32.xlu0 %v4688, 20
  %v6072 = vpop.permute.xlu0 %6071
  %6073 = vrot.lane.b32.xlu0 %v4689, 20
  %v6074 = vpop.permute.xlu0 %6073
  %6075 = vrot.lane.b32.xlu0 %v4690, 20
  %v6076 = vpop.permute.xlu0 %6075
  %6077 = vrot.lane.b32.xlu0 %v4691, 20
  %v6078 = vpop.permute.xlu0 %6077
  %6079 = vrot.lane.b32.xlu0 %v4692, 20
  %v6080 = vpop.permute.xlu0 %6079
  %6081 = vrot.lane.b32.xlu0 %v4693, 20
  %v6082 = vpop.permute.xlu0 %6081
  %6083 = vrot.lane.b32.xlu0 %v4694, 20
  %v6084 = vpop.permute.xlu0 %6083
  %6085 = vrot.lane.b32.xlu0 %v4695, 20
  %v6086 = vpop.permute.xlu0 %6085
  %6087 = vrot.lane.b32.xlu0 %v4696, 20
  %v6088 = vpop.permute.xlu0 %6087
  %6089 = vrot.lane.b32.xlu0 %v4697, 20
  %v6090 = vpop.permute.xlu0 %6089
  %6091 = vrot.lane.b32.xlu0 %v4698, 20
  %v6092 = vpop.permute.xlu0 %6091
  %6093 = vrot.lane.b32.xlu0 %v4699, 20
  %v6094 = vpop.permute.xlu0 %6093
  %6095 = vrot.lane.b32.xlu0 %v4700, 20
  %v6096 = vpop.permute.xlu0 %6095
  %6097 = vrot.lane.b32.xlu0 %v4701, 20
  %v6098 = vpop.permute.xlu0 %6097
  %6099 = vrot.lane.b32.xlu0 %v4702, 20
  %v6100 = vpop.permute.xlu0 %6099
  %6101 = vrot.lane.b32.xlu0 %v4703, 20
  %v6102 = vpop.permute.xlu0 %6101
  %6103 = vrot.lane.b32.xlu0 %v4704, 20
  %v6104 = vpop.permute.xlu0 %6103
  %6105 = vrot.lane.b32.xlu0 %v4705, 20
  %v6106 = vpop.permute.xlu0 %6105
  %6107 = vrot.lane.b32.xlu0 %v4706, 20
  %v6108 = vpop.permute.xlu0 %6107
  %6109 = vrot.lane.b32.xlu0 %v4707, 20
  %v6110 = vpop.permute.xlu0 %6109
  %6111 = vrot.lane.b32.xlu0 %v4708, 20
  %v6112 = vpop.permute.xlu0 %6111
  %6113 = vrot.lane.b32.xlu0 %v4709, 20
  %v6114 = vpop.permute.xlu0 %6113
  %6115 = vrot.lane.b32.xlu0 %v4710, 20
  %v6116 = vpop.permute.xlu0 %6115
  %6117 = vrot.lane.b32.xlu0 %v4711, 20
  %v6118 = vpop.permute.xlu0 %6117
  %6119 = vrot.lane.b32.xlu0 %v4712, 20
  %v6120 = vpop.permute.xlu0 %6119
  %6121 = vrot.lane.b32.xlu0 %v4713, 20
  %v6122 = vpop.permute.xlu0 %6121
  %6251 = vrot.lane.b32.xlu0 %v4715, 24
  %v6252 = vpop.permute.xlu0 %6251
  %6253 = vrot.lane.b32.xlu0 %v4716, 24
  %v6254 = vpop.permute.xlu0 %6253
  %6255 = vrot.lane.b32.xlu0 %v4717, 24
  %v6256 = vpop.permute.xlu0 %6255
  %6257 = vrot.lane.b32.xlu0 %v4718, 24
  %v6258 = vpop.permute.xlu0 %6257
  %6259 = vrot.lane.b32.xlu0 %v4719, 24
  %v6260 = vpop.permute.xlu0 %6259
  %6261 = vrot.lane.b32.xlu0 %v4720, 24
  %v6262 = vpop.permute.xlu0 %6261
  %6263 = vrot.lane.b32.xlu0 %v4721, 24
  %v6264 = vpop.permute.xlu0 %6263
  %6265 = vrot.lane.b32.xlu0 %v4722, 24
  %v6266 = vpop.permute.xlu0 %6265
  %6267 = vrot.lane.b32.xlu0 %v4723, 24
  %v6268 = vpop.permute.xlu0 %6267
  %6269 = vrot.lane.b32.xlu0 %v4724, 24
  %v6270 = vpop.permute.xlu0 %6269
  %6271 = vrot.lane.b32.xlu0 %v4725, 24
  %v6272 = vpop.permute.xlu0 %6271
  %6273 = vrot.lane.b32.xlu0 %v4726, 24
  %v6274 = vpop.permute.xlu0 %6273
  %6275 = vrot.lane.b32.xlu0 %v4727, 24
  %v6276 = vpop.permute.xlu0 %6275
  %6277 = vrot.lane.b32.xlu0 %v4728, 24
  %v6278 = vpop.permute.xlu0 %6277
  %6279 = vrot.lane.b32.xlu0 %v4729, 24
  %v6280 = vpop.permute.xlu0 %6279
  %6281 = vrot.lane.b32.xlu0 %v4730, 24
  %v6282 = vpop.permute.xlu0 %6281
  %6283 = vrot.lane.b32.xlu0 %v4731, 24
  %v6284 = vpop.permute.xlu0 %6283
  %6285 = vrot.lane.b32.xlu0 %v4732, 24
  %v6286 = vpop.permute.xlu0 %6285
  %6287 = vrot.lane.b32.xlu0 %v4733, 24
  %v6288 = vpop.permute.xlu0 %6287
  %6289 = vrot.lane.b32.xlu0 %v4734, 24
  %v6290 = vpop.permute.xlu0 %6289
  %6291 = vrot.lane.b32.xlu0 %v4735, 24
  %v6292 = vpop.permute.xlu0 %6291
  %6293 = vrot.lane.b32.xlu0 %v4736, 24
  %v6294 = vpop.permute.xlu0 %6293
  %6295 = vrot.lane.b32.xlu0 %v4737, 24
  %v6296 = vpop.permute.xlu0 %6295
  %6297 = vrot.lane.b32.xlu0 %v4738, 24
  %v6298 = vpop.permute.xlu0 %6297
  %6299 = vrot.lane.b32.xlu0 %v4739, 24
  %v6300 = vpop.permute.xlu0 %6299
  %6301 = vrot.lane.b32.xlu0 %v4740, 24
  %v6302 = vpop.permute.xlu0 %6301
  %6303 = vrot.lane.b32.xlu0 %v4741, 24
  %v6304 = vpop.permute.xlu0 %6303
  %6305 = vrot.lane.b32.xlu0 %v4742, 24
  %v6306 = vpop.permute.xlu0 %6305
  %6307 = vrot.lane.b32.xlu0 %v4743, 24
  %v6308 = vpop.permute.xlu0 %6307
  %6309 = vrot.lane.b32.xlu0 %v4744, 24
  %v6310 = vpop.permute.xlu0 %6309
  %6311 = vrot.lane.b32.xlu0 %v4745, 24
  %v6312 = vpop.permute.xlu0 %6311
  %6313 = vrot.lane.b32.xlu0 %v4746, 24
  %v6314 = vpop.permute.xlu0 %6313
  %6315 = vrot.lane.b32.xlu0 %v4747, 24
  %v6316 = vpop.permute.xlu0 %6315
  %6317 = vrot.lane.b32.xlu0 %v4748, 24
  %v6318 = vpop.permute.xlu0 %6317
  %6319 = vrot.lane.b32.xlu0 %v4749, 24
  %v6320 = vpop.permute.xlu0 %6319
  %6321 = vrot.lane.b32.xlu0 %v4750, 24
  %v6322 = vpop.permute.xlu0 %6321
  %6323 = vrot.lane.b32.xlu0 %v4751, 24
  %v6324 = vpop.permute.xlu0 %6323
  %6325 = vrot.lane.b32.xlu0 %v4752, 24
  %v6326 = vpop.permute.xlu0 %6325
  %6327 = vrot.lane.b32.xlu0 %v4753, 24
  %v6328 = vpop.permute.xlu0 %6327
  %6329 = vrot.lane.b32.xlu0 %v4754, 24
  %v6330 = vpop.permute.xlu0 %6329
  %6331 = vrot.lane.b32.xlu0 %v4755, 24
  %v6332 = vpop.permute.xlu0 %6331
  %6333 = vrot.lane.b32.xlu0 %v4756, 24
  %v6334 = vpop.permute.xlu0 %6333
  %6335 = vrot.lane.b32.xlu0 %v4757, 24
  %v6336 = vpop.permute.xlu0 %6335
  %6337 = vrot.lane.b32.xlu0 %v4758, 24
  %v6338 = vpop.permute.xlu0 %6337
  %6339 = vrot.lane.b32.xlu0 %v4759, 24
  %v6340 = vpop.permute.xlu0 %6339
  %6341 = vrot.lane.b32.xlu0 %v4760, 24
  %v6342 = vpop.permute.xlu0 %6341
  %6343 = vrot.lane.b32.xlu0 %v4761, 24
  %v6344 = vpop.permute.xlu0 %6343
  %6345 = vrot.lane.b32.xlu0 %v4762, 24
  %v6346 = vpop.permute.xlu0 %6345
  %6347 = vrot.lane.b32.xlu0 %v4763, 24
  %v6348 = vpop.permute.xlu0 %6347
  %6349 = vrot.lane.b32.xlu0 %v4764, 24
  %v6350 = vpop.permute.xlu0 %6349
  %6351 = vrot.lane.b32.xlu0 %v4765, 24
  %v6352 = vpop.permute.xlu0 %6351
  %6353 = vrot.lane.b32.xlu0 %v4766, 24
  %v6354 = vpop.permute.xlu0 %6353
  %6355 = vrot.lane.b32.xlu0 %v4767, 24
  %v6356 = vpop.permute.xlu0 %6355
  %6357 = vrot.lane.b32.xlu0 %v4768, 24
  %v6358 = vpop.permute.xlu0 %6357
  %6359 = vrot.lane.b32.xlu0 %v4769, 24
  %v6360 = vpop.permute.xlu0 %6359
  %6361 = vrot.lane.b32.xlu0 %v4770, 24
  %v6362 = vpop.permute.xlu0 %6361
  %6363 = vrot.lane.b32.xlu0 %v4771, 24
  %v6364 = vpop.permute.xlu0 %6363
  %6365 = vrot.lane.b32.xlu0 %v4772, 24
  %v6366 = vpop.permute.xlu0 %6365
  %6367 = vrot.lane.b32.xlu0 %v4773, 24
  %v6368 = vpop.permute.xlu0 %6367
  %6369 = vrot.lane.b32.xlu0 %v4774, 24
  %v6370 = vpop.permute.xlu0 %6369
  %6371 = vrot.lane.b32.xlu0 %v4775, 24
  %v6372 = vpop.permute.xlu0 %6371
  %6373 = vrot.lane.b32.xlu0 %v4776, 24
  %v6374 = vpop.permute.xlu0 %6373
  %6375 = vrot.lane.b32.xlu0 %v4777, 24
  %v6376 = vpop.permute.xlu0 %6375
  %6377 = vrot.lane.b32.xlu0 %v4778, 24
  %v6378 = vpop.permute.xlu0 %6377
  %6507 = vrot.lane.b32.xlu0 %v4779, 28
  %v6508 = vpop.permute.xlu0 %6507
  %6509 = vrot.lane.b32.xlu0 %v4780, 28
  %v6510 = vpop.permute.xlu0 %6509
  %6511 = vrot.lane.b32.xlu0 %v4781, 28
  %v6512 = vpop.permute.xlu0 %6511
  %6513 = vrot.lane.b32.xlu0 %v4782, 28
  %v6514 = vpop.permute.xlu0 %6513
  %6515 = vrot.lane.b32.xlu0 %v4783, 28
  %v6516 = vpop.permute.xlu0 %6515
  %6517 = vrot.lane.b32.xlu0 %v4784, 28
  %v6518 = vpop.permute.xlu0 %6517
  %6519 = vrot.lane.b32.xlu0 %v4785, 28
  %v6520 = vpop.permute.xlu0 %6519
  %6521 = vrot.lane.b32.xlu0 %v4786, 28
  %v6522 = vpop.permute.xlu0 %6521
  %6523 = vrot.lane.b32.xlu0 %v4787, 28
  %v6524 = vpop.permute.xlu0 %6523
  %6525 = vrot.lane.b32.xlu0 %v4788, 28
  %v6526 = vpop.permute.xlu0 %6525
  %6527 = vrot.lane.b32.xlu0 %v4789, 28
  %v6528 = vpop.permute.xlu0 %6527
  %6529 = vrot.lane.b32.xlu0 %v4790, 28
  %v6530 = vpop.permute.xlu0 %6529
  %6531 = vrot.lane.b32.xlu0 %v4791, 28
  %v6532 = vpop.permute.xlu0 %6531
  %6533 = vrot.lane.b32.xlu0 %v4792, 28
  %v6534 = vpop.permute.xlu0 %6533
  %6535 = vrot.lane.b32.xlu0 %v4793, 28
  %v6536 = vpop.permute.xlu0 %6535
  %6537 = vrot.lane.b32.xlu0 %v4794, 28
  %v6538 = vpop.permute.xlu0 %6537
  %6539 = vrot.lane.b32.xlu0 %v4795, 28
  %v6540 = vpop.permute.xlu0 %6539
  %6541 = vrot.lane.b32.xlu0 %v4796, 28
  %v6542 = vpop.permute.xlu0 %6541
  %6543 = vrot.lane.b32.xlu0 %v4797, 28
  %v6544 = vpop.permute.xlu0 %6543
  %6545 = vrot.lane.b32.xlu0 %v4798, 28
  %v6546 = vpop.permute.xlu0 %6545
  %6547 = vrot.lane.b32.xlu0 %v4799, 28
  %v6548 = vpop.permute.xlu0 %6547
  %6549 = vrot.lane.b32.xlu0 %v4800, 28
  %v6550 = vpop.permute.xlu0 %6549
  %6551 = vrot.lane.b32.xlu0 %v4801, 28
  %v6552 = vpop.permute.xlu0 %6551
  %6553 = vrot.lane.b32.xlu0 %v4802, 28
  %v6554 = vpop.permute.xlu0 %6553
  %6555 = vrot.lane.b32.xlu0 %v4803, 28
  %v6556 = vpop.permute.xlu0 %6555
  %6557 = vrot.lane.b32.xlu0 %v4804, 28
  %v6558 = vpop.permute.xlu0 %6557
  %6559 = vrot.lane.b32.xlu0 %v4805, 28
  %v6560 = vpop.permute.xlu0 %6559
  %6561 = vrot.lane.b32.xlu0 %v4806, 28
  %v6562 = vpop.permute.xlu0 %6561
  %6563 = vrot.lane.b32.xlu0 %v4807, 28
  %v6564 = vpop.permute.xlu0 %6563
  %6565 = vrot.lane.b32.xlu0 %v4808, 28
  %v6566 = vpop.permute.xlu0 %6565
  %6567 = vrot.lane.b32.xlu0 %v4809, 28
  %v6568 = vpop.permute.xlu0 %6567
  %6569 = vrot.lane.b32.xlu0 %v4810, 28
  %v6570 = vpop.permute.xlu0 %6569
  %6571 = vrot.lane.b32.xlu0 %v4811, 28
  %v6572 = vpop.permute.xlu0 %6571
  %6573 = vrot.lane.b32.xlu0 %v4812, 28
  %v6574 = vpop.permute.xlu0 %6573
  %6575 = vrot.lane.b32.xlu0 %v4813, 28
  %v6576 = vpop.permute.xlu0 %6575
  %6577 = vrot.lane.b32.xlu0 %v4814, 28
  %v6578 = vpop.permute.xlu0 %6577
  %6579 = vrot.lane.b32.xlu0 %v4815, 28
  %v6580 = vpop.permute.xlu0 %6579
  %6581 = vrot.lane.b32.xlu0 %v4816, 28
  %v6582 = vpop.permute.xlu0 %6581
  %6583 = vrot.lane.b32.xlu0 %v4817, 28
  %v6584 = vpop.permute.xlu0 %6583
  %6585 = vrot.lane.b32.xlu0 %v4818, 28
  %v6586 = vpop.permute.xlu0 %6585
  %6587 = vrot.lane.b32.xlu0 %v4819, 28
  %v6588 = vpop.permute.xlu0 %6587
  %6589 = vrot.lane.b32.xlu0 %v4820, 28
  %v6590 = vpop.permute.xlu0 %6589
  %6591 = vrot.lane.b32.xlu0 %v4821, 28
  %v6592 = vpop.permute.xlu0 %6591
  %6593 = vrot.lane.b32.xlu0 %v4822, 28
  %v6594 = vpop.permute.xlu0 %6593
  %6595 = vrot.lane.b32.xlu0 %v4823, 28
  %v6596 = vpop.permute.xlu0 %6595
  %6597 = vrot.lane.b32.xlu0 %v4824, 28
  %v6598 = vpop.permute.xlu0 %6597
  %6599 = vrot.lane.b32.xlu0 %v4825, 28
  %v6600 = vpop.permute.xlu0 %6599
  %6601 = vrot.lane.b32.xlu0 %v4826, 28
  %v6602 = vpop.permute.xlu0 %6601
  %6603 = vrot.lane.b32.xlu0 %v4827, 28
  %v6604 = vpop.permute.xlu0 %6603
  %6605 = vrot.lane.b32.xlu0 %v4828, 28
  %v6606 = vpop.permute.xlu0 %6605
  %6607 = vrot.lane.b32.xlu0 %v4829, 28
  %v6608 = vpop.permute.xlu0 %6607
  %6609 = vrot.lane.b32.xlu0 %v4830, 28
  %v6610 = vpop.permute.xlu0 %6609
  %6611 = vrot.lane.b32.xlu0 %v4831, 28
  %v6612 = vpop.permute.xlu0 %6611
  %6613 = vrot.lane.b32.xlu0 %v4832, 28
  %v6614 = vpop.permute.xlu0 %6613
  %6615 = vrot.lane.b32.xlu0 %v4833, 28
  %v6616 = vpop.permute.xlu0 %6615
  %6617 = vrot.lane.b32.xlu0 %v4834, 28
  %v6618 = vpop.permute.xlu0 %6617
  %6619 = vrot.lane.b32.xlu0 %v4835, 28
  %v6620 = vpop.permute.xlu0 %6619
  %6621 = vrot.lane.b32.xlu0 %v4836, 28
  %v6622 = vpop.permute.xlu0 %6621
  %6623 = vrot.lane.b32.xlu0 %v4837, 28
  %v6624 = vpop.permute.xlu0 %6623
  %6625 = vrot.lane.b32.xlu0 %v4838, 28
  %v6626 = vpop.permute.xlu0 %6625
  %6627 = vrot.lane.b32.xlu0 %v4839, 28
  %v6628 = vpop.permute.xlu0 %6627
  %6629 = vrot.lane.b32.xlu0 %v4840, 28
  %v6630 = vpop.permute.xlu0 %6629
  %6631 = vrot.lane.b32.xlu0 %v4841, 28
  %v6632 = vpop.permute.xlu0 %6631
  %6633 = vrot.lane.b32.xlu0 %v4842, 28
  %v6634 = vpop.permute.xlu0 %6633
  %6763 = vrot.lane.b32.xlu0 %v4843, 32
  %v6764 = vpop.permute.xlu0 %6763
  %6765 = vrot.lane.b32.xlu0 %v4844, 32
  %v6766 = vpop.permute.xlu0 %6765
  %6767 = vrot.lane.b32.xlu0 %v4845, 32
  %v6768 = vpop.permute.xlu0 %6767
  %6769 = vrot.lane.b32.xlu0 %v4846, 32
  %v6770 = vpop.permute.xlu0 %6769
  %6771 = vrot.lane.b32.xlu0 %v4847, 32
  %v6772 = vpop.permute.xlu0 %6771
  %6773 = vrot.lane.b32.xlu0 %v4848, 32
  %v6774 = vpop.permute.xlu0 %6773
  %6775 = vrot.lane.b32.xlu0 %v4849, 32
  %v6776 = vpop.permute.xlu0 %6775
  %6777 = vrot.lane.b32.xlu0 %v4850, 32
  %v6778 = vpop.permute.xlu0 %6777
  %6779 = vrot.lane.b32.xlu0 %v4851, 32
  %v6780 = vpop.permute.xlu0 %6779
  %6781 = vrot.lane.b32.xlu0 %v4852, 32
  %v6782 = vpop.permute.xlu0 %6781
  %6783 = vrot.lane.b32.xlu0 %v4853, 32
  %v6784 = vpop.permute.xlu0 %6783
  %6785 = vrot.lane.b32.xlu0 %v4854, 32
  %v6786 = vpop.permute.xlu0 %6785
  %6787 = vrot.lane.b32.xlu0 %v4855, 32
  %v6788 = vpop.permute.xlu0 %6787
  %6789 = vrot.lane.b32.xlu0 %v4856, 32
  %v6790 = vpop.permute.xlu0 %6789
  %6791 = vrot.lane.b32.xlu0 %v4857, 32
  %v6792 = vpop.permute.xlu0 %6791
  %6793 = vrot.lane.b32.xlu0 %v4858, 32
  %v6794 = vpop.permute.xlu0 %6793
  %6795 = vrot.lane.b32.xlu0 %v4859, 32
  %v6796 = vpop.permute.xlu0 %6795
  %6797 = vrot.lane.b32.xlu0 %v4860, 32
  %v6798 = vpop.permute.xlu0 %6797
  %6799 = vrot.lane.b32.xlu0 %v4861, 32
  %v6800 = vpop.permute.xlu0 %6799
  %6801 = vrot.lane.b32.xlu0 %v4862, 32
  %v6802 = vpop.permute.xlu0 %6801
  %6803 = vrot.lane.b32.xlu0 %v4863, 32
  %v6804 = vpop.permute.xlu0 %6803
  %6805 = vrot.lane.b32.xlu0 %v4864, 32
  %v6806 = vpop.permute.xlu0 %6805
  %6807 = vrot.lane.b32.xlu0 %v4865, 32
  %v6808 = vpop.permute.xlu0 %6807
  %6809 = vrot.lane.b32.xlu0 %v4866, 32
  %v6810 = vpop.permute.xlu0 %6809
  %6811 = vrot.lane.b32.xlu0 %v4867, 32
  %v6812 = vpop.permute.xlu0 %6811
  %6813 = vrot.lane.b32.xlu0 %v4868, 32
  %v6814 = vpop.permute.xlu0 %6813
  %6815 = vrot.lane.b32.xlu0 %v4869, 32
  %v6816 = vpop.permute.xlu0 %6815
  %6817 = vrot.lane.b32.xlu0 %v4870, 32
  %v6818 = vpop.permute.xlu0 %6817
  %6819 = vrot.lane.b32.xlu0 %v4871, 32
  %v6820 = vpop.permute.xlu0 %6819
  %6821 = vrot.lane.b32.xlu0 %v4872, 32
  %v6822 = vpop.permute.xlu0 %6821
  %6823 = vrot.lane.b32.xlu0 %v4873, 32
  %v6824 = vpop.permute.xlu0 %6823
  %6825 = vrot.lane.b32.xlu0 %v4874, 32
  %v6826 = vpop.permute.xlu0 %6825
  %6827 = vrot.lane.b32.xlu0 %v4875, 32
  %v6828 = vpop.permute.xlu0 %6827
  %6829 = vrot.lane.b32.xlu0 %v4876, 32
  %v6830 = vpop.permute.xlu0 %6829
  %6831 = vrot.lane.b32.xlu0 %v4877, 32
  %v6832 = vpop.permute.xlu0 %6831
  %6833 = vrot.lane.b32.xlu0 %v4878, 32
  %v6834 = vpop.permute.xlu0 %6833
  %6835 = vrot.lane.b32.xlu0 %v4879, 32
  %v6836 = vpop.permute.xlu0 %6835
  %6837 = vrot.lane.b32.xlu0 %v4880, 32
  %v6838 = vpop.permute.xlu0 %6837
  %6839 = vrot.lane.b32.xlu0 %v4881, 32
  %v6840 = vpop.permute.xlu0 %6839
  %6841 = vrot.lane.b32.xlu0 %v4882, 32
  %v6842 = vpop.permute.xlu0 %6841
  %6843 = vrot.lane.b32.xlu0 %v4883, 32
  %v6844 = vpop.permute.xlu0 %6843
  %6845 = vrot.lane.b32.xlu0 %v4884, 32
  %v6846 = vpop.permute.xlu0 %6845
  %6847 = vrot.lane.b32.xlu0 %v4885, 32
  %v6848 = vpop.permute.xlu0 %6847
  %6849 = vrot.lane.b32.xlu0 %v4886, 32
  %v6850 = vpop.permute.xlu0 %6849
  %6851 = vrot.lane.b32.xlu0 %v4887, 32
  %v6852 = vpop.permute.xlu0 %6851
  %6853 = vrot.lane.b32.xlu0 %v4888, 32
  %v6854 = vpop.permute.xlu0 %6853
  %6855 = vrot.lane.b32.xlu0 %v4889, 32
  %v6856 = vpop.permute.xlu0 %6855
  %6857 = vrot.lane.b32.xlu0 %v4890, 32
  %v6858 = vpop.permute.xlu0 %6857
  %6859 = vrot.lane.b32.xlu0 %v4891, 32
  %v6860 = vpop.permute.xlu0 %6859
  %6861 = vrot.lane.b32.xlu0 %v4892, 32
  %v6862 = vpop.permute.xlu0 %6861
  %6863 = vrot.lane.b32.xlu0 %v4893, 32
  %v6864 = vpop.permute.xlu0 %6863
  %6865 = vrot.lane.b32.xlu0 %v4894, 32
  %v6866 = vpop.permute.xlu0 %6865
  %6867 = vrot.lane.b32.xlu0 %v4895, 32
  %v6868 = vpop.permute.xlu0 %6867
  %6869 = vrot.lane.b32.xlu0 %v4896, 32
  %v6870 = vpop.permute.xlu0 %6869
  %6871 = vrot.lane.b32.xlu0 %v4897, 32
  %v6872 = vpop.permute.xlu0 %6871
  %6873 = vrot.lane.b32.xlu0 %v4898, 32
  %v6874 = vpop.permute.xlu0 %6873
  %6875 = vrot.lane.b32.xlu0 %v4899, 32
  %v6876 = vpop.permute.xlu0 %6875
  %6877 = vrot.lane.b32.xlu0 %v4900, 32
  %v6878 = vpop.permute.xlu0 %6877
  %6879 = vrot.lane.b32.xlu0 %v4901, 32
  %v6880 = vpop.permute.xlu0 %6879
  %6881 = vrot.lane.b32.xlu0 %v4902, 32
  %v6882 = vpop.permute.xlu0 %6881
  %6883 = vrot.lane.b32.xlu0 %v4903, 32
  %v6884 = vpop.permute.xlu0 %6883
  %6885 = vrot.lane.b32.xlu0 %v4904, 32
  %v6886 = vpop.permute.xlu0 %6885
  %6887 = vrot.lane.b32.xlu0 %v4905, 32
  %v6888 = vpop.permute.xlu0 %6887
  %6889 = vrot.lane.b32.xlu0 %v4906, 32
  %v6890 = vpop.permute.xlu0 %6889
  %v6955 = vsel %vm26, %v4330, %v4972
  %v6956 = vsel %vm26, %v4331, %v4974
  %v6957 = vsel %vm26, %v4332, %v4976
  %v6958 = vsel %vm26, %v4333, %v4978
  %v6959 = vsel %vm26, %v4334, %v4980
  %v6960 = vsel %vm26, %v4335, %v4982
  %v6961 = vsel %vm26, %v4336, %v4984
  %v6962 = vsel %vm26, %v4337, %v4986
  %v6963 = vsel %vm26, %v4338, %v4988
  %v6964 = vsel %vm26, %v4339, %v4990
  %v6965 = vsel %vm26, %v4340, %v4992
  %v6966 = vsel %vm26, %v4341, %v4994
  %v6967 = vsel %vm26, %v4342, %v4996
  %v6968 = vsel %vm26, %v4343, %v4998
  %v6969 = vsel %vm26, %v4344, %v5000
  %v6970 = vsel %vm26, %v4345, %v5002
  %v6971 = vsel %vm26, %v4346, %v5004
  %v6972 = vsel %vm26, %v4347, %v5006
  %v6973 = vsel %vm26, %v4348, %v5008
  %v6974 = vsel %vm26, %v4349, %v5010
  %v6975 = vsel %vm26, %v4350, %v5012
  %v6976 = vsel %vm26, %v4351, %v5014
  %v6977 = vsel %vm26, %v4352, %v5016
  %v6978 = vsel %vm26, %v4353, %v5018
  %v6979 = vsel %vm26, %v4354, %v5020
  %v6980 = vsel %vm26, %v4355, %v5022
  %v6981 = vsel %vm26, %v4356, %v5024
  %v6982 = vsel %vm26, %v4357, %v5026
  %v6983 = vsel %vm26, %v4358, %v5028
  %v6984 = vsel %vm26, %v4359, %v5030
  %v6985 = vsel %vm26, %v4360, %v5032
  %v6986 = vsel %vm26, %v4361, %v5034
  %v6987 = vsel %vm26, %v4362, %v5036
  %v6988 = vsel %vm26, %v4363, %v5038
  %v6989 = vsel %vm26, %v4364, %v5040
  %v6990 = vsel %vm26, %v4365, %v5042
  %v6991 = vsel %vm26, %v4366, %v5044
  %v6992 = vsel %vm26, %v4367, %v5046
  %v6993 = vsel %vm26, %v4368, %v5048
  %v6994 = vsel %vm26, %v4369, %v5050
  %v6995 = vsel %vm26, %v4370, %v5052
  %v6996 = vsel %vm26, %v4371, %v5054
  %v6997 = vsel %vm26, %v4372, %v5056
  %v6998 = vsel %vm26, %v4373, %v5058
  %v6999 = vsel %vm26, %v4374, %v5060
  %v7000 = vsel %vm26, %v4375, %v5062
  %v7001 = vsel %vm26, %v4376, %v5064
  %v7002 = vsel %vm26, %v4377, %v5066
  %v7003 = vsel %vm26, %v4378, %v5068
  %v7004 = vsel %vm26, %v4379, %v5070
  %v7005 = vsel %vm26, %v4380, %v5072
  %v7006 = vsel %vm26, %v4381, %v5074
  %v7007 = vsel %vm26, %v4382, %v5076
  %v7008 = vsel %vm26, %v4383, %v5078
  %v7009 = vsel %vm26, %v4384, %v5080
  %v7010 = vsel %vm26, %v4385, %v5082
  %v7011 = vsel %vm26, %v4386, %v5084
  %v7012 = vsel %vm26, %v4387, %v5086
  %v7013 = vsel %vm26, %v4388, %v5088
  %v7014 = vsel %vm26, %v4389, %v5090
  %v7015 = vsel %vm26, %v4390, %v5092
  %v7016 = vsel %vm26, %v4391, %v5094
  %v7017 = vsel %vm26, %v4392, %v5096
  %v7018 = vsel %vm26, %v4393, %v5098
  %v7019 = vsel %vm3017, %v6955, %v5228
  %v7020 = vsel %vm3017, %v6956, %v5230
  %v7021 = vsel %vm3017, %v6957, %v5232
  %v7022 = vsel %vm3017, %v6958, %v5234
  %v7023 = vsel %vm3017, %v6959, %v5236
  %v7024 = vsel %vm3017, %v6960, %v5238
  %v7025 = vsel %vm3017, %v6961, %v5240
  %v7026 = vsel %vm3017, %v6962, %v5242
  %v7027 = vsel %vm3017, %v6963, %v5244
  %v7028 = vsel %vm3017, %v6964, %v5246
  %v7029 = vsel %vm3017, %v6965, %v5248
  %v7030 = vsel %vm3017, %v6966, %v5250
  %v7031 = vsel %vm3017, %v6967, %v5252
  %v7032 = vsel %vm3017, %v6968, %v5254
  %v7033 = vsel %vm3017, %v6969, %v5256
  %v7034 = vsel %vm3017, %v6970, %v5258
  %v7035 = vsel %vm3017, %v6971, %v5260
  %v7036 = vsel %vm3017, %v6972, %v5262
  %v7037 = vsel %vm3017, %v6973, %v5264
  %v7038 = vsel %vm3017, %v6974, %v5266
  %v7039 = vsel %vm3017, %v6975, %v5268
  %v7040 = vsel %vm3017, %v6976, %v5270
  %v7041 = vsel %vm3017, %v6977, %v5272
  %v7042 = vsel %vm3017, %v6978, %v5274
  %v7043 = vsel %vm3017, %v6979, %v5276
  %v7044 = vsel %vm3017, %v6980, %v5278
  %v7045 = vsel %vm3017, %v6981, %v5280
  %v7046 = vsel %vm3017, %v6982, %v5282
  %v7047 = vsel %vm3017, %v6983, %v5284
  %v7048 = vsel %vm3017, %v6984, %v5286
  %v7049 = vsel %vm3017, %v6985, %v5288
  %v7050 = vsel %vm3017, %v6986, %v5290
  %v7051 = vsel %vm3017, %v6987, %v5292
  %v7052 = vsel %vm3017, %v6988, %v5294
  %v7053 = vsel %vm3017, %v6989, %v5296
  %v7054 = vsel %vm3017, %v6990, %v5298
  %v7055 = vsel %vm3017, %v6991, %v5300
  %v7056 = vsel %vm3017, %v6992, %v5302
  %v7057 = vsel %vm3017, %v6993, %v5304
  %v7058 = vsel %vm3017, %v6994, %v5306
  %v7059 = vsel %vm3017, %v6995, %v5308
  %v7060 = vsel %vm3017, %v6996, %v5310
  %v7061 = vsel %vm3017, %v6997, %v5312
  %v7062 = vsel %vm3017, %v6998, %v5314
  %v7063 = vsel %vm3017, %v6999, %v5316
  %v7064 = vsel %vm3017, %v7000, %v5318
  %v7065 = vsel %vm3017, %v7001, %v5320
  %v7066 = vsel %vm3017, %v7002, %v5322
  %v7067 = vsel %vm3017, %v7003, %v5324
  %v7068 = vsel %vm3017, %v7004, %v5326
  %v7069 = vsel %vm3017, %v7005, %v5328
  %v7070 = vsel %vm3017, %v7006, %v5330
  %v7071 = vsel %vm3017, %v7007, %v5332
  %v7072 = vsel %vm3017, %v7008, %v5334
  %v7073 = vsel %vm3017, %v7009, %v5336
  %v7074 = vsel %vm3017, %v7010, %v5338
  %v7075 = vsel %vm3017, %v7011, %v5340
  %v7076 = vsel %vm3017, %v7012, %v5342
  %v7077 = vsel %vm3017, %v7013, %v5344
  %v7078 = vsel %vm3017, %v7014, %v5346
  %v7079 = vsel %vm3017, %v7015, %v5348
  %v7080 = vsel %vm3017, %v7016, %v5350
  %v7081 = vsel %vm3017, %v7017, %v5352
  %v7082 = vsel %vm3017, %v7018, %v5354
  %v7083 = vsel %vm3082, %v7019, %v5484
  %v7084 = vsel %vm3082, %v7020, %v5486
  %v7085 = vsel %vm3082, %v7021, %v5488
  %v7086 = vsel %vm3082, %v7022, %v5490
  %v7087 = vsel %vm3082, %v7023, %v5492
  %v7088 = vsel %vm3082, %v7024, %v5494
  %v7089 = vsel %vm3082, %v7025, %v5496
  %v7090 = vsel %vm3082, %v7026, %v5498
  %v7091 = vsel %vm3082, %v7027, %v5500
  %v7092 = vsel %vm3082, %v7028, %v5502
  %v7093 = vsel %vm3082, %v7029, %v5504
  %v7094 = vsel %vm3082, %v7030, %v5506
  %v7095 = vsel %vm3082, %v7031, %v5508
  %v7096 = vsel %vm3082, %v7032, %v5510
  %v7097 = vsel %vm3082, %v7033, %v5512
  %v7098 = vsel %vm3082, %v7034, %v5514
  %v7099 = vsel %vm3082, %v7035, %v5516
  %v7100 = vsel %vm3082, %v7036, %v5518
  %v7101 = vsel %vm3082, %v7037, %v5520
  %v7102 = vsel %vm3082, %v7038, %v5522
  %v7103 = vsel %vm3082, %v7039, %v5524
  %v7104 = vsel %vm3082, %v7040, %v5526
  %v7105 = vsel %vm3082, %v7041, %v5528
  %v7106 = vsel %vm3082, %v7042, %v5530
  %v7107 = vsel %vm3082, %v7043, %v5532
  %v7108 = vsel %vm3082, %v7044, %v5534
  %v7109 = vsel %vm3082, %v7045, %v5536
  %v7110 = vsel %vm3082, %v7046, %v5538
  %v7111 = vsel %vm3082, %v7047, %v5540
  %v7112 = vsel %vm3082, %v7048, %v5542
  %v7113 = vsel %vm3082, %v7049, %v5544
  %v7114 = vsel %vm3082, %v7050, %v5546
  %v7115 = vsel %vm3082, %v7051, %v5548
  %v7116 = vsel %vm3082, %v7052, %v5550
  %v7117 = vsel %vm3082, %v7053, %v5552
  %v7118 = vsel %vm3082, %v7054, %v5554
  %v7119 = vsel %vm3082, %v7055, %v5556
  %v7120 = vsel %vm3082, %v7056, %v5558
  %v7121 = vsel %vm3082, %v7057, %v5560
  %v7122 = vsel %vm3082, %v7058, %v5562
  %v7123 = vsel %vm3082, %v7059, %v5564
  %v7124 = vsel %vm3082, %v7060, %v5566
  %v7125 = vsel %vm3082, %v7061, %v5568
  %v7126 = vsel %vm3082, %v7062, %v5570
  %v7127 = vsel %vm3082, %v7063, %v5572
  %v7128 = vsel %vm3082, %v7064, %v5574
  %v7129 = vsel %vm3082, %v7065, %v5576
  %v7130 = vsel %vm3082, %v7066, %v5578
  %v7131 = vsel %vm3082, %v7067, %v5580
  %v7132 = vsel %vm3082, %v7068, %v5582
  %v7133 = vsel %vm3082, %v7069, %v5584
  %v7134 = vsel %vm3082, %v7070, %v5586
  %v7135 = vsel %vm3082, %v7071, %v5588
  %v7136 = vsel %vm3082, %v7072, %v5590
  %v7137 = vsel %vm3082, %v7073, %v5592
  %v7138 = vsel %vm3082, %v7074, %v5594
  %v7139 = vsel %vm3082, %v7075, %v5596
  %v7140 = vsel %vm3082, %v7076, %v5598
  %v7141 = vsel %vm3082, %v7077, %v5600
  %v7142 = vsel %vm3082, %v7078, %v5602
  %v7143 = vsel %vm3082, %v7079, %v5604
  %v7144 = vsel %vm3082, %v7080, %v5606
  %v7145 = vsel %vm3082, %v7081, %v5608
  %v7146 = vsel %vm3082, %v7082, %v5610
  %v7147 = vsel %vm3147, %v7083, %v5740
  %v7148 = vsel %vm3147, %v7084, %v5742
  %v7149 = vsel %vm3147, %v7085, %v5744
  %v7150 = vsel %vm3147, %v7086, %v5746
  %v7151 = vsel %vm3147, %v7087, %v5748
  %v7152 = vsel %vm3147, %v7088, %v5750
  %v7153 = vsel %vm3147, %v7089, %v5752
  %v7154 = vsel %vm3147, %v7090, %v5754
  %v7155 = vsel %vm3147, %v7091, %v5756
  %v7156 = vsel %vm3147, %v7092, %v5758
  %v7157 = vsel %vm3147, %v7093, %v5760
  %v7158 = vsel %vm3147, %v7094, %v5762
  %v7159 = vsel %vm3147, %v7095, %v5764
  %v7160 = vsel %vm3147, %v7096, %v5766
  %v7161 = vsel %vm3147, %v7097, %v5768
  %v7162 = vsel %vm3147, %v7098, %v5770
  %v7163 = vsel %vm3147, %v7099, %v5772
  %v7164 = vsel %vm3147, %v7100, %v5774
  %v7165 = vsel %vm3147, %v7101, %v5776
  %v7166 = vsel %vm3147, %v7102, %v5778
  %v7167 = vsel %vm3147, %v7103, %v5780
  %v7168 = vsel %vm3147, %v7104, %v5782
  %v7169 = vsel %vm3147, %v7105, %v5784
  %v7170 = vsel %vm3147, %v7106, %v5786
  %v7171 = vsel %vm3147, %v7107, %v5788
  %v7172 = vsel %vm3147, %v7108, %v5790
  %v7173 = vsel %vm3147, %v7109, %v5792
  %v7174 = vsel %vm3147, %v7110, %v5794
  %v7175 = vsel %vm3147, %v7111, %v5796
  %v7176 = vsel %vm3147, %v7112, %v5798
  %v7177 = vsel %vm3147, %v7113, %v5800
  %v7178 = vsel %vm3147, %v7114, %v5802
  %v7179 = vsel %vm3147, %v7115, %v5804
  %v7180 = vsel %vm3147, %v7116, %v5806
  %v7181 = vsel %vm3147, %v7117, %v5808
  %v7182 = vsel %vm3147, %v7118, %v5810
  %v7183 = vsel %vm3147, %v7119, %v5812
  %v7184 = vsel %vm3147, %v7120, %v5814
  %v7185 = vsel %vm3147, %v7121, %v5816
  %v7186 = vsel %vm3147, %v7122, %v5818
  %v7187 = vsel %vm3147, %v7123, %v5820
  %v7188 = vsel %vm3147, %v7124, %v5822
  %v7189 = vsel %vm3147, %v7125, %v5824
  %v7190 = vsel %vm3147, %v7126, %v5826
  %v7191 = vsel %vm3147, %v7127, %v5828
  %v7192 = vsel %vm3147, %v7128, %v5830
  %v7193 = vsel %vm3147, %v7129, %v5832
  %v7194 = vsel %vm3147, %v7130, %v5834
  %v7195 = vsel %vm3147, %v7131, %v5836
  %v7196 = vsel %vm3147, %v7132, %v5838
  %v7197 = vsel %vm3147, %v7133, %v5840
  %v7198 = vsel %vm3147, %v7134, %v5842
  %v7199 = vsel %vm3147, %v7135, %v5844
  %v7200 = vsel %vm3147, %v7136, %v5846
  %v7201 = vsel %vm3147, %v7137, %v5848
  %v7202 = vsel %vm3147, %v7138, %v5850
  %v7203 = vsel %vm3147, %v7139, %v5852
  %v7204 = vsel %vm3147, %v7140, %v5854
  %v7205 = vsel %vm3147, %v7141, %v5856
  %v7206 = vsel %vm3147, %v7142, %v5858
  %v7207 = vsel %vm3147, %v7143, %v5860
  %v7208 = vsel %vm3147, %v7144, %v5862
  %v7209 = vsel %vm3147, %v7145, %v5864
  %v7210 = vsel %vm3147, %v7146, %v5866
  %v7211 = vsel %vm3212, %v7147, %v5996
  %v7212 = vsel %vm3212, %v7148, %v5998
  %v7213 = vsel %vm3212, %v7149, %v6000
  %v7214 = vsel %vm3212, %v7150, %v6002
  %v7215 = vsel %vm3212, %v7151, %v6004
  %v7216 = vsel %vm3212, %v7152, %v6006
  %v7217 = vsel %vm3212, %v7153, %v6008
  %v7218 = vsel %vm3212, %v7154, %v6010
  %v7219 = vsel %vm3212, %v7155, %v6012
  %v7220 = vsel %vm3212, %v7156, %v6014
  %v7221 = vsel %vm3212, %v7157, %v6016
  %v7222 = vsel %vm3212, %v7158, %v6018
  %v7223 = vsel %vm3212, %v7159, %v6020
  %v7224 = vsel %vm3212, %v7160, %v6022
  %v7225 = vsel %vm3212, %v7161, %v6024
  %v7226 = vsel %vm3212, %v7162, %v6026
  %v7227 = vsel %vm3212, %v7163, %v6028
  %v7228 = vsel %vm3212, %v7164, %v6030
  %v7229 = vsel %vm3212, %v7165, %v6032
  %v7230 = vsel %vm3212, %v7166, %v6034
  %v7231 = vsel %vm3212, %v7167, %v6036
  %v7232 = vsel %vm3212, %v7168, %v6038
  %v7233 = vsel %vm3212, %v7169, %v6040
  %v7234 = vsel %vm3212, %v7170, %v6042
  %v7235 = vsel %vm3212, %v7171, %v6044
  %v7236 = vsel %vm3212, %v7172, %v6046
  %v7237 = vsel %vm3212, %v7173, %v6048
  %v7238 = vsel %vm3212, %v7174, %v6050
  %v7239 = vsel %vm3212, %v7175, %v6052
  %v7240 = vsel %vm3212, %v7176, %v6054
  %v7241 = vsel %vm3212, %v7177, %v6056
  %v7242 = vsel %vm3212, %v7178, %v6058
  %v7243 = vsel %vm3212, %v7179, %v6060
  %v7244 = vsel %vm3212, %v7180, %v6062
  %v7245 = vsel %vm3212, %v7181, %v6064
  %v7246 = vsel %vm3212, %v7182, %v6066
  %v7247 = vsel %vm3212, %v7183, %v6068
  %v7248 = vsel %vm3212, %v7184, %v6070
  %v7249 = vsel %vm3212, %v7185, %v6072
  %v7250 = vsel %vm3212, %v7186, %v6074
  %v7251 = vsel %vm3212, %v7187, %v6076
  %v7252 = vsel %vm3212, %v7188, %v6078
  %v7253 = vsel %vm3212, %v7189, %v6080
  %v7254 = vsel %vm3212, %v7190, %v6082
  %v7255 = vsel %vm3212, %v7191, %v6084
  %v7256 = vsel %vm3212, %v7192, %v6086
  %v7257 = vsel %vm3212, %v7193, %v6088
  %v7258 = vsel %vm3212, %v7194, %v6090
  %v7259 = vsel %vm3212, %v7195, %v6092
  %v7260 = vsel %vm3212, %v7196, %v6094
  %v7261 = vsel %vm3212, %v7197, %v6096
  %v7262 = vsel %vm3212, %v7198, %v6098
  %v7263 = vsel %vm3212, %v7199, %v6100
  %v7264 = vsel %vm3212, %v7200, %v6102
  %v7265 = vsel %vm3212, %v7201, %v6104
  %v7266 = vsel %vm3212, %v7202, %v6106
  %v7267 = vsel %vm3212, %v7203, %v6108
  %v7268 = vsel %vm3212, %v7204, %v6110
  %v7269 = vsel %vm3212, %v7205, %v6112
  %v7270 = vsel %vm3212, %v7206, %v6114
  %v7271 = vsel %vm3212, %v7207, %v6116
  %v7272 = vsel %vm3212, %v7208, %v6118
  %v7273 = vsel %vm3212, %v7209, %v6120
  %v7274 = vsel %vm3212, %v7210, %v6122
  %v7275 = vsel %vm3277, %v7211, %v6252
  %v7276 = vsel %vm3277, %v7212, %v6254
  %v7277 = vsel %vm3277, %v7213, %v6256
  %v7278 = vsel %vm3277, %v7214, %v6258
  %v7279 = vsel %vm3277, %v7215, %v6260
  %v7280 = vsel %vm3277, %v7216, %v6262
  %v7281 = vsel %vm3277, %v7217, %v6264
  %v7282 = vsel %vm3277, %v7218, %v6266
  %v7283 = vsel %vm3277, %v7219, %v6268
  %v7284 = vsel %vm3277, %v7220, %v6270
  %v7285 = vsel %vm3277, %v7221, %v6272
  %v7286 = vsel %vm3277, %v7222, %v6274
  %v7287 = vsel %vm3277, %v7223, %v6276
  %v7288 = vsel %vm3277, %v7224, %v6278
  %v7289 = vsel %vm3277, %v7225, %v6280
  %v7290 = vsel %vm3277, %v7226, %v6282
  %v7291 = vsel %vm3277, %v7227, %v6284
  %v7292 = vsel %vm3277, %v7228, %v6286
  %v7293 = vsel %vm3277, %v7229, %v6288
  %v7294 = vsel %vm3277, %v7230, %v6290
  %v7295 = vsel %vm3277, %v7231, %v6292
  %v7296 = vsel %vm3277, %v7232, %v6294
  %v7297 = vsel %vm3277, %v7233, %v6296
  %v7298 = vsel %vm3277, %v7234, %v6298
  %v7299 = vsel %vm3277, %v7235, %v6300
  %v7300 = vsel %vm3277, %v7236, %v6302
  %v7301 = vsel %vm3277, %v7237, %v6304
  %v7302 = vsel %vm3277, %v7238, %v6306
  %v7303 = vsel %vm3277, %v7239, %v6308
  %v7304 = vsel %vm3277, %v7240, %v6310
  %v7305 = vsel %vm3277, %v7241, %v6312
  %v7306 = vsel %vm3277, %v7242, %v6314
  %v7307 = vsel %vm3277, %v7243, %v6316
  %v7308 = vsel %vm3277, %v7244, %v6318
  %v7309 = vsel %vm3277, %v7245, %v6320
  %v7310 = vsel %vm3277, %v7246, %v6322
  %v7311 = vsel %vm3277, %v7247, %v6324
  %v7312 = vsel %vm3277, %v7248, %v6326
  %v7313 = vsel %vm3277, %v7249, %v6328
  %v7314 = vsel %vm3277, %v7250, %v6330
  %v7315 = vsel %vm3277, %v7251, %v6332
  %v7316 = vsel %vm3277, %v7252, %v6334
  %v7317 = vsel %vm3277, %v7253, %v6336
  %v7318 = vsel %vm3277, %v7254, %v6338
  %v7319 = vsel %vm3277, %v7255, %v6340
  %v7320 = vsel %vm3277, %v7256, %v6342
  %v7321 = vsel %vm3277, %v7257, %v6344
  %v7322 = vsel %vm3277, %v7258, %v6346
  %v7323 = vsel %vm3277, %v7259, %v6348
  %v7324 = vsel %vm3277, %v7260, %v6350
  %v7325 = vsel %vm3277, %v7261, %v6352
  %v7326 = vsel %vm3277, %v7262, %v6354
  %v7327 = vsel %vm3277, %v7263, %v6356
  %v7328 = vsel %vm3277, %v7264, %v6358
  %v7329 = vsel %vm3277, %v7265, %v6360
  %v7330 = vsel %vm3277, %v7266, %v6362
  %v7331 = vsel %vm3277, %v7267, %v6364
  %v7332 = vsel %vm3277, %v7268, %v6366
  %v7333 = vsel %vm3277, %v7269, %v6368
  %v7334 = vsel %vm3277, %v7270, %v6370
  %v7335 = vsel %vm3277, %v7271, %v6372
  %v7336 = vsel %vm3277, %v7272, %v6374
  %v7337 = vsel %vm3277, %v7273, %v6376
  %v7338 = vsel %vm3277, %v7274, %v6378
  %v7339 = vsel %vm3342, %v7275, %v6508
  %v7340 = vsel %vm3342, %v7276, %v6510
  %v7341 = vsel %vm3342, %v7277, %v6512
  %v7342 = vsel %vm3342, %v7278, %v6514
  %v7343 = vsel %vm3342, %v7279, %v6516
  %v7344 = vsel %vm3342, %v7280, %v6518
  %v7345 = vsel %vm3342, %v7281, %v6520
  %v7346 = vsel %vm3342, %v7282, %v6522
  %v7347 = vsel %vm3342, %v7283, %v6524
  %v7348 = vsel %vm3342, %v7284, %v6526
  %v7349 = vsel %vm3342, %v7285, %v6528
  %v7350 = vsel %vm3342, %v7286, %v6530
  %v7351 = vsel %vm3342, %v7287, %v6532
  %v7352 = vsel %vm3342, %v7288, %v6534
  %v7353 = vsel %vm3342, %v7289, %v6536
  %v7354 = vsel %vm3342, %v7290, %v6538
  %v7355 = vsel %vm3342, %v7291, %v6540
  %v7356 = vsel %vm3342, %v7292, %v6542
  %v7357 = vsel %vm3342, %v7293, %v6544
  %v7358 = vsel %vm3342, %v7294, %v6546
  %v7359 = vsel %vm3342, %v7295, %v6548
  %v7360 = vsel %vm3342, %v7296, %v6550
  %v7361 = vsel %vm3342, %v7297, %v6552
  %v7362 = vsel %vm3342, %v7298, %v6554
  %v7363 = vsel %vm3342, %v7299, %v6556
  %v7364 = vsel %vm3342, %v7300, %v6558
  %v7365 = vsel %vm3342, %v7301, %v6560
  %v7366 = vsel %vm3342, %v7302, %v6562
  %v7367 = vsel %vm3342, %v7303, %v6564
  %v7368 = vsel %vm3342, %v7304, %v6566
  %v7369 = vsel %vm3342, %v7305, %v6568
  %v7370 = vsel %vm3342, %v7306, %v6570
  %v7371 = vsel %vm3342, %v7307, %v6572
  %v7372 = vsel %vm3342, %v7308, %v6574
  %v7373 = vsel %vm3342, %v7309, %v6576
  %v7374 = vsel %vm3342, %v7310, %v6578
  %v7375 = vsel %vm3342, %v7311, %v6580
  %v7376 = vsel %vm3342, %v7312, %v6582
  %v7377 = vsel %vm3342, %v7313, %v6584
  %v7378 = vsel %vm3342, %v7314, %v6586
  %v7379 = vsel %vm3342, %v7315, %v6588
  %v7380 = vsel %vm3342, %v7316, %v6590
  %v7381 = vsel %vm3342, %v7317, %v6592
  %v7382 = vsel %vm3342, %v7318, %v6594
  %v7383 = vsel %vm3342, %v7319, %v6596
  %v7384 = vsel %vm3342, %v7320, %v6598
  %v7385 = vsel %vm3342, %v7321, %v6600
  %v7386 = vsel %vm3342, %v7322, %v6602
  %v7387 = vsel %vm3342, %v7323, %v6604
  %v7388 = vsel %vm3342, %v7324, %v6606
  %v7389 = vsel %vm3342, %v7325, %v6608
  %v7390 = vsel %vm3342, %v7326, %v6610
  %v7391 = vsel %vm3342, %v7327, %v6612
  %v7392 = vsel %vm3342, %v7328, %v6614
  %v7393 = vsel %vm3342, %v7329, %v6616
  %v7394 = vsel %vm3342, %v7330, %v6618
  %v7395 = vsel %vm3342, %v7331, %v6620
  %v7396 = vsel %vm3342, %v7332, %v6622
  %v7397 = vsel %vm3342, %v7333, %v6624
  %v7398 = vsel %vm3342, %v7334, %v6626
  %v7399 = vsel %vm3342, %v7335, %v6628
  %v7400 = vsel %vm3342, %v7336, %v6630
  %v7401 = vsel %vm3342, %v7337, %v6632
  %v7402 = vsel %vm3342, %v7338, %v6634
  %v7403 = vsel %vm3407, %v7339, %v6764
  %v7404 = vsel %vm3407, %v7340, %v6766
  %v7405 = vsel %vm3407, %v7341, %v6768
  %v7406 = vsel %vm3407, %v7342, %v6770
  %v7407 = vsel %vm3407, %v7343, %v6772
  %v7408 = vsel %vm3407, %v7344, %v6774
  %v7409 = vsel %vm3407, %v7345, %v6776
  %v7410 = vsel %vm3407, %v7346, %v6778
  %v7411 = vsel %vm3407, %v7347, %v6780
  %v7412 = vsel %vm3407, %v7348, %v6782
  %v7413 = vsel %vm3407, %v7349, %v6784
  %v7414 = vsel %vm3407, %v7350, %v6786
  %v7415 = vsel %vm3407, %v7351, %v6788
  %v7416 = vsel %vm3407, %v7352, %v6790
  %v7417 = vsel %vm3407, %v7353, %v6792
  %v7418 = vsel %vm3407, %v7354, %v6794
  %v7419 = vsel %vm3407, %v7355, %v6796
  %v7420 = vsel %vm3407, %v7356, %v6798
  %v7421 = vsel %vm3407, %v7357, %v6800
  %v7422 = vsel %vm3407, %v7358, %v6802
  %v7423 = vsel %vm3407, %v7359, %v6804
  %v7424 = vsel %vm3407, %v7360, %v6806
  %v7425 = vsel %vm3407, %v7361, %v6808
  %v7426 = vsel %vm3407, %v7362, %v6810
  %v7427 = vsel %vm3407, %v7363, %v6812
  %v7428 = vsel %vm3407, %v7364, %v6814
  %v7429 = vsel %vm3407, %v7365, %v6816
  %v7430 = vsel %vm3407, %v7366, %v6818
  %v7431 = vsel %vm3407, %v7367, %v6820
  %v7432 = vsel %vm3407, %v7368, %v6822
  %v7433 = vsel %vm3407, %v7369, %v6824
  %v7434 = vsel %vm3407, %v7370, %v6826
  %v7435 = vsel %vm3407, %v7371, %v6828
  %v7436 = vsel %vm3407, %v7372, %v6830
  %v7437 = vsel %vm3407, %v7373, %v6832
  %v7438 = vsel %vm3407, %v7374, %v6834
  %v7439 = vsel %vm3407, %v7375, %v6836
  %v7440 = vsel %vm3407, %v7376, %v6838
  %v7441 = vsel %vm3407, %v7377, %v6840
  %v7442 = vsel %vm3407, %v7378, %v6842
  %v7443 = vsel %vm3407, %v7379, %v6844
  %v7444 = vsel %vm3407, %v7380, %v6846
  %v7445 = vsel %vm3407, %v7381, %v6848
  %v7446 = vsel %vm3407, %v7382, %v6850
  %v7447 = vsel %vm3407, %v7383, %v6852
  %v7448 = vsel %vm3407, %v7384, %v6854
  %v7449 = vsel %vm3407, %v7385, %v6856
  %v7450 = vsel %vm3407, %v7386, %v6858
  %v7451 = vsel %vm3407, %v7387, %v6860
  %v7452 = vsel %vm3407, %v7388, %v6862
  %v7453 = vsel %vm3407, %v7389, %v6864
  %v7454 = vsel %vm3407, %v7390, %v6866
  %v7455 = vsel %vm3407, %v7391, %v6868
  %v7456 = vsel %vm3407, %v7392, %v6870
  %v7457 = vsel %vm3407, %v7393, %v6872
  %v7458 = vsel %vm3407, %v7394, %v6874
  %v7459 = vsel %vm3407, %v7395, %v6876
  %v7460 = vsel %vm3407, %v7396, %v6878
  %v7461 = vsel %vm3407, %v7397, %v6880
  %v7462 = vsel %vm3407, %v7398, %v6882
  %v7463 = vsel %vm3407, %v7399, %v6884
  %v7464 = vsel %vm3407, %v7400, %v6886
  %v7465 = vsel %vm3407, %v7401, %v6888
  %v7466 = vsel %vm3407, %v7402, %v6890
  %v7467 = vld [vmem:[%s4] sm:$0xff]
  %v7468 = vld [vmem:[%s4 + $0x8] sm:$0xff]
  %v7469 = vld [vmem:[%s4 + $0x10] sm:$0xff]
  %v7470 = vld [vmem:[%s4 + $0x18] sm:$0xff]
  %v7471 = vld [vmem:[%s4 + $0x20] sm:$0xf]
  %v7473 = vsel %vm3477, %v7403, 0
  %v7476 = vsel %vm3477, %v7404, 0
  %v7479 = vsel %vm3477, %v7405, 0
  %v7482 = vsel %vm3477, %v7406, 0
  %v7485 = vsel %vm3477, %v7407, 0
  %v7488 = vsel %vm3477, %v7408, 0
  %v7491 = vsel %vm3477, %v7409, 0
  %v7494 = vsel %vm3477, %v7410, 0
  %v7497 = vsel %vm3477, %v7411, 0
  %v7500 = vsel %vm3477, %v7412, 0
  %v7503 = vsel %vm3477, %v7413, 0
  %v7506 = vsel %vm3477, %v7414, 0
  %v7509 = vsel %vm3477, %v7415, 0
  %v7512 = vsel %vm3477, %v7416, 0
  %v7515 = vsel %vm3477, %v7417, 0
  %v7518 = vsel %vm3477, %v7418, 0
  %v7521 = vsel %vm3477, %v7419, 0
  %v7524 = vsel %vm3477, %v7420, 0
  %v7527 = vsel %vm3477, %v7421, 0
  %v7530 = vsel %vm3477, %v7422, 0
  %v7533 = vsel %vm3477, %v7423, 0
  %v7536 = vsel %vm3477, %v7424, 0
  %v7539 = vsel %vm3477, %v7425, 0
  %v7542 = vsel %vm3477, %v7426, 0
  %v7545 = vsel %vm3477, %v7427, 0
  %v7548 = vsel %vm3477, %v7428, 0
  %v7551 = vsel %vm3477, %v7429, 0
  %v7554 = vsel %vm3477, %v7430, 0
  %v7557 = vsel %vm3477, %v7431, 0
  %v7560 = vsel %vm3477, %v7432, 0
  %v7563 = vsel %vm3477, %v7433, 0
  %v7566 = vsel %vm3477, %v7434, 0
  %v7569 = vsel %vm3477, %v7435, 0
  %v7572 = vsel %vm3477, %v7436, 0
  %v7575 = vsel %vm3477, %v7437, 0
  %v7578 = vsel %vm3477, %v7438, 0
  %v7581 = vsel %vm3477, %v7439, 0
  %v7584 = vsel %vm3477, %v7440, 0
  %v7587 = vsel %vm3477, %v7441, 0
  %v7590 = vsel %vm3477, %v7442, 0
  %v7593 = vsel %vm3477, %v7443, 0
  %v7596 = vsel %vm3477, %v7444, 0
  %v7599 = vsel %vm3477, %v7445, 0
  %v7602 = vsel %vm3477, %v7446, 0
  %v7605 = vsel %vm3477, %v7447, 0
  %v7608 = vsel %vm3477, %v7448, 0
  %v7611 = vsel %vm3477, %v7449, 0
  %v7614 = vsel %vm3477, %v7450, 0
  %v7617 = vsel %vm3477, %v7451, 0
  %v7620 = vsel %vm3477, %v7452, 0
  %v7623 = vsel %vm3477, %v7453, 0
  %v7626 = vsel %vm3477, %v7454, 0
  %v7629 = vsel %vm3477, %v7455, 0
  %v7632 = vsel %vm3477, %v7456, 0
  %v7635 = vsel %vm3477, %v7457, 0
  %v7638 = vsel %vm3477, %v7458, 0
  %v7641 = vsel %vm3477, %v7459, 0
  %v7644 = vsel %vm3477, %v7460, 0
  %v7647 = vsel %vm3477, %v7461, 0
  %v7650 = vsel %vm3477, %v7462, 0
  %v7653 = vsel %vm3477, %v7463, 0
  %v7656 = vsel %vm3477, %v7464, 0
  %v7659 = vsel %vm3477, %v7465, 0
  %v7662 = vsel %vm3477, %v7466, 0
  %v7665 = vsel %vm3670, %v7471, 0
  %7667 = vmatprep.subr.mxu0 0.0
  %7668 = vmatpush1.msra.mxu0 %v7467
  %7669 = vmatprep.subr.mxu0 0.0
  %7670 = vmatpush1.msra.mxu0 %v7468
  %7671 = vmatprep.subr.mxu0 0.0
  %7672 = vmatpush1.msra.mxu0 %v7469
  %7673 = vmatprep.subr.mxu0 0.0
  %7674 = vmatpush1.msra.mxu0 %v7470
  %7675 = vmatprep.subr.mxu0 0.0
  %7676 = vmatpush1.msra.mxu0 %v7665
  %7677 = vmatprep.subr.mxu0 0.0
  %7678 = vmatpush1.msra.mxu0 0.0
  %7679 = vmatprep.subr.mxu0 0.0
  %7680 = vmatpush1.msra.mxu0 0.0
  %7681 = vmatprep.subr.mxu0 0.0
  %7682 = vmatpush1.msra.mxu0 0.0
  %7683 = vmatprep.subr.mxu0 0.0
  %7684 = vmatpush1.msra.mxu0 0.0
  %7685 = vmatprep.subr.mxu0 0.0
  %7686 = vmatpush1.msra.mxu0 0.0
  %7687 = vmatprep.subr.mxu0 0.0
  %7688 = vmatpush1.msra.mxu0 0.0
  %7689 = vmatprep.subr.mxu0 0.0
  %7690 = vmatpush1.msra.mxu0 0.0
  %7691 = vmatprep.subr.mxu0 0.0
  %7692 = vmatpush1.msra.mxu0 0.0
  %7693 = vmatprep.subr.mxu0 0.0
  %7694 = vmatpush1.msra.mxu0 0.0
  %7695 = vmatprep.subr.mxu0 0.0
  %7696 = vmatpush1.msra.mxu0 0.0
  %7697 = vmatprep.subr.mxu0 0.0
  %7698 = vmatpush1.msra.mxu0 0.0
  %7699 = vmatprep.subr.mxu0 0.0
  %7700 = vmatpush1.msra.mxu0 0.0
  %7701 = vmatprep.subr.mxu0 0.0
  %7702 = vmatpush1.msra.mxu0 0.0
  %7703 = vmatprep.subr.mxu0 0.0
  %7704 = vmatpush1.msra.mxu0 0.0
  %7705 = vmatprep.subr.mxu0 0.0
  %7706 = vmatpush1.msra.mxu0 0.0
  %7707 = vmatprep.subr.mxu0 0.0
  %7708 = vmatpush1.msra.mxu0 0.0
  %7709 = vmatprep.subr.mxu0 0.0
  %7710 = vmatpush1.msra.mxu0 0.0
  %7711 = vmatprep.subr.mxu0 0.0
  %7712 = vmatpush1.msra.mxu0 0.0
  %7713 = vmatprep.subr.mxu0 0.0
  %7714 = vmatpush1.msra.mxu0 0.0
  %7715 = vmatprep.subr.mxu0 0.0
  %7716 = vmatpush1.msra.mxu0 0.0
  %7717 = vmatprep.subr.mxu0 0.0
  %7718 = vmatpush1.msra.mxu0 0.0
  %7719 = vmatprep.subr.mxu0 0.0
  %7720 = vmatpush1.msra.mxu0 0.0
  %7721 = vmatprep.subr.mxu0 0.0
  %7722 = vmatpush1.msra.mxu0 0.0
  %7723 = vmatprep.subr.mxu0 0.0
  %7724 = vmatpush1.msra.mxu0 0.0
  %7725 = vmatprep.subr.mxu0 0.0
  %7726 = vmatpush1.msra.mxu0 0.0
  %7727 = vmatprep.subr.mxu0 0.0
  %7728 = vmatpush1.msra.mxu0 0.0
  %7729 = vmatprep.subr.mxu0 0.0
  %7730 = vmatpush1.msra.mxu0 0.0
  %7731 = vmatprep.mubr.f32.mxu0 0.0
  %7732 = vmatmul.mubr.f32.gmra.mrb[0].mxu0 %v7473
  %v7733 = vpop.f32.mrb[0].mxu0
  %v7734 = vadd.f32 0.0, %v7733
  %v7735 = vpop.f32.mrb[0].mxu0
  %7736 = vmatprep.mubr.f32.mxu0 0.0
  %7737 = vmatmul.mubr.f32.gmra.mrb[0].mxu0 %v7476
  %v7738 = vpop.f32.mrb[0].mxu0
  %v7739 = vadd.f32 0.0, %v7738
  %v7740 = vpop.f32.mrb[0].mxu0
  %7741 = vmatprep.mubr.f32.mxu0 0.0
  %7742 = vmatmul.mubr.f32.gmra.mrb[0].mxu0 %v7479
  %v7743 = vpop.f32.mrb[0].mxu0
  %v7744 = vadd.f32 0.0, %v7743
  %v7745 = vpop.f32.mrb[0].mxu0
  %7746 = vmatprep.mubr.f32.mxu0 0.0
  %7747 = vmatmul.mubr.f32.gmra.mrb[0].mxu0 %v7482
  %v7748 = vpop.f32.mrb[0].mxu0
  %v7749 = vadd.f32 0.0, %v7748
  %v7750 = vpop.f32.mrb[0].mxu0
  %7751 = vmatprep.mubr.f32.mxu0 0.0
  %7752 = vmatmul.mubr.f32.gmra.mrb[0].mxu0 %v7485
  %v7753 = vpop.f32.mrb[0].mxu0
  %v7754 = vadd.f32 0.0, %v7753
  %v7755 = vpop.f32.mrb[0].mxu0
  %7756 = vmatprep.mubr.f32.mxu0 0.0
  %7757 = vmatmul.mubr.f32.gmra.mrb[0].mxu0 %v7488
  %v7758 = vpop.f32.mrb[0].mxu0
  %v7759 = vadd.f32 0.0, %v7758
  %v7760 = vpop.f32.mrb[0].mxu0
  %7761 = vmatprep.mubr.f32.mxu0 0.0
  %7762 = vmatmul.mubr.f32.gmra.mrb[0].mxu0 %v7491
  %v7763 = vpop.f32.mrb[0].mxu0
  %v7764 = vadd.f32 0.0, %v7763
  %v7765 = vpop.f32.mrb[0].mxu0
  %7766 = vmatprep.mubr.f32.mxu0 0.0
  %7767 = vmatmul.mubr.f32.gmra.mrb[0].mxu0 %v7494
  %v7768 = vpop.f32.mrb[0].mxu0
  %v7769 = vadd.f32 0.0, %v7768
  %v7770 = vpop.f32.mrb[0].mxu0
  %7771 = vmatprep.mubr.f32.mxu0 0.0
  %7772 = vmatmul.mubr.f32.gmra.mrb[0].mxu0 %v7497
  %v7773 = vpop.f32.mrb[0].mxu0
  %v7774 = vadd.f32 0.0, %v7773
  %v7775 = vpop.f32.mrb[0].mxu0
  %7776 = vmatprep.mubr.f32.mxu0 0.0
  %7777 = vmatmul.mubr.f32.gmra.mrb[0].mxu0 %v7500
  %v7778 = vpop.f32.mrb[0].mxu0
  %v7779 = vadd.f32 0.0, %v7778
  %v7780 = vpop.f32.mrb[0].mxu0
  %7781 = vmatprep.mubr.f32.mxu0 0.0
  %7782 = vmatmul.mubr.f32.gmra.mrb[0].mxu0 %v7503
  %v7783 = vpop.f32.mrb[0].mxu0
  %v7784 = vadd.f32 0.0, %v7783
  %v7785 = vpop.f32.mrb[0].mxu0
  %7786 = vmatprep.mubr.f32.mxu0 0.0
  %7787 = vmatmul.mubr.f32.gmra.mrb[0].mxu0 %v7506
  %v7788 = vpop.f32.mrb[0].mxu0
  %v7789 = vadd.f32 0.0, %v7788
  %v7790 = vpop.f32.mrb[0].mxu0
  %7791 = vmatprep.mubr.f32.mxu0 0.0
  %7792 = vmatmul.mubr.f32.gmra.mrb[0].mxu0 %v7509
  %v7793 = vpop.f32.mrb[0].mxu0
  %v7794 = vadd.f32 0.0, %v7793
  %v7795 = vpop.f32.mrb[0].mxu0
  %7796 = vmatprep.mubr.f32.mxu0 0.0
  %7797 = vmatmul.mubr.f32.gmra.mrb[0].mxu0 %v7512
  %v7798 = vpop.f32.mrb[0].mxu0
  %v7799 = vadd.f32 0.0, %v7798
  %v7800 = vpop.f32.mrb[0].mxu0
  %7801 = vmatprep.mubr.f32.mxu0 0.0
  %7802 = vmatmul.mubr.f32.gmra.mrb[0].mxu0 %v7515
  %v7803 = vpop.f32.mrb[0].mxu0
  %v7804 = vadd.f32 0.0, %v7803
  %v7805 = vpop.f32.mrb[0].mxu0
  %7806 = vmatprep.mubr.f32.mxu0 0.0
  %7807 = vmatmul.mubr.f32.gmra.mrb[0].mxu0 %v7518
  %v7808 = vpop.f32.mrb[0].mxu0
  %v7809 = vadd.f32 0.0, %v7808
  %v7810 = vpop.f32.mrb[0].mxu0
  %7811 = vmatprep.mubr.f32.mxu0 0.0
  %7812 = vmatmul.mubr.f32.gmra.mrb[0].mxu0 %v7521
  %v7813 = vpop.f32.mrb[0].mxu0
  %v7814 = vadd.f32 0.0, %v7813
  %v7815 = vpop.f32.mrb[0].mxu0
  %7816 = vmatprep.mubr.f32.mxu0 0.0
  %7817 = vmatmul.mubr.f32.gmra.mrb[0].mxu0 %v7524
  %v7818 = vpop.f32.mrb[0].mxu0
  %v7819 = vadd.f32 0.0, %v7818
  %v7820 = vpop.f32.mrb[0].mxu0
  %7821 = vmatprep.mubr.f32.mxu0 0.0
  %7822 = vmatmul.mubr.f32.gmra.mrb[0].mxu0 %v7527
  %v7823 = vpop.f32.mrb[0].mxu0
  %v7824 = vadd.f32 0.0, %v7823
  %v7825 = vpop.f32.mrb[0].mxu0
  %7826 = vmatprep.mubr.f32.mxu0 0.0
  %7827 = vmatmul.mubr.f32.gmra.mrb[0].mxu0 %v7530
  %v7828 = vpop.f32.mrb[0].mxu0
  %v7829 = vadd.f32 0.0, %v7828
  %v7830 = vpop.f32.mrb[0].mxu0
  %7831 = vmatprep.mubr.f32.mxu0 0.0
  %7832 = vmatmul.mubr.f32.gmra.mrb[0].mxu0 %v7533
  %v7833 = vpop.f32.mrb[0].mxu0
  %v7834 = vadd.f32 0.0, %v7833
  %v7835 = vpop.f32.mrb[0].mxu0
  %7836 = vmatprep.mubr.f32.mxu0 0.0
  %7837 = vmatmul.mubr.f32.gmra.mrb[0].mxu0 %v7536
  %v7838 = vpop.f32.mrb[0].mxu0
  %v7839 = vadd.f32 0.0, %v7838
  %v7840 = vpop.f32.mrb[0].mxu0
  %7841 = vmatprep.mubr.f32.mxu0 0.0
  %7842 = vmatmul.mubr.f32.gmra.mrb[0].mxu0 %v7539
  %v7843 = vpop.f32.mrb[0].mxu0
  %v7844 = vadd.f32 0.0, %v7843
  %v7845 = vpop.f32.mrb[0].mxu0
  %7846 = vmatprep.mubr.f32.mxu0 0.0
  %7847 = vmatmul.mubr.f32.gmra.mrb[0].mxu0 %v7542
  %v7848 = vpop.f32.mrb[0].mxu0
  %v7849 = vadd.f32 0.0, %v7848
  %v7850 = vpop.f32.mrb[0].mxu0
  %7851 = vmatprep.mubr.f32.mxu0 0.0
  %7852 = vmatmul.mubr.f32.gmra.mrb[0].mxu0 %v7545
  %v7853 = vpop.f32.mrb[0].mxu0
  %v7854 = vadd.f32 0.0, %v7853
  %v7855 = vpop.f32.mrb[0].mxu0
  %7856 = vmatprep.mubr.f32.mxu0 0.0
  %7857 = vmatmul.mubr.f32.gmra.mrb[0].mxu0 %v7548
  %v7858 = vpop.f32.mrb[0].mxu0
  %v7859 = vadd.f32 0.0, %v7858
  %v7860 = vpop.f32.mrb[0].mxu0
  %7861 = vmatprep.mubr.f32.mxu0 0.0
  %7862 = vmatmul.mubr.f32.gmra.mrb[0].mxu0 %v7551
  %v7863 = vpop.f32.mrb[0].mxu0
  %v7864 = vadd.f32 0.0, %v7863
  %v7865 = vpop.f32.mrb[0].mxu0
  %7866 = vmatprep.mubr.f32.mxu0 0.0
  %7867 = vmatmul.mubr.f32.gmra.mrb[0].mxu0 %v7554
  %v7868 = vpop.f32.mrb[0].mxu0
  %v7869 = vadd.f32 0.0, %v7868
  %v7870 = vpop.f32.mrb[0].mxu0
  %7871 = vmatprep.mubr.f32.mxu0 0.0
  %7872 = vmatmul.mubr.f32.gmra.mrb[0].mxu0 %v7557
  %v7873 = vpop.f32.mrb[0].mxu0
  %v7874 = vadd.f32 0.0, %v7873
  %v7875 = vpop.f32.mrb[0].mxu0
  %7876 = vmatprep.mubr.f32.mxu0 0.0
  %7877 = vmatmul.mubr.f32.gmra.mrb[0].mxu0 %v7560
  %v7878 = vpop.f32.mrb[0].mxu0
  %v7879 = vadd.f32 0.0, %v7878
  %v7880 = vpop.f32.mrb[0].mxu0
  %7881 = vmatprep.mubr.f32.mxu0 0.0
  %7882 = vmatmul.mubr.f32.gmra.mrb[0].mxu0 %v7563
  %v7883 = vpop.f32.mrb[0].mxu0
  %v7884 = vadd.f32 0.0, %v7883
  %v7885 = vpop.f32.mrb[0].mxu0
  %7886 = vmatprep.mubr.f32.mxu0 0.0
  %7887 = vmatmul.mubr.f32.gmra.mrb[0].mxu0 %v7566
  %v7888 = vpop.f32.mrb[0].mxu0
  %v7889 = vadd.f32 0.0, %v7888
  %v7890 = vpop.f32.mrb[0].mxu0
  %7891 = vmatprep.mubr.f32.mxu0 0.0
  %7892 = vmatmul.mubr.f32.gmra.mrb[0].mxu0 %v7569
  %v7893 = vpop.f32.mrb[0].mxu0
  %v7894 = vadd.f32 0.0, %v7893
  %v7895 = vpop.f32.mrb[0].mxu0
  %7896 = vmatprep.mubr.f32.mxu0 0.0
  %7897 = vmatmul.mubr.f32.gmra.mrb[0].mxu0 %v7572
  %v7898 = vpop.f32.mrb[0].mxu0
  %v7899 = vadd.f32 0.0, %v7898
  %v7900 = vpop.f32.mrb[0].mxu0
  %7901 = vmatprep.mubr.f32.mxu0 0.0
  %7902 = vmatmul.mubr.f32.gmra.mrb[0].mxu0 %v7575
  %v7903 = vpop.f32.mrb[0].mxu0
  %v7904 = vadd.f32 0.0, %v7903
  %v7905 = vpop.f32.mrb[0].mxu0
  %7906 = vmatprep.mubr.f32.mxu0 0.0
  %7907 = vmatmul.mubr.f32.gmra.mrb[0].mxu0 %v7578
  %v7908 = vpop.f32.mrb[0].mxu0
  %v7909 = vadd.f32 0.0, %v7908
  %v7910 = vpop.f32.mrb[0].mxu0
  %7911 = vmatprep.mubr.f32.mxu0 0.0
  %7912 = vmatmul.mubr.f32.gmra.mrb[0].mxu0 %v7581
  %v7913 = vpop.f32.mrb[0].mxu0
  %v7914 = vadd.f32 0.0, %v7913
  %v7915 = vpop.f32.mrb[0].mxu0
  %7916 = vmatprep.mubr.f32.mxu0 0.0
  %7917 = vmatmul.mubr.f32.gmra.mrb[0].mxu0 %v7584
  %v7918 = vpop.f32.mrb[0].mxu0
  %v7919 = vadd.f32 0.0, %v7918
  %v7920 = vpop.f32.mrb[0].mxu0
  %7921 = vmatprep.mubr.f32.mxu0 0.0
  %7922 = vmatmul.mubr.f32.gmra.mrb[0].mxu0 %v7587
  %v7923 = vpop.f32.mrb[0].mxu0
  %v7924 = vadd.f32 0.0, %v7923
  %v7925 = vpop.f32.mrb[0].mxu0
  %7926 = vmatprep.mubr.f32.mxu0 0.0
  %7927 = vmatmul.mubr.f32.gmra.mrb[0].mxu0 %v7590
  %v7928 = vpop.f32.mrb[0].mxu0
  %v7929 = vadd.f32 0.0, %v7928
  %v7930 = vpop.f32.mrb[0].mxu0
  %7931 = vmatprep.mubr.f32.mxu0 0.0
  %7932 = vmatmul.mubr.f32.gmra.mrb[0].mxu0 %v7593
  %v7933 = vpop.f32.mrb[0].mxu0
  %v7934 = vadd.f32 0.0, %v7933
  %v7935 = vpop.f32.mrb[0].mxu0
  %7936 = vmatprep.mubr.f32.mxu0 0.0
  %7937 = vmatmul.mubr.f32.gmra.mrb[0].mxu0 %v7596
  %v7938 = vpop.f32.mrb[0].mxu0
  %v7939 = vadd.f32 0.0, %v7938
  %v7940 = vpop.f32.mrb[0].mxu0
  %7941 = vmatprep.mubr.f32.mxu0 0.0
  %7942 = vmatmul.mubr.f32.gmra.mrb[0].mxu0 %v7599
  %v7943 = vpop.f32.mrb[0].mxu0
  %v7944 = vadd.f32 0.0, %v7943
  %v7945 = vpop.f32.mrb[0].mxu0
  %7946 = vmatprep.mubr.f32.mxu0 0.0
  %7947 = vmatmul.mubr.f32.gmra.mrb[0].mxu0 %v7602
  %v7948 = vpop.f32.mrb[0].mxu0
  %v7949 = vadd.f32 0.0, %v7948
  %v7950 = vpop.f32.mrb[0].mxu0
  %7951 = vmatprep.mubr.f32.mxu0 0.0
  %7952 = vmatmul.mubr.f32.gmra.mrb[0].mxu0 %v7605
  %v7953 = vpop.f32.mrb[0].mxu0
  %v7954 = vadd.f32 0.0, %v7953
  %v7955 = vpop.f32.mrb[0].mxu0
  %7956 = vmatprep.mubr.f32.mxu0 0.0
  %7957 = vmatmul.mubr.f32.gmra.mrb[0].mxu0 %v7608
  %v7958 = vpop.f32.mrb[0].mxu0
  %v7959 = vadd.f32 0.0, %v7958
  %v7960 = vpop.f32.mrb[0].mxu0
  %7961 = vmatprep.mubr.f32.mxu0 0.0
  %7962 = vmatmul.mubr.f32.gmra.mrb[0].mxu0 %v7611
  %v7963 = vpop.f32.mrb[0].mxu0
  %v7964 = vadd.f32 0.0, %v7963
  %v7965 = vpop.f32.mrb[0].mxu0
  %7966 = vmatprep.mubr.f32.mxu0 0.0
  %7967 = vmatmul.mubr.f32.gmra.mrb[0].mxu0 %v7614
  %v7968 = vpop.f32.mrb[0].mxu0
  %v7969 = vadd.f32 0.0, %v7968
  %v7970 = vpop.f32.mrb[0].mxu0
  %7971 = vmatprep.mubr.f32.mxu0 0.0
  %7972 = vmatmul.mubr.f32.gmra.mrb[0].mxu0 %v7617
  %v7973 = vpop.f32.mrb[0].mxu0
  %v7974 = vadd.f32 0.0, %v7973
  %v7975 = vpop.f32.mrb[0].mxu0
  %7976 = vmatprep.mubr.f32.mxu0 0.0
  %7977 = vmatmul.mubr.f32.gmra.mrb[0].mxu0 %v7620
  %v7978 = vpop.f32.mrb[0].mxu0
  %v7979 = vadd.f32 0.0, %v7978
  %v7980 = vpop.f32.mrb[0].mxu0
  %7981 = vmatprep.mubr.f32.mxu0 0.0
  %7982 = vmatmul.mubr.f32.gmra.mrb[0].mxu0 %v7623
  %v7983 = vpop.f32.mrb[0].mxu0
  %v7984 = vadd.f32 0.0, %v7983
  %v7985 = vpop.f32.mrb[0].mxu0
  %7986 = vmatprep.mubr.f32.mxu0 0.0
  %7987 = vmatmul.mubr.f32.gmra.mrb[0].mxu0 %v7626
  %v7988 = vpop.f32.mrb[0].mxu0
  %v7989 = vadd.f32 0.0, %v7988
  %v7990 = vpop.f32.mrb[0].mxu0
  %7991 = vmatprep.mubr.f32.mxu0 0.0
  %7992 = vmatmul.mubr.f32.gmra.mrb[0].mxu0 %v7629
  %v7993 = vpop.f32.mrb[0].mxu0
  %v7994 = vadd.f32 0.0, %v7993
  %v7995 = vpop.f32.mrb[0].mxu0
  %7996 = vmatprep.mubr.f32.mxu0 0.0
  %7997 = vmatmul.mubr.f32.gmra.mrb[0].mxu0 %v7632
  %v7998 = vpop.f32.mrb[0].mxu0
  %v7999 = vadd.f32 0.0, %v7998
  %v8000 = vpop.f32.mrb[0].mxu0
  %8001 = vmatprep.mubr.f32.mxu0 0.0
  %8002 = vmatmul.mubr.f32.gmra.mrb[0].mxu0 %v7635
  %v8003 = vpop.f32.mrb[0].mxu0
  %v8004 = vadd.f32 0.0, %v8003
  %v8005 = vpop.f32.mrb[0].mxu0
  %8006 = vmatprep.mubr.f32.mxu0 0.0
  %8007 = vmatmul.mubr.f32.gmra.mrb[0].mxu0 %v7638
  %v8008 = vpop.f32.mrb[0].mxu0
  %v8009 = vadd.f32 0.0, %v8008
  %v8010 = vpop.f32.mrb[0].mxu0
  %8011 = vmatprep.mubr.f32.mxu0 0.0
  %8012 = vmatmul.mubr.f32.gmra.mrb[0].mxu0 %v7641
  %v8013 = vpop.f32.mrb[0].mxu0
  %v8014 = vadd.f32 0.0, %v8013
  %v8015 = vpop.f32.mrb[0].mxu0
  %8016 = vmatprep.mubr.f32.mxu0 0.0
  %8017 = vmatmul.mubr.f32.gmra.mrb[0].mxu0 %v7644
  %v8018 = vpop.f32.mrb[0].mxu0
  %v8019 = vadd.f32 0.0, %v8018
  %v8020 = vpop.f32.mrb[0].mxu0
  %8021 = vmatprep.mubr.f32.mxu0 0.0
  %8022 = vmatmul.mubr.f32.gmra.mrb[0].mxu0 %v7647
  %v8023 = vpop.f32.mrb[0].mxu0
  %v8024 = vadd.f32 0.0, %v8023
  %v8025 = vpop.f32.mrb[0].mxu0
  %8026 = vmatprep.mubr.f32.mxu0 0.0
  %8027 = vmatmul.mubr.f32.gmra.mrb[0].mxu0 %v7650
  %v8028 = vpop.f32.mrb[0].mxu0
  %v8029 = vadd.f32 0.0, %v8028
  %v8030 = vpop.f32.mrb[0].mxu0
  %8031 = vmatprep.mubr.f32.mxu0 0.0
  %8032 = vmatmul.mubr.f32.gmra.mrb[0].mxu0 %v7653
  %v8033 = vpop.f32.mrb[0].mxu0
  %v8034 = vadd.f32 0.0, %v8033
  %v8035 = vpop.f32.mrb[0].mxu0
  %8036 = vmatprep.mubr.f32.mxu0 0.0
  %8037 = vmatmul.mubr.f32.gmra.mrb[0].mxu0 %v7656
  %v8038 = vpop.f32.mrb[0].mxu0
  %v8039 = vadd.f32 0.0, %v8038
  %v8040 = vpop.f32.mrb[0].mxu0
  %8041 = vmatprep.mubr.f32.mxu0 0.0
  %8042 = vmatmul.mubr.f32.gmra.mrb[0].mxu0 %v7659
  %v8043 = vpop.f32.mrb[0].mxu0
  %v8044 = vadd.f32 0.0, %v8043
  %v8045 = vpop.f32.mrb[0].mxu0
  %8046 = vmatprep.mubr.f32.mxu0 0.0
  %8047 = vmatmul.mubr.f32.gmra.mrb[0].mxu0 %v7662
  %v8048 = vpop.f32.mrb[0].mxu0
  %v8049 = vadd.f32 0.0, %v8048
  %v8050 = vpop.f32.mrb[0].mxu0
  %8051 = vdwg.mxu0
  %v8052 = vld [vmem:[%s5] sm:$0x1]
  %v8054 = vlaneseq
  %v8055 = vshrl.u32 %v8054, 7
  %v8056 = vsub.s32 0, %v8055
  %v8057 = vrot.slane %v8052, %v8056
  %v8059 = vmul.f32 %v7734, %v8057
  %v8060 = vmul.f32 %v7739, %v8057
  %v8061 = vmul.f32 %v7744, %v8057
  %v8062 = vmul.f32 %v7749, %v8057
  %v8063 = vmul.f32 %v7754, %v8057
  %v8064 = vmul.f32 %v7759, %v8057
  %v8065 = vmul.f32 %v7764, %v8057
  %v8066 = vmul.f32 %v7769, %v8057
  %v8067 = vmul.f32 %v7774, %v8057
  %v8068 = vmul.f32 %v7779, %v8057
  %v8069 = vmul.f32 %v7784, %v8057
  %v8070 = vmul.f32 %v7789, %v8057
  %v8071 = vmul.f32 %v7794, %v8057
  %v8072 = vmul.f32 %v7799, %v8057
  %v8073 = vmul.f32 %v7804, %v8057
  %v8074 = vmul.f32 %v7809, %v8057
  %v8075 = vmul.f32 %v7814, %v8057
  %v8076 = vmul.f32 %v7819, %v8057
  %v8077 = vmul.f32 %v7824, %v8057
  %v8078 = vmul.f32 %v7829, %v8057
  %v8079 = vmul.f32 %v7834, %v8057
  %v8080 = vmul.f32 %v7839, %v8057
  %v8081 = vmul.f32 %v7844, %v8057
  %v8082 = vmul.f32 %v7849, %v8057
  %v8083 = vmul.f32 %v7854, %v8057
  %v8084 = vmul.f32 %v7859, %v8057
  %v8085 = vmul.f32 %v7864, %v8057
  %v8086 = vmul.f32 %v7869, %v8057
  %v8087 = vmul.f32 %v7874, %v8057
  %v8088 = vmul.f32 %v7879, %v8057
  %v8089 = vmul.f32 %v7884, %v8057
  %v8090 = vmul.f32 %v7889, %v8057
  %v8091 = vmul.f32 %v7894, %v8057
  %v8092 = vmul.f32 %v7899, %v8057
  %v8093 = vmul.f32 %v7904, %v8057
  %v8094 = vmul.f32 %v7909, %v8057
  %v8095 = vmul.f32 %v7914, %v8057
  %v8096 = vmul.f32 %v7919, %v8057
  %v8097 = vmul.f32 %v7924, %v8057
  %v8098 = vmul.f32 %v7929, %v8057
  %v8099 = vmul.f32 %v7934, %v8057
  %v8100 = vmul.f32 %v7939, %v8057
  %v8101 = vmul.f32 %v7944, %v8057
  %v8102 = vmul.f32 %v7949, %v8057
  %v8103 = vmul.f32 %v7954, %v8057
  %v8104 = vmul.f32 %v7959, %v8057
  %v8105 = vmul.f32 %v7964, %v8057
  %v8106 = vmul.f32 %v7969, %v8057
  %v8107 = vmul.f32 %v7974, %v8057
  %v8108 = vmul.f32 %v7979, %v8057
  %v8109 = vmul.f32 %v7984, %v8057
  %v8110 = vmul.f32 %v7989, %v8057
  %v8111 = vmul.f32 %v7994, %v8057
  %v8112 = vmul.f32 %v7999, %v8057
  %v8113 = vmul.f32 %v8004, %v8057
  %v8114 = vmul.f32 %v8009, %v8057
  %v8115 = vmul.f32 %v8014, %v8057
  %v8116 = vmul.f32 %v8019, %v8057
  %v8117 = vmul.f32 %v8024, %v8057
  %v8118 = vmul.f32 %v8029, %v8057
  %v8119 = vmul.f32 %v8034, %v8057
  %v8120 = vmul.f32 %v8039, %v8057
  %v8121 = vmul.f32 %v8044, %v8057
  %v8122 = vmul.f32 %v8049, %v8057
  %v8123 = vld [vmem:[%s6] sm:$0x1]
  %v8125 = vlaneseq
  %v8126 = vshrl.u32 %v8125, 7
  %v8127 = vsub.s32 0, %v8126
  %v8128 = vrot.slane %v8123, %v8127
  %v8130 = vadd.f32 %v8059, %v8128
  %v8131 = vadd.f32 %v8060, %v8128
  %v8132 = vadd.f32 %v8061, %v8128
  %v8133 = vadd.f32 %v8062, %v8128
  %v8134 = vadd.f32 %v8063, %v8128
  %v8135 = vadd.f32 %v8064, %v8128
  %v8136 = vadd.f32 %v8065, %v8128
  %v8137 = vadd.f32 %v8066, %v8128
  %v8138 = vadd.f32 %v8067, %v8128
  %v8139 = vadd.f32 %v8068, %v8128
  %v8140 = vadd.f32 %v8069, %v8128
  %v8141 = vadd.f32 %v8070, %v8128
  %v8142 = vadd.f32 %v8071, %v8128
  %v8143 = vadd.f32 %v8072, %v8128
  %v8144 = vadd.f32 %v8073, %v8128
  %v8145 = vadd.f32 %v8074, %v8128
  %v8146 = vadd.f32 %v8075, %v8128
  %v8147 = vadd.f32 %v8076, %v8128
  %v8148 = vadd.f32 %v8077, %v8128
  %v8149 = vadd.f32 %v8078, %v8128
  %v8150 = vadd.f32 %v8079, %v8128
  %v8151 = vadd.f32 %v8080, %v8128
  %v8152 = vadd.f32 %v8081, %v8128
  %v8153 = vadd.f32 %v8082, %v8128
  %v8154 = vadd.f32 %v8083, %v8128
  %v8155 = vadd.f32 %v8084, %v8128
  %v8156 = vadd.f32 %v8085, %v8128
  %v8157 = vadd.f32 %v8086, %v8128
  %v8158 = vadd.f32 %v8087, %v8128
  %v8159 = vadd.f32 %v8088, %v8128
  %v8160 = vadd.f32 %v8089, %v8128
  %v8161 = vadd.f32 %v8090, %v8128
  %v8162 = vadd.f32 %v8091, %v8128
  %v8163 = vadd.f32 %v8092, %v8128
  %v8164 = vadd.f32 %v8093, %v8128
  %v8165 = vadd.f32 %v8094, %v8128
  %v8166 = vadd.f32 %v8095, %v8128
  %v8167 = vadd.f32 %v8096, %v8128
  %v8168 = vadd.f32 %v8097, %v8128
  %v8169 = vadd.f32 %v8098, %v8128
  %v8170 = vadd.f32 %v8099, %v8128
  %v8171 = vadd.f32 %v8100, %v8128
  %v8172 = vadd.f32 %v8101, %v8128
  %v8173 = vadd.f32 %v8102, %v8128
  %v8174 = vadd.f32 %v8103, %v8128
  %v8175 = vadd.f32 %v8104, %v8128
  %v8176 = vadd.f32 %v8105, %v8128
  %v8177 = vadd.f32 %v8106, %v8128
  %v8178 = vadd.f32 %v8107, %v8128
  %v8179 = vadd.f32 %v8108, %v8128
  %v8180 = vadd.f32 %v8109, %v8128
  %v8181 = vadd.f32 %v8110, %v8128
  %v8182 = vadd.f32 %v8111, %v8128
  %v8183 = vadd.f32 %v8112, %v8128
  %v8184 = vadd.f32 %v8113, %v8128
  %v8185 = vadd.f32 %v8114, %v8128
  %v8186 = vadd.f32 %v8115, %v8128
  %v8187 = vadd.f32 %v8116, %v8128
  %v8188 = vadd.f32 %v8117, %v8128
  %v8189 = vadd.f32 %v8118, %v8128
  %v8190 = vadd.f32 %v8119, %v8128
  %v8191 = vadd.f32 %v8120, %v8128
  %v8192 = vadd.f32 %v8121, %v8128
  %v8193 = vadd.f32 %v8122, %v8128
  %v8194 = vadd.f32 %v8130, %v199
  %v8195 = vadd.f32 %v8131, %v200
  %v8196 = vadd.f32 %v8132, %v201
  %v8197 = vadd.f32 %v8133, %v202
  %v8198 = vadd.f32 %v8134, %v203
  %v8199 = vadd.f32 %v8135, %v204
  %v8200 = vadd.f32 %v8136, %v205
  %v8201 = vadd.f32 %v8137, %v206
  %v8202 = vadd.f32 %v8138, %v207
  %v8203 = vadd.f32 %v8139, %v208
  %v8204 = vadd.f32 %v8140, %v209
  %v8205 = vadd.f32 %v8141, %v210
  %v8206 = vadd.f32 %v8142, %v211
  %v8207 = vadd.f32 %v8143, %v212
  %v8208 = vadd.f32 %v8144, %v213
  %v8209 = vadd.f32 %v8145, %v214
  %v8210 = vadd.f32 %v8146, %v215
  %v8211 = vadd.f32 %v8147, %v216
  %v8212 = vadd.f32 %v8148, %v217
  %v8213 = vadd.f32 %v8149, %v218
  %v8214 = vadd.f32 %v8150, %v219
  %v8215 = vadd.f32 %v8151, %v220
  %v8216 = vadd.f32 %v8152, %v221
  %v8217 = vadd.f32 %v8153, %v222
  %v8218 = vadd.f32 %v8154, %v223
  %v8219 = vadd.f32 %v8155, %v224
  %v8220 = vadd.f32 %v8156, %v225
  %v8221 = vadd.f32 %v8157, %v226
  %v8222 = vadd.f32 %v8158, %v227
  %v8223 = vadd.f32 %v8159, %v228
  %v8224 = vadd.f32 %v8160, %v229
  %v8225 = vadd.f32 %v8161, %v230
  %v8226 = vadd.f32 %v8162, %v231
  %v8227 = vadd.f32 %v8163, %v232
  %v8228 = vadd.f32 %v8164, %v233
  %v8229 = vadd.f32 %v8165, %v234
  %v8230 = vadd.f32 %v8166, %v235
  %v8231 = vadd.f32 %v8167, %v236
  %v8232 = vadd.f32 %v8168, %v237
  %v8233 = vadd.f32 %v8169, %v238
  %v8234 = vadd.f32 %v8170, %v239
  %v8235 = vadd.f32 %v8171, %v240
  %v8236 = vadd.f32 %v8172, %v241
  %v8237 = vadd.f32 %v8173, %v242
  %v8238 = vadd.f32 %v8174, %v243
  %v8239 = vadd.f32 %v8175, %v244
  %v8240 = vadd.f32 %v8176, %v245
  %v8241 = vadd.f32 %v8177, %v246
  %v8242 = vadd.f32 %v8178, %v247
  %v8243 = vadd.f32 %v8179, %v248
  %v8244 = vadd.f32 %v8180, %v249
  %v8245 = vadd.f32 %v8181, %v250
  %v8246 = vadd.f32 %v8182, %v251
  %v8247 = vadd.f32 %v8183, %v252
  %v8248 = vadd.f32 %v8184, %v253
  %v8249 = vadd.f32 %v8185, %v254
  %v8250 = vadd.f32 %v8186, %v255
  %v8251 = vadd.f32 %v8187, %v256
  %v8252 = vadd.f32 %v8188, %v257
  %v8253 = vadd.f32 %v8189, %v258
  %v8254 = vadd.f32 %v8190, %v259
  %v8255 = vadd.f32 %v8191, %v260
  %v8256 = vadd.f32 %v8192, %v261
  %v8257 = vadd.f32 %v8193, %v262
  %v8258 = vmax.f32 %v8194, 0.0
  %v8259 = vmax.f32 %v8195, 0.0
  %v8260 = vmax.f32 %v8196, 0.0
  %v8261 = vmax.f32 %v8197, 0.0
  %v8262 = vmax.f32 %v8198, 0.0
  %v8263 = vmax.f32 %v8199, 0.0
  %v8264 = vmax.f32 %v8200, 0.0
  %v8265 = vmax.f32 %v8201, 0.0
  %v8266 = vmax.f32 %v8202, 0.0
  %v8267 = vmax.f32 %v8203, 0.0
  %v8268 = vmax.f32 %v8204, 0.0
  %v8269 = vmax.f32 %v8205, 0.0
  %v8270 = vmax.f32 %v8206, 0.0
  %v8271 = vmax.f32 %v8207, 0.0
  %v8272 = vmax.f32 %v8208, 0.0
  %v8273 = vmax.f32 %v8209, 0.0
  %v8274 = vmax.f32 %v8210, 0.0
  %v8275 = vmax.f32 %v8211, 0.0
  %v8276 = vmax.f32 %v8212, 0.0
  %v8277 = vmax.f32 %v8213, 0.0
  %v8278 = vmax.f32 %v8214, 0.0
  %v8279 = vmax.f32 %v8215, 0.0
  %v8280 = vmax.f32 %v8216, 0.0
  %v8281 = vmax.f32 %v8217, 0.0
  %v8282 = vmax.f32 %v8218, 0.0
  %v8283 = vmax.f32 %v8219, 0.0
  %v8284 = vmax.f32 %v8220, 0.0
  %v8285 = vmax.f32 %v8221, 0.0
  %v8286 = vmax.f32 %v8222, 0.0
  %v8287 = vmax.f32 %v8223, 0.0
  %v8288 = vmax.f32 %v8224, 0.0
  %v8289 = vmax.f32 %v8225, 0.0
  %v8290 = vmax.f32 %v8226, 0.0
  %v8291 = vmax.f32 %v8227, 0.0
  %v8292 = vmax.f32 %v8228, 0.0
  %v8293 = vmax.f32 %v8229, 0.0
  %v8294 = vmax.f32 %v8230, 0.0
  %v8295 = vmax.f32 %v8231, 0.0
  %v8296 = vmax.f32 %v8232, 0.0
  %v8297 = vmax.f32 %v8233, 0.0
  %v8298 = vmax.f32 %v8234, 0.0
  %v8299 = vmax.f32 %v8235, 0.0
  %v8300 = vmax.f32 %v8236, 0.0
  %v8301 = vmax.f32 %v8237, 0.0
  %v8302 = vmax.f32 %v8238, 0.0
  %v8303 = vmax.f32 %v8239, 0.0
  %v8304 = vmax.f32 %v8240, 0.0
  %v8305 = vmax.f32 %v8241, 0.0
  %v8306 = vmax.f32 %v8242, 0.0
  %v8307 = vmax.f32 %v8243, 0.0
  %v8308 = vmax.f32 %v8244, 0.0
  %v8309 = vmax.f32 %v8245, 0.0
  %v8310 = vmax.f32 %v8246, 0.0
  %v8311 = vmax.f32 %v8247, 0.0
  %v8312 = vmax.f32 %v8248, 0.0
  %v8313 = vmax.f32 %v8249, 0.0
  %v8314 = vmax.f32 %v8250, 0.0
  %v8315 = vmax.f32 %v8251, 0.0
  %v8316 = vmax.f32 %v8252, 0.0
  %v8317 = vmax.f32 %v8253, 0.0
  %v8318 = vmax.f32 %v8254, 0.0
  %v8319 = vmax.f32 %v8255, 0.0
  %v8320 = vmax.f32 %v8256, 0.0
  %v8321 = vmax.f32 %v8257, 0.0
  %8322 = vst.msk [vmem:[%s7] sm:$0xff] %vm26, %v8258
  %8323 = vst.msk [vmem:[%s7 + $0x8] sm:$0xff] %vm26, %v8259
  %8324 = vst.msk [vmem:[%s7 + $0x10] sm:$0xff] %vm26, %v8260
  %8325 = vst.msk [vmem:[%s7 + $0x18] sm:$0xff] %vm26, %v8261
  %8326 = vst.msk [vmem:[%s7 + $0x20] sm:$0xff] %vm26, %v8262
  %8327 = vst.msk [vmem:[%s7 + $0x28] sm:$0xff] %vm26, %v8263
  %8328 = vst.msk [vmem:[%s7 + $0x30] sm:$0xff] %vm26, %v8264
  %8329 = vst.msk [vmem:[%s7 + $0x38] sm:$0xff] %vm26, %v8265
  %8330 = vst.msk [vmem:[%s7 + $0x40] sm:$0xff] %vm26, %v8266
  %8331 = vst.msk [vmem:[%s7 + $0x48] sm:$0xff] %vm26, %v8267
  %8332 = vst.msk [vmem:[%s7 + $0x50] sm:$0xff] %vm26, %v8268
  %8333 = vst.msk [vmem:[%s7 + $0x58] sm:$0xff] %vm26, %v8269
  %8334 = vst.msk [vmem:[%s7 + $0x60] sm:$0xff] %vm26, %v8270
  %8335 = vst.msk [vmem:[%s7 + $0x68] sm:$0xff] %vm26, %v8271
  %8336 = vst.msk [vmem:[%s7 + $0x70] sm:$0xff] %vm26, %v8272
  %8337 = vst.msk [vmem:[%s7 + $0x78] sm:$0xff] %vm26, %v8273
  %8338 = vst.msk [vmem:[%s7 + $0x80] sm:$0xff] %vm26, %v8274
  %8339 = vst.msk [vmem:[%s7 + $0x88] sm:$0xff] %vm26, %v8275
  %8340 = vst.msk [vmem:[%s7 + $0x90] sm:$0xff] %vm26, %v8276
  %8341 = vst.msk [vmem:[%s7 + $0x98] sm:$0xff] %vm26, %v8277
  %8342 = vst.msk [vmem:[%s7 + $0xa0] sm:$0xff] %vm26, %v8278
  %8343 = vst.msk [vmem:[%s7 + $0xa8] sm:$0xff] %vm26, %v8279
  %8344 = vst.msk [vmem:[%s7 + $0xb0] sm:$0xff] %vm26, %v8280
  %8345 = vst.msk [vmem:[%s7 + $0xb8] sm:$0xff] %vm26, %v8281
  %8346 = vst.msk [vmem:[%s7 + $0xc0] sm:$0xff] %vm26, %v8282
  %8347 = vst.msk [vmem:[%s7 + $0xc8] sm:$0xff] %vm26, %v8283
  %8348 = vst.msk [vmem:[%s7 + $0xd0] sm:$0xff] %vm26, %v8284
  %8349 = vst.msk [vmem:[%s7 + $0xd8] sm:$0xff] %vm26, %v8285
  %8350 = vst.msk [vmem:[%s7 + $0xe0] sm:$0xff] %vm26, %v8286
  %8351 = vst.msk [vmem:[%s7 + $0xe8] sm:$0xff] %vm26, %v8287
  %8352 = vst.msk [vmem:[%s7 + $0xf0] sm:$0xff] %vm26, %v8288
  %8353 = vst.msk [vmem:[%s7 + $0xf8] sm:$0xff] %vm26, %v8289
  %8354 = vst.msk [vmem:[%s7 + $0x100] sm:$0xff] %vm26, %v8290
  %8355 = vst.msk [vmem:[%s7 + $0x108] sm:$0xff] %vm26, %v8291
  %8356 = vst.msk [vmem:[%s7 + $0x110] sm:$0xff] %vm26, %v8292
  %8357 = vst.msk [vmem:[%s7 + $0x118] sm:$0xff] %vm26, %v8293
  %8358 = vst.msk [vmem:[%s7 + $0x120] sm:$0xff] %vm26, %v8294
  %8359 = vst.msk [vmem:[%s7 + $0x128] sm:$0xff] %vm26, %v8295
  %8360 = vst.msk [vmem:[%s7 + $0x130] sm:$0xff] %vm26, %v8296
  %8361 = vst.msk [vmem:[%s7 + $0x138] sm:$0xff] %vm26, %v8297
  %8362 = vst.msk [vmem:[%s7 + $0x140] sm:$0xff] %vm26, %v8298
  %8363 = vst.msk [vmem:[%s7 + $0x148] sm:$0xff] %vm26, %v8299
  %8364 = vst.msk [vmem:[%s7 + $0x150] sm:$0xff] %vm26, %v8300
  %8365 = vst.msk [vmem:[%s7 + $0x158] sm:$0xff] %vm26, %v8301
  %8366 = vst.msk [vmem:[%s7 + $0x160] sm:$0xff] %vm26, %v8302
  %8367 = vst.msk [vmem:[%s7 + $0x168] sm:$0xff] %vm26, %v8303
  %8368 = vst.msk [vmem:[%s7 + $0x170] sm:$0xff] %vm26, %v8304
  %8369 = vst.msk [vmem:[%s7 + $0x178] sm:$0xff] %vm26, %v8305
  %8370 = vst.msk [vmem:[%s7 + $0x180] sm:$0xff] %vm26, %v8306
  %8371 = vst.msk [vmem:[%s7 + $0x188] sm:$0xff] %vm26, %v8307
  %8372 = vst.msk [vmem:[%s7 + $0x190] sm:$0xff] %vm26, %v8308
  %8373 = vst.msk [vmem:[%s7 + $0x198] sm:$0xff] %vm26, %v8309
  %8374 = vst.msk [vmem:[%s7 + $0x1a0] sm:$0xff] %vm26, %v8310
  %8375 = vst.msk [vmem:[%s7 + $0x1a8] sm:$0xff] %vm26, %v8311
  %8376 = vst.msk [vmem:[%s7 + $0x1b0] sm:$0xff] %vm26, %v8312
  %8377 = vst.msk [vmem:[%s7 + $0x1b8] sm:$0xff] %vm26, %v8313
  %8378 = vst.msk [vmem:[%s7 + $0x1c0] sm:$0xff] %vm26, %v8314
  %8379 = vst.msk [vmem:[%s7 + $0x1c8] sm:$0xff] %vm26, %v8315
  %8380 = vst.msk [vmem:[%s7 + $0x1d0] sm:$0xff] %vm26, %v8316
  %8381 = vst.msk [vmem:[%s7 + $0x1d8] sm:$0xff] %vm26, %v8317
  %8382 = vst.msk [vmem:[%s7 + $0x1e0] sm:$0xff] %vm26, %v8318
  %8383 = vst.msk [vmem:[%s7 + $0x1e8] sm:$0xff] %vm26, %v8319
  %8384 = vst.msk [vmem:[%s7 + $0x1f0] sm:$0xff] %vm26, %v8320
  %8385 = vst.msk [vmem:[%s7 + $0x1f8] sm:$0xff] %vm26, %v8321
  // Predicated region
  $region30: #{residual_block_pallas.1} parent=0 // pred_check
    _
  $region31: #{residual_block_pallas.1} parent=0 // pred_check_branch
    %8387 = sbr.rel (0) target = $region33
  $region32: #{residual_block_pallas.1} parent=0 // pred_region
    _
  $region33: #{residual_block_pallas.1} parent=0 // pred_fallthru
    _
  // Predicated region
  $region34: #{residual_block_pallas.1} parent=0 // pred_check
    _
  $region35: #{residual_block_pallas.1} parent=0 // pred_check_branch
    %8389 = sbr.rel (0) target = $region37
  $region36: #{residual_block_pallas.1} parent=0 // pred_region
    _
  $region37: #{residual_block_pallas.1} parent=0 // pred_fallthru
    _

</llo_original>
